<compile_context>
chip_gen: v7x
topology: tpu7x:2x2x1
jax: 0.10.0
libtpu: 0.0.40
codegen_flags: <defaults>
</compile_context>

<pallas_src>
import functools

import numpy as np

import jax
import jax.numpy as jnp
from jax import lax
from jax.experimental import pallas as pl
from jax.experimental.pallas import tpu as pltpu


_BN_EPS = 1e-5
_K1, _S1 = 5, 2     # conv1 kernel / stride
_K2, _S2 = 3, 2     # conv2
_K3, _S3 = 3, 2     # conv3
_KPAD = 128         # conv1 im2col K padded to one full lane tile


def _conv_out(n, k, s):
    return (n - k) // s + 1


# ----------------------------------------------------------------------------
# Fused kernel.
# Row layout of `patches_ref` (built by build_conv_patches):
#   outer blocks : conv2 tap k2   (9 blocks of 9*blk3 rows)
#   sub-blocks   : conv3 tap k3   (9 blocks of blk3 rows, n_valid valid)
#   inner rows   : (conv3 position p3, batch b)   -- b innermost
# ----------------------------------------------------------------------------
def _critic_fused_kernel(
    patches_ref, action_ref,
    w1_ref, s1_ref, t1_ref,
    w2_ref, s2_ref, t2_ref,
    w3_ref, s3_ref, t3_ref,
    w1c_ref, w1a_ref, b1_ref,
    w2f_ref, b2_ref,
    w3f_ref, b3_ref,
    out_ref,
    *, n_b, n_p3, blk3):
    f32, bf16 = jnp.float32, jnp.bfloat16
    n_taps = _K2 * _K2                      # 9 (conv2 and conv3 are both 3x3)
    blk2 = n_taps * blk3                    # rows per conv2-tap block
    c1 = w2_ref.shape[0] // n_taps          # 32  conv1 out channels
    c2 = w3_ref.shape[0] // n_taps          # 64  conv2 out channels
    c3 = w1c_ref.shape[0] // n_p3           # 128 conv3 out channels
    n_valid = n_p3 * n_b                    # valid rows per conv3-tap sub-block

    # ---- conv1 (single MXU call for all towers) + BN1 + ReLU ----------------
    y1 = jnp.dot(patches_ref[...], w1_ref[...], preferred_element_type=f32)
    y1 = jnp.maximum(y1 * s1_ref[...] + t1_ref[...], 0.0).astype(bf16)

    # ---- conv2 (accumulate over its 9 taps) + BN2 + ReLU --------------------
    x2 = jnp.zeros((blk2, w2_ref.shape[1]), f32)
    for k2 in range(n_taps):
        y1b = y1[k2 * blk2:(k2 + 1) * blk2, :]                       # (blk2, 32)
        w2b = w2_ref[pl.ds(k2 * c1, c1), :]                          # (32, 64)
        x2 = x2 + jnp.dot(y1b, w2b, preferred_element_type=f32)
    x2 = jnp.maximum(x2 * s2_ref[...] + t2_ref[...], 0.0)            # (blk2, 64)

    # ---- conv3 (accumulate over its 9 taps) + BN3 + ReLU --------------------
    x3 = jnp.zeros((n_valid, w3_ref.shape[1]), f32)
    for k3 in range(n_taps):
        xb = x2[k3 * blk3: k3 * blk3 + n_valid, :].astype(bf16)      # (n_valid, 64)
        w3b = w3_ref[pl.ds(k3 * c2, c2), :]                          # (64, 128)
        x3 = x3 + jnp.dot(xb, w3b, preferred_element_type=f32)
    x3 = jnp.maximum(x3 * s3_ref[...] + t3_ref[...], 0.0)            # (n_valid, 128)
    # rows of x3: (conv3 position p3, batch b) == NHWC flatten chunks for fc1

    # ---- fc1 (conv features chunked per spatial position, + action) ---------
    h = jnp.dot(action_ref[...], w1a_ref[...], preferred_element_type=f32)
    h = h + b1_ref[...]
    for p in range(n_p3):
        xp = x3[p * n_b:(p + 1) * n_b, :].astype(bf16)               # (B, 128)
        w1b = w1c_ref[pl.ds(p * c3, c3), :]                          # (128, 400)
        h = h + jnp.dot(xp, w1b, preferred_element_type=f32)
    h = jnp.maximum(h, 0.0).astype(bf16)                             # (B, 400)

    # ---- fc2 / fc3 ----------------------------------------------------------
    h2 = jnp.dot(h, w2f_ref[...], preferred_element_type=f32) + b2_ref[...]
    h2 = jnp.maximum(h2, 0.0).astype(bf16)                           # (B, 300)

    q = jnp.dot(h2, w3f_ref[...], preferred_element_type=f32) + b3_ref[...]
    out_ref[...] = q.astype(out_ref.dtype)                           # (B, 1)


# ----------------------------------------------------------------------------
# Glue: "tower im2col" built once at the input boundary.
#   1) conv1 im2col via 25 strided slices (XLA-friendly, no scalar gather)
#   2) one row-gather selecting the conv1 position each tower needs
# ----------------------------------------------------------------------------
def build_conv_patches(state):
    B, H, W, C = state.shape
    H1, W1 = _conv_out(H, _K1, _S1), _conv_out(W, _K1, _S1)
    H2, W2 = _conv_out(H1, _K2, _S2), _conv_out(W1, _K2, _S2)
    H3, W3 = _conv_out(H2, _K3, _S3), _conv_out(W2, _K3, _S3)

    # (1) all conv1 patches; feature order (a, b, c) with channel innermost,
    #     matching conv1_w.reshape(75, 32).
    rows = []
    for a in range(_K1):
        for b in range(_K1):
            rows.append(state[:, a:a + _S1 * (H1 - 1) + 1:_S1,
                              b:b + _S1 * (W1 - 1) + 1:_S1, :])
    patches_all = jnp.stack(rows, axis=3)                 # (B, H1, W1, 25, C)
    kdim = _K1 * _K1 * C                                   # 75
    patches_all = patches_all.reshape(B, H1 * W1, kdim)

    # (2) conv1 positions needed per (conv2 tap k2, conv3 tap k3, position p3)
    pos = []
    for a2 in range(_K2):
        for b2 in range(_K2):
            for a3 in range(_K3):
                for b3 in range(_K3):
                    for i3 in range(H3):
                        for j3 in range(W3):
                            i1 = _S2 * (_S3 * i3 + a3) + a2
                            j1 = _S2 * (_S3 * j3 + b3) + b2
                            pos.append(i1 * W1 + j1)
    pos = jnp.asarray(np.asarray(pos, dtype=np.int32))     # (81 * H3*W3,)

    sel = jnp.take(patches_all, pos, axis=1)               # (B, 81*n_p3, 75)
    sel = jnp.transpose(sel, (1, 0, 2))                    # (81*n_p3, B, 75)

    n_p3 = H3 * W3
    n_valid = n_p3 * B                                     # rows / tower block
    blk3 = max(8, -(-n_valid // 8) * 8)                    # sublane-aligned
    n_blocks = (_K2 * _K2) * (_K3 * _K3)                   # 81

    sel = sel.reshape(n_blocks, n_valid, kdim).astype(jnp.float32)
    sel = jnp.pad(sel, ((0, 0), (0, blk3 - n_valid), (0, _KPAD - kdim)))
    patches = sel.reshape(n_blocks * blk3, _KPAD).astype(jnp.bfloat16)
    return patches, (H3, W3, blk3)


# ----------------------------------------------------------------------------
# Parameters
# ----------------------------------------------------------------------------
def init_critic_params(key, action_dim, h3, w3):
    ks = jax.random.split(key, 13)

    def unif(k, fan_in, shape):
        bound = 1.0 / jnp.sqrt(jnp.float32(fan_in))
        return jax.random.uniform(k, shape, jnp.float32, -bound, bound)

    p = {}
    p["conv1_w"] = unif(ks[0], 3 * 5 * 5, (5, 5, 3, 32))
    p["conv1_b"] = unif(ks[1], 3 * 5 * 5, (32,))
    p["conv2_w"] = unif(ks[2], 32 * 3 * 3, (3, 3, 32, 64))
    p["conv2_b"] = unif(ks[3], 32 * 3 * 3, (64,))
    p["conv3_w"] = unif(ks[4], 64 * 3 * 3, (3, 3, 64, 128))
    p["conv3_b"] = unif(ks[5], 64 * 3 * 3, (128,))
    for name, c in (("bn1", 32), ("bn2", 64), ("bn3", 128)):
        p[f"{name}_g"] = jnp.ones((c,), jnp.float32)
        p[f"{name}_b"] = jnp.zeros((c,), jnp.float32)
        p[f"{name}_m"] = jnp.zeros((c,), jnp.float32)
        p[f"{name}_v"] = jnp.ones((c,), jnp.float32)
    feat = h3 * w3 * 128
    fc1_in = feat + action_dim
    # fc1 weight rows stored directly in NHWC-flatten order (i3, j3, c).
    p["fc1_wc"] = unif(ks[6], fc1_in, (feat, 400))
    p["fc1_wa"] = unif(ks[7], fc1_in, (action_dim, 400))
    p["fc1_b"] = unif(ks[8], fc1_in, (400,))
    p["fc2_w"] = unif(ks[9], 400, (400, 300))
    p["fc2_b"] = unif(ks[10], 400, (300,))
    p["fc3_w"] = unif(ks[11], 300, (300, 1))
    p["fc3_b"] = unif(ks[12], 300, (1,))
    return p


def prepare_inference_params(p):
    """One-time offline prep: fold BN, flatten conv weights to matmul form,
    pad conv1 K to 128 lanes, cast MXU operands to bf16 (epilogues stay f32)."""
    bf16, f32 = jnp.bfloat16, jnp.float32

    def fold(prefix, conv_b):
        s = p[f"{prefix}_g"] / jnp.sqrt(p[f"{prefix}_v"] + _BN_EPS)
        t = conv_b * s + (p[f"{prefix}_b"] - p[f"{prefix}_m"] * s)
        return s.reshape(1, -1).astype(f32), t.reshape(1, -1).astype(f32)

    out = {}
    out["s1"], out["t1"] = fold("bn1", p["conv1_b"])
    out["s2"], out["t2"] = fold("bn2", p["conv2_b"])
    out["s3"], out["t3"] = fold("bn3", p["conv3_b"])
    kdim = _K1 * _K1 * 3
    w1 = p["conv1_w"].reshape(kdim, 32)
    out["w1"] = jnp.pad(w1, ((0, _KPAD - kdim), (0, 0))).astype(bf16)
    out["w2"] = p["conv2_w"].reshape(_K2 * _K2 * 32, 64).astype(bf16)
    out["w3"] = p["conv3_w"].reshape(_K3 * _K3 * 64, 128).astype(bf16)
    out["fc1_wc"] = p["fc1_wc"].astype(bf16)
    out["fc1_wa"] = p["fc1_wa"].astype(bf16)
    out["fc1_b"] = p["fc1_b"].reshape(1, -1).astype(f32)
    out["fc2_w"] = p["fc2_w"].astype(bf16)
    out["fc2_b"] = p["fc2_b"].reshape(1, -1).astype(f32)
    out["fc3_w"] = p["fc3_w"].astype(bf16)
    out["fc3_b"] = p["fc3_b"].reshape(1, -1).astype(f32)
    return out


# ----------------------------------------------------------------------------
# Forward pass (mirrors Critic.forward) — one pallas_call
# ----------------------------------------------------------------------------
def critic_forward(prep, state, action):
    patches, (H3, W3, blk3) = build_conv_patches(state.astype(jnp.float32))
    if action.ndim == 3 and action.shape[1] == 1:   # torch: action.squeeze(1)
        action = action[:, 0, :]
    action = action.astype(jnp.bfloat16)
    B = state.shape[0]
    n_p3 = H3 * W3

    operands = (
        patches, action,
        prep["w1"], prep["s1"], prep["t1"],
        prep["w2"], prep["s2"], prep["t2"],
        prep["w3"], prep["s3"], prep["t3"],
        prep["fc1_wc"], prep["fc1_wa"], prep["fc1_b"],
        prep["fc2_w"], prep["fc2_b"],
        prep["fc3_w"], prep["fc3_b"],
    )
    # All operands are 2-D and passed as whole-array blocks.
    in_specs = [pl.BlockSpec(op.shape, lambda i: (0, 0)) for op in operands]

    return pl.pallas_call(
        functools.partial(_critic_fused_kernel, n_b=B, n_p3=n_p3, blk3=blk3),
        out_shape=jax.ShapeDtypeStruct((B, 1), jnp.float32),
        grid=(1,),
        in_specs=in_specs,
        out_specs=pl.BlockSpec((B, 1), lambda i: (0, 0)),
        compiler_params=pltpu.CompilerParams(
            dimension_semantics=("arbitrary",)),
    )(*operands)


# ----------------------------------------------------------------------------
# Pure-JAX reference (same bf16 operands / f32 accumulation) for verification
# ----------------------------------------------------------------------------
def critic_reference(params, state, action):
    f32, bf16 = jnp.float32, jnp.bfloat16

    def conv_bn_relu(x, w, cb, g, bt, m, v, stride):
        y = lax.conv_general_dilated(
            x.astype(bf16), w.astype(bf16),
            window_strides=(stride, stride), padding="VALID",
            dimension_numbers=("NHWC", "HWIO", "NHWC"),
            preferred_element_type=f32)
        y = y + cb
        s = g / jnp.sqrt(v + _BN_EPS)
        return jnp.maximum(y * s + (bt - m * s), 0.0)

    x = conv_bn_relu(state.astype(f32), params["conv1_w"], params["conv1_b"],
                     params["bn1_g"], params["bn1_b"], params["bn1_m"], params["bn1_v"], _S1)
    x = conv_bn_relu(x, params["conv2_w"], params["conv2_b"],
                     params["bn2_g"], params["bn2_b"], params["bn2_m"], params["bn2_v"], _S2)
    x = conv_bn_relu(x, params["conv3_w"], params["conv3_b"],
                     params["bn3_g"], params["bn3_b"], params["bn3_m"], params["bn3_v"], _S3)
    B = x.shape[0]
    feat = x.reshape(B, -1)                         # NHWC flatten == fc1_wc rows
    if action.ndim == 3 and action.shape[1] == 1:
        action = action[:, 0, :]
    h = (jnp.dot(feat.astype(bf16), params["fc1_wc"].astype(bf16), preferred_element_type=f32)
         + jnp.dot(action.astype(bf16), params["fc1_wa"].astype(bf16), preferred_element_type=f32)
         + params["fc1_b"])
    h = jnp.maximum(h, 0.0)
    h2 = jnp.dot(h.astype(bf16), params["fc2_w"].astype(bf16),
                 preferred_element_type=f32) + params["fc2_b"]
    h2 = jnp.maximum(h2, 0.0)
    return jnp.dot(h2.astype(bf16), params["fc3_w"].astype(bf16),
                   preferred_element_type=f32) + params["fc3_b"]


if __name__ == "__main__":
    # Small shapes consistent with the module (NHWC image with 3 channels).
    B, H, W, action_dim = 2, 30, 40, 4

    H1, W1 = _conv_out(H, _K1, _S1), _conv_out(W, _K1, _S1)
    H2, W2 = _conv_out(H1, _K2, _S2), _conv_out(W1, _K2, _S2)
    H3, W3 = _conv_out(H2, _K3, _S3), _conv_out(W2, _K3, _S3)

    key = jax.random.PRNGKey(0)
    k_param, k_state, k_action = jax.random.split(key, 3)
    params = init_critic_params(k_param, action_dim, H3, W3)
    prep = prepare_inference_params(params)         # offline weight prep

    state = jax.random.normal(k_state, (B, H, W, 3), jnp.float32)
    action = jax.random.normal(k_action, (B, action_dim), jnp.float32)

    out = jax.jit(critic_forward)(prep, state, action)
    out = jax.block_until_ready(out)
    assert out.shape == (B, 1), out.shape

    ref = jax.block_until_ready(critic_reference(params, state, action))
    np.testing.assert_allclose(np.asarray(out), np.asarray(ref),
                               rtol=2e-2, atol=2e-2)
    print("KERNEL_OK")
</pallas_src>

<mosaic_0001>
module attributes {stable_mosaic.version = 11 : i64} {
  func.func @_critic_fused_kernel(%arg0: i32, %arg1: memref<1296x128xbf16, #tpu.memory_space<vmem>>, %arg2: memref<2x4xbf16, #tpu.memory_space<vmem>>, %arg3: memref<128x32xbf16, #tpu.memory_space<vmem>>, %arg4: memref<1x32xf32, #tpu.memory_space<vmem>>, %arg5: memref<1x32xf32, #tpu.memory_space<vmem>>, %arg6: memref<288x64xbf16, #tpu.memory_space<vmem>>, %arg7: memref<1x64xf32, #tpu.memory_space<vmem>>, %arg8: memref<1x64xf32, #tpu.memory_space<vmem>>, %arg9: memref<576x128xbf16, #tpu.memory_space<vmem>>, %arg10: memref<1x128xf32, #tpu.memory_space<vmem>>, %arg11: memref<1x128xf32, #tpu.memory_space<vmem>>, %arg12: memref<768x400xbf16, #tpu.memory_space<vmem>>, %arg13: memref<4x400xbf16, #tpu.memory_space<vmem>>, %arg14: memref<1x400xf32, #tpu.memory_space<vmem>>, %arg15: memref<400x300xbf16, #tpu.memory_space<vmem>>, %arg16: memref<1x300xf32, #tpu.memory_space<vmem>>, %arg17: memref<300x1xbf16, #tpu.memory_space<vmem>>, %arg18: memref<1x1xf32, #tpu.memory_space<vmem>>, %arg19: memref<2x1xf32, #tpu.memory_space<vmem>>) attributes {dimension_semantics = [#tpu.dimension_semantics<arbitrary>], iteration_bounds = array<i64: 1>, scalar_prefetch = 0 : i64, scratch_operands = 0 : i64, tpu.core_type = #tpu.core_type<tc>, window_params = [{pipeline_mode = #tpu.pipeline_mode<synchronous>, transform_indices = @transform_0, window_bounds = array<i64: 1296, 128>}, {pipeline_mode = #tpu.pipeline_mode<synchronous>, transform_indices = @transform_1, window_bounds = array<i64: 2, 4>}, {pipeline_mode = #tpu.pipeline_mode<synchronous>, transform_indices = @transform_2, window_bounds = array<i64: 128, 32>}, {pipeline_mode = #tpu.pipeline_mode<synchronous>, transform_indices = @transform_3, window_bounds = array<i64: 1, 32>}, {pipeline_mode = #tpu.pipeline_mode<synchronous>, transform_indices = @transform_4, window_bounds = array<i64: 1, 32>}, {pipeline_mode = #tpu.pipeline_mode<synchronous>, transform_indices = @transform_5, window_bounds = array<i64: 288, 64>}, {pipeline_mode = #tpu.pipeline_mode<synchronous>, transform_indices = @transform_6, window_bounds = array<i64: 1, 64>}, {pipeline_mode = #tpu.pipeline_mode<synchronous>, transform_indices = @transform_7, window_bounds = array<i64: 1, 64>}, {pipeline_mode = #tpu.pipeline_mode<synchronous>, transform_indices = @transform_8, window_bounds = array<i64: 576, 128>}, {pipeline_mode = #tpu.pipeline_mode<synchronous>, transform_indices = @transform_9, window_bounds = array<i64: 1, 128>}, {pipeline_mode = #tpu.pipeline_mode<synchronous>, transform_indices = @transform_10, window_bounds = array<i64: 1, 128>}, {pipeline_mode = #tpu.pipeline_mode<synchronous>, transform_indices = @transform_11, window_bounds = array<i64: 768, 400>}, {pipeline_mode = #tpu.pipeline_mode<synchronous>, transform_indices = @transform_12, window_bounds = array<i64: 4, 400>}, {pipeline_mode = #tpu.pipeline_mode<synchronous>, transform_indices = @transform_13, window_bounds = array<i64: 1, 400>}, {pipeline_mode = #tpu.pipeline_mode<synchronous>, transform_indices = @transform_14, window_bounds = array<i64: 400, 300>}, {pipeline_mode = #tpu.pipeline_mode<synchronous>, transform_indices = @transform_15, window_bounds = array<i64: 1, 300>}, {pipeline_mode = #tpu.pipeline_mode<synchronous>, transform_indices = @transform_16, window_bounds = array<i64: 300, 1>}, {pipeline_mode = #tpu.pipeline_mode<synchronous>, transform_indices = @transform_17, window_bounds = array<i64: 1, 1>}, {pipeline_mode = #tpu.pipeline_mode<synchronous>, transform_indices = @transform_18, window_bounds = array<i64: 2, 1>}]} {
    %c0 = arith.constant 0 : index
    %c0_0 = arith.constant 0 : index
    %0 = vector.load %arg1[%c0, %c0_0] : memref<1296x128xbf16, #tpu.memory_space<vmem>>, vector<1296x128xbf16>
    %c0_1 = arith.constant 0 : index
    %c0_2 = arith.constant 0 : index
    %1 = vector.load %arg3[%c0_1, %c0_2] : memref<128x32xbf16, #tpu.memory_space<vmem>>, vector<128x32xbf16>
    %cst = arith.constant dense<0.000000e+00> : vector<1296x32xf32>
    %2 = tpu.matmul %0, %1, %cst {dimension_numbers = #tpu.dot_dimension_numbers<[1], [0], [0], [1], [0, 0, 1, 1], [], []>} : vector<1296x128xbf16>, vector<128x32xbf16>, vector<1296x32xf32> -> vector<1296x32xf32>
    %c0_3 = arith.constant 0 : index
    %c0_4 = arith.constant 0 : index
    %3 = vector.load %arg4[%c0_3, %c0_4] : memref<1x32xf32, #tpu.memory_space<vmem>>, vector<1x32xf32>
    %4 = vector.broadcast %3 : vector<1x32xf32> to vector<1296x32xf32>
    %5 = arith.mulf %2, %4 : vector<1296x32xf32>
    %c0_5 = arith.constant 0 : index
    %c0_6 = arith.constant 0 : index
    %6 = vector.load %arg5[%c0_5, %c0_6] : memref<1x32xf32, #tpu.memory_space<vmem>>, vector<1x32xf32>
    %7 = vector.broadcast %6 : vector<1x32xf32> to vector<1296x32xf32>
    %8 = arith.addf %5, %7 : vector<1296x32xf32>
    %cst_7 = arith.constant 0.000000e+00 : f32
    %9 = vector.broadcast %cst_7 : f32 to vector<1296x32xf32>
    %10 = arith.maximumf %8, %9 : vector<1296x32xf32>
    %11 = arith.truncf %10 : vector<1296x32xf32> to vector<1296x32xbf16>
    %cst_8 = arith.constant 0.000000e+00 : f32
    %12 = vector.broadcast %cst_8 : f32 to vector<144x64xf32>
    %13 = vector.extract_strided_slice %11 {offsets = [0, 0], sizes = [144, 32], strides = [1, 1]} : vector<1296x32xbf16> to vector<144x32xbf16>
    %c0_9 = arith.constant 0 : index
    %c0_10 = arith.constant 0 : index
    %14 = vector.load %arg6[%c0_9, %c0_10] : memref<288x64xbf16, #tpu.memory_space<vmem>>, vector<32x64xbf16>
    %cst_11 = arith.constant dense<0.000000e+00> : vector<144x64xf32>
    %15 = tpu.matmul %13, %14, %cst_11 {dimension_numbers = #tpu.dot_dimension_numbers<[1], [0], [0], [1], [0, 0, 1, 1], [], []>} : vector<144x32xbf16>, vector<32x64xbf16>, vector<144x64xf32> -> vector<144x64xf32>
    %16 = arith.addf %12, %15 : vector<144x64xf32>
    %17 = vector.extract_strided_slice %11 {offsets = [144, 0], sizes = [144, 32], strides = [1, 1]} : vector<1296x32xbf16> to vector<144x32xbf16>
    %c32 = arith.constant 32 : index
    %c0_12 = arith.constant 0 : index
    %18 = vector.load %arg6[%c32, %c0_12] : memref<288x64xbf16, #tpu.memory_space<vmem>>, vector<32x64xbf16>
    %cst_13 = arith.constant dense<0.000000e+00> : vector<144x64xf32>
    %19 = tpu.matmul %17, %18, %cst_13 {dimension_numbers = #tpu.dot_dimension_numbers<[1], [0], [0], [1], [0, 0, 1, 1], [], []>} : vector<144x32xbf16>, vector<32x64xbf16>, vector<144x64xf32> -> vector<144x64xf32>
    %20 = arith.addf %16, %19 : vector<144x64xf32>
    %21 = vector.extract_strided_slice %11 {offsets = [288, 0], sizes = [144, 32], strides = [1, 1]} : vector<1296x32xbf16> to vector<144x32xbf16>
    %c64 = arith.constant 64 : index
    %c0_14 = arith.constant 0 : index
    %22 = vector.load %arg6[%c64, %c0_14] : memref<288x64xbf16, #tpu.memory_space<vmem>>, vector<32x64xbf16>
    %cst_15 = arith.constant dense<0.000000e+00> : vector<144x64xf32>
    %23 = tpu.matmul %21, %22, %cst_15 {dimension_numbers = #tpu.dot_dimension_numbers<[1], [0], [0], [1], [0, 0, 1, 1], [], []>} : vector<144x32xbf16>, vector<32x64xbf16>, vector<144x64xf32> -> vector<144x64xf32>
    %24 = arith.addf %20, %23 : vector<144x64xf32>
    %25 = vector.extract_strided_slice %11 {offsets = [432, 0], sizes = [144, 32], strides = [1, 1]} : vector<1296x32xbf16> to vector<144x32xbf16>
    %c96 = arith.constant 96 : index
    %c0_16 = arith.constant 0 : index
    %26 = vector.load %arg6[%c96, %c0_16] : memref<288x64xbf16, #tpu.memory_space<vmem>>, vector<32x64xbf16>
    %cst_17 = arith.constant dense<0.000000e+00> : vector<144x64xf32>
    %27 = tpu.matmul %25, %26, %cst_17 {dimension_numbers = #tpu.dot_dimension_numbers<[1], [0], [0], [1], [0, 0, 1, 1], [], []>} : vector<144x32xbf16>, vector<32x64xbf16>, vector<144x64xf32> -> vector<144x64xf32>
    %28 = arith.addf %24, %27 : vector<144x64xf32>
    %29 = vector.extract_strided_slice %11 {offsets = [576, 0], sizes = [144, 32], strides = [1, 1]} : vector<1296x32xbf16> to vector<144x32xbf16>
    %c128 = arith.constant 128 : index
    %c0_18 = arith.constant 0 : index
    %30 = vector.load %arg6[%c128, %c0_18] : memref<288x64xbf16, #tpu.memory_space<vmem>>, vector<32x64xbf16>
    %cst_19 = arith.constant dense<0.000000e+00> : vector<144x64xf32>
    %31 = tpu.matmul %29, %30, %cst_19 {dimension_numbers = #tpu.dot_dimension_numbers<[1], [0], [0], [1], [0, 0, 1, 1], [], []>} : vector<144x32xbf16>, vector<32x64xbf16>, vector<144x64xf32> -> vector<144x64xf32>
    %32 = arith.addf %28, %31 : vector<144x64xf32>
    %33 = vector.extract_strided_slice %11 {offsets = [720, 0], sizes = [144, 32], strides = [1, 1]} : vector<1296x32xbf16> to vector<144x32xbf16>
    %c160 = arith.constant 160 : index
    %c0_20 = arith.constant 0 : index
    %34 = vector.load %arg6[%c160, %c0_20] : memref<288x64xbf16, #tpu.memory_space<vmem>>, vector<32x64xbf16>
    %cst_21 = arith.constant dense<0.000000e+00> : vector<144x64xf32>
    %35 = tpu.matmul %33, %34, %cst_21 {dimension_numbers = #tpu.dot_dimension_numbers<[1], [0], [0], [1], [0, 0, 1, 1], [], []>} : vector<144x32xbf16>, vector<32x64xbf16>, vector<144x64xf32> -> vector<144x64xf32>
    %36 = arith.addf %32, %35 : vector<144x64xf32>
    %37 = vector.extract_strided_slice %11 {offsets = [864, 0], sizes = [144, 32], strides = [1, 1]} : vector<1296x32xbf16> to vector<144x32xbf16>
    %c192 = arith.constant 192 : index
    %c0_22 = arith.constant 0 : index
    %38 = vector.load %arg6[%c192, %c0_22] : memref<288x64xbf16, #tpu.memory_space<vmem>>, vector<32x64xbf16>
    %cst_23 = arith.constant dense<0.000000e+00> : vector<144x64xf32>
    %39 = tpu.matmul %37, %38, %cst_23 {dimension_numbers = #tpu.dot_dimension_numbers<[1], [0], [0], [1], [0, 0, 1, 1], [], []>} : vector<144x32xbf16>, vector<32x64xbf16>, vector<144x64xf32> -> vector<144x64xf32>
    %40 = arith.addf %36, %39 : vector<144x64xf32>
    %41 = vector.extract_strided_slice %11 {offsets = [1008, 0], sizes = [144, 32], strides = [1, 1]} : vector<1296x32xbf16> to vector<144x32xbf16>
    %c224 = arith.constant 224 : index
    %c0_24 = arith.constant 0 : index
    %42 = vector.load %arg6[%c224, %c0_24] : memref<288x64xbf16, #tpu.memory_space<vmem>>, vector<32x64xbf16>
    %cst_25 = arith.constant dense<0.000000e+00> : vector<144x64xf32>
    %43 = tpu.matmul %41, %42, %cst_25 {dimension_numbers = #tpu.dot_dimension_numbers<[1], [0], [0], [1], [0, 0, 1, 1], [], []>} : vector<144x32xbf16>, vector<32x64xbf16>, vector<144x64xf32> -> vector<144x64xf32>
    %44 = arith.addf %40, %43 : vector<144x64xf32>
    %45 = vector.extract_strided_slice %11 {offsets = [1152, 0], sizes = [144, 32], strides = [1, 1]} : vector<1296x32xbf16> to vector<144x32xbf16>
    %c256 = arith.constant 256 : index
    %c0_26 = arith.constant 0 : index
    %46 = vector.load %arg6[%c256, %c0_26] : memref<288x64xbf16, #tpu.memory_space<vmem>>, vector<32x64xbf16>
    %cst_27 = arith.constant dense<0.000000e+00> : vector<144x64xf32>
    %47 = tpu.matmul %45, %46, %cst_27 {dimension_numbers = #tpu.dot_dimension_numbers<[1], [0], [0], [1], [0, 0, 1, 1], [], []>} : vector<144x32xbf16>, vector<32x64xbf16>, vector<144x64xf32> -> vector<144x64xf32>
    %48 = arith.addf %44, %47 : vector<144x64xf32>
    %c0_28 = arith.constant 0 : index
    %c0_29 = arith.constant 0 : index
    %49 = vector.load %arg7[%c0_28, %c0_29] : memref<1x64xf32, #tpu.memory_space<vmem>>, vector<1x64xf32>
    %50 = vector.broadcast %49 : vector<1x64xf32> to vector<144x64xf32>
    %51 = arith.mulf %48, %50 : vector<144x64xf32>
    %c0_30 = arith.constant 0 : index
    %c0_31 = arith.constant 0 : index
    %52 = vector.load %arg8[%c0_30, %c0_31] : memref<1x64xf32, #tpu.memory_space<vmem>>, vector<1x64xf32>
    %53 = vector.broadcast %52 : vector<1x64xf32> to vector<144x64xf32>
    %54 = arith.addf %51, %53 : vector<144x64xf32>
    %cst_32 = arith.constant 0.000000e+00 : f32
    %55 = vector.broadcast %cst_32 : f32 to vector<144x64xf32>
    %56 = arith.maximumf %54, %55 : vector<144x64xf32>
    %cst_33 = arith.constant 0.000000e+00 : f32
    %57 = vector.broadcast %cst_33 : f32 to vector<12x128xf32>
    %58 = vector.extract_strided_slice %56 {offsets = [0, 0], sizes = [12, 64], strides = [1, 1]} : vector<144x64xf32> to vector<12x64xf32>
    %59 = arith.truncf %58 : vector<12x64xf32> to vector<12x64xbf16>
    %c0_34 = arith.constant 0 : index
    %c0_35 = arith.constant 0 : index
    %60 = vector.load %arg9[%c0_34, %c0_35] : memref<576x128xbf16, #tpu.memory_space<vmem>>, vector<64x128xbf16>
    %cst_36 = arith.constant dense<0.000000e+00> : vector<12x128xf32>
    %61 = tpu.matmul %59, %60, %cst_36 {dimension_numbers = #tpu.dot_dimension_numbers<[1], [0], [0], [1], [0, 0, 1, 1], [], []>} : vector<12x64xbf16>, vector<64x128xbf16>, vector<12x128xf32> -> vector<12x128xf32>
    %62 = arith.addf %57, %61 : vector<12x128xf32>
    %63 = vector.extract_strided_slice %56 {offsets = [16, 0], sizes = [12, 64], strides = [1, 1]} : vector<144x64xf32> to vector<12x64xf32>
    %64 = arith.truncf %63 : vector<12x64xf32> to vector<12x64xbf16>
    %c64_37 = arith.constant 64 : index
    %c0_38 = arith.constant 0 : index
    %65 = vector.load %arg9[%c64_37, %c0_38] : memref<576x128xbf16, #tpu.memory_space<vmem>>, vector<64x128xbf16>
    %cst_39 = arith.constant dense<0.000000e+00> : vector<12x128xf32>
    %66 = tpu.matmul %64, %65, %cst_39 {dimension_numbers = #tpu.dot_dimension_numbers<[1], [0], [0], [1], [0, 0, 1, 1], [], []>} : vector<12x64xbf16>, vector<64x128xbf16>, vector<12x128xf32> -> vector<12x128xf32>
    %67 = arith.addf %62, %66 : vector<12x128xf32>
    %68 = vector.extract_strided_slice %56 {offsets = [32, 0], sizes = [12, 64], strides = [1, 1]} : vector<144x64xf32> to vector<12x64xf32>
    %69 = arith.truncf %68 : vector<12x64xf32> to vector<12x64xbf16>
    %c128_40 = arith.constant 128 : index
    %c0_41 = arith.constant 0 : index
    %70 = vector.load %arg9[%c128_40, %c0_41] : memref<576x128xbf16, #tpu.memory_space<vmem>>, vector<64x128xbf16>
    %cst_42 = arith.constant dense<0.000000e+00> : vector<12x128xf32>
    %71 = tpu.matmul %69, %70, %cst_42 {dimension_numbers = #tpu.dot_dimension_numbers<[1], [0], [0], [1], [0, 0, 1, 1], [], []>} : vector<12x64xbf16>, vector<64x128xbf16>, vector<12x128xf32> -> vector<12x128xf32>
    %72 = arith.addf %67, %71 : vector<12x128xf32>
    %73 = vector.extract_strided_slice %56 {offsets = [48, 0], sizes = [12, 64], strides = [1, 1]} : vector<144x64xf32> to vector<12x64xf32>
    %74 = arith.truncf %73 : vector<12x64xf32> to vector<12x64xbf16>
    %c192_43 = arith.constant 192 : index
    %c0_44 = arith.constant 0 : index
    %75 = vector.load %arg9[%c192_43, %c0_44] : memref<576x128xbf16, #tpu.memory_space<vmem>>, vector<64x128xbf16>
    %cst_45 = arith.constant dense<0.000000e+00> : vector<12x128xf32>
    %76 = tpu.matmul %74, %75, %cst_45 {dimension_numbers = #tpu.dot_dimension_numbers<[1], [0], [0], [1], [0, 0, 1, 1], [], []>} : vector<12x64xbf16>, vector<64x128xbf16>, vector<12x128xf32> -> vector<12x128xf32>
    %77 = arith.addf %72, %76 : vector<12x128xf32>
    %78 = vector.extract_strided_slice %56 {offsets = [64, 0], sizes = [12, 64], strides = [1, 1]} : vector<144x64xf32> to vector<12x64xf32>
    %79 = arith.truncf %78 : vector<12x64xf32> to vector<12x64xbf16>
    %c256_46 = arith.constant 256 : index
    %c0_47 = arith.constant 0 : index
    %80 = vector.load %arg9[%c256_46, %c0_47] : memref<576x128xbf16, #tpu.memory_space<vmem>>, vector<64x128xbf16>
    %cst_48 = arith.constant dense<0.000000e+00> : vector<12x128xf32>
    %81 = tpu.matmul %79, %80, %cst_48 {dimension_numbers = #tpu.dot_dimension_numbers<[1], [0], [0], [1], [0, 0, 1, 1], [], []>} : vector<12x64xbf16>, vector<64x128xbf16>, vector<12x128xf32> -> vector<12x128xf32>
    %82 = arith.addf %77, %81 : vector<12x128xf32>
    %83 = vector.extract_strided_slice %56 {offsets = [80, 0], sizes = [12, 64], strides = [1, 1]} : vector<144x64xf32> to vector<12x64xf32>
    %84 = arith.truncf %83 : vector<12x64xf32> to vector<12x64xbf16>
    %c320 = arith.constant 320 : index
    %c0_49 = arith.constant 0 : index
    %85 = vector.load %arg9[%c320, %c0_49] : memref<576x128xbf16, #tpu.memory_space<vmem>>, vector<64x128xbf16>
    %cst_50 = arith.constant dense<0.000000e+00> : vector<12x128xf32>
    %86 = tpu.matmul %84, %85, %cst_50 {dimension_numbers = #tpu.dot_dimension_numbers<[1], [0], [0], [1], [0, 0, 1, 1], [], []>} : vector<12x64xbf16>, vector<64x128xbf16>, vector<12x128xf32> -> vector<12x128xf32>
    %87 = arith.addf %82, %86 : vector<12x128xf32>
    %88 = vector.extract_strided_slice %56 {offsets = [96, 0], sizes = [12, 64], strides = [1, 1]} : vector<144x64xf32> to vector<12x64xf32>
    %89 = arith.truncf %88 : vector<12x64xf32> to vector<12x64xbf16>
    %c384 = arith.constant 384 : index
    %c0_51 = arith.constant 0 : index
    %90 = vector.load %arg9[%c384, %c0_51] : memref<576x128xbf16, #tpu.memory_space<vmem>>, vector<64x128xbf16>
    %cst_52 = arith.constant dense<0.000000e+00> : vector<12x128xf32>
    %91 = tpu.matmul %89, %90, %cst_52 {dimension_numbers = #tpu.dot_dimension_numbers<[1], [0], [0], [1], [0, 0, 1, 1], [], []>} : vector<12x64xbf16>, vector<64x128xbf16>, vector<12x128xf32> -> vector<12x128xf32>
    %92 = arith.addf %87, %91 : vector<12x128xf32>
    %93 = vector.extract_strided_slice %56 {offsets = [112, 0], sizes = [12, 64], strides = [1, 1]} : vector<144x64xf32> to vector<12x64xf32>
    %94 = arith.truncf %93 : vector<12x64xf32> to vector<12x64xbf16>
    %c448 = arith.constant 448 : index
    %c0_53 = arith.constant 0 : index
    %95 = vector.load %arg9[%c448, %c0_53] : memref<576x128xbf16, #tpu.memory_space<vmem>>, vector<64x128xbf16>
    %cst_54 = arith.constant dense<0.000000e+00> : vector<12x128xf32>
    %96 = tpu.matmul %94, %95, %cst_54 {dimension_numbers = #tpu.dot_dimension_numbers<[1], [0], [0], [1], [0, 0, 1, 1], [], []>} : vector<12x64xbf16>, vector<64x128xbf16>, vector<12x128xf32> -> vector<12x128xf32>
    %97 = arith.addf %92, %96 : vector<12x128xf32>
    %98 = vector.extract_strided_slice %56 {offsets = [128, 0], sizes = [12, 64], strides = [1, 1]} : vector<144x64xf32> to vector<12x64xf32>
    %99 = arith.truncf %98 : vector<12x64xf32> to vector<12x64xbf16>
    %c512 = arith.constant 512 : index
    %c0_55 = arith.constant 0 : index
    %100 = vector.load %arg9[%c512, %c0_55] : memref<576x128xbf16, #tpu.memory_space<vmem>>, vector<64x128xbf16>
    %cst_56 = arith.constant dense<0.000000e+00> : vector<12x128xf32>
    %101 = tpu.matmul %99, %100, %cst_56 {dimension_numbers = #tpu.dot_dimension_numbers<[1], [0], [0], [1], [0, 0, 1, 1], [], []>} : vector<12x64xbf16>, vector<64x128xbf16>, vector<12x128xf32> -> vector<12x128xf32>
    %102 = arith.addf %97, %101 : vector<12x128xf32>
    %c0_57 = arith.constant 0 : index
    %c0_58 = arith.constant 0 : index
    %103 = vector.load %arg10[%c0_57, %c0_58] : memref<1x128xf32, #tpu.memory_space<vmem>>, vector<1x128xf32>
    %104 = vector.broadcast %103 : vector<1x128xf32> to vector<12x128xf32>
    %105 = arith.mulf %102, %104 : vector<12x128xf32>
    %c0_59 = arith.constant 0 : index
    %c0_60 = arith.constant 0 : index
    %106 = vector.load %arg11[%c0_59, %c0_60] : memref<1x128xf32, #tpu.memory_space<vmem>>, vector<1x128xf32>
    %107 = vector.broadcast %106 : vector<1x128xf32> to vector<12x128xf32>
    %108 = arith.addf %105, %107 : vector<12x128xf32>
    %cst_61 = arith.constant 0.000000e+00 : f32
    %109 = vector.broadcast %cst_61 : f32 to vector<12x128xf32>
    %110 = arith.maximumf %108, %109 : vector<12x128xf32>
    %c0_62 = arith.constant 0 : index
    %c0_63 = arith.constant 0 : index
    %111 = vector.load %arg2[%c0_62, %c0_63] : memref<2x4xbf16, #tpu.memory_space<vmem>>, vector<2x4xbf16>
    %c0_64 = arith.constant 0 : index
    %c0_65 = arith.constant 0 : index
    %112 = vector.load %arg13[%c0_64, %c0_65] : memref<4x400xbf16, #tpu.memory_space<vmem>>, vector<4x400xbf16>
    %cst_66 = arith.constant dense<0.000000e+00> : vector<2x400xf32>
    %113 = tpu.matmul %111, %112, %cst_66 {dimension_numbers = #tpu.dot_dimension_numbers<[1], [0], [0], [1], [0, 0, 1, 1], [], []>} : vector<2x4xbf16>, vector<4x400xbf16>, vector<2x400xf32> -> vector<2x400xf32>
    %c0_67 = arith.constant 0 : index
    %c0_68 = arith.constant 0 : index
    %114 = vector.load %arg14[%c0_67, %c0_68] : memref<1x400xf32, #tpu.memory_space<vmem>>, vector<1x400xf32>
    %115 = vector.broadcast %114 : vector<1x400xf32> to vector<2x400xf32>
    %116 = arith.addf %113, %115 : vector<2x400xf32>
    %117 = vector.extract_strided_slice %110 {offsets = [0, 0], sizes = [2, 128], strides = [1, 1]} : vector<12x128xf32> to vector<2x128xf32>
    %118 = arith.truncf %117 : vector<2x128xf32> to vector<2x128xbf16>
    %c0_69 = arith.constant 0 : index
    %c0_70 = arith.constant 0 : index
    %119 = vector.load %arg12[%c0_69, %c0_70] : memref<768x400xbf16, #tpu.memory_space<vmem>>, vector<128x400xbf16>
    %cst_71 = arith.constant dense<0.000000e+00> : vector<2x400xf32>
    %120 = tpu.matmul %118, %119, %cst_71 {dimension_numbers = #tpu.dot_dimension_numbers<[1], [0], [0], [1], [0, 0, 1, 1], [], []>} : vector<2x128xbf16>, vector<128x400xbf16>, vector<2x400xf32> -> vector<2x400xf32>
    %121 = arith.addf %116, %120 : vector<2x400xf32>
    %122 = vector.extract_strided_slice %110 {offsets = [2, 0], sizes = [2, 128], strides = [1, 1]} : vector<12x128xf32> to vector<2x128xf32>
    %123 = arith.truncf %122 : vector<2x128xf32> to vector<2x128xbf16>
    %c128_72 = arith.constant 128 : index
    %c0_73 = arith.constant 0 : index
    %124 = vector.load %arg12[%c128_72, %c0_73] : memref<768x400xbf16, #tpu.memory_space<vmem>>, vector<128x400xbf16>
    %cst_74 = arith.constant dense<0.000000e+00> : vector<2x400xf32>
    %125 = tpu.matmul %123, %124, %cst_74 {dimension_numbers = #tpu.dot_dimension_numbers<[1], [0], [0], [1], [0, 0, 1, 1], [], []>} : vector<2x128xbf16>, vector<128x400xbf16>, vector<2x400xf32> -> vector<2x400xf32>
    %126 = arith.addf %121, %125 : vector<2x400xf32>
    %127 = vector.extract_strided_slice %110 {offsets = [4, 0], sizes = [2, 128], strides = [1, 1]} : vector<12x128xf32> to vector<2x128xf32>
    %128 = arith.truncf %127 : vector<2x128xf32> to vector<2x128xbf16>
    %c256_75 = arith.constant 256 : index
    %c0_76 = arith.constant 0 : index
    %129 = vector.load %arg12[%c256_75, %c0_76] : memref<768x400xbf16, #tpu.memory_space<vmem>>, vector<128x400xbf16>
    %cst_77 = arith.constant dense<0.000000e+00> : vector<2x400xf32>
    %130 = tpu.matmul %128, %129, %cst_77 {dimension_numbers = #tpu.dot_dimension_numbers<[1], [0], [0], [1], [0, 0, 1, 1], [], []>} : vector<2x128xbf16>, vector<128x400xbf16>, vector<2x400xf32> -> vector<2x400xf32>
    %131 = arith.addf %126, %130 : vector<2x400xf32>
    %132 = vector.extract_strided_slice %110 {offsets = [6, 0], sizes = [2, 128], strides = [1, 1]} : vector<12x128xf32> to vector<2x128xf32>
    %133 = arith.truncf %132 : vector<2x128xf32> to vector<2x128xbf16>
    %c384_78 = arith.constant 384 : index
    %c0_79 = arith.constant 0 : index
    %134 = vector.load %arg12[%c384_78, %c0_79] : memref<768x400xbf16, #tpu.memory_space<vmem>>, vector<128x400xbf16>
    %cst_80 = arith.constant dense<0.000000e+00> : vector<2x400xf32>
    %135 = tpu.matmul %133, %134, %cst_80 {dimension_numbers = #tpu.dot_dimension_numbers<[1], [0], [0], [1], [0, 0, 1, 1], [], []>} : vector<2x128xbf16>, vector<128x400xbf16>, vector<2x400xf32> -> vector<2x400xf32>
    %136 = arith.addf %131, %135 : vector<2x400xf32>
    %137 = vector.extract_strided_slice %110 {offsets = [8, 0], sizes = [2, 128], strides = [1, 1]} : vector<12x128xf32> to vector<2x128xf32>
    %138 = arith.truncf %137 : vector<2x128xf32> to vector<2x128xbf16>
    %c512_81 = arith.constant 512 : index
    %c0_82 = arith.constant 0 : index
    %139 = vector.load %arg12[%c512_81, %c0_82] : memref<768x400xbf16, #tpu.memory_space<vmem>>, vector<128x400xbf16>
    %cst_83 = arith.constant dense<0.000000e+00> : vector<2x400xf32>
    %140 = tpu.matmul %138, %139, %cst_83 {dimension_numbers = #tpu.dot_dimension_numbers<[1], [0], [0], [1], [0, 0, 1, 1], [], []>} : vector<2x128xbf16>, vector<128x400xbf16>, vector<2x400xf32> -> vector<2x400xf32>
    %141 = arith.addf %136, %140 : vector<2x400xf32>
    %142 = vector.extract_strided_slice %110 {offsets = [10, 0], sizes = [2, 128], strides = [1, 1]} : vector<12x128xf32> to vector<2x128xf32>
    %143 = arith.truncf %142 : vector<2x128xf32> to vector<2x128xbf16>
    %c640 = arith.constant 640 : index
    %c0_84 = arith.constant 0 : index
    %144 = vector.load %arg12[%c640, %c0_84] : memref<768x400xbf16, #tpu.memory_space<vmem>>, vector<128x400xbf16>
    %cst_85 = arith.constant dense<0.000000e+00> : vector<2x400xf32>
    %145 = tpu.matmul %143, %144, %cst_85 {dimension_numbers = #tpu.dot_dimension_numbers<[1], [0], [0], [1], [0, 0, 1, 1], [], []>} : vector<2x128xbf16>, vector<128x400xbf16>, vector<2x400xf32> -> vector<2x400xf32>
    %146 = arith.addf %141, %145 : vector<2x400xf32>
    %cst_86 = arith.constant 0.000000e+00 : f32
    %147 = vector.broadcast %cst_86 : f32 to vector<2x400xf32>
    %148 = arith.maximumf %146, %147 : vector<2x400xf32>
    %149 = arith.truncf %148 : vector<2x400xf32> to vector<2x400xbf16>
    %c0_87 = arith.constant 0 : index
    %c0_88 = arith.constant 0 : index
    %150 = vector.load %arg15[%c0_87, %c0_88] : memref<400x300xbf16, #tpu.memory_space<vmem>>, vector<400x300xbf16>
    %cst_89 = arith.constant dense<0.000000e+00> : vector<2x300xf32>
    %151 = tpu.matmul %149, %150, %cst_89 {dimension_numbers = #tpu.dot_dimension_numbers<[1], [0], [0], [1], [0, 0, 1, 1], [], []>} : vector<2x400xbf16>, vector<400x300xbf16>, vector<2x300xf32> -> vector<2x300xf32>
    %c0_90 = arith.constant 0 : index
    %c0_91 = arith.constant 0 : index
    %152 = vector.load %arg16[%c0_90, %c0_91] : memref<1x300xf32, #tpu.memory_space<vmem>>, vector<1x300xf32>
    %153 = vector.broadcast %152 : vector<1x300xf32> to vector<2x300xf32>
    %154 = arith.addf %151, %153 : vector<2x300xf32>
    %cst_92 = arith.constant 0.000000e+00 : f32
    %155 = vector.broadcast %cst_92 : f32 to vector<2x300xf32>
    %156 = arith.maximumf %154, %155 : vector<2x300xf32>
    %157 = arith.truncf %156 : vector<2x300xf32> to vector<2x300xbf16>
    %c0_93 = arith.constant 0 : index
    %c0_94 = arith.constant 0 : index
    %158 = vector.load %arg17[%c0_93, %c0_94] : memref<300x1xbf16, #tpu.memory_space<vmem>>, vector<300x1xbf16>
    %cst_95 = arith.constant dense<0.000000e+00> : vector<2x1xf32>
    %159 = tpu.matmul %157, %158, %cst_95 {dimension_numbers = #tpu.dot_dimension_numbers<[1], [0], [0], [1], [0, 0, 1, 1], [], []>} : vector<2x300xbf16>, vector<300x1xbf16>, vector<2x1xf32> -> vector<2x1xf32>
    %c0_96 = arith.constant 0 : index
    %c0_97 = arith.constant 0 : index
    %160 = vector.load %arg18[%c0_96, %c0_97] : memref<1x1xf32, #tpu.memory_space<vmem>>, vector<1x1xf32>
    %161 = vector.broadcast %160 : vector<1x1xf32> to vector<2x1xf32>
    %162 = arith.addf %159, %161 : vector<2x1xf32>
    %c0_98 = arith.constant 0 : index
    %c0_99 = arith.constant 0 : index
    %163 = vector.load %arg19[%c0_98, %c0_99] : memref<2x1xf32, #tpu.memory_space<vmem>>, vector<2x1xf32>
    tpu.vector_store %arg19[%c0_98, %c0_99], %162 {strides = array<i32>} : memref<2x1xf32, #tpu.memory_space<vmem>>, vector<2x1xf32>,
    return
  }
  func.func @transform_0(%arg0: i32) -> (i32, i32) {
    %c0_i32 = arith.constant 0 : i32
    %c0_i32_0 = arith.constant 0 : i32
    %c0_i32_1 = arith.constant 0 : i32
    return %c0_i32, %c0_i32_0 : i32, i32
  }
  func.func @transform_1(%arg0: i32) -> (i32, i32) {
    %c0_i32 = arith.constant 0 : i32
    %c0_i32_0 = arith.constant 0 : i32
    %c0_i32_1 = arith.constant 0 : i32
    return %c0_i32, %c0_i32_0 : i32, i32
  }
  func.func @transform_2(%arg0: i32) -> (i32, i32) {
    %c0_i32 = arith.constant 0 : i32
    %c0_i32_0 = arith.constant 0 : i32
    %c0_i32_1 = arith.constant 0 : i32
    return %c0_i32, %c0_i32_0 : i32, i32
  }
  func.func @transform_3(%arg0: i32) -> (i32, i32) {
    %c0_i32 = arith.constant 0 : i32
    %c0_i32_0 = arith.constant 0 : i32
    %c0_i32_1 = arith.constant 0 : i32
    return %c0_i32, %c0_i32_0 : i32, i32
  }
  func.func @transform_4(%arg0: i32) -> (i32, i32) {
    %c0_i32 = arith.constant 0 : i32
    %c0_i32_0 = arith.constant 0 : i32
    %c0_i32_1 = arith.constant 0 : i32
    return %c0_i32, %c0_i32_0 : i32, i32
  }
  func.func @transform_5(%arg0: i32) -> (i32, i32) {
    %c0_i32 = arith.constant 0 : i32
    %c0_i32_0 = arith.constant 0 : i32
    %c0_i32_1 = arith.constant 0 : i32
    return %c0_i32, %c0_i32_0 : i32, i32
  }
  func.func @transform_6(%arg0: i32) -> (i32, i32) {
    %c0_i32 = arith.constant 0 : i32
    %c0_i32_0 = arith.constant 0 : i32
    %c0_i32_1 = arith.constant 0 : i32
    return %c0_i32, %c0_i32_0 : i32, i32
  }
  func.func @transform_7(%arg0: i32) -> (i32, i32) {
    %c0_i32 = arith.constant 0 : i32
    %c0_i32_0 = arith.constant 0 : i32
    %c0_i32_1 = arith.constant 0 : i32
    return %c0_i32, %c0_i32_0 : i32, i32
  }
  func.func @transform_8(%arg0: i32) -> (i32, i32) {
    %c0_i32 = arith.constant 0 : i32
    %c0_i32_0 = arith.constant 0 : i32
    %c0_i32_1 = arith.constant 0 : i32
    return %c0_i32, %c0_i32_0 : i32, i32
  }
  func.func @transform_9(%arg0: i32) -> (i32, i32) {
    %c0_i32 = arith.constant 0 : i32
    %c0_i32_0 = arith.constant 0 : i32
    %c0_i32_1 = arith.constant 0 : i32
    return %c0_i32, %c0_i32_0 : i32, i32
  }
  func.func @transform_10(%arg0: i32) -> (i32, i32) {
    %c0_i32 = arith.constant 0 : i32
    %c0_i32_0 = arith.constant 0 : i32
    %c0_i32_1 = arith.constant 0 : i32
    return %c0_i32, %c0_i32_0 : i32, i32
  }
  func.func @transform_11(%arg0: i32) -> (i32, i32) {
    %c0_i32 = arith.constant 0 : i32
    %c0_i32_0 = arith.constant 0 : i32
    %c0_i32_1 = arith.constant 0 : i32
    return %c0_i32, %c0_i32_0 : i32, i32
  }
  func.func @transform_12(%arg0: i32) -> (i32, i32) {
    %c0_i32 = arith.constant 0 : i32
    %c0_i32_0 = arith.constant 0 : i32
    %c0_i32_1 = arith.constant 0 : i32
    return %c0_i32, %c0_i32_0 : i32, i32
  }
  func.func @transform_13(%arg0: i32) -> (i32, i32) {
    %c0_i32 = arith.constant 0 : i32
    %c0_i32_0 = arith.constant 0 : i32
    %c0_i32_1 = arith.constant 0 : i32
    return %c0_i32, %c0_i32_0 : i32, i32
  }
  func.func @transform_14(%arg0: i32) -> (i32, i32) {
    %c0_i32 = arith.constant 0 : i32
    %c0_i32_0 = arith.constant 0 : i32
    %c0_i32_1 = arith.constant 0 : i32
    return %c0_i32, %c0_i32_0 : i32, i32
  }
  func.func @transform_15(%arg0: i32) -> (i32, i32) {
    %c0_i32 = arith.constant 0 : i32
    %c0_i32_0 = arith.constant 0 : i32
    %c0_i32_1 = arith.constant 0 : i32
    return %c0_i32, %c0_i32_0 : i32, i32
  }
  func.func @transform_16(%arg0: i32) -> (i32, i32) {
    %c0_i32 = arith.constant 0 : i32
    %c0_i32_0 = arith.constant 0 : i32
    %c0_i32_1 = arith.constant 0 : i32
    return %c0_i32, %c0_i32_0 : i32, i32
  }
  func.func @transform_17(%arg0: i32) -> (i32, i32) {
    %c0_i32 = arith.constant 0 : i32
    %c0_i32_0 = arith.constant 0 : i32
    %c0_i32_1 = arith.constant 0 : i32
    return %c0_i32, %c0_i32_0 : i32, i32
  }
  func.func @transform_18(%arg0: i32) -> (i32, i32) {
    %c0_i32 = arith.constant 0 : i32
    %c0_i32_0 = arith.constant 0 : i32
    %c0_i32_1 = arith.constant 0 : i32
    return %c0_i32, %c0_i32_0 : i32, i32
  }
}

</mosaic_0001>

<llo_original>
// kernel: critic_forward.1
$region0: #{critic_forward.1}
  #allocation0 [shape = 'u32[]', space=smem, size = 0x4, offset = 0x4, fixed_abs, tag = 'smem constant byte address 0x4 - core index']
  #allocation1 [shape = 'u32[144,128]{1,0:T(1,128)}', space=vmem, size = 0x12000, scoped, tag = 'internal scratch']
  #allocation2 [shape = 'f32[1,1]{1,0:T(1,128)S(1)}', space=vmem, size = 0x200, scoped, tag = 'scoped memory for critic_forward.1']
  %s0 = inlined_call_operand.vmem [shape: bf16[1296,128], index: 0, kind: input, shape index: {}]
  %s1 = inlined_call_operand.vmem [shape: bf16[2,4], index: 1, kind: input, shape index: {}]
  %s2 = inlined_call_operand.vmem [shape: bf16[128,32], index: 2, kind: input, shape index: {}]
  %s3 = inlined_call_operand.vmem [shape: f32[1,32], index: 3, kind: input, shape index: {}]
  %s4 = inlined_call_operand.vmem [shape: f32[1,32], index: 4, kind: input, shape index: {}]
  %s5 = inlined_call_operand.vmem [shape: bf16[288,64], index: 5, kind: input, shape index: {}]
  %s6 = inlined_call_operand.vmem [shape: f32[1,64], index: 6, kind: input, shape index: {}]
  %s7 = inlined_call_operand.vmem [shape: f32[1,64], index: 7, kind: input, shape index: {}]
  %s8 = inlined_call_operand.vmem [shape: bf16[576,128], index: 8, kind: input, shape index: {}]
  %s9 = inlined_call_operand.vmem [shape: f32[1,128], index: 9, kind: input, shape index: {}]
  %s10 = inlined_call_operand.vmem [shape: f32[1,128], index: 10, kind: input, shape index: {}]
  %s11 = inlined_call_operand.vmem [shape: bf16[768,400], index: 11, kind: input, shape index: {}]
  %s12 = inlined_call_operand.vmem [shape: bf16[4,400], index: 12, kind: input, shape index: {}]
  %s13 = inlined_call_operand.vmem [shape: f32[1,400], index: 13, kind: input, shape index: {}]
  %s14 = inlined_call_operand.vmem [shape: bf16[400,300], index: 14, kind: input, shape index: {}]
  %s15 = inlined_call_operand.vmem [shape: f32[1,300], index: 15, kind: input, shape index: {}]
  %s16 = inlined_call_operand.vmem [shape: bf16[300,1], index: 16, kind: input, shape index: {}]
  %s17 = inlined_call_operand.<no memory space> [shape: f32[1,1], index: 17, kind: input, shape index: {}]
  %s18 = inlined_call_operand.vmem [shape: f32[2,1], index: 18, kind: output, shape index: {}]
  %s19 = sld [smem:[#allocation0]]
  $region82: #{critic_forward.1} parent=0
    _
  %s21 = ssub.s32 1, %s19
  %s22 = scalar_select 0, %s21, %s19
  %v23 = vstv %s17
  %24 = vst [vmem:[#allocation2] sm:$0x1] %v23
  // Predicated region
  $region2: #{critic_forward.1} parent=0 // pred_check
    _
  $region3: #{critic_forward.1} parent=0 // pred_check_branch
    %26 = sbr.rel (0) target = $region5
  $region4: #{critic_forward.1} parent=0 // pred_region
    _
  $region5: #{critic_forward.1} parent=0 // pred_fallthru
    _
  // Predicated region
  $region6: #{critic_forward.1} parent=0 // pred_check
    _
  $region7: #{critic_forward.1} parent=0 // pred_check_branch
    %28 = sbr.rel (0) target = $region9
  $region8: #{critic_forward.1} parent=0 // pred_region
    _
  $region9: #{critic_forward.1} parent=0 // pred_fallthru
    _
  // Predicated region
  $region10: #{critic_forward.1} parent=0 // pred_check
    _
  $region11: #{critic_forward.1} parent=0 // pred_check_branch
    %30 = sbr.rel (0) target = $region13
  $region12: #{critic_forward.1} parent=0 // pred_region
    _
  $region13: #{critic_forward.1} parent=0 // pred_fallthru
    _
  // Predicated region
  $region14: #{critic_forward.1} parent=0 // pred_check
    _
  $region15: #{critic_forward.1} parent=0 // pred_check_branch
    %32 = sbr.rel (0) target = $region17
  $region16: #{critic_forward.1} parent=0 // pred_region
    _
  $region17: #{critic_forward.1} parent=0 // pred_fallthru
    _
  // Predicated region
  $region18: #{critic_forward.1} parent=0 // pred_check
    _
  $region19: #{critic_forward.1} parent=0 // pred_check_branch
    %34 = sbr.rel (0) target = $region21
  $region20: #{critic_forward.1} parent=0 // pred_region
    _
  $region21: #{critic_forward.1} parent=0 // pred_fallthru
    _
  // Predicated region
  $region22: #{critic_forward.1} parent=0 // pred_check
    _
  $region23: #{critic_forward.1} parent=0 // pred_check_branch
    %36 = sbr.rel (0) target = $region25
  $region24: #{critic_forward.1} parent=0 // pred_region
    _
  $region25: #{critic_forward.1} parent=0 // pred_fallthru
    _
  // Predicated region
  $region26: #{critic_forward.1} parent=0 // pred_check
    _
  $region27: #{critic_forward.1} parent=0 // pred_check_branch
    %38 = sbr.rel (0) target = $region29
  $region28: #{critic_forward.1} parent=0 // pred_region
    _
  $region29: #{critic_forward.1} parent=0 // pred_fallthru
    _
  // Predicated region
  $region30: #{critic_forward.1} parent=0 // pred_check
    _
  $region31: #{critic_forward.1} parent=0 // pred_check_branch
    %40 = sbr.rel (0) target = $region33
  $region32: #{critic_forward.1} parent=0 // pred_region
    _
  $region33: #{critic_forward.1} parent=0 // pred_fallthru
    _
  // Predicated region
  $region34: #{critic_forward.1} parent=0 // pred_check
    _
  $region35: #{critic_forward.1} parent=0 // pred_check_branch
    %42 = sbr.rel (0) target = $region37
  $region36: #{critic_forward.1} parent=0 // pred_region
    _
  $region37: #{critic_forward.1} parent=0 // pred_fallthru
    _
  // Predicated region
  $region38: #{critic_forward.1} parent=0 // pred_check
    _
  $region39: #{critic_forward.1} parent=0 // pred_check_branch
    %44 = sbr.rel (0) target = $region41
  $region40: #{critic_forward.1} parent=0 // pred_region
    _
  $region41: #{critic_forward.1} parent=0 // pred_fallthru
    _
  // Predicated region
  $region42: #{critic_forward.1} parent=0 // pred_check
    _
  $region43: #{critic_forward.1} parent=0 // pred_check_branch
    %46 = sbr.rel (0) target = $region45
  $region44: #{critic_forward.1} parent=0 // pred_region
    _
  $region45: #{critic_forward.1} parent=0 // pred_fallthru
    _
  // Predicated region
  $region46: #{critic_forward.1} parent=0 // pred_check
    _
  $region47: #{critic_forward.1} parent=0 // pred_check_branch
    %48 = sbr.rel (0) target = $region49
  $region48: #{critic_forward.1} parent=0 // pred_region
    _
  $region49: #{critic_forward.1} parent=0 // pred_fallthru
    _
  // Predicated region
  $region50: #{critic_forward.1} parent=0 // pred_check
    _
  $region51: #{critic_forward.1} parent=0 // pred_check_branch
    %50 = sbr.rel (0) target = $region53
  $region52: #{critic_forward.1} parent=0 // pred_region
    _
  $region53: #{critic_forward.1} parent=0 // pred_fallthru
    _
  // Predicated region
  $region54: #{critic_forward.1} parent=0 // pred_check
    _
  $region55: #{critic_forward.1} parent=0 // pred_check_branch
    %52 = sbr.rel (0) target = $region57
  $region56: #{critic_forward.1} parent=0 // pred_region
    _
  $region57: #{critic_forward.1} parent=0 // pred_fallthru
    _
  // Predicated region
  $region58: #{critic_forward.1} parent=0 // pred_check
    _
  $region59: #{critic_forward.1} parent=0 // pred_check_branch
    %54 = sbr.rel (0) target = $region61
  $region60: #{critic_forward.1} parent=0 // pred_region
    _
  $region61: #{critic_forward.1} parent=0 // pred_fallthru
    _
  // Predicated region
  $region62: #{critic_forward.1} parent=0 // pred_check
    _
  $region63: #{critic_forward.1} parent=0 // pred_check_branch
    %56 = sbr.rel (0) target = $region65
  $region64: #{critic_forward.1} parent=0 // pred_region
    _
  $region65: #{critic_forward.1} parent=0 // pred_fallthru
    _
  // Predicated region
  $region66: #{critic_forward.1} parent=0 // pred_check
    _
  $region67: #{critic_forward.1} parent=0 // pred_check_branch
    %58 = sbr.rel (0) target = $region69
  $region68: #{critic_forward.1} parent=0 // pred_region
    _
  $region69: #{critic_forward.1} parent=0 // pred_fallthru
    _
  // Predicated region
  $region70: #{critic_forward.1} parent=0 // pred_check
    _
  $region71: #{critic_forward.1} parent=0 // pred_check_branch
    %60 = sbr.rel (0) target = $region73
  $region72: #{critic_forward.1} parent=0 // pred_region
    _
  $region73: #{critic_forward.1} parent=0 // pred_fallthru
    _
  %v62 = vld [vmem:[%s0] sm:$0xf]
  %v63 = vld [vmem:[%s0 + $0x4] sm:$0xf]
  %v64 = vld [vmem:[%s0 + $0x8] sm:$0xf]
  %v65 = vld [vmem:[%s0 + $0xc] sm:$0xf]
  %v66 = vld [vmem:[%s0 + $0x10] sm:$0xf]
  %v67 = vld [vmem:[%s0 + $0x14] sm:$0xf]
  %v68 = vld [vmem:[%s0 + $0x18] sm:$0xf]
  %v69 = vld [vmem:[%s0 + $0x1c] sm:$0xf]
  %v70 = vld [vmem:[%s0 + $0x20] sm:$0xf]
  %v71 = vld [vmem:[%s0 + $0x24] sm:$0xf]
  %v72 = vld [vmem:[%s0 + $0x28] sm:$0xf]
  %v73 = vld [vmem:[%s0 + $0x2c] sm:$0xf]
  %v74 = vld [vmem:[%s0 + $0x30] sm:$0xf]
  %v75 = vld [vmem:[%s0 + $0x34] sm:$0xf]
  %v76 = vld [vmem:[%s0 + $0x38] sm:$0xf]
  %v77 = vld [vmem:[%s0 + $0x3c] sm:$0xf]
  %v78 = vld [vmem:[%s0 + $0x40] sm:$0xf]
  %v79 = vld [vmem:[%s0 + $0x44] sm:$0xf]
  %v80 = vld [vmem:[%s0 + $0x48] sm:$0xf]
  %v81 = vld [vmem:[%s0 + $0x4c] sm:$0xf]
  %v82 = vld [vmem:[%s0 + $0x50] sm:$0xf]
  %v83 = vld [vmem:[%s0 + $0x54] sm:$0xf]
  %v84 = vld [vmem:[%s0 + $0x58] sm:$0xf]
  %v85 = vld [vmem:[%s0 + $0x5c] sm:$0xf]
  %v86 = vld [vmem:[%s0 + $0x60] sm:$0xf]
  %v87 = vld [vmem:[%s0 + $0x64] sm:$0xf]
  %v88 = vld [vmem:[%s0 + $0x68] sm:$0xf]
  %v89 = vld [vmem:[%s0 + $0x6c] sm:$0xf]
  %v90 = vld [vmem:[%s0 + $0x70] sm:$0xf]
  %v91 = vld [vmem:[%s0 + $0x74] sm:$0xf]
  %v92 = vld [vmem:[%s0 + $0x78] sm:$0xf]
  %v93 = vld [vmem:[%s0 + $0x7c] sm:$0xf]
  %v94 = vld [vmem:[%s0 + $0x80] sm:$0xf]
  %v95 = vld [vmem:[%s0 + $0x84] sm:$0xf]
  %v96 = vld [vmem:[%s0 + $0x88] sm:$0xf]
  %v97 = vld [vmem:[%s0 + $0x8c] sm:$0xf]
  %v98 = vld [vmem:[%s0 + $0x90] sm:$0xf]
  %v99 = vld [vmem:[%s0 + $0x94] sm:$0xf]
  %v100 = vld [vmem:[%s0 + $0x98] sm:$0xf]
  %v101 = vld [vmem:[%s0 + $0x9c] sm:$0xf]
  %v102 = vld [vmem:[%s0 + $0xa0] sm:$0xf]
  %v103 = vld [vmem:[%s0 + $0xa4] sm:$0xf]
  %v104 = vld [vmem:[%s0 + $0xa8] sm:$0xf]
  %v105 = vld [vmem:[%s0 + $0xac] sm:$0xf]
  %v106 = vld [vmem:[%s0 + $0xb0] sm:$0xf]
  %v107 = vld [vmem:[%s0 + $0xb4] sm:$0xf]
  %v108 = vld [vmem:[%s0 + $0xb8] sm:$0xf]
  %v109 = vld [vmem:[%s0 + $0xbc] sm:$0xf]
  %v110 = vld [vmem:[%s0 + $0xc0] sm:$0xf]
  %v111 = vld [vmem:[%s0 + $0xc4] sm:$0xf]
  %v112 = vld [vmem:[%s0 + $0xc8] sm:$0xf]
  %v113 = vld [vmem:[%s0 + $0xcc] sm:$0xf]
  %v114 = vld [vmem:[%s0 + $0xd0] sm:$0xf]
  %v115 = vld [vmem:[%s0 + $0xd4] sm:$0xf]
  %v116 = vld [vmem:[%s0 + $0xd8] sm:$0xf]
  %v117 = vld [vmem:[%s0 + $0xdc] sm:$0xf]
  %v118 = vld [vmem:[%s0 + $0xe0] sm:$0xf]
  %v119 = vld [vmem:[%s0 + $0xe4] sm:$0xf]
  %v120 = vld [vmem:[%s0 + $0xe8] sm:$0xf]
  %v121 = vld [vmem:[%s0 + $0xec] sm:$0xf]
  %v122 = vld [vmem:[%s0 + $0xf0] sm:$0xf]
  %v123 = vld [vmem:[%s0 + $0xf4] sm:$0xf]
  %v124 = vld [vmem:[%s0 + $0xf8] sm:$0xf]
  %v125 = vld [vmem:[%s0 + $0xfc] sm:$0xf]
  %v126 = vld [vmem:[%s0 + $0x100] sm:$0xf]
  %v127 = vld [vmem:[%s0 + $0x104] sm:$0xf]
  %v128 = vld [vmem:[%s0 + $0x108] sm:$0xf]
  %v129 = vld [vmem:[%s0 + $0x10c] sm:$0xf]
  %v130 = vld [vmem:[%s0 + $0x110] sm:$0xf]
  %v131 = vld [vmem:[%s0 + $0x114] sm:$0xf]
  %v132 = vld [vmem:[%s0 + $0x118] sm:$0xf]
  %v133 = vld [vmem:[%s0 + $0x11c] sm:$0xf]
  %v134 = vld [vmem:[%s0 + $0x120] sm:$0xf]
  %v135 = vld [vmem:[%s0 + $0x124] sm:$0xf]
  %v136 = vld [vmem:[%s0 + $0x128] sm:$0xf]
  %v137 = vld [vmem:[%s0 + $0x12c] sm:$0xf]
  %v138 = vld [vmem:[%s0 + $0x130] sm:$0xf]
  %v139 = vld [vmem:[%s0 + $0x134] sm:$0xf]
  %v140 = vld [vmem:[%s0 + $0x138] sm:$0xf]
  %v141 = vld [vmem:[%s0 + $0x13c] sm:$0xf]
  %v142 = vld [vmem:[%s0 + $0x140] sm:$0xf]
  %v143 = vld [vmem:[%s0 + $0x144] sm:$0xf]
  %v144 = vld [vmem:[%s0 + $0x148] sm:$0xf]
  %v145 = vld [vmem:[%s0 + $0x14c] sm:$0xf]
  %v146 = vld [vmem:[%s0 + $0x150] sm:$0xf]
  %v147 = vld [vmem:[%s0 + $0x154] sm:$0xf]
  %v148 = vld [vmem:[%s0 + $0x158] sm:$0xf]
  %v149 = vld [vmem:[%s0 + $0x15c] sm:$0xf]
  %v150 = vld [vmem:[%s0 + $0x160] sm:$0xf]
  %v151 = vld [vmem:[%s0 + $0x164] sm:$0xf]
  %v152 = vld [vmem:[%s0 + $0x168] sm:$0xf]
  %v153 = vld [vmem:[%s0 + $0x16c] sm:$0xf]
  %v154 = vld [vmem:[%s0 + $0x170] sm:$0xf]
  %v155 = vld [vmem:[%s0 + $0x174] sm:$0xf]
  %v156 = vld [vmem:[%s0 + $0x178] sm:$0xf]
  %v157 = vld [vmem:[%s0 + $0x17c] sm:$0xf]
  %v158 = vld [vmem:[%s0 + $0x180] sm:$0xf]
  %v159 = vld [vmem:[%s0 + $0x184] sm:$0xf]
  %v160 = vld [vmem:[%s0 + $0x188] sm:$0xf]
  %v161 = vld [vmem:[%s0 + $0x18c] sm:$0xf]
  %v162 = vld [vmem:[%s0 + $0x190] sm:$0xf]
  %v163 = vld [vmem:[%s0 + $0x194] sm:$0xf]
  %v164 = vld [vmem:[%s0 + $0x198] sm:$0xf]
  %v165 = vld [vmem:[%s0 + $0x19c] sm:$0xf]
  %v166 = vld [vmem:[%s0 + $0x1a0] sm:$0xf]
  %v167 = vld [vmem:[%s0 + $0x1a4] sm:$0xf]
  %v168 = vld [vmem:[%s0 + $0x1a8] sm:$0xf]
  %v169 = vld [vmem:[%s0 + $0x1ac] sm:$0xf]
  %v170 = vld [vmem:[%s0 + $0x1b0] sm:$0xf]
  %v171 = vld [vmem:[%s0 + $0x1b4] sm:$0xf]
  %v172 = vld [vmem:[%s0 + $0x1b8] sm:$0xf]
  %v173 = vld [vmem:[%s0 + $0x1bc] sm:$0xf]
  %v174 = vld [vmem:[%s0 + $0x1c0] sm:$0xf]
  %v175 = vld [vmem:[%s0 + $0x1c4] sm:$0xf]
  %v176 = vld [vmem:[%s0 + $0x1c8] sm:$0xf]
  %v177 = vld [vmem:[%s0 + $0x1cc] sm:$0xf]
  %v178 = vld [vmem:[%s0 + $0x1d0] sm:$0xf]
  %v179 = vld [vmem:[%s0 + $0x1d4] sm:$0xf]
  %v180 = vld [vmem:[%s0 + $0x1d8] sm:$0xf]
  %v181 = vld [vmem:[%s0 + $0x1dc] sm:$0xf]
  %v182 = vld [vmem:[%s0 + $0x1e0] sm:$0xf]
  %v183 = vld [vmem:[%s0 + $0x1e4] sm:$0xf]
  %v184 = vld [vmem:[%s0 + $0x1e8] sm:$0xf]
  %v185 = vld [vmem:[%s0 + $0x1ec] sm:$0xf]
  %v186 = vld [vmem:[%s0 + $0x1f0] sm:$0xf]
  %v187 = vld [vmem:[%s0 + $0x1f4] sm:$0xf]
  %v188 = vld [vmem:[%s0 + $0x1f8] sm:$0xf]
  %v189 = vld [vmem:[%s0 + $0x1fc] sm:$0xf]
  %v190 = vld [vmem:[%s0 + $0x200] sm:$0xf]
  %v191 = vld [vmem:[%s0 + $0x204] sm:$0xf]
  %v192 = vld [vmem:[%s0 + $0x208] sm:$0xf]
  %v193 = vld [vmem:[%s0 + $0x20c] sm:$0xf]
  %v194 = vld [vmem:[%s0 + $0x210] sm:$0xf]
  %v195 = vld [vmem:[%s0 + $0x214] sm:$0xf]
  %v196 = vld [vmem:[%s0 + $0x218] sm:$0xf]
  %v197 = vld [vmem:[%s0 + $0x21c] sm:$0xf]
  %v198 = vld [vmem:[%s0 + $0x220] sm:$0xf]
  %v199 = vld [vmem:[%s0 + $0x224] sm:$0xf]
  %v200 = vld [vmem:[%s0 + $0x228] sm:$0xf]
  %v201 = vld [vmem:[%s0 + $0x22c] sm:$0xf]
  %v202 = vld [vmem:[%s0 + $0x230] sm:$0xf]
  %v203 = vld [vmem:[%s0 + $0x234] sm:$0xf]
  %v204 = vld [vmem:[%s0 + $0x238] sm:$0xf]
  %v205 = vld [vmem:[%s0 + $0x23c] sm:$0xf]
  %v206 = vld [vmem:[%s0 + $0x240] sm:$0xf]
  %v207 = vld [vmem:[%s0 + $0x244] sm:$0xf]
  %v208 = vld [vmem:[%s0 + $0x248] sm:$0xf]
  %v209 = vld [vmem:[%s0 + $0x24c] sm:$0xf]
  %v210 = vld [vmem:[%s0 + $0x250] sm:$0xf]
  %v211 = vld [vmem:[%s0 + $0x254] sm:$0xf]
  %v212 = vld [vmem:[%s0 + $0x258] sm:$0xf]
  %v213 = vld [vmem:[%s0 + $0x25c] sm:$0xf]
  %v214 = vld [vmem:[%s0 + $0x260] sm:$0xf]
  %v215 = vld [vmem:[%s0 + $0x264] sm:$0xf]
  %v216 = vld [vmem:[%s0 + $0x268] sm:$0xf]
  %v217 = vld [vmem:[%s0 + $0x26c] sm:$0xf]
  %v218 = vld [vmem:[%s0 + $0x270] sm:$0xf]
  %v219 = vld [vmem:[%s0 + $0x274] sm:$0xf]
  %v220 = vld [vmem:[%s0 + $0x278] sm:$0xf]
  %v221 = vld [vmem:[%s0 + $0x27c] sm:$0xf]
  %v222 = vld [vmem:[%s0 + $0x280] sm:$0xf]
  %v223 = vld [vmem:[%s0 + $0x284] sm:$0xf]
  %v224 = vld [vmem:[%s2] sm:$0xf]
  %v225 = vld [vmem:[%s2 + $0x4] sm:$0xf]
  %v226 = vld [vmem:[%s2 + $0x8] sm:$0xf]
  %v227 = vld [vmem:[%s2 + $0xc] sm:$0xf]
  %v228 = vld [vmem:[%s2 + $0x10] sm:$0xf]
  %v229 = vld [vmem:[%s2 + $0x14] sm:$0xf]
  %v230 = vld [vmem:[%s2 + $0x18] sm:$0xf]
  %v231 = vld [vmem:[%s2 + $0x1c] sm:$0xf]
  %v232 = vld [vmem:[%s2 + $0x20] sm:$0xf]
  %v233 = vld [vmem:[%s2 + $0x24] sm:$0xf]
  %v234 = vld [vmem:[%s2 + $0x28] sm:$0xf]
  %v235 = vld [vmem:[%s2 + $0x2c] sm:$0xf]
  %v236 = vld [vmem:[%s2 + $0x30] sm:$0xf]
  %v237 = vld [vmem:[%s2 + $0x34] sm:$0xf]
  %v238 = vld [vmem:[%s2 + $0x38] sm:$0xf]
  %v239 = vld [vmem:[%s2 + $0x3c] sm:$0xf]
  %v402 = vunpack.c.l.b16 %v62
  %v403 = vunpack.c.l.b16 %v63
  %v404 = vunpack.c.l.b16 %v64
  %v405 = vunpack.c.l.b16 %v65
  %v406 = vunpack.c.l.b16 %v66
  %v407 = vunpack.c.l.b16 %v67
  %v408 = vunpack.c.l.b16 %v68
  %v409 = vunpack.c.l.b16 %v69
  %v410 = vunpack.c.l.b16 %v70
  %v411 = vunpack.c.l.b16 %v71
  %v412 = vunpack.c.l.b16 %v72
  %v413 = vunpack.c.l.b16 %v73
  %v414 = vunpack.c.l.b16 %v74
  %v415 = vunpack.c.l.b16 %v75
  %v416 = vunpack.c.l.b16 %v76
  %v417 = vunpack.c.l.b16 %v77
  %v418 = vunpack.c.l.b16 %v78
  %v419 = vunpack.c.l.b16 %v79
  %v420 = vunpack.c.l.b16 %v80
  %v421 = vunpack.c.l.b16 %v81
  %v422 = vunpack.c.l.b16 %v82
  %v423 = vunpack.c.l.b16 %v83
  %v424 = vunpack.c.l.b16 %v84
  %v425 = vunpack.c.l.b16 %v85
  %v426 = vunpack.c.l.b16 %v86
  %v427 = vunpack.c.l.b16 %v87
  %v428 = vunpack.c.l.b16 %v88
  %v429 = vunpack.c.l.b16 %v89
  %v430 = vunpack.c.l.b16 %v90
  %v431 = vunpack.c.l.b16 %v91
  %v432 = vunpack.c.l.b16 %v92
  %v433 = vunpack.c.l.b16 %v93
  %v434 = vunpack.c.l.b16 %v94
  %v435 = vunpack.c.l.b16 %v95
  %v436 = vunpack.c.l.b16 %v96
  %v437 = vunpack.c.l.b16 %v97
  %v438 = vunpack.c.l.b16 %v98
  %v439 = vunpack.c.l.b16 %v99
  %v440 = vunpack.c.l.b16 %v100
  %v441 = vunpack.c.l.b16 %v101
  %v442 = vunpack.c.l.b16 %v102
  %v443 = vunpack.c.l.b16 %v103
  %v444 = vunpack.c.l.b16 %v104
  %v445 = vunpack.c.l.b16 %v105
  %v446 = vunpack.c.l.b16 %v106
  %v447 = vunpack.c.l.b16 %v107
  %v448 = vunpack.c.l.b16 %v108
  %v449 = vunpack.c.l.b16 %v109
  %v450 = vunpack.c.l.b16 %v110
  %v451 = vunpack.c.l.b16 %v111
  %v452 = vunpack.c.l.b16 %v112
  %v453 = vunpack.c.l.b16 %v113
  %v454 = vunpack.c.l.b16 %v114
  %v455 = vunpack.c.l.b16 %v115
  %v456 = vunpack.c.l.b16 %v116
  %v457 = vunpack.c.l.b16 %v117
  %v458 = vunpack.c.l.b16 %v118
  %v459 = vunpack.c.l.b16 %v119
  %v460 = vunpack.c.l.b16 %v120
  %v461 = vunpack.c.l.b16 %v121
  %v462 = vunpack.c.l.b16 %v122
  %v463 = vunpack.c.l.b16 %v123
  %v464 = vunpack.c.l.b16 %v124
  %v465 = vunpack.c.l.b16 %v125
  %v466 = vunpack.c.l.b16 %v126
  %v467 = vunpack.c.l.b16 %v127
  %v468 = vunpack.c.l.b16 %v128
  %v469 = vunpack.c.l.b16 %v129
  %v470 = vunpack.c.l.b16 %v130
  %v471 = vunpack.c.l.b16 %v131
  %v472 = vunpack.c.l.b16 %v132
  %v473 = vunpack.c.l.b16 %v133
  %v474 = vunpack.c.l.b16 %v134
  %v475 = vunpack.c.l.b16 %v135
  %v476 = vunpack.c.l.b16 %v136
  %v477 = vunpack.c.l.b16 %v137
  %v478 = vunpack.c.l.b16 %v138
  %v479 = vunpack.c.l.b16 %v139
  %v480 = vunpack.c.l.b16 %v140
  %v481 = vunpack.c.l.b16 %v141
  %v482 = vunpack.c.l.b16 %v142
  %v483 = vunpack.c.l.b16 %v143
  %v484 = vunpack.c.l.b16 %v144
  %v485 = vunpack.c.l.b16 %v145
  %v486 = vunpack.c.l.b16 %v146
  %v487 = vunpack.c.l.b16 %v147
  %v488 = vunpack.c.l.b16 %v148
  %v489 = vunpack.c.l.b16 %v149
  %v490 = vunpack.c.l.b16 %v150
  %v491 = vunpack.c.l.b16 %v151
  %v492 = vunpack.c.l.b16 %v152
  %v493 = vunpack.c.l.b16 %v153
  %v494 = vunpack.c.l.b16 %v154
  %v495 = vunpack.c.l.b16 %v155
  %v496 = vunpack.c.l.b16 %v156
  %v497 = vunpack.c.l.b16 %v157
  %v498 = vunpack.c.l.b16 %v158
  %v499 = vunpack.c.l.b16 %v159
  %v500 = vunpack.c.l.b16 %v160
  %v501 = vunpack.c.l.b16 %v161
  %v502 = vunpack.c.l.b16 %v162
  %v503 = vunpack.c.l.b16 %v163
  %v504 = vunpack.c.l.b16 %v164
  %v505 = vunpack.c.l.b16 %v165
  %v506 = vunpack.c.l.b16 %v166
  %v507 = vunpack.c.l.b16 %v167
  %v508 = vunpack.c.l.b16 %v168
  %v509 = vunpack.c.l.b16 %v169
  %v510 = vunpack.c.l.b16 %v170
  %v511 = vunpack.c.l.b16 %v171
  %v512 = vunpack.c.l.b16 %v172
  %v513 = vunpack.c.l.b16 %v173
  %v514 = vunpack.c.l.b16 %v174
  %v515 = vunpack.c.l.b16 %v175
  %v516 = vunpack.c.l.b16 %v176
  %v517 = vunpack.c.l.b16 %v177
  %v518 = vunpack.c.l.b16 %v178
  %v519 = vunpack.c.l.b16 %v179
  %v520 = vunpack.c.l.b16 %v180
  %v521 = vunpack.c.l.b16 %v181
  %v522 = vunpack.c.l.b16 %v182
  %v523 = vunpack.c.l.b16 %v183
  %v524 = vunpack.c.l.b16 %v184
  %v525 = vunpack.c.l.b16 %v185
  %v526 = vunpack.c.l.b16 %v186
  %v527 = vunpack.c.l.b16 %v187
  %v528 = vunpack.c.l.b16 %v188
  %v529 = vunpack.c.l.b16 %v189
  %v530 = vunpack.c.l.b16 %v190
  %v531 = vunpack.c.l.b16 %v191
  %v532 = vunpack.c.l.b16 %v192
  %v533 = vunpack.c.l.b16 %v193
  %v534 = vunpack.c.l.b16 %v194
  %v535 = vunpack.c.l.b16 %v195
  %v536 = vunpack.c.l.b16 %v196
  %v537 = vunpack.c.l.b16 %v197
  %v538 = vunpack.c.l.b16 %v198
  %v539 = vunpack.c.l.b16 %v199
  %v540 = vunpack.c.l.b16 %v200
  %v541 = vunpack.c.l.b16 %v201
  %v542 = vunpack.c.l.b16 %v202
  %v543 = vunpack.c.l.b16 %v203
  %v544 = vunpack.c.l.b16 %v204
  %v545 = vunpack.c.l.b16 %v205
  %v546 = vunpack.c.l.b16 %v206
  %v547 = vunpack.c.l.b16 %v207
  %v548 = vunpack.c.l.b16 %v208
  %v549 = vunpack.c.l.b16 %v209
  %v550 = vunpack.c.l.b16 %v210
  %v551 = vunpack.c.l.b16 %v211
  %v552 = vunpack.c.l.b16 %v212
  %v553 = vunpack.c.l.b16 %v213
  %v554 = vunpack.c.l.b16 %v214
  %v555 = vunpack.c.l.b16 %v215
  %v556 = vunpack.c.l.b16 %v216
  %v557 = vunpack.c.l.b16 %v217
  %v558 = vunpack.c.l.b16 %v218
  %v559 = vunpack.c.l.b16 %v219
  %v560 = vunpack.c.l.b16 %v220
  %v561 = vunpack.c.l.b16 %v221
  %v562 = vunpack.c.l.b16 %v222
  %v563 = vunpack.c.l.b16 %v223
  %v564 = vpack.c.b16 %v403, %v402
  %v565 = vpack.c.b16 %v405, %v404
  %v566 = vpack.c.b16 %v407, %v406
  %v567 = vpack.c.b16 %v409, %v408
  %v568 = vpack.c.b16 %v411, %v410
  %v569 = vpack.c.b16 %v413, %v412
  %v570 = vpack.c.b16 %v415, %v414
  %v571 = vpack.c.b16 %v417, %v416
  %v572 = vpack.c.b16 %v419, %v418
  %v573 = vpack.c.b16 %v421, %v420
  %v574 = vpack.c.b16 %v423, %v422
  %v575 = vpack.c.b16 %v425, %v424
  %v576 = vpack.c.b16 %v427, %v426
  %v577 = vpack.c.b16 %v429, %v428
  %v578 = vpack.c.b16 %v431, %v430
  %v579 = vpack.c.b16 %v433, %v432
  %v580 = vpack.c.b16 %v435, %v434
  %v581 = vpack.c.b16 %v437, %v436
  %v582 = vpack.c.b16 %v439, %v438
  %v583 = vpack.c.b16 %v441, %v440
  %v584 = vpack.c.b16 %v443, %v442
  %v585 = vpack.c.b16 %v445, %v444
  %v586 = vpack.c.b16 %v447, %v446
  %v587 = vpack.c.b16 %v449, %v448
  %v588 = vpack.c.b16 %v451, %v450
  %v589 = vpack.c.b16 %v453, %v452
  %v590 = vpack.c.b16 %v455, %v454
  %v591 = vpack.c.b16 %v457, %v456
  %v592 = vpack.c.b16 %v459, %v458
  %v593 = vpack.c.b16 %v461, %v460
  %v594 = vpack.c.b16 %v463, %v462
  %v595 = vpack.c.b16 %v465, %v464
  %v596 = vpack.c.b16 %v467, %v466
  %v597 = vpack.c.b16 %v469, %v468
  %v598 = vpack.c.b16 %v471, %v470
  %v599 = vpack.c.b16 %v473, %v472
  %v600 = vpack.c.b16 %v475, %v474
  %v601 = vpack.c.b16 %v477, %v476
  %v602 = vpack.c.b16 %v479, %v478
  %v603 = vpack.c.b16 %v481, %v480
  %v604 = vpack.c.b16 %v483, %v482
  %v605 = vpack.c.b16 %v485, %v484
  %v606 = vpack.c.b16 %v487, %v486
  %v607 = vpack.c.b16 %v489, %v488
  %v608 = vpack.c.b16 %v491, %v490
  %v609 = vpack.c.b16 %v493, %v492
  %v610 = vpack.c.b16 %v495, %v494
  %v611 = vpack.c.b16 %v497, %v496
  %v612 = vpack.c.b16 %v499, %v498
  %v613 = vpack.c.b16 %v501, %v500
  %v614 = vpack.c.b16 %v503, %v502
  %v615 = vpack.c.b16 %v505, %v504
  %v616 = vpack.c.b16 %v507, %v506
  %v617 = vpack.c.b16 %v509, %v508
  %v618 = vpack.c.b16 %v511, %v510
  %v619 = vpack.c.b16 %v513, %v512
  %v620 = vpack.c.b16 %v515, %v514
  %v621 = vpack.c.b16 %v517, %v516
  %v622 = vpack.c.b16 %v519, %v518
  %v623 = vpack.c.b16 %v521, %v520
  %v624 = vpack.c.b16 %v523, %v522
  %v625 = vpack.c.b16 %v525, %v524
  %v626 = vpack.c.b16 %v527, %v526
  %v627 = vpack.c.b16 %v529, %v528
  %v628 = vpack.c.b16 %v531, %v530
  %v629 = vpack.c.b16 %v533, %v532
  %v630 = vpack.c.b16 %v535, %v534
  %v631 = vpack.c.b16 %v537, %v536
  %v632 = vpack.c.b16 %v539, %v538
  %v633 = vpack.c.b16 %v541, %v540
  %v634 = vpack.c.b16 %v543, %v542
  %v635 = vpack.c.b16 %v545, %v544
  %v636 = vpack.c.b16 %v547, %v546
  %v637 = vpack.c.b16 %v549, %v548
  %v638 = vpack.c.b16 %v551, %v550
  %v639 = vpack.c.b16 %v553, %v552
  %v640 = vpack.c.b16 %v555, %v554
  %v641 = vpack.c.b16 %v557, %v556
  %v642 = vpack.c.b16 %v559, %v558
  %v643 = vpack.c.b16 %v561, %v560
  %v644 = vpack.c.b16 %v563, %v562
  %v742 = vunpack.c.l.b16 %v224
  %v743 = vunpack.c.l.b16 %v225
  %v744 = vunpack.c.l.b16 %v226
  %v745 = vunpack.c.l.b16 %v227
  %v746 = vunpack.c.l.b16 %v228
  %v747 = vunpack.c.l.b16 %v229
  %v748 = vunpack.c.l.b16 %v230
  %v749 = vunpack.c.l.b16 %v231
  %v750 = vunpack.c.l.b16 %v232
  %v751 = vunpack.c.l.b16 %v233
  %v752 = vunpack.c.l.b16 %v234
  %v753 = vunpack.c.l.b16 %v235
  %v754 = vunpack.c.l.b16 %v236
  %v755 = vunpack.c.l.b16 %v237
  %v756 = vunpack.c.l.b16 %v238
  %v757 = vunpack.c.l.b16 %v239
  %v758 = vpack.c.b16 %v743, %v742
  %v759 = vpack.c.b16 %v745, %v744
  %v760 = vpack.c.b16 %v747, %v746
  %v761 = vpack.c.b16 %v749, %v748
  %v762 = vpack.c.b16 %v751, %v750
  %v763 = vpack.c.b16 %v753, %v752
  %v764 = vpack.c.b16 %v755, %v754
  %v765 = vpack.c.b16 %v757, %v756
  %774 = vmatprep.subr.bf16.mxu0 0
  %775 = vmatpush1.bf16.msra.mxu0 %v758
  %776 = vmatprep.subr.bf16.mxu0 0
  %777 = vmatpush1.bf16.msra.mxu0 %v759
  %778 = vmatprep.subr.bf16.mxu0 0
  %779 = vmatpush1.bf16.msra.mxu0 %v760
  %780 = vmatprep.subr.bf16.mxu0 0
  %781 = vmatpush1.bf16.msra.mxu0 %v761
  %782 = vmatprep.subr.bf16.mxu0 0
  %783 = vmatpush1.bf16.msra.mxu0 %v762
  %784 = vmatprep.subr.bf16.mxu0 0
  %785 = vmatpush1.bf16.msra.mxu0 %v763
  %786 = vmatprep.subr.bf16.mxu0 0
  %787 = vmatpush1.bf16.msra.mxu0 %v764
  %788 = vmatprep.subr.bf16.mxu0 0
  %789 = vmatpush1.bf16.msra.mxu0 %v765
  %790 = vmatprep.subr.bf16.mxu0 0
  %791 = vmatpush1.bf16.msra.mxu0 0
  %792 = vmatprep.subr.bf16.mxu0 0
  %793 = vmatpush1.bf16.msra.mxu0 0
  %794 = vmatprep.subr.bf16.mxu0 0
  %795 = vmatpush1.bf16.msra.mxu0 0
  %796 = vmatprep.subr.bf16.mxu0 0
  %797 = vmatpush1.bf16.msra.mxu0 0
  %798 = vmatprep.subr.bf16.mxu0 0
  %799 = vmatpush1.bf16.msra.mxu0 0
  %800 = vmatprep.subr.bf16.mxu0 0
  %801 = vmatpush1.bf16.msra.mxu0 0
  %802 = vmatprep.subr.bf16.mxu0 0
  %803 = vmatpush1.bf16.msra.mxu0 0
  %804 = vmatprep.subr.bf16.mxu0 0
  %805 = vmatpush1.bf16.msra.mxu0 0
  %806 = vmatprep.mubr.bf16.mxu0 0
  %807 = vmatmul.mubr.bf16.gmra.mrb[0].mxu0 %v564
  %v808 = vpop.f32.mrb[0].mxu0
  %v809 = vadd.f32 0.0, %v808
  %v810 = vpop.f32.mrb[0].mxu0
  %v811 = vpop.f32.mrb[0].mxu0
  %v812 = vadd.f32 0.0, %v811
  %v813 = vpop.f32.mrb[0].mxu0
  %814 = vmatprep.mubr.bf16.mxu0 0
  %815 = vmatmul.mubr.bf16.gmra.mrb[0].mxu0 %v565
  %v816 = vpop.f32.mrb[0].mxu0
  %v817 = vadd.f32 0.0, %v816
  %v818 = vpop.f32.mrb[0].mxu0
  %v819 = vpop.f32.mrb[0].mxu0
  %v820 = vadd.f32 0.0, %v819
  %v821 = vpop.f32.mrb[0].mxu0
  %822 = vmatprep.mubr.bf16.mxu0 0
  %823 = vmatmul.mubr.bf16.gmra.mrb[0].mxu0 %v566
  %v824 = vpop.f32.mrb[0].mxu0
  %v825 = vadd.f32 0.0, %v824
  %v826 = vpop.f32.mrb[0].mxu0
  %v827 = vpop.f32.mrb[0].mxu0
  %v828 = vadd.f32 0.0, %v827
  %v829 = vpop.f32.mrb[0].mxu0
  %830 = vmatprep.mubr.bf16.mxu0 0
  %831 = vmatmul.mubr.bf16.gmra.mrb[0].mxu0 %v567
  %v832 = vpop.f32.mrb[0].mxu0
  %v833 = vadd.f32 0.0, %v832
  %v834 = vpop.f32.mrb[0].mxu0
  %v835 = vpop.f32.mrb[0].mxu0
  %v836 = vadd.f32 0.0, %v835
  %v837 = vpop.f32.mrb[0].mxu0
  %838 = vmatprep.mubr.bf16.mxu0 0
  %839 = vmatmul.mubr.bf16.gmra.mrb[0].mxu0 %v568
  %v840 = vpop.f32.mrb[0].mxu0
  %v841 = vadd.f32 0.0, %v840
  %v842 = vpop.f32.mrb[0].mxu0
  %v843 = vpop.f32.mrb[0].mxu0
  %v844 = vadd.f32 0.0, %v843
  %v845 = vpop.f32.mrb[0].mxu0
  %846 = vmatprep.mubr.bf16.mxu0 0
  %847 = vmatmul.mubr.bf16.gmra.mrb[0].mxu0 %v569
  %v848 = vpop.f32.mrb[0].mxu0
  %v849 = vadd.f32 0.0, %v848
  %v850 = vpop.f32.mrb[0].mxu0
  %v851 = vpop.f32.mrb[0].mxu0
  %v852 = vadd.f32 0.0, %v851
  %v853 = vpop.f32.mrb[0].mxu0
  %854 = vmatprep.mubr.bf16.mxu0 0
  %855 = vmatmul.mubr.bf16.gmra.mrb[0].mxu0 %v570
  %v856 = vpop.f32.mrb[0].mxu0
  %v857 = vadd.f32 0.0, %v856
  %v858 = vpop.f32.mrb[0].mxu0
  %v859 = vpop.f32.mrb[0].mxu0
  %v860 = vadd.f32 0.0, %v859
  %v861 = vpop.f32.mrb[0].mxu0
  %862 = vmatprep.mubr.bf16.mxu0 0
  %863 = vmatmul.mubr.bf16.gmra.mrb[0].mxu0 %v571
  %v864 = vpop.f32.mrb[0].mxu0
  %v865 = vadd.f32 0.0, %v864
  %v866 = vpop.f32.mrb[0].mxu0
  %v867 = vpop.f32.mrb[0].mxu0
  %v868 = vadd.f32 0.0, %v867
  %v869 = vpop.f32.mrb[0].mxu0
  %870 = vmatprep.mubr.bf16.mxu0 0
  %871 = vmatmul.mubr.bf16.gmra.mrb[0].mxu0 %v572
  %v872 = vpop.f32.mrb[0].mxu0
  %v873 = vadd.f32 0.0, %v872
  %v874 = vpop.f32.mrb[0].mxu0
  %v875 = vpop.f32.mrb[0].mxu0
  %v876 = vadd.f32 0.0, %v875
  %v877 = vpop.f32.mrb[0].mxu0
  %878 = vmatprep.mubr.bf16.mxu0 0
  %879 = vmatmul.mubr.bf16.gmra.mrb[0].mxu0 %v573
  %v880 = vpop.f32.mrb[0].mxu0
  %v881 = vadd.f32 0.0, %v880
  %v882 = vpop.f32.mrb[0].mxu0
  %v883 = vpop.f32.mrb[0].mxu0
  %v884 = vadd.f32 0.0, %v883
  %v885 = vpop.f32.mrb[0].mxu0
  %886 = vmatprep.mubr.bf16.mxu0 0
  %887 = vmatmul.mubr.bf16.gmra.mrb[0].mxu0 %v574
  %v888 = vpop.f32.mrb[0].mxu0
  %v889 = vadd.f32 0.0, %v888
  %v890 = vpop.f32.mrb[0].mxu0
  %v891 = vpop.f32.mrb[0].mxu0
  %v892 = vadd.f32 0.0, %v891
  %v893 = vpop.f32.mrb[0].mxu0
  %894 = vmatprep.mubr.bf16.mxu0 0
  %895 = vmatmul.mubr.bf16.gmra.mrb[0].mxu0 %v575
  %v896 = vpop.f32.mrb[0].mxu0
  %v897 = vadd.f32 0.0, %v896
  %v898 = vpop.f32.mrb[0].mxu0
  %v899 = vpop.f32.mrb[0].mxu0
  %v900 = vadd.f32 0.0, %v899
  %v901 = vpop.f32.mrb[0].mxu0
  %902 = vmatprep.mubr.bf16.mxu0 0
  %903 = vmatmul.mubr.bf16.gmra.mrb[0].mxu0 %v576
  %v904 = vpop.f32.mrb[0].mxu0
  %v905 = vadd.f32 0.0, %v904
  %v906 = vpop.f32.mrb[0].mxu0
  %v907 = vpop.f32.mrb[0].mxu0
  %v908 = vadd.f32 0.0, %v907
  %v909 = vpop.f32.mrb[0].mxu0
  %910 = vmatprep.mubr.bf16.mxu0 0
  %911 = vmatmul.mubr.bf16.gmra.mrb[0].mxu0 %v577
  %v912 = vpop.f32.mrb[0].mxu0
  %v913 = vadd.f32 0.0, %v912
  %v914 = vpop.f32.mrb[0].mxu0
  %v915 = vpop.f32.mrb[0].mxu0
  %v916 = vadd.f32 0.0, %v915
  %v917 = vpop.f32.mrb[0].mxu0
  %918 = vmatprep.mubr.bf16.mxu0 0
  %919 = vmatmul.mubr.bf16.gmra.mrb[0].mxu0 %v578
  %v920 = vpop.f32.mrb[0].mxu0
  %v921 = vadd.f32 0.0, %v920
  %v922 = vpop.f32.mrb[0].mxu0
  %v923 = vpop.f32.mrb[0].mxu0
  %v924 = vadd.f32 0.0, %v923
  %v925 = vpop.f32.mrb[0].mxu0
  %926 = vmatprep.mubr.bf16.mxu0 0
  %927 = vmatmul.mubr.bf16.gmra.mrb[0].mxu0 %v579
  %v928 = vpop.f32.mrb[0].mxu0
  %v929 = vadd.f32 0.0, %v928
  %v930 = vpop.f32.mrb[0].mxu0
  %v931 = vpop.f32.mrb[0].mxu0
  %v932 = vadd.f32 0.0, %v931
  %v933 = vpop.f32.mrb[0].mxu0
  %934 = vmatprep.mubr.bf16.mxu0 0
  %935 = vmatmul.mubr.bf16.gmra.mrb[0].mxu0 %v580
  %v936 = vpop.f32.mrb[0].mxu0
  %v937 = vadd.f32 0.0, %v936
  %v938 = vpop.f32.mrb[0].mxu0
  %v939 = vpop.f32.mrb[0].mxu0
  %v940 = vadd.f32 0.0, %v939
  %v941 = vpop.f32.mrb[0].mxu0
  %942 = vmatprep.mubr.bf16.mxu0 0
  %943 = vmatmul.mubr.bf16.gmra.mrb[0].mxu0 %v581
  %v944 = vpop.f32.mrb[0].mxu0
  %v945 = vadd.f32 0.0, %v944
  %v946 = vpop.f32.mrb[0].mxu0
  %v947 = vpop.f32.mrb[0].mxu0
  %v948 = vadd.f32 0.0, %v947
  %v949 = vpop.f32.mrb[0].mxu0
  %950 = vmatprep.mubr.bf16.mxu0 0
  %951 = vmatmul.mubr.bf16.gmra.mrb[0].mxu0 %v582
  %v952 = vpop.f32.mrb[0].mxu0
  %v953 = vadd.f32 0.0, %v952
  %v954 = vpop.f32.mrb[0].mxu0
  %v955 = vpop.f32.mrb[0].mxu0
  %v956 = vadd.f32 0.0, %v955
  %v957 = vpop.f32.mrb[0].mxu0
  %958 = vmatprep.mubr.bf16.mxu0 0
  %959 = vmatmul.mubr.bf16.gmra.mrb[0].mxu0 %v583
  %v960 = vpop.f32.mrb[0].mxu0
  %v961 = vadd.f32 0.0, %v960
  %v962 = vpop.f32.mrb[0].mxu0
  %v963 = vpop.f32.mrb[0].mxu0
  %v964 = vadd.f32 0.0, %v963
  %v965 = vpop.f32.mrb[0].mxu0
  %966 = vmatprep.mubr.bf16.mxu0 0
  %967 = vmatmul.mubr.bf16.gmra.mrb[0].mxu0 %v584
  %v968 = vpop.f32.mrb[0].mxu0
  %v969 = vadd.f32 0.0, %v968
  %v970 = vpop.f32.mrb[0].mxu0
  %v971 = vpop.f32.mrb[0].mxu0
  %v972 = vadd.f32 0.0, %v971
  %v973 = vpop.f32.mrb[0].mxu0
  %974 = vmatprep.mubr.bf16.mxu0 0
  %975 = vmatmul.mubr.bf16.gmra.mrb[0].mxu0 %v585
  %v976 = vpop.f32.mrb[0].mxu0
  %v977 = vadd.f32 0.0, %v976
  %v978 = vpop.f32.mrb[0].mxu0
  %v979 = vpop.f32.mrb[0].mxu0
  %v980 = vadd.f32 0.0, %v979
  %v981 = vpop.f32.mrb[0].mxu0
  %982 = vmatprep.mubr.bf16.mxu0 0
  %983 = vmatmul.mubr.bf16.gmra.mrb[0].mxu0 %v586
  %v984 = vpop.f32.mrb[0].mxu0
  %v985 = vadd.f32 0.0, %v984
  %v986 = vpop.f32.mrb[0].mxu0
  %v987 = vpop.f32.mrb[0].mxu0
  %v988 = vadd.f32 0.0, %v987
  %v989 = vpop.f32.mrb[0].mxu0
  %990 = vmatprep.mubr.bf16.mxu0 0
  %991 = vmatmul.mubr.bf16.gmra.mrb[0].mxu0 %v587
  %v992 = vpop.f32.mrb[0].mxu0
  %v993 = vadd.f32 0.0, %v992
  %v994 = vpop.f32.mrb[0].mxu0
  %v995 = vpop.f32.mrb[0].mxu0
  %v996 = vadd.f32 0.0, %v995
  %v997 = vpop.f32.mrb[0].mxu0
  %998 = vmatprep.mubr.bf16.mxu0 0
  %999 = vmatmul.mubr.bf16.gmra.mrb[0].mxu0 %v588
  %v1000 = vpop.f32.mrb[0].mxu0
  %v1001 = vadd.f32 0.0, %v1000
  %v1002 = vpop.f32.mrb[0].mxu0
  %v1003 = vpop.f32.mrb[0].mxu0
  %v1004 = vadd.f32 0.0, %v1003
  %v1005 = vpop.f32.mrb[0].mxu0
  %1006 = vmatprep.mubr.bf16.mxu0 0
  %1007 = vmatmul.mubr.bf16.gmra.mrb[0].mxu0 %v589
  %v1008 = vpop.f32.mrb[0].mxu0
  %v1009 = vadd.f32 0.0, %v1008
  %v1010 = vpop.f32.mrb[0].mxu0
  %v1011 = vpop.f32.mrb[0].mxu0
  %v1012 = vadd.f32 0.0, %v1011
  %v1013 = vpop.f32.mrb[0].mxu0
  %1014 = vmatprep.mubr.bf16.mxu0 0
  %1015 = vmatmul.mubr.bf16.gmra.mrb[0].mxu0 %v590
  %v1016 = vpop.f32.mrb[0].mxu0
  %v1017 = vadd.f32 0.0, %v1016
  %v1018 = vpop.f32.mrb[0].mxu0
  %v1019 = vpop.f32.mrb[0].mxu0
  %v1020 = vadd.f32 0.0, %v1019
  %v1021 = vpop.f32.mrb[0].mxu0
  %1022 = vmatprep.mubr.bf16.mxu0 0
  %1023 = vmatmul.mubr.bf16.gmra.mrb[0].mxu0 %v591
  %v1024 = vpop.f32.mrb[0].mxu0
  %v1025 = vadd.f32 0.0, %v1024
  %v1026 = vpop.f32.mrb[0].mxu0
  %v1027 = vpop.f32.mrb[0].mxu0
  %v1028 = vadd.f32 0.0, %v1027
  %v1029 = vpop.f32.mrb[0].mxu0
  %1030 = vmatprep.mubr.bf16.mxu0 0
  %1031 = vmatmul.mubr.bf16.gmra.mrb[0].mxu0 %v592
  %v1032 = vpop.f32.mrb[0].mxu0
  %v1033 = vadd.f32 0.0, %v1032
  %v1034 = vpop.f32.mrb[0].mxu0
  %v1035 = vpop.f32.mrb[0].mxu0
  %v1036 = vadd.f32 0.0, %v1035
  %v1037 = vpop.f32.mrb[0].mxu0
  %1038 = vmatprep.mubr.bf16.mxu0 0
  %1039 = vmatmul.mubr.bf16.gmra.mrb[0].mxu0 %v593
  %v1040 = vpop.f32.mrb[0].mxu0
  %v1041 = vadd.f32 0.0, %v1040
  %v1042 = vpop.f32.mrb[0].mxu0
  %v1043 = vpop.f32.mrb[0].mxu0
  %v1044 = vadd.f32 0.0, %v1043
  %v1045 = vpop.f32.mrb[0].mxu0
  %1046 = vmatprep.mubr.bf16.mxu0 0
  %1047 = vmatmul.mubr.bf16.gmra.mrb[0].mxu0 %v594
  %v1048 = vpop.f32.mrb[0].mxu0
  %v1049 = vadd.f32 0.0, %v1048
  %v1050 = vpop.f32.mrb[0].mxu0
  %v1051 = vpop.f32.mrb[0].mxu0
  %v1052 = vadd.f32 0.0, %v1051
  %v1053 = vpop.f32.mrb[0].mxu0
  %1054 = vmatprep.mubr.bf16.mxu0 0
  %1055 = vmatmul.mubr.bf16.gmra.mrb[0].mxu0 %v595
  %v1056 = vpop.f32.mrb[0].mxu0
  %v1057 = vadd.f32 0.0, %v1056
  %v1058 = vpop.f32.mrb[0].mxu0
  %v1059 = vpop.f32.mrb[0].mxu0
  %v1060 = vadd.f32 0.0, %v1059
  %v1061 = vpop.f32.mrb[0].mxu0
  %1062 = vmatprep.mubr.bf16.mxu0 0
  %1063 = vmatmul.mubr.bf16.gmra.mrb[0].mxu0 %v596
  %v1064 = vpop.f32.mrb[0].mxu0
  %v1065 = vadd.f32 0.0, %v1064
  %v1066 = vpop.f32.mrb[0].mxu0
  %v1067 = vpop.f32.mrb[0].mxu0
  %v1068 = vadd.f32 0.0, %v1067
  %v1069 = vpop.f32.mrb[0].mxu0
  %1070 = vmatprep.mubr.bf16.mxu0 0
  %1071 = vmatmul.mubr.bf16.gmra.mrb[0].mxu0 %v597
  %v1072 = vpop.f32.mrb[0].mxu0
  %v1073 = vadd.f32 0.0, %v1072
  %v1074 = vpop.f32.mrb[0].mxu0
  %v1075 = vpop.f32.mrb[0].mxu0
  %v1076 = vadd.f32 0.0, %v1075
  %v1077 = vpop.f32.mrb[0].mxu0
  %1078 = vmatprep.mubr.bf16.mxu0 0
  %1079 = vmatmul.mubr.bf16.gmra.mrb[0].mxu0 %v598
  %v1080 = vpop.f32.mrb[0].mxu0
  %v1081 = vadd.f32 0.0, %v1080
  %v1082 = vpop.f32.mrb[0].mxu0
  %v1083 = vpop.f32.mrb[0].mxu0
  %v1084 = vadd.f32 0.0, %v1083
  %v1085 = vpop.f32.mrb[0].mxu0
  %1086 = vmatprep.mubr.bf16.mxu0 0
  %1087 = vmatmul.mubr.bf16.gmra.mrb[0].mxu0 %v599
  %v1088 = vpop.f32.mrb[0].mxu0
  %v1089 = vadd.f32 0.0, %v1088
  %v1090 = vpop.f32.mrb[0].mxu0
  %v1091 = vpop.f32.mrb[0].mxu0
  %v1092 = vadd.f32 0.0, %v1091
  %v1093 = vpop.f32.mrb[0].mxu0
  %1094 = vmatprep.mubr.bf16.mxu0 0
  %1095 = vmatmul.mubr.bf16.gmra.mrb[0].mxu0 %v600
  %v1096 = vpop.f32.mrb[0].mxu0
  %v1097 = vadd.f32 0.0, %v1096
  %v1098 = vpop.f32.mrb[0].mxu0
  %v1099 = vpop.f32.mrb[0].mxu0
  %v1100 = vadd.f32 0.0, %v1099
  %v1101 = vpop.f32.mrb[0].mxu0
  %1102 = vmatprep.mubr.bf16.mxu0 0
  %1103 = vmatmul.mubr.bf16.gmra.mrb[0].mxu0 %v601
  %v1104 = vpop.f32.mrb[0].mxu0
  %v1105 = vadd.f32 0.0, %v1104
  %v1106 = vpop.f32.mrb[0].mxu0
  %v1107 = vpop.f32.mrb[0].mxu0
  %v1108 = vadd.f32 0.0, %v1107
  %v1109 = vpop.f32.mrb[0].mxu0
  %1110 = vmatprep.mubr.bf16.mxu0 0
  %1111 = vmatmul.mubr.bf16.gmra.mrb[0].mxu0 %v602
  %v1112 = vpop.f32.mrb[0].mxu0
  %v1113 = vadd.f32 0.0, %v1112
  %v1114 = vpop.f32.mrb[0].mxu0
  %v1115 = vpop.f32.mrb[0].mxu0
  %v1116 = vadd.f32 0.0, %v1115
  %v1117 = vpop.f32.mrb[0].mxu0
  %1118 = vmatprep.mubr.bf16.mxu0 0
  %1119 = vmatmul.mubr.bf16.gmra.mrb[0].mxu0 %v603
  %v1120 = vpop.f32.mrb[0].mxu0
  %v1121 = vadd.f32 0.0, %v1120
  %v1122 = vpop.f32.mrb[0].mxu0
  %v1123 = vpop.f32.mrb[0].mxu0
  %v1124 = vadd.f32 0.0, %v1123
  %v1125 = vpop.f32.mrb[0].mxu0
  %1126 = vmatprep.mubr.bf16.mxu0 0
  %1127 = vmatmul.mubr.bf16.gmra.mrb[0].mxu0 %v604
  %v1128 = vpop.f32.mrb[0].mxu0
  %v1129 = vadd.f32 0.0, %v1128
  %v1130 = vpop.f32.mrb[0].mxu0
  %v1131 = vpop.f32.mrb[0].mxu0
  %v1132 = vadd.f32 0.0, %v1131
  %v1133 = vpop.f32.mrb[0].mxu0
  %1134 = vmatprep.mubr.bf16.mxu0 0
  %1135 = vmatmul.mubr.bf16.gmra.mrb[0].mxu0 %v605
  %v1136 = vpop.f32.mrb[0].mxu0
  %v1137 = vadd.f32 0.0, %v1136
  %v1138 = vpop.f32.mrb[0].mxu0
  %v1139 = vpop.f32.mrb[0].mxu0
  %v1140 = vadd.f32 0.0, %v1139
  %v1141 = vpop.f32.mrb[0].mxu0
  %1142 = vmatprep.mubr.bf16.mxu0 0
  %1143 = vmatmul.mubr.bf16.gmra.mrb[0].mxu0 %v606
  %v1144 = vpop.f32.mrb[0].mxu0
  %v1145 = vadd.f32 0.0, %v1144
  %v1146 = vpop.f32.mrb[0].mxu0
  %v1147 = vpop.f32.mrb[0].mxu0
  %v1148 = vadd.f32 0.0, %v1147
  %v1149 = vpop.f32.mrb[0].mxu0
  %1150 = vmatprep.mubr.bf16.mxu0 0
  %1151 = vmatmul.mubr.bf16.gmra.mrb[0].mxu0 %v607
  %v1152 = vpop.f32.mrb[0].mxu0
  %v1153 = vadd.f32 0.0, %v1152
  %v1154 = vpop.f32.mrb[0].mxu0
  %v1155 = vpop.f32.mrb[0].mxu0
  %v1156 = vadd.f32 0.0, %v1155
  %v1157 = vpop.f32.mrb[0].mxu0
  %1158 = vmatprep.mubr.bf16.mxu0 0
  %1159 = vmatmul.mubr.bf16.gmra.mrb[0].mxu0 %v608
  %v1160 = vpop.f32.mrb[0].mxu0
  %v1161 = vadd.f32 0.0, %v1160
  %v1162 = vpop.f32.mrb[0].mxu0
  %v1163 = vpop.f32.mrb[0].mxu0
  %v1164 = vadd.f32 0.0, %v1163
  %v1165 = vpop.f32.mrb[0].mxu0
  %1166 = vmatprep.mubr.bf16.mxu0 0
  %1167 = vmatmul.mubr.bf16.gmra.mrb[0].mxu0 %v609
  %v1168 = vpop.f32.mrb[0].mxu0
  %v1169 = vadd.f32 0.0, %v1168
  %v1170 = vpop.f32.mrb[0].mxu0
  %v1171 = vpop.f32.mrb[0].mxu0
  %v1172 = vadd.f32 0.0, %v1171
  %v1173 = vpop.f32.mrb[0].mxu0
  %1174 = vmatprep.mubr.bf16.mxu0 0
  %1175 = vmatmul.mubr.bf16.gmra.mrb[0].mxu0 %v610
  %v1176 = vpop.f32.mrb[0].mxu0
  %v1177 = vadd.f32 0.0, %v1176
  %v1178 = vpop.f32.mrb[0].mxu0
  %v1179 = vpop.f32.mrb[0].mxu0
  %v1180 = vadd.f32 0.0, %v1179
  %v1181 = vpop.f32.mrb[0].mxu0
  %1182 = vmatprep.mubr.bf16.mxu0 0
  %1183 = vmatmul.mubr.bf16.gmra.mrb[0].mxu0 %v611
  %v1184 = vpop.f32.mrb[0].mxu0
  %v1185 = vadd.f32 0.0, %v1184
  %v1186 = vpop.f32.mrb[0].mxu0
  %v1187 = vpop.f32.mrb[0].mxu0
  %v1188 = vadd.f32 0.0, %v1187
  %v1189 = vpop.f32.mrb[0].mxu0
  %1190 = vmatprep.mubr.bf16.mxu0 0
  %1191 = vmatmul.mubr.bf16.gmra.mrb[0].mxu0 %v612
  %v1192 = vpop.f32.mrb[0].mxu0
  %v1193 = vadd.f32 0.0, %v1192
  %v1194 = vpop.f32.mrb[0].mxu0
  %v1195 = vpop.f32.mrb[0].mxu0
  %v1196 = vadd.f32 0.0, %v1195
  %v1197 = vpop.f32.mrb[0].mxu0
  %1198 = vmatprep.mubr.bf16.mxu0 0
  %1199 = vmatmul.mubr.bf16.gmra.mrb[0].mxu0 %v613
  %v1200 = vpop.f32.mrb[0].mxu0
  %v1201 = vadd.f32 0.0, %v1200
  %v1202 = vpop.f32.mrb[0].mxu0
  %v1203 = vpop.f32.mrb[0].mxu0
  %v1204 = vadd.f32 0.0, %v1203
  %v1205 = vpop.f32.mrb[0].mxu0
  %1206 = vmatprep.mubr.bf16.mxu0 0
  %1207 = vmatmul.mubr.bf16.gmra.mrb[0].mxu0 %v614
  %v1208 = vpop.f32.mrb[0].mxu0
  %v1209 = vadd.f32 0.0, %v1208
  %v1210 = vpop.f32.mrb[0].mxu0
  %v1211 = vpop.f32.mrb[0].mxu0
  %v1212 = vadd.f32 0.0, %v1211
  %v1213 = vpop.f32.mrb[0].mxu0
  %1214 = vmatprep.mubr.bf16.mxu0 0
  %1215 = vmatmul.mubr.bf16.gmra.mrb[0].mxu0 %v615
  %v1216 = vpop.f32.mrb[0].mxu0
  %v1217 = vadd.f32 0.0, %v1216
  %v1218 = vpop.f32.mrb[0].mxu0
  %v1219 = vpop.f32.mrb[0].mxu0
  %v1220 = vadd.f32 0.0, %v1219
  %v1221 = vpop.f32.mrb[0].mxu0
  %1222 = vmatprep.mubr.bf16.mxu0 0
  %1223 = vmatmul.mubr.bf16.gmra.mrb[0].mxu0 %v616
  %v1224 = vpop.f32.mrb[0].mxu0
  %v1225 = vadd.f32 0.0, %v1224
  %v1226 = vpop.f32.mrb[0].mxu0
  %v1227 = vpop.f32.mrb[0].mxu0
  %v1228 = vadd.f32 0.0, %v1227
  %v1229 = vpop.f32.mrb[0].mxu0
  %1230 = vmatprep.mubr.bf16.mxu0 0
  %1231 = vmatmul.mubr.bf16.gmra.mrb[0].mxu0 %v617
  %v1232 = vpop.f32.mrb[0].mxu0
  %v1233 = vadd.f32 0.0, %v1232
  %v1234 = vpop.f32.mrb[0].mxu0
  %v1235 = vpop.f32.mrb[0].mxu0
  %v1236 = vadd.f32 0.0, %v1235
  %v1237 = vpop.f32.mrb[0].mxu0
  %1238 = vmatprep.mubr.bf16.mxu0 0
  %1239 = vmatmul.mubr.bf16.gmra.mrb[0].mxu0 %v618
  %v1240 = vpop.f32.mrb[0].mxu0
  %v1241 = vadd.f32 0.0, %v1240
  %v1242 = vpop.f32.mrb[0].mxu0
  %v1243 = vpop.f32.mrb[0].mxu0
  %v1244 = vadd.f32 0.0, %v1243
  %v1245 = vpop.f32.mrb[0].mxu0
  %1246 = vmatprep.mubr.bf16.mxu0 0
  %1247 = vmatmul.mubr.bf16.gmra.mrb[0].mxu0 %v619
  %v1248 = vpop.f32.mrb[0].mxu0
  %v1249 = vadd.f32 0.0, %v1248
  %v1250 = vpop.f32.mrb[0].mxu0
  %v1251 = vpop.f32.mrb[0].mxu0
  %v1252 = vadd.f32 0.0, %v1251
  %v1253 = vpop.f32.mrb[0].mxu0
  %1254 = vmatprep.mubr.bf16.mxu0 0
  %1255 = vmatmul.mubr.bf16.gmra.mrb[0].mxu0 %v620
  %v1256 = vpop.f32.mrb[0].mxu0
  %v1257 = vadd.f32 0.0, %v1256
  %v1258 = vpop.f32.mrb[0].mxu0
  %v1259 = vpop.f32.mrb[0].mxu0
  %v1260 = vadd.f32 0.0, %v1259
  %v1261 = vpop.f32.mrb[0].mxu0
  %1262 = vmatprep.mubr.bf16.mxu0 0
  %1263 = vmatmul.mubr.bf16.gmra.mrb[0].mxu0 %v621
  %v1264 = vpop.f32.mrb[0].mxu0
  %v1265 = vadd.f32 0.0, %v1264
  %v1266 = vpop.f32.mrb[0].mxu0
  %v1267 = vpop.f32.mrb[0].mxu0
  %v1268 = vadd.f32 0.0, %v1267
  %v1269 = vpop.f32.mrb[0].mxu0
  %1270 = vmatprep.mubr.bf16.mxu0 0
  %1271 = vmatmul.mubr.bf16.gmra.mrb[0].mxu0 %v622
  %v1272 = vpop.f32.mrb[0].mxu0
  %v1273 = vadd.f32 0.0, %v1272
  %v1274 = vpop.f32.mrb[0].mxu0
  %v1275 = vpop.f32.mrb[0].mxu0
  %v1276 = vadd.f32 0.0, %v1275
  %v1277 = vpop.f32.mrb[0].mxu0
  %1278 = vmatprep.mubr.bf16.mxu0 0
  %1279 = vmatmul.mubr.bf16.gmra.mrb[0].mxu0 %v623
  %v1280 = vpop.f32.mrb[0].mxu0
  %v1281 = vadd.f32 0.0, %v1280
  %v1282 = vpop.f32.mrb[0].mxu0
  %v1283 = vpop.f32.mrb[0].mxu0
  %v1284 = vadd.f32 0.0, %v1283
  %v1285 = vpop.f32.mrb[0].mxu0
  %1286 = vmatprep.mubr.bf16.mxu0 0
  %1287 = vmatmul.mubr.bf16.gmra.mrb[0].mxu0 %v624
  %v1288 = vpop.f32.mrb[0].mxu0
  %v1289 = vadd.f32 0.0, %v1288
  %v1290 = vpop.f32.mrb[0].mxu0
  %v1291 = vpop.f32.mrb[0].mxu0
  %v1292 = vadd.f32 0.0, %v1291
  %v1293 = vpop.f32.mrb[0].mxu0
  %1294 = vmatprep.mubr.bf16.mxu0 0
  %1295 = vmatmul.mubr.bf16.gmra.mrb[0].mxu0 %v625
  %v1296 = vpop.f32.mrb[0].mxu0
  %v1297 = vadd.f32 0.0, %v1296
  %v1298 = vpop.f32.mrb[0].mxu0
  %v1299 = vpop.f32.mrb[0].mxu0
  %v1300 = vadd.f32 0.0, %v1299
  %v1301 = vpop.f32.mrb[0].mxu0
  %1302 = vmatprep.mubr.bf16.mxu0 0
  %1303 = vmatmul.mubr.bf16.gmra.mrb[0].mxu0 %v626
  %v1304 = vpop.f32.mrb[0].mxu0
  %v1305 = vadd.f32 0.0, %v1304
  %v1306 = vpop.f32.mrb[0].mxu0
  %v1307 = vpop.f32.mrb[0].mxu0
  %v1308 = vadd.f32 0.0, %v1307
  %v1309 = vpop.f32.mrb[0].mxu0
  %1310 = vmatprep.mubr.bf16.mxu0 0
  %1311 = vmatmul.mubr.bf16.gmra.mrb[0].mxu0 %v627
  %v1312 = vpop.f32.mrb[0].mxu0
  %v1313 = vadd.f32 0.0, %v1312
  %v1314 = vpop.f32.mrb[0].mxu0
  %v1315 = vpop.f32.mrb[0].mxu0
  %v1316 = vadd.f32 0.0, %v1315
  %v1317 = vpop.f32.mrb[0].mxu0
  %1318 = vmatprep.mubr.bf16.mxu0 0
  %1319 = vmatmul.mubr.bf16.gmra.mrb[0].mxu0 %v628
  %v1320 = vpop.f32.mrb[0].mxu0
  %v1321 = vadd.f32 0.0, %v1320
  %v1322 = vpop.f32.mrb[0].mxu0
  %v1323 = vpop.f32.mrb[0].mxu0
  %v1324 = vadd.f32 0.0, %v1323
  %v1325 = vpop.f32.mrb[0].mxu0
  %1326 = vmatprep.mubr.bf16.mxu0 0
  %1327 = vmatmul.mubr.bf16.gmra.mrb[0].mxu0 %v629
  %v1328 = vpop.f32.mrb[0].mxu0
  %v1329 = vadd.f32 0.0, %v1328
  %v1330 = vpop.f32.mrb[0].mxu0
  %v1331 = vpop.f32.mrb[0].mxu0
  %v1332 = vadd.f32 0.0, %v1331
  %v1333 = vpop.f32.mrb[0].mxu0
  %1334 = vmatprep.mubr.bf16.mxu0 0
  %1335 = vmatmul.mubr.bf16.gmra.mrb[0].mxu0 %v630
  %v1336 = vpop.f32.mrb[0].mxu0
  %v1337 = vadd.f32 0.0, %v1336
  %v1338 = vpop.f32.mrb[0].mxu0
  %v1339 = vpop.f32.mrb[0].mxu0
  %v1340 = vadd.f32 0.0, %v1339
  %v1341 = vpop.f32.mrb[0].mxu0
  %1342 = vmatprep.mubr.bf16.mxu0 0
  %1343 = vmatmul.mubr.bf16.gmra.mrb[0].mxu0 %v631
  %v1344 = vpop.f32.mrb[0].mxu0
  %v1345 = vadd.f32 0.0, %v1344
  %v1346 = vpop.f32.mrb[0].mxu0
  %v1347 = vpop.f32.mrb[0].mxu0
  %v1348 = vadd.f32 0.0, %v1347
  %v1349 = vpop.f32.mrb[0].mxu0
  %1350 = vmatprep.mubr.bf16.mxu0 0
  %1351 = vmatmul.mubr.bf16.gmra.mrb[0].mxu0 %v632
  %v1352 = vpop.f32.mrb[0].mxu0
  %v1353 = vadd.f32 0.0, %v1352
  %v1354 = vpop.f32.mrb[0].mxu0
  %v1355 = vpop.f32.mrb[0].mxu0
  %v1356 = vadd.f32 0.0, %v1355
  %v1357 = vpop.f32.mrb[0].mxu0
  %1358 = vmatprep.mubr.bf16.mxu0 0
  %1359 = vmatmul.mubr.bf16.gmra.mrb[0].mxu0 %v633
  %v1360 = vpop.f32.mrb[0].mxu0
  %v1361 = vadd.f32 0.0, %v1360
  %v1362 = vpop.f32.mrb[0].mxu0
  %v1363 = vpop.f32.mrb[0].mxu0
  %v1364 = vadd.f32 0.0, %v1363
  %v1365 = vpop.f32.mrb[0].mxu0
  %1366 = vmatprep.mubr.bf16.mxu0 0
  %1367 = vmatmul.mubr.bf16.gmra.mrb[0].mxu0 %v634
  %v1368 = vpop.f32.mrb[0].mxu0
  %v1369 = vadd.f32 0.0, %v1368
  %v1370 = vpop.f32.mrb[0].mxu0
  %v1371 = vpop.f32.mrb[0].mxu0
  %v1372 = vadd.f32 0.0, %v1371
  %v1373 = vpop.f32.mrb[0].mxu0
  %1374 = vmatprep.mubr.bf16.mxu0 0
  %1375 = vmatmul.mubr.bf16.gmra.mrb[0].mxu0 %v635
  %v1376 = vpop.f32.mrb[0].mxu0
  %v1377 = vadd.f32 0.0, %v1376
  %v1378 = vpop.f32.mrb[0].mxu0
  %v1379 = vpop.f32.mrb[0].mxu0
  %v1380 = vadd.f32 0.0, %v1379
  %v1381 = vpop.f32.mrb[0].mxu0
  %1382 = vmatprep.mubr.bf16.mxu0 0
  %1383 = vmatmul.mubr.bf16.gmra.mrb[0].mxu0 %v636
  %v1384 = vpop.f32.mrb[0].mxu0
  %v1385 = vadd.f32 0.0, %v1384
  %v1386 = vpop.f32.mrb[0].mxu0
  %v1387 = vpop.f32.mrb[0].mxu0
  %v1388 = vadd.f32 0.0, %v1387
  %v1389 = vpop.f32.mrb[0].mxu0
  %1390 = vmatprep.mubr.bf16.mxu0 0
  %1391 = vmatmul.mubr.bf16.gmra.mrb[0].mxu0 %v637
  %v1392 = vpop.f32.mrb[0].mxu0
  %v1393 = vadd.f32 0.0, %v1392
  %v1394 = vpop.f32.mrb[0].mxu0
  %v1395 = vpop.f32.mrb[0].mxu0
  %v1396 = vadd.f32 0.0, %v1395
  %v1397 = vpop.f32.mrb[0].mxu0
  %1398 = vmatprep.mubr.bf16.mxu0 0
  %1399 = vmatmul.mubr.bf16.gmra.mrb[0].mxu0 %v638
  %v1400 = vpop.f32.mrb[0].mxu0
  %v1401 = vadd.f32 0.0, %v1400
  %v1402 = vpop.f32.mrb[0].mxu0
  %v1403 = vpop.f32.mrb[0].mxu0
  %v1404 = vadd.f32 0.0, %v1403
  %v1405 = vpop.f32.mrb[0].mxu0
  %1406 = vmatprep.mubr.bf16.mxu0 0
  %1407 = vmatmul.mubr.bf16.gmra.mrb[0].mxu0 %v639
  %v1408 = vpop.f32.mrb[0].mxu0
  %v1409 = vadd.f32 0.0, %v1408
  %v1410 = vpop.f32.mrb[0].mxu0
  %v1411 = vpop.f32.mrb[0].mxu0
  %v1412 = vadd.f32 0.0, %v1411
  %v1413 = vpop.f32.mrb[0].mxu0
  %1414 = vmatprep.mubr.bf16.mxu0 0
  %1415 = vmatmul.mubr.bf16.gmra.mrb[0].mxu0 %v640
  %v1416 = vpop.f32.mrb[0].mxu0
  %v1417 = vadd.f32 0.0, %v1416
  %v1418 = vpop.f32.mrb[0].mxu0
  %v1419 = vpop.f32.mrb[0].mxu0
  %v1420 = vadd.f32 0.0, %v1419
  %v1421 = vpop.f32.mrb[0].mxu0
  %1422 = vmatprep.mubr.bf16.mxu0 0
  %1423 = vmatmul.mubr.bf16.gmra.mrb[0].mxu0 %v641
  %v1424 = vpop.f32.mrb[0].mxu0
  %v1425 = vadd.f32 0.0, %v1424
  %v1426 = vpop.f32.mrb[0].mxu0
  %v1427 = vpop.f32.mrb[0].mxu0
  %v1428 = vadd.f32 0.0, %v1427
  %v1429 = vpop.f32.mrb[0].mxu0
  %1430 = vmatprep.mubr.bf16.mxu0 0
  %1431 = vmatmul.mubr.bf16.gmra.mrb[0].mxu0 %v642
  %v1432 = vpop.f32.mrb[0].mxu0
  %v1433 = vadd.f32 0.0, %v1432
  %v1434 = vpop.f32.mrb[0].mxu0
  %v1435 = vpop.f32.mrb[0].mxu0
  %v1436 = vadd.f32 0.0, %v1435
  %v1437 = vpop.f32.mrb[0].mxu0
  %1438 = vmatprep.mubr.bf16.mxu0 0
  %1439 = vmatmul.mubr.bf16.gmra.mrb[0].mxu0 %v643
  %v1440 = vpop.f32.mrb[0].mxu0
  %v1441 = vadd.f32 0.0, %v1440
  %v1442 = vpop.f32.mrb[0].mxu0
  %v1443 = vpop.f32.mrb[0].mxu0
  %v1444 = vadd.f32 0.0, %v1443
  %v1445 = vpop.f32.mrb[0].mxu0
  %1446 = vmatprep.mubr.bf16.mxu0 0
  %1447 = vmatmul.mubr.bf16.gmra.mrb[0].mxu0 %v644
  %v1448 = vpop.f32.mrb[0].mxu0
  %v1449 = vadd.f32 0.0, %v1448
  %v1450 = vpop.f32.mrb[0].mxu0
  %v1451 = vpop.f32.mrb[0].mxu0
  %v1452 = vadd.f32 0.0, %v1451
  %v1453 = vpop.f32.mrb[0].mxu0
  %1454 = vdwg.mxu0
  %v1455 = vld [vmem:[%s3] sm:$0x1]
  %v1457 = vlaneseq
  %v1458 = vshrl.u32 %v1457, 7
  %v1459 = vsub.s32 0, %v1458
  %v1460 = vrot.slane %v1455, %v1459
  %v1462 = vmul.f32 %v809, %v1460
  %v1463 = vmul.f32 %v812, %v1460
  %v1464 = vmul.f32 %v817, %v1460
  %v1465 = vmul.f32 %v820, %v1460
  %v1466 = vmul.f32 %v825, %v1460
  %v1467 = vmul.f32 %v828, %v1460
  %v1468 = vmul.f32 %v833, %v1460
  %v1469 = vmul.f32 %v836, %v1460
  %v1470 = vmul.f32 %v841, %v1460
  %v1471 = vmul.f32 %v844, %v1460
  %v1472 = vmul.f32 %v849, %v1460
  %v1473 = vmul.f32 %v852, %v1460
  %v1474 = vmul.f32 %v857, %v1460
  %v1475 = vmul.f32 %v860, %v1460
  %v1476 = vmul.f32 %v865, %v1460
  %v1477 = vmul.f32 %v868, %v1460
  %v1478 = vmul.f32 %v873, %v1460
  %v1479 = vmul.f32 %v876, %v1460
  %v1480 = vmul.f32 %v881, %v1460
  %v1481 = vmul.f32 %v884, %v1460
  %v1482 = vmul.f32 %v889, %v1460
  %v1483 = vmul.f32 %v892, %v1460
  %v1484 = vmul.f32 %v897, %v1460
  %v1485 = vmul.f32 %v900, %v1460
  %v1486 = vmul.f32 %v905, %v1460
  %v1487 = vmul.f32 %v908, %v1460
  %v1488 = vmul.f32 %v913, %v1460
  %v1489 = vmul.f32 %v916, %v1460
  %v1490 = vmul.f32 %v921, %v1460
  %v1491 = vmul.f32 %v924, %v1460
  %v1492 = vmul.f32 %v929, %v1460
  %v1493 = vmul.f32 %v932, %v1460
  %v1494 = vmul.f32 %v937, %v1460
  %v1495 = vmul.f32 %v940, %v1460
  %v1496 = vmul.f32 %v945, %v1460
  %v1497 = vmul.f32 %v948, %v1460
  %v1498 = vmul.f32 %v953, %v1460
  %v1499 = vmul.f32 %v956, %v1460
  %v1500 = vmul.f32 %v961, %v1460
  %v1501 = vmul.f32 %v964, %v1460
  %v1502 = vmul.f32 %v969, %v1460
  %v1503 = vmul.f32 %v972, %v1460
  %v1504 = vmul.f32 %v977, %v1460
  %v1505 = vmul.f32 %v980, %v1460
  %v1506 = vmul.f32 %v985, %v1460
  %v1507 = vmul.f32 %v988, %v1460
  %v1508 = vmul.f32 %v993, %v1460
  %v1509 = vmul.f32 %v996, %v1460
  %v1510 = vmul.f32 %v1001, %v1460
  %v1511 = vmul.f32 %v1004, %v1460
  %v1512 = vmul.f32 %v1009, %v1460
  %v1513 = vmul.f32 %v1012, %v1460
  %v1514 = vmul.f32 %v1017, %v1460
  %v1515 = vmul.f32 %v1020, %v1460
  %v1516 = vmul.f32 %v1025, %v1460
  %v1517 = vmul.f32 %v1028, %v1460
  %v1518 = vmul.f32 %v1033, %v1460
  %v1519 = vmul.f32 %v1036, %v1460
  %v1520 = vmul.f32 %v1041, %v1460
  %v1521 = vmul.f32 %v1044, %v1460
  %v1522 = vmul.f32 %v1049, %v1460
  %v1523 = vmul.f32 %v1052, %v1460
  %v1524 = vmul.f32 %v1057, %v1460
  %v1525 = vmul.f32 %v1060, %v1460
  %v1526 = vmul.f32 %v1065, %v1460
  %v1527 = vmul.f32 %v1068, %v1460
  %v1528 = vmul.f32 %v1073, %v1460
  %v1529 = vmul.f32 %v1076, %v1460
  %v1530 = vmul.f32 %v1081, %v1460
  %v1531 = vmul.f32 %v1084, %v1460
  %v1532 = vmul.f32 %v1089, %v1460
  %v1533 = vmul.f32 %v1092, %v1460
  %v1534 = vmul.f32 %v1097, %v1460
  %v1535 = vmul.f32 %v1100, %v1460
  %v1536 = vmul.f32 %v1105, %v1460
  %v1537 = vmul.f32 %v1108, %v1460
  %v1538 = vmul.f32 %v1113, %v1460
  %v1539 = vmul.f32 %v1116, %v1460
  %v1540 = vmul.f32 %v1121, %v1460
  %v1541 = vmul.f32 %v1124, %v1460
  %v1542 = vmul.f32 %v1129, %v1460
  %v1543 = vmul.f32 %v1132, %v1460
  %v1544 = vmul.f32 %v1137, %v1460
  %v1545 = vmul.f32 %v1140, %v1460
  %v1546 = vmul.f32 %v1145, %v1460
  %v1547 = vmul.f32 %v1148, %v1460
  %v1548 = vmul.f32 %v1153, %v1460
  %v1549 = vmul.f32 %v1156, %v1460
  %v1550 = vmul.f32 %v1161, %v1460
  %v1551 = vmul.f32 %v1164, %v1460
  %v1552 = vmul.f32 %v1169, %v1460
  %v1553 = vmul.f32 %v1172, %v1460
  %v1554 = vmul.f32 %v1177, %v1460
  %v1555 = vmul.f32 %v1180, %v1460
  %v1556 = vmul.f32 %v1185, %v1460
  %v1557 = vmul.f32 %v1188, %v1460
  %v1558 = vmul.f32 %v1193, %v1460
  %v1559 = vmul.f32 %v1196, %v1460
  %v1560 = vmul.f32 %v1201, %v1460
  %v1561 = vmul.f32 %v1204, %v1460
  %v1562 = vmul.f32 %v1209, %v1460
  %v1563 = vmul.f32 %v1212, %v1460
  %v1564 = vmul.f32 %v1217, %v1460
  %v1565 = vmul.f32 %v1220, %v1460
  %v1566 = vmul.f32 %v1225, %v1460
  %v1567 = vmul.f32 %v1228, %v1460
  %v1568 = vmul.f32 %v1233, %v1460
  %v1569 = vmul.f32 %v1236, %v1460
  %v1570 = vmul.f32 %v1241, %v1460
  %v1571 = vmul.f32 %v1244, %v1460
  %v1572 = vmul.f32 %v1249, %v1460
  %v1573 = vmul.f32 %v1252, %v1460
  %v1574 = vmul.f32 %v1257, %v1460
  %v1575 = vmul.f32 %v1260, %v1460
  %v1576 = vmul.f32 %v1265, %v1460
  %v1577 = vmul.f32 %v1268, %v1460
  %v1578 = vmul.f32 %v1273, %v1460
  %v1579 = vmul.f32 %v1276, %v1460
  %v1580 = vmul.f32 %v1281, %v1460
  %v1581 = vmul.f32 %v1284, %v1460
  %v1582 = vmul.f32 %v1289, %v1460
  %v1583 = vmul.f32 %v1292, %v1460
  %v1584 = vmul.f32 %v1297, %v1460
  %v1585 = vmul.f32 %v1300, %v1460
  %v1586 = vmul.f32 %v1305, %v1460
  %v1587 = vmul.f32 %v1308, %v1460
  %v1588 = vmul.f32 %v1313, %v1460
  %v1589 = vmul.f32 %v1316, %v1460
  %v1590 = vmul.f32 %v1321, %v1460
  %v1591 = vmul.f32 %v1324, %v1460
  %v1592 = vmul.f32 %v1329, %v1460
  %v1593 = vmul.f32 %v1332, %v1460
  %v1594 = vmul.f32 %v1337, %v1460
  %v1595 = vmul.f32 %v1340, %v1460
  %v1596 = vmul.f32 %v1345, %v1460
  %v1597 = vmul.f32 %v1348, %v1460
  %v1598 = vmul.f32 %v1353, %v1460
  %v1599 = vmul.f32 %v1356, %v1460
  %v1600 = vmul.f32 %v1361, %v1460
  %v1601 = vmul.f32 %v1364, %v1460
  %v1602 = vmul.f32 %v1369, %v1460
  %v1603 = vmul.f32 %v1372, %v1460
  %v1604 = vmul.f32 %v1377, %v1460
  %v1605 = vmul.f32 %v1380, %v1460
  %v1606 = vmul.f32 %v1385, %v1460
  %v1607 = vmul.f32 %v1388, %v1460
  %v1608 = vmul.f32 %v1393, %v1460
  %v1609 = vmul.f32 %v1396, %v1460
  %v1610 = vmul.f32 %v1401, %v1460
  %v1611 = vmul.f32 %v1404, %v1460
  %v1612 = vmul.f32 %v1409, %v1460
  %v1613 = vmul.f32 %v1412, %v1460
  %v1614 = vmul.f32 %v1417, %v1460
  %v1615 = vmul.f32 %v1420, %v1460
  %v1616 = vmul.f32 %v1425, %v1460
  %v1617 = vmul.f32 %v1428, %v1460
  %v1618 = vmul.f32 %v1433, %v1460
  %v1619 = vmul.f32 %v1436, %v1460
  %v1620 = vmul.f32 %v1441, %v1460
  %v1621 = vmul.f32 %v1444, %v1460
  %v1622 = vmul.f32 %v1449, %v1460
  %v1623 = vmul.f32 %v1452, %v1460
  %v1624 = vld [vmem:[%s4] sm:$0x1]
  %v1626 = vlaneseq
  %v1627 = vshrl.u32 %v1626, 7
  %v1628 = vsub.s32 0, %v1627
  %v1629 = vrot.slane %v1624, %v1628
  %v1631 = vadd.f32 %v1462, %v1629
  %v1632 = vadd.f32 %v1463, %v1629
  %v1633 = vadd.f32 %v1464, %v1629
  %v1634 = vadd.f32 %v1465, %v1629
  %v1635 = vadd.f32 %v1466, %v1629
  %v1636 = vadd.f32 %v1467, %v1629
  %v1637 = vadd.f32 %v1468, %v1629
  %v1638 = vadd.f32 %v1469, %v1629
  %v1639 = vadd.f32 %v1470, %v1629
  %v1640 = vadd.f32 %v1471, %v1629
  %v1641 = vadd.f32 %v1472, %v1629
  %v1642 = vadd.f32 %v1473, %v1629
  %v1643 = vadd.f32 %v1474, %v1629
  %v1644 = vadd.f32 %v1475, %v1629
  %v1645 = vadd.f32 %v1476, %v1629
  %v1646 = vadd.f32 %v1477, %v1629
  %v1647 = vadd.f32 %v1478, %v1629
  %v1648 = vadd.f32 %v1479, %v1629
  %v1649 = vadd.f32 %v1480, %v1629
  %v1650 = vadd.f32 %v1481, %v1629
  %v1651 = vadd.f32 %v1482, %v1629
  %v1652 = vadd.f32 %v1483, %v1629
  %v1653 = vadd.f32 %v1484, %v1629
  %v1654 = vadd.f32 %v1485, %v1629
  %v1655 = vadd.f32 %v1486, %v1629
  %v1656 = vadd.f32 %v1487, %v1629
  %v1657 = vadd.f32 %v1488, %v1629
  %v1658 = vadd.f32 %v1489, %v1629
  %v1659 = vadd.f32 %v1490, %v1629
  %v1660 = vadd.f32 %v1491, %v1629
  %v1661 = vadd.f32 %v1492, %v1629
  %v1662 = vadd.f32 %v1493, %v1629
  %v1663 = vadd.f32 %v1494, %v1629
  %v1664 = vadd.f32 %v1495, %v1629
  %v1665 = vadd.f32 %v1496, %v1629
  %v1666 = vadd.f32 %v1497, %v1629
  %v1667 = vadd.f32 %v1498, %v1629
  %v1668 = vadd.f32 %v1499, %v1629
  %v1669 = vadd.f32 %v1500, %v1629
  %v1670 = vadd.f32 %v1501, %v1629
  %v1671 = vadd.f32 %v1502, %v1629
  %v1672 = vadd.f32 %v1503, %v1629
  %v1673 = vadd.f32 %v1504, %v1629
  %v1674 = vadd.f32 %v1505, %v1629
  %v1675 = vadd.f32 %v1506, %v1629
  %v1676 = vadd.f32 %v1507, %v1629
  %v1677 = vadd.f32 %v1508, %v1629
  %v1678 = vadd.f32 %v1509, %v1629
  %v1679 = vadd.f32 %v1510, %v1629
  %v1680 = vadd.f32 %v1511, %v1629
  %v1681 = vadd.f32 %v1512, %v1629
  %v1682 = vadd.f32 %v1513, %v1629
  %v1683 = vadd.f32 %v1514, %v1629
  %v1684 = vadd.f32 %v1515, %v1629
  %v1685 = vadd.f32 %v1516, %v1629
  %v1686 = vadd.f32 %v1517, %v1629
  %v1687 = vadd.f32 %v1518, %v1629
  %v1688 = vadd.f32 %v1519, %v1629
  %v1689 = vadd.f32 %v1520, %v1629
  %v1690 = vadd.f32 %v1521, %v1629
  %v1691 = vadd.f32 %v1522, %v1629
  %v1692 = vadd.f32 %v1523, %v1629
  %v1693 = vadd.f32 %v1524, %v1629
  %v1694 = vadd.f32 %v1525, %v1629
  %v1695 = vadd.f32 %v1526, %v1629
  %v1696 = vadd.f32 %v1527, %v1629
  %v1697 = vadd.f32 %v1528, %v1629
  %v1698 = vadd.f32 %v1529, %v1629
  %v1699 = vadd.f32 %v1530, %v1629
  %v1700 = vadd.f32 %v1531, %v1629
  %v1701 = vadd.f32 %v1532, %v1629
  %v1702 = vadd.f32 %v1533, %v1629
  %v1703 = vadd.f32 %v1534, %v1629
  %v1704 = vadd.f32 %v1535, %v1629
  %v1705 = vadd.f32 %v1536, %v1629
  %v1706 = vadd.f32 %v1537, %v1629
  %v1707 = vadd.f32 %v1538, %v1629
  %v1708 = vadd.f32 %v1539, %v1629
  %v1709 = vadd.f32 %v1540, %v1629
  %v1710 = vadd.f32 %v1541, %v1629
  %v1711 = vadd.f32 %v1542, %v1629
  %v1712 = vadd.f32 %v1543, %v1629
  %v1713 = vadd.f32 %v1544, %v1629
  %v1714 = vadd.f32 %v1545, %v1629
  %v1715 = vadd.f32 %v1546, %v1629
  %v1716 = vadd.f32 %v1547, %v1629
  %v1717 = vadd.f32 %v1548, %v1629
  %v1718 = vadd.f32 %v1549, %v1629
  %v1719 = vadd.f32 %v1550, %v1629
  %v1720 = vadd.f32 %v1551, %v1629
  %v1721 = vadd.f32 %v1552, %v1629
  %v1722 = vadd.f32 %v1553, %v1629
  %v1723 = vadd.f32 %v1554, %v1629
  %v1724 = vadd.f32 %v1555, %v1629
  %v1725 = vadd.f32 %v1556, %v1629
  %v1726 = vadd.f32 %v1557, %v1629
  %v1727 = vadd.f32 %v1558, %v1629
  %v1728 = vadd.f32 %v1559, %v1629
  %v1729 = vadd.f32 %v1560, %v1629
  %v1730 = vadd.f32 %v1561, %v1629
  %v1731 = vadd.f32 %v1562, %v1629
  %v1732 = vadd.f32 %v1563, %v1629
  %v1733 = vadd.f32 %v1564, %v1629
  %v1734 = vadd.f32 %v1565, %v1629
  %v1735 = vadd.f32 %v1566, %v1629
  %v1736 = vadd.f32 %v1567, %v1629
  %v1737 = vadd.f32 %v1568, %v1629
  %v1738 = vadd.f32 %v1569, %v1629
  %v1739 = vadd.f32 %v1570, %v1629
  %v1740 = vadd.f32 %v1571, %v1629
  %v1741 = vadd.f32 %v1572, %v1629
  %v1742 = vadd.f32 %v1573, %v1629
  %v1743 = vadd.f32 %v1574, %v1629
  %v1744 = vadd.f32 %v1575, %v1629
  %v1745 = vadd.f32 %v1576, %v1629
  %v1746 = vadd.f32 %v1577, %v1629
  %v1747 = vadd.f32 %v1578, %v1629
  %v1748 = vadd.f32 %v1579, %v1629
  %v1749 = vadd.f32 %v1580, %v1629
  %v1750 = vadd.f32 %v1581, %v1629
  %v1751 = vadd.f32 %v1582, %v1629
  %v1752 = vadd.f32 %v1583, %v1629
  %v1753 = vadd.f32 %v1584, %v1629
  %v1754 = vadd.f32 %v1585, %v1629
  %v1755 = vadd.f32 %v1586, %v1629
  %v1756 = vadd.f32 %v1587, %v1629
  %v1757 = vadd.f32 %v1588, %v1629
  %v1758 = vadd.f32 %v1589, %v1629
  %v1759 = vadd.f32 %v1590, %v1629
  %v1760 = vadd.f32 %v1591, %v1629
  %v1761 = vadd.f32 %v1592, %v1629
  %v1762 = vadd.f32 %v1593, %v1629
  %v1763 = vadd.f32 %v1594, %v1629
  %v1764 = vadd.f32 %v1595, %v1629
  %v1765 = vadd.f32 %v1596, %v1629
  %v1766 = vadd.f32 %v1597, %v1629
  %v1767 = vadd.f32 %v1598, %v1629
  %v1768 = vadd.f32 %v1599, %v1629
  %v1769 = vadd.f32 %v1600, %v1629
  %v1770 = vadd.f32 %v1601, %v1629
  %v1771 = vadd.f32 %v1602, %v1629
  %v1772 = vadd.f32 %v1603, %v1629
  %v1773 = vadd.f32 %v1604, %v1629
  %v1774 = vadd.f32 %v1605, %v1629
  %v1775 = vadd.f32 %v1606, %v1629
  %v1776 = vadd.f32 %v1607, %v1629
  %v1777 = vadd.f32 %v1608, %v1629
  %v1778 = vadd.f32 %v1609, %v1629
  %v1779 = vadd.f32 %v1610, %v1629
  %v1780 = vadd.f32 %v1611, %v1629
  %v1781 = vadd.f32 %v1612, %v1629
  %v1782 = vadd.f32 %v1613, %v1629
  %v1783 = vadd.f32 %v1614, %v1629
  %v1784 = vadd.f32 %v1615, %v1629
  %v1785 = vadd.f32 %v1616, %v1629
  %v1786 = vadd.f32 %v1617, %v1629
  %v1787 = vadd.f32 %v1618, %v1629
  %v1788 = vadd.f32 %v1619, %v1629
  %v1789 = vadd.f32 %v1620, %v1629
  %v1790 = vadd.f32 %v1621, %v1629
  %v1791 = vadd.f32 %v1622, %v1629
  %v1792 = vadd.f32 %v1623, %v1629
  %v1793 = vmax.f32 %v1631, 0.0
  %v1794 = vmax.f32 %v1632, 0.0
  %v1795 = vmax.f32 %v1633, 0.0
  %v1796 = vmax.f32 %v1634, 0.0
  %v1797 = vmax.f32 %v1635, 0.0
  %v1798 = vmax.f32 %v1636, 0.0
  %v1799 = vmax.f32 %v1637, 0.0
  %v1800 = vmax.f32 %v1638, 0.0
  %v1801 = vmax.f32 %v1639, 0.0
  %v1802 = vmax.f32 %v1640, 0.0
  %v1803 = vmax.f32 %v1641, 0.0
  %v1804 = vmax.f32 %v1642, 0.0
  %v1805 = vmax.f32 %v1643, 0.0
  %v1806 = vmax.f32 %v1644, 0.0
  %v1807 = vmax.f32 %v1645, 0.0
  %v1808 = vmax.f32 %v1646, 0.0
  %v1809 = vmax.f32 %v1647, 0.0
  %v1810 = vmax.f32 %v1648, 0.0
  %v1811 = vmax.f32 %v1649, 0.0
  %v1812 = vmax.f32 %v1650, 0.0
  %v1813 = vmax.f32 %v1651, 0.0
  %v1814 = vmax.f32 %v1652, 0.0
  %v1815 = vmax.f32 %v1653, 0.0
  %v1816 = vmax.f32 %v1654, 0.0
  %v1817 = vmax.f32 %v1655, 0.0
  %v1818 = vmax.f32 %v1656, 0.0
  %v1819 = vmax.f32 %v1657, 0.0
  %v1820 = vmax.f32 %v1658, 0.0
  %v1821 = vmax.f32 %v1659, 0.0
  %v1822 = vmax.f32 %v1660, 0.0
  %v1823 = vmax.f32 %v1661, 0.0
  %v1824 = vmax.f32 %v1662, 0.0
  %v1825 = vmax.f32 %v1663, 0.0
  %v1826 = vmax.f32 %v1664, 0.0
  %v1827 = vmax.f32 %v1665, 0.0
  %v1828 = vmax.f32 %v1666, 0.0
  %v1829 = vmax.f32 %v1667, 0.0
  %v1830 = vmax.f32 %v1668, 0.0
  %v1831 = vmax.f32 %v1669, 0.0
  %v1832 = vmax.f32 %v1670, 0.0
  %v1833 = vmax.f32 %v1671, 0.0
  %v1834 = vmax.f32 %v1672, 0.0
  %v1835 = vmax.f32 %v1673, 0.0
  %v1836 = vmax.f32 %v1674, 0.0
  %v1837 = vmax.f32 %v1675, 0.0
  %v1838 = vmax.f32 %v1676, 0.0
  %v1839 = vmax.f32 %v1677, 0.0
  %v1840 = vmax.f32 %v1678, 0.0
  %v1841 = vmax.f32 %v1679, 0.0
  %v1842 = vmax.f32 %v1680, 0.0
  %v1843 = vmax.f32 %v1681, 0.0
  %v1844 = vmax.f32 %v1682, 0.0
  %v1845 = vmax.f32 %v1683, 0.0
  %v1846 = vmax.f32 %v1684, 0.0
  %v1847 = vmax.f32 %v1685, 0.0
  %v1848 = vmax.f32 %v1686, 0.0
  %v1849 = vmax.f32 %v1687, 0.0
  %v1850 = vmax.f32 %v1688, 0.0
  %v1851 = vmax.f32 %v1689, 0.0
  %v1852 = vmax.f32 %v1690, 0.0
  %v1853 = vmax.f32 %v1691, 0.0
  %v1854 = vmax.f32 %v1692, 0.0
  %v1855 = vmax.f32 %v1693, 0.0
  %v1856 = vmax.f32 %v1694, 0.0
  %v1857 = vmax.f32 %v1695, 0.0
  %v1858 = vmax.f32 %v1696, 0.0
  %v1859 = vmax.f32 %v1697, 0.0
  %v1860 = vmax.f32 %v1698, 0.0
  %v1861 = vmax.f32 %v1699, 0.0
  %v1862 = vmax.f32 %v1700, 0.0
  %v1863 = vmax.f32 %v1701, 0.0
  %v1864 = vmax.f32 %v1702, 0.0
  %v1865 = vmax.f32 %v1703, 0.0
  %v1866 = vmax.f32 %v1704, 0.0
  %v1867 = vmax.f32 %v1705, 0.0
  %v1868 = vmax.f32 %v1706, 0.0
  %v1869 = vmax.f32 %v1707, 0.0
  %v1870 = vmax.f32 %v1708, 0.0
  %v1871 = vmax.f32 %v1709, 0.0
  %v1872 = vmax.f32 %v1710, 0.0
  %v1873 = vmax.f32 %v1711, 0.0
  %v1874 = vmax.f32 %v1712, 0.0
  %v1875 = vmax.f32 %v1713, 0.0
  %v1876 = vmax.f32 %v1714, 0.0
  %v1877 = vmax.f32 %v1715, 0.0
  %v1878 = vmax.f32 %v1716, 0.0
  %v1879 = vmax.f32 %v1717, 0.0
  %v1880 = vmax.f32 %v1718, 0.0
  %v1881 = vmax.f32 %v1719, 0.0
  %v1882 = vmax.f32 %v1720, 0.0
  %v1883 = vmax.f32 %v1721, 0.0
  %v1884 = vmax.f32 %v1722, 0.0
  %v1885 = vmax.f32 %v1723, 0.0
  %v1886 = vmax.f32 %v1724, 0.0
  %v1887 = vmax.f32 %v1725, 0.0
  %v1888 = vmax.f32 %v1726, 0.0
  %v1889 = vmax.f32 %v1727, 0.0
  %v1890 = vmax.f32 %v1728, 0.0
  %v1891 = vmax.f32 %v1729, 0.0
  %v1892 = vmax.f32 %v1730, 0.0
  %v1893 = vmax.f32 %v1731, 0.0
  %v1894 = vmax.f32 %v1732, 0.0
  %v1895 = vmax.f32 %v1733, 0.0
  %v1896 = vmax.f32 %v1734, 0.0
  %v1897 = vmax.f32 %v1735, 0.0
  %v1898 = vmax.f32 %v1736, 0.0
  %v1899 = vmax.f32 %v1737, 0.0
  %v1900 = vmax.f32 %v1738, 0.0
  %v1901 = vmax.f32 %v1739, 0.0
  %v1902 = vmax.f32 %v1740, 0.0
  %v1903 = vmax.f32 %v1741, 0.0
  %v1904 = vmax.f32 %v1742, 0.0
  %v1905 = vmax.f32 %v1743, 0.0
  %v1906 = vmax.f32 %v1744, 0.0
  %v1907 = vmax.f32 %v1745, 0.0
  %v1908 = vmax.f32 %v1746, 0.0
  %v1909 = vmax.f32 %v1747, 0.0
  %v1910 = vmax.f32 %v1748, 0.0
  %v1911 = vmax.f32 %v1749, 0.0
  %v1912 = vmax.f32 %v1750, 0.0
  %v1913 = vmax.f32 %v1751, 0.0
  %v1914 = vmax.f32 %v1752, 0.0
  %v1915 = vmax.f32 %v1753, 0.0
  %v1916 = vmax.f32 %v1754, 0.0
  %v1917 = vmax.f32 %v1755, 0.0
  %v1918 = vmax.f32 %v1756, 0.0
  %v1919 = vmax.f32 %v1757, 0.0
  %v1920 = vmax.f32 %v1758, 0.0
  %v1921 = vmax.f32 %v1759, 0.0
  %v1922 = vmax.f32 %v1760, 0.0
  %v1923 = vmax.f32 %v1761, 0.0
  %v1924 = vmax.f32 %v1762, 0.0
  %v1925 = vmax.f32 %v1763, 0.0
  %v1926 = vmax.f32 %v1764, 0.0
  %v1927 = vmax.f32 %v1765, 0.0
  %v1928 = vmax.f32 %v1766, 0.0
  %v1929 = vmax.f32 %v1767, 0.0
  %v1930 = vmax.f32 %v1768, 0.0
  %v1931 = vmax.f32 %v1769, 0.0
  %v1932 = vmax.f32 %v1770, 0.0
  %v1933 = vmax.f32 %v1771, 0.0
  %v1934 = vmax.f32 %v1772, 0.0
  %v1935 = vmax.f32 %v1773, 0.0
  %v1936 = vmax.f32 %v1774, 0.0
  %v1937 = vmax.f32 %v1775, 0.0
  %v1938 = vmax.f32 %v1776, 0.0
  %v1939 = vmax.f32 %v1777, 0.0
  %v1940 = vmax.f32 %v1778, 0.0
  %v1941 = vmax.f32 %v1779, 0.0
  %v1942 = vmax.f32 %v1780, 0.0
  %v1943 = vmax.f32 %v1781, 0.0
  %v1944 = vmax.f32 %v1782, 0.0
  %v1945 = vmax.f32 %v1783, 0.0
  %v1946 = vmax.f32 %v1784, 0.0
  %v1947 = vmax.f32 %v1785, 0.0
  %v1948 = vmax.f32 %v1786, 0.0
  %v1949 = vmax.f32 %v1787, 0.0
  %v1950 = vmax.f32 %v1788, 0.0
  %v1951 = vmax.f32 %v1789, 0.0
  %v1952 = vmax.f32 %v1790, 0.0
  %v1953 = vmax.f32 %v1791, 0.0
  %v1954 = vmax.f32 %v1792, 0.0
  %v1955 = vpack.c.bf16 %v1794, %v1793
  %v1956 = vpack.c.bf16 %v1796, %v1795
  %v1957 = vpack.c.bf16 %v1798, %v1797
  %v1958 = vpack.c.bf16 %v1800, %v1799
  %v1959 = vpack.c.bf16 %v1802, %v1801
  %v1960 = vpack.c.bf16 %v1804, %v1803
  %v1961 = vpack.c.bf16 %v1806, %v1805
  %v1962 = vpack.c.bf16 %v1808, %v1807
  %v1963 = vpack.c.bf16 %v1810, %v1809
  %v1964 = vpack.c.bf16 %v1812, %v1811
  %v1965 = vpack.c.bf16 %v1814, %v1813
  %v1966 = vpack.c.bf16 %v1816, %v1815
  %v1967 = vpack.c.bf16 %v1818, %v1817
  %v1968 = vpack.c.bf16 %v1820, %v1819
  %v1969 = vpack.c.bf16 %v1822, %v1821
  %v1970 = vpack.c.bf16 %v1824, %v1823
  %v1971 = vpack.c.bf16 %v1826, %v1825
  %v1972 = vpack.c.bf16 %v1828, %v1827
  %v1973 = vpack.c.bf16 %v1830, %v1829
  %v1974 = vpack.c.bf16 %v1832, %v1831
  %v1975 = vpack.c.bf16 %v1834, %v1833
  %v1976 = vpack.c.bf16 %v1836, %v1835
  %v1977 = vpack.c.bf16 %v1838, %v1837
  %v1978 = vpack.c.bf16 %v1840, %v1839
  %v1979 = vpack.c.bf16 %v1842, %v1841
  %v1980 = vpack.c.bf16 %v1844, %v1843
  %v1981 = vpack.c.bf16 %v1846, %v1845
  %v1982 = vpack.c.bf16 %v1848, %v1847
  %v1983 = vpack.c.bf16 %v1850, %v1849
  %v1984 = vpack.c.bf16 %v1852, %v1851
  %v1985 = vpack.c.bf16 %v1854, %v1853
  %v1986 = vpack.c.bf16 %v1856, %v1855
  %v1987 = vpack.c.bf16 %v1858, %v1857
  %v1988 = vpack.c.bf16 %v1860, %v1859
  %v1989 = vpack.c.bf16 %v1862, %v1861
  %v1990 = vpack.c.bf16 %v1864, %v1863
  %v1991 = vpack.c.bf16 %v1866, %v1865
  %v1992 = vpack.c.bf16 %v1868, %v1867
  %v1993 = vpack.c.bf16 %v1870, %v1869
  %v1994 = vpack.c.bf16 %v1872, %v1871
  %v1995 = vpack.c.bf16 %v1874, %v1873
  %v1996 = vpack.c.bf16 %v1876, %v1875
  %v1997 = vpack.c.bf16 %v1878, %v1877
  %v1998 = vpack.c.bf16 %v1880, %v1879
  %v1999 = vpack.c.bf16 %v1882, %v1881
  %v2000 = vpack.c.bf16 %v1884, %v1883
  %v2001 = vpack.c.bf16 %v1886, %v1885
  %v2002 = vpack.c.bf16 %v1888, %v1887
  %v2003 = vpack.c.bf16 %v1890, %v1889
  %v2004 = vpack.c.bf16 %v1892, %v1891
  %v2005 = vpack.c.bf16 %v1894, %v1893
  %v2006 = vpack.c.bf16 %v1896, %v1895
  %v2007 = vpack.c.bf16 %v1898, %v1897
  %v2008 = vpack.c.bf16 %v1900, %v1899
  %v2009 = vpack.c.bf16 %v1902, %v1901
  %v2010 = vpack.c.bf16 %v1904, %v1903
  %v2011 = vpack.c.bf16 %v1906, %v1905
  %v2012 = vpack.c.bf16 %v1908, %v1907
  %v2013 = vpack.c.bf16 %v1910, %v1909
  %v2014 = vpack.c.bf16 %v1912, %v1911
  %v2015 = vpack.c.bf16 %v1914, %v1913
  %v2016 = vpack.c.bf16 %v1916, %v1915
  %v2017 = vpack.c.bf16 %v1918, %v1917
  %v2018 = vpack.c.bf16 %v1920, %v1919
  %v2019 = vpack.c.bf16 %v1922, %v1921
  %v2020 = vpack.c.bf16 %v1924, %v1923
  %v2021 = vpack.c.bf16 %v1926, %v1925
  %v2022 = vpack.c.bf16 %v1928, %v1927
  %v2023 = vpack.c.bf16 %v1930, %v1929
  %v2024 = vpack.c.bf16 %v1932, %v1931
  %v2025 = vpack.c.bf16 %v1934, %v1933
  %v2026 = vpack.c.bf16 %v1936, %v1935
  %v2027 = vpack.c.bf16 %v1938, %v1937
  %v2028 = vpack.c.bf16 %v1940, %v1939
  %v2029 = vpack.c.bf16 %v1942, %v1941
  %v2030 = vpack.c.bf16 %v1944, %v1943
  %v2031 = vpack.c.bf16 %v1946, %v1945
  %v2032 = vpack.c.bf16 %v1948, %v1947
  %v2033 = vpack.c.bf16 %v1950, %v1949
  %v2034 = vpack.c.bf16 %v1952, %v1951
  %v2035 = vpack.c.bf16 %v1954, %v1953
  %v2036 = vld [vmem:[%s5] sm:$0xf]
  %v2037 = vld [vmem:[%s5 + $0x4] sm:$0xf]
  %v2038 = vld [vmem:[%s5 + $0x8] sm:$0xf]
  %v2039 = vld [vmem:[%s5 + $0xc] sm:$0xf]
  %v2040 = vld [vmem:[%s5 + $0x10] sm:$0xf]
  %v2041 = vld [vmem:[%s5 + $0x14] sm:$0xf]
  %v2042 = vld [vmem:[%s5 + $0x18] sm:$0xf]
  %v2043 = vld [vmem:[%s5 + $0x1c] sm:$0xf]
  %v2048 = vunpack.c.l.b16 %v2040
  %v2049 = vunpack.c.l.b16 %v2041
  %v2050 = vunpack.c.l.b16 %v2042
  %v2051 = vunpack.c.l.b16 %v2043
  %v2052 = vpack.c.b16 %v2049, %v2048
  %v2053 = vpack.c.b16 %v2051, %v2050
  %vm2056 = vcmask 261120
  %v2058 = vsel %vm2056, %v1964, 0
  %v2061 = vsel %vm2056, %v1965, 0
  %v2064 = vsel %vm2056, %v1966, 0
  %v2067 = vsel %vm2056, %v1967, 0
  %v2070 = vsel %vm2056, %v1968, 0
  %v2073 = vsel %vm2056, %v1969, 0
  %v2076 = vsel %vm2056, %v1970, 0
  %v2079 = vsel %vm2056, %v1971, 0
  %v2082 = vsel %vm2056, %v1972, 0
  %2084 = vmatprep.subr.bf16.mxu0 0
  %2085 = vmatpush1.bf16.msra.mxu0 %v2052
  %2086 = vmatprep.subr.bf16.mxu0 0
  %2087 = vmatpush1.bf16.msra.mxu0 %v2053
  %2088 = vmatprep.subr.bf16.mxu0 0
  %2089 = vmatpush1.bf16.msra.mxu0 0
  %2090 = vmatprep.subr.bf16.mxu0 0
  %2091 = vmatpush1.bf16.msra.mxu0 0
  %2092 = vmatprep.subr.bf16.mxu0 0
  %2093 = vmatpush1.bf16.msra.mxu0 0
  %2094 = vmatprep.subr.bf16.mxu0 0
  %2095 = vmatpush1.bf16.msra.mxu0 0
  %2096 = vmatprep.subr.bf16.mxu0 0
  %2097 = vmatpush1.bf16.msra.mxu0 0
  %2098 = vmatprep.subr.bf16.mxu0 0
  %2099 = vmatpush1.bf16.msra.mxu0 0
  %2100 = vmatprep.subr.bf16.mxu0 0
  %2101 = vmatpush1.bf16.msra.mxu0 0
  %2102 = vmatprep.subr.bf16.mxu0 0
  %2103 = vmatpush1.bf16.msra.mxu0 0
  %2104 = vmatprep.subr.bf16.mxu0 0
  %2105 = vmatpush1.bf16.msra.mxu0 0
  %2106 = vmatprep.subr.bf16.mxu0 0
  %2107 = vmatpush1.bf16.msra.mxu0 0
  %2108 = vmatprep.subr.bf16.mxu0 0
  %2109 = vmatpush1.bf16.msra.mxu0 0
  %2110 = vmatprep.subr.bf16.mxu0 0
  %2111 = vmatpush1.bf16.msra.mxu0 0
  %2112 = vmatprep.subr.bf16.mxu0 0
  %2113 = vmatpush1.bf16.msra.mxu0 0
  %2114 = vmatprep.subr.bf16.mxu0 0
  %2115 = vmatpush1.bf16.msra.mxu0 0
  %2116 = vmatprep.mubr.bf16.mxu0 0
  %2117 = vmatmul.mubr.bf16.gmra.mrb[0].mxu0 %v2058
  %v2118 = vpop.f32.mrb[0].mxu0
  %v2119 = vadd.f32 0.0, %v2118
  %v2120 = vpop.f32.mrb[0].mxu0
  %v2121 = vpop.f32.mrb[0].mxu0
  %v2122 = vadd.f32 0.0, %v2121
  %v2123 = vpop.f32.mrb[0].mxu0
  %2124 = vmatprep.mubr.bf16.mxu0 0
  %2125 = vmatmul.mubr.bf16.gmra.mrb[0].mxu0 %v2061
  %v2126 = vpop.f32.mrb[0].mxu0
  %v2127 = vadd.f32 0.0, %v2126
  %v2128 = vpop.f32.mrb[0].mxu0
  %v2129 = vpop.f32.mrb[0].mxu0
  %v2130 = vadd.f32 0.0, %v2129
  %v2131 = vpop.f32.mrb[0].mxu0
  %2132 = vmatprep.mubr.bf16.mxu0 0
  %2133 = vmatmul.mubr.bf16.gmra.mrb[0].mxu0 %v2064
  %v2134 = vpop.f32.mrb[0].mxu0
  %v2135 = vadd.f32 0.0, %v2134
  %v2136 = vpop.f32.mrb[0].mxu0
  %v2137 = vpop.f32.mrb[0].mxu0
  %v2138 = vadd.f32 0.0, %v2137
  %v2139 = vpop.f32.mrb[0].mxu0
  %2140 = vmatprep.mubr.bf16.mxu0 0
  %2141 = vmatmul.mubr.bf16.gmra.mrb[0].mxu0 %v2067
  %v2142 = vpop.f32.mrb[0].mxu0
  %v2143 = vadd.f32 0.0, %v2142
  %v2144 = vpop.f32.mrb[0].mxu0
  %v2145 = vpop.f32.mrb[0].mxu0
  %v2146 = vadd.f32 0.0, %v2145
  %v2147 = vpop.f32.mrb[0].mxu0
  %2148 = vmatprep.mubr.bf16.mxu0 0
  %2149 = vmatmul.mubr.bf16.gmra.mrb[0].mxu0 %v2070
  %v2150 = vpop.f32.mrb[0].mxu0
  %v2151 = vadd.f32 0.0, %v2150
  %v2152 = vpop.f32.mrb[0].mxu0
  %v2153 = vpop.f32.mrb[0].mxu0
  %v2154 = vadd.f32 0.0, %v2153
  %v2155 = vpop.f32.mrb[0].mxu0
  %2156 = vmatprep.mubr.bf16.mxu0 0
  %2157 = vmatmul.mubr.bf16.gmra.mrb[0].mxu0 %v2073
  %v2158 = vpop.f32.mrb[0].mxu0
  %v2159 = vadd.f32 0.0, %v2158
  %v2160 = vpop.f32.mrb[0].mxu0
  %v2161 = vpop.f32.mrb[0].mxu0
  %v2162 = vadd.f32 0.0, %v2161
  %v2163 = vpop.f32.mrb[0].mxu0
  %2164 = vmatprep.mubr.bf16.mxu0 0
  %2165 = vmatmul.mubr.bf16.gmra.mrb[0].mxu0 %v2076
  %v2166 = vpop.f32.mrb[0].mxu0
  %v2167 = vadd.f32 0.0, %v2166
  %v2168 = vpop.f32.mrb[0].mxu0
  %v2169 = vpop.f32.mrb[0].mxu0
  %v2170 = vadd.f32 0.0, %v2169
  %v2171 = vpop.f32.mrb[0].mxu0
  %2172 = vmatprep.mubr.bf16.mxu0 0
  %2173 = vmatmul.mubr.bf16.gmra.mrb[0].mxu0 %v2079
  %v2174 = vpop.f32.mrb[0].mxu0
  %v2175 = vadd.f32 0.0, %v2174
  %v2176 = vpop.f32.mrb[0].mxu0
  %v2177 = vpop.f32.mrb[0].mxu0
  %v2178 = vadd.f32 0.0, %v2177
  %v2179 = vpop.f32.mrb[0].mxu0
  %2180 = vmatprep.mubr.bf16.mxu0 0
  %2181 = vmatmul.mubr.bf16.gmra.mrb[0].mxu0 %v2082
  %v2182 = vpop.f32.mrb[0].mxu0
  %v2183 = vadd.f32 0.0, %v2182
  %v2184 = vpop.f32.mrb[0].mxu0
  %v2185 = vpop.f32.mrb[0].mxu0
  %v2186 = vadd.f32 0.0, %v2185
  %v2187 = vpop.f32.mrb[0].mxu0
  %2188 = vdwg.mxu0
  %v2193 = vunpack.c.l.b16 %v2036
  %v2194 = vunpack.c.l.b16 %v2037
  %v2195 = vunpack.c.l.b16 %v2038
  %v2196 = vunpack.c.l.b16 %v2039
  %v2197 = vpack.c.b16 %v2194, %v2193
  %v2198 = vpack.c.b16 %v2196, %v2195
  %v2202 = vsel %vm2056, %v1955, 0
  %v2205 = vsel %vm2056, %v1956, 0
  %v2208 = vsel %vm2056, %v1957, 0
  %v2211 = vsel %vm2056, %v1958, 0
  %v2214 = vsel %vm2056, %v1959, 0
  %v2217 = vsel %vm2056, %v1960, 0
  %v2220 = vsel %vm2056, %v1961, 0
  %v2223 = vsel %vm2056, %v1962, 0
  %v2226 = vsel %vm2056, %v1963, 0
  %2228 = vmatprep.subr.bf16.mxu0 0
  %2229 = vmatpush1.bf16.msra.mxu0 %v2197
  %2230 = vmatprep.subr.bf16.mxu0 0
  %2231 = vmatpush1.bf16.msra.mxu0 %v2198
  %2232 = vmatprep.subr.bf16.mxu0 0
  %2233 = vmatpush1.bf16.msra.mxu0 0
  %2234 = vmatprep.subr.bf16.mxu0 0
  %2235 = vmatpush1.bf16.msra.mxu0 0
  %2236 = vmatprep.subr.bf16.mxu0 0
  %2237 = vmatpush1.bf16.msra.mxu0 0
  %2238 = vmatprep.subr.bf16.mxu0 0
  %2239 = vmatpush1.bf16.msra.mxu0 0
  %2240 = vmatprep.subr.bf16.mxu0 0
  %2241 = vmatpush1.bf16.msra.mxu0 0
  %2242 = vmatprep.subr.bf16.mxu0 0
  %2243 = vmatpush1.bf16.msra.mxu0 0
  %2244 = vmatprep.subr.bf16.mxu0 0
  %2245 = vmatpush1.bf16.msra.mxu0 0
  %2246 = vmatprep.subr.bf16.mxu0 0
  %2247 = vmatpush1.bf16.msra.mxu0 0
  %2248 = vmatprep.subr.bf16.mxu0 0
  %2249 = vmatpush1.bf16.msra.mxu0 0
  %2250 = vmatprep.subr.bf16.mxu0 0
  %2251 = vmatpush1.bf16.msra.mxu0 0
  %2252 = vmatprep.subr.bf16.mxu0 0
  %2253 = vmatpush1.bf16.msra.mxu0 0
  %2254 = vmatprep.subr.bf16.mxu0 0
  %2255 = vmatpush1.bf16.msra.mxu0 0
  %2256 = vmatprep.subr.bf16.mxu0 0
  %2257 = vmatpush1.bf16.msra.mxu0 0
  %2258 = vmatprep.subr.bf16.mxu0 0
  %2259 = vmatpush1.bf16.msra.mxu0 0
  %2260 = vmatprep.mubr.bf16.mxu0 0
  %2261 = vmatmul.mubr.bf16.gmra.mrb[0].mxu0 %v2202
  %v2262 = vpop.f32.mrb[0].mxu0
  %v2263 = vadd.f32 %v2119, %v2262
  %v2264 = vpop.f32.mrb[0].mxu0
  %v2265 = vpop.f32.mrb[0].mxu0
  %v2266 = vadd.f32 %v2122, %v2265
  %v2267 = vpop.f32.mrb[0].mxu0
  %2268 = vmatprep.mubr.bf16.mxu0 0
  %2269 = vmatmul.mubr.bf16.gmra.mrb[0].mxu0 %v2205
  %v2270 = vpop.f32.mrb[0].mxu0
  %v2271 = vadd.f32 %v2127, %v2270
  %v2272 = vpop.f32.mrb[0].mxu0
  %v2273 = vpop.f32.mrb[0].mxu0
  %v2274 = vadd.f32 %v2130, %v2273
  %v2275 = vpop.f32.mrb[0].mxu0
  %2276 = vmatprep.mubr.bf16.mxu0 0
  %2277 = vmatmul.mubr.bf16.gmra.mrb[0].mxu0 %v2208
  %v2278 = vpop.f32.mrb[0].mxu0
  %v2279 = vadd.f32 %v2135, %v2278
  %v2280 = vpop.f32.mrb[0].mxu0
  %v2281 = vpop.f32.mrb[0].mxu0
  %v2282 = vadd.f32 %v2138, %v2281
  %v2283 = vpop.f32.mrb[0].mxu0
  %2284 = vmatprep.mubr.bf16.mxu0 0
  %2285 = vmatmul.mubr.bf16.gmra.mrb[0].mxu0 %v2211
  %v2286 = vpop.f32.mrb[0].mxu0
  %v2287 = vadd.f32 %v2143, %v2286
  %v2288 = vpop.f32.mrb[0].mxu0
  %v2289 = vpop.f32.mrb[0].mxu0
  %v2290 = vadd.f32 %v2146, %v2289
  %v2291 = vpop.f32.mrb[0].mxu0
  %2292 = vmatprep.mubr.bf16.mxu0 0
  %2293 = vmatmul.mubr.bf16.gmra.mrb[0].mxu0 %v2214
  %v2294 = vpop.f32.mrb[0].mxu0
  %v2295 = vadd.f32 %v2151, %v2294
  %v2296 = vpop.f32.mrb[0].mxu0
  %v2297 = vpop.f32.mrb[0].mxu0
  %v2298 = vadd.f32 %v2154, %v2297
  %v2299 = vpop.f32.mrb[0].mxu0
  %2300 = vmatprep.mubr.bf16.mxu0 0
  %2301 = vmatmul.mubr.bf16.gmra.mrb[0].mxu0 %v2217
  %v2302 = vpop.f32.mrb[0].mxu0
  %v2303 = vadd.f32 %v2159, %v2302
  %v2304 = vpop.f32.mrb[0].mxu0
  %v2305 = vpop.f32.mrb[0].mxu0
  %v2306 = vadd.f32 %v2162, %v2305
  %v2307 = vpop.f32.mrb[0].mxu0
  %2308 = vmatprep.mubr.bf16.mxu0 0
  %2309 = vmatmul.mubr.bf16.gmra.mrb[0].mxu0 %v2220
  %v2310 = vpop.f32.mrb[0].mxu0
  %v2311 = vadd.f32 %v2167, %v2310
  %v2312 = vpop.f32.mrb[0].mxu0
  %v2313 = vpop.f32.mrb[0].mxu0
  %v2314 = vadd.f32 %v2170, %v2313
  %v2315 = vpop.f32.mrb[0].mxu0
  %2316 = vmatprep.mubr.bf16.mxu0 0
  %2317 = vmatmul.mubr.bf16.gmra.mrb[0].mxu0 %v2223
  %v2318 = vpop.f32.mrb[0].mxu0
  %v2319 = vadd.f32 %v2175, %v2318
  %v2320 = vpop.f32.mrb[0].mxu0
  %v2321 = vpop.f32.mrb[0].mxu0
  %v2322 = vadd.f32 %v2178, %v2321
  %v2323 = vpop.f32.mrb[0].mxu0
  %2324 = vmatprep.mubr.bf16.mxu0 0
  %2325 = vmatmul.mubr.bf16.gmra.mrb[0].mxu0 %v2226
  %v2326 = vpop.f32.mrb[0].mxu0
  %v2327 = vadd.f32 %v2183, %v2326
  %v2328 = vpop.f32.mrb[0].mxu0
  %v2329 = vpop.f32.mrb[0].mxu0
  %v2330 = vadd.f32 %v2186, %v2329
  %v2331 = vpop.f32.mrb[0].mxu0
  %2332 = vdwg.mxu0
  %v2333 = vld [vmem:[%s5 + $0x20] sm:$0xf]
  %v2334 = vld [vmem:[%s5 + $0x24] sm:$0xf]
  %v2335 = vld [vmem:[%s5 + $0x28] sm:$0xf]
  %v2336 = vld [vmem:[%s5 + $0x2c] sm:$0xf]
  %v2341 = vunpack.c.l.b16 %v2333
  %v2342 = vunpack.c.l.b16 %v2334
  %v2343 = vunpack.c.l.b16 %v2335
  %v2344 = vunpack.c.l.b16 %v2336
  %v2345 = vpack.c.b16 %v2342, %v2341
  %v2346 = vpack.c.b16 %v2344, %v2343
  %v2350 = vsel %vm2056, %v1973, 0
  %v2353 = vsel %vm2056, %v1974, 0
  %v2356 = vsel %vm2056, %v1975, 0
  %v2359 = vsel %vm2056, %v1976, 0
  %v2362 = vsel %vm2056, %v1977, 0
  %v2365 = vsel %vm2056, %v1978, 0
  %v2368 = vsel %vm2056, %v1979, 0
  %v2371 = vsel %vm2056, %v1980, 0
  %v2374 = vsel %vm2056, %v1981, 0
  %2376 = vmatprep.subr.bf16.mxu0 0
  %2377 = vmatpush1.bf16.msra.mxu0 %v2345
  %2378 = vmatprep.subr.bf16.mxu0 0
  %2379 = vmatpush1.bf16.msra.mxu0 %v2346
  %2380 = vmatprep.subr.bf16.mxu0 0
  %2381 = vmatpush1.bf16.msra.mxu0 0
  %2382 = vmatprep.subr.bf16.mxu0 0
  %2383 = vmatpush1.bf16.msra.mxu0 0
  %2384 = vmatprep.subr.bf16.mxu0 0
  %2385 = vmatpush1.bf16.msra.mxu0 0
  %2386 = vmatprep.subr.bf16.mxu0 0
  %2387 = vmatpush1.bf16.msra.mxu0 0
  %2388 = vmatprep.subr.bf16.mxu0 0
  %2389 = vmatpush1.bf16.msra.mxu0 0
  %2390 = vmatprep.subr.bf16.mxu0 0
  %2391 = vmatpush1.bf16.msra.mxu0 0
  %2392 = vmatprep.subr.bf16.mxu0 0
  %2393 = vmatpush1.bf16.msra.mxu0 0
  %2394 = vmatprep.subr.bf16.mxu0 0
  %2395 = vmatpush1.bf16.msra.mxu0 0
  %2396 = vmatprep.subr.bf16.mxu0 0
  %2397 = vmatpush1.bf16.msra.mxu0 0
  %2398 = vmatprep.subr.bf16.mxu0 0
  %2399 = vmatpush1.bf16.msra.mxu0 0
  %2400 = vmatprep.subr.bf16.mxu0 0
  %2401 = vmatpush1.bf16.msra.mxu0 0
  %2402 = vmatprep.subr.bf16.mxu0 0
  %2403 = vmatpush1.bf16.msra.mxu0 0
  %2404 = vmatprep.subr.bf16.mxu0 0
  %2405 = vmatpush1.bf16.msra.mxu0 0
  %2406 = vmatprep.subr.bf16.mxu0 0
  %2407 = vmatpush1.bf16.msra.mxu0 0
  %2408 = vmatprep.mubr.bf16.mxu0 0
  %2409 = vmatmul.mubr.bf16.gmra.mrb[0].mxu0 %v2350
  %v2410 = vpop.f32.mrb[0].mxu0
  %v2411 = vadd.f32 0.0, %v2410
  %v2412 = vpop.f32.mrb[0].mxu0
  %v2413 = vpop.f32.mrb[0].mxu0
  %v2414 = vadd.f32 0.0, %v2413
  %v2415 = vpop.f32.mrb[0].mxu0
  %2416 = vmatprep.mubr.bf16.mxu0 0
  %2417 = vmatmul.mubr.bf16.gmra.mrb[0].mxu0 %v2353
  %v2418 = vpop.f32.mrb[0].mxu0
  %v2419 = vadd.f32 0.0, %v2418
  %v2420 = vpop.f32.mrb[0].mxu0
  %v2421 = vpop.f32.mrb[0].mxu0
  %v2422 = vadd.f32 0.0, %v2421
  %v2423 = vpop.f32.mrb[0].mxu0
  %2424 = vmatprep.mubr.bf16.mxu0 0
  %2425 = vmatmul.mubr.bf16.gmra.mrb[0].mxu0 %v2356
  %v2426 = vpop.f32.mrb[0].mxu0
  %v2427 = vadd.f32 0.0, %v2426
  %v2428 = vpop.f32.mrb[0].mxu0
  %v2429 = vpop.f32.mrb[0].mxu0
  %v2430 = vadd.f32 0.0, %v2429
  %v2431 = vpop.f32.mrb[0].mxu0
  %2432 = vmatprep.mubr.bf16.mxu0 0
  %2433 = vmatmul.mubr.bf16.gmra.mrb[0].mxu0 %v2359
  %v2434 = vpop.f32.mrb[0].mxu0
  %v2435 = vadd.f32 0.0, %v2434
  %v2436 = vpop.f32.mrb[0].mxu0
  %v2437 = vpop.f32.mrb[0].mxu0
  %v2438 = vadd.f32 0.0, %v2437
  %v2439 = vpop.f32.mrb[0].mxu0
  %2440 = vmatprep.mubr.bf16.mxu0 0
  %2441 = vmatmul.mubr.bf16.gmra.mrb[0].mxu0 %v2362
  %v2442 = vpop.f32.mrb[0].mxu0
  %v2443 = vadd.f32 0.0, %v2442
  %v2444 = vpop.f32.mrb[0].mxu0
  %v2445 = vpop.f32.mrb[0].mxu0
  %v2446 = vadd.f32 0.0, %v2445
  %v2447 = vpop.f32.mrb[0].mxu0
  %2448 = vmatprep.mubr.bf16.mxu0 0
  %2449 = vmatmul.mubr.bf16.gmra.mrb[0].mxu0 %v2365
  %v2450 = vpop.f32.mrb[0].mxu0
  %v2451 = vadd.f32 0.0, %v2450
  %v2452 = vpop.f32.mrb[0].mxu0
  %v2453 = vpop.f32.mrb[0].mxu0
  %v2454 = vadd.f32 0.0, %v2453
  %v2455 = vpop.f32.mrb[0].mxu0
  %2456 = vmatprep.mubr.bf16.mxu0 0
  %2457 = vmatmul.mubr.bf16.gmra.mrb[0].mxu0 %v2368
  %v2458 = vpop.f32.mrb[0].mxu0
  %v2459 = vadd.f32 0.0, %v2458
  %v2460 = vpop.f32.mrb[0].mxu0
  %v2461 = vpop.f32.mrb[0].mxu0
  %v2462 = vadd.f32 0.0, %v2461
  %v2463 = vpop.f32.mrb[0].mxu0
  %2464 = vmatprep.mubr.bf16.mxu0 0
  %2465 = vmatmul.mubr.bf16.gmra.mrb[0].mxu0 %v2371
  %v2466 = vpop.f32.mrb[0].mxu0
  %v2467 = vadd.f32 0.0, %v2466
  %v2468 = vpop.f32.mrb[0].mxu0
  %v2469 = vpop.f32.mrb[0].mxu0
  %v2470 = vadd.f32 0.0, %v2469
  %v2471 = vpop.f32.mrb[0].mxu0
  %2472 = vmatprep.mubr.bf16.mxu0 0
  %2473 = vmatmul.mubr.bf16.gmra.mrb[0].mxu0 %v2374
  %v2474 = vpop.f32.mrb[0].mxu0
  %v2475 = vadd.f32 0.0, %v2474
  %v2476 = vpop.f32.mrb[0].mxu0
  %v2477 = vpop.f32.mrb[0].mxu0
  %v2478 = vadd.f32 0.0, %v2477
  %v2479 = vpop.f32.mrb[0].mxu0
  %2480 = vdwg.mxu0
  %v2481 = vadd.f32 %v2263, %v2411
  %v2482 = vadd.f32 %v2266, %v2414
  %v2483 = vadd.f32 %v2271, %v2419
  %v2484 = vadd.f32 %v2274, %v2422
  %v2485 = vadd.f32 %v2279, %v2427
  %v2486 = vadd.f32 %v2282, %v2430
  %v2487 = vadd.f32 %v2287, %v2435
  %v2488 = vadd.f32 %v2290, %v2438
  %v2489 = vadd.f32 %v2295, %v2443
  %v2490 = vadd.f32 %v2298, %v2446
  %v2491 = vadd.f32 %v2303, %v2451
  %v2492 = vadd.f32 %v2306, %v2454
  %v2493 = vadd.f32 %v2311, %v2459
  %v2494 = vadd.f32 %v2314, %v2462
  %v2495 = vadd.f32 %v2319, %v2467
  %v2496 = vadd.f32 %v2322, %v2470
  %v2497 = vadd.f32 %v2327, %v2475
  %v2498 = vadd.f32 %v2330, %v2478
  %v2499 = vld [vmem:[%s5 + $0x30] sm:$0xf]
  %v2500 = vld [vmem:[%s5 + $0x34] sm:$0xf]
  %v2501 = vld [vmem:[%s5 + $0x38] sm:$0xf]
  %v2502 = vld [vmem:[%s5 + $0x3c] sm:$0xf]
  %v2507 = vunpack.c.l.b16 %v2499
  %v2508 = vunpack.c.l.b16 %v2500
  %v2509 = vunpack.c.l.b16 %v2501
  %v2510 = vunpack.c.l.b16 %v2502
  %v2511 = vpack.c.b16 %v2508, %v2507
  %v2512 = vpack.c.b16 %v2510, %v2509
  %v2516 = vsel %vm2056, %v1982, 0
  %v2519 = vsel %vm2056, %v1983, 0
  %v2522 = vsel %vm2056, %v1984, 0
  %v2525 = vsel %vm2056, %v1985, 0
  %v2528 = vsel %vm2056, %v1986, 0
  %v2531 = vsel %vm2056, %v1987, 0
  %v2534 = vsel %vm2056, %v1988, 0
  %v2537 = vsel %vm2056, %v1989, 0
  %v2540 = vsel %vm2056, %v1990, 0
  %2542 = vmatprep.subr.bf16.mxu0 0
  %2543 = vmatpush1.bf16.msra.mxu0 %v2511
  %2544 = vmatprep.subr.bf16.mxu0 0
  %2545 = vmatpush1.bf16.msra.mxu0 %v2512
  %2546 = vmatprep.subr.bf16.mxu0 0
  %2547 = vmatpush1.bf16.msra.mxu0 0
  %2548 = vmatprep.subr.bf16.mxu0 0
  %2549 = vmatpush1.bf16.msra.mxu0 0
  %2550 = vmatprep.subr.bf16.mxu0 0
  %2551 = vmatpush1.bf16.msra.mxu0 0
  %2552 = vmatprep.subr.bf16.mxu0 0
  %2553 = vmatpush1.bf16.msra.mxu0 0
  %2554 = vmatprep.subr.bf16.mxu0 0
  %2555 = vmatpush1.bf16.msra.mxu0 0
  %2556 = vmatprep.subr.bf16.mxu0 0
  %2557 = vmatpush1.bf16.msra.mxu0 0
  %2558 = vmatprep.subr.bf16.mxu0 0
  %2559 = vmatpush1.bf16.msra.mxu0 0
  %2560 = vmatprep.subr.bf16.mxu0 0
  %2561 = vmatpush1.bf16.msra.mxu0 0
  %2562 = vmatprep.subr.bf16.mxu0 0
  %2563 = vmatpush1.bf16.msra.mxu0 0
  %2564 = vmatprep.subr.bf16.mxu0 0
  %2565 = vmatpush1.bf16.msra.mxu0 0
  %2566 = vmatprep.subr.bf16.mxu0 0
  %2567 = vmatpush1.bf16.msra.mxu0 0
  %2568 = vmatprep.subr.bf16.mxu0 0
  %2569 = vmatpush1.bf16.msra.mxu0 0
  %2570 = vmatprep.subr.bf16.mxu0 0
  %2571 = vmatpush1.bf16.msra.mxu0 0
  %2572 = vmatprep.subr.bf16.mxu0 0
  %2573 = vmatpush1.bf16.msra.mxu0 0
  %2574 = vmatprep.mubr.bf16.mxu0 0
  %2575 = vmatmul.mubr.bf16.gmra.mrb[0].mxu0 %v2516
  %v2576 = vpop.f32.mrb[0].mxu0
  %v2577 = vadd.f32 0.0, %v2576
  %v2578 = vpop.f32.mrb[0].mxu0
  %v2579 = vpop.f32.mrb[0].mxu0
  %v2580 = vadd.f32 0.0, %v2579
  %v2581 = vpop.f32.mrb[0].mxu0
  %2582 = vmatprep.mubr.bf16.mxu0 0
  %2583 = vmatmul.mubr.bf16.gmra.mrb[0].mxu0 %v2519
  %v2584 = vpop.f32.mrb[0].mxu0
  %v2585 = vadd.f32 0.0, %v2584
  %v2586 = vpop.f32.mrb[0].mxu0
  %v2587 = vpop.f32.mrb[0].mxu0
  %v2588 = vadd.f32 0.0, %v2587
  %v2589 = vpop.f32.mrb[0].mxu0
  %2590 = vmatprep.mubr.bf16.mxu0 0
  %2591 = vmatmul.mubr.bf16.gmra.mrb[0].mxu0 %v2522
  %v2592 = vpop.f32.mrb[0].mxu0
  %v2593 = vadd.f32 0.0, %v2592
  %v2594 = vpop.f32.mrb[0].mxu0
  %v2595 = vpop.f32.mrb[0].mxu0
  %v2596 = vadd.f32 0.0, %v2595
  %v2597 = vpop.f32.mrb[0].mxu0
  %2598 = vmatprep.mubr.bf16.mxu0 0
  %2599 = vmatmul.mubr.bf16.gmra.mrb[0].mxu0 %v2525
  %v2600 = vpop.f32.mrb[0].mxu0
  %v2601 = vadd.f32 0.0, %v2600
  %v2602 = vpop.f32.mrb[0].mxu0
  %v2603 = vpop.f32.mrb[0].mxu0
  %v2604 = vadd.f32 0.0, %v2603
  %v2605 = vpop.f32.mrb[0].mxu0
  %2606 = vmatprep.mubr.bf16.mxu0 0
  %2607 = vmatmul.mubr.bf16.gmra.mrb[0].mxu0 %v2528
  %v2608 = vpop.f32.mrb[0].mxu0
  %v2609 = vadd.f32 0.0, %v2608
  %v2610 = vpop.f32.mrb[0].mxu0
  %v2611 = vpop.f32.mrb[0].mxu0
  %v2612 = vadd.f32 0.0, %v2611
  %v2613 = vpop.f32.mrb[0].mxu0
  %2614 = vmatprep.mubr.bf16.mxu0 0
  %2615 = vmatmul.mubr.bf16.gmra.mrb[0].mxu0 %v2531
  %v2616 = vpop.f32.mrb[0].mxu0
  %v2617 = vadd.f32 0.0, %v2616
  %v2618 = vpop.f32.mrb[0].mxu0
  %v2619 = vpop.f32.mrb[0].mxu0
  %v2620 = vadd.f32 0.0, %v2619
  %v2621 = vpop.f32.mrb[0].mxu0
  %2622 = vmatprep.mubr.bf16.mxu0 0
  %2623 = vmatmul.mubr.bf16.gmra.mrb[0].mxu0 %v2534
  %v2624 = vpop.f32.mrb[0].mxu0
  %v2625 = vadd.f32 0.0, %v2624
  %v2626 = vpop.f32.mrb[0].mxu0
  %v2627 = vpop.f32.mrb[0].mxu0
  %v2628 = vadd.f32 0.0, %v2627
  %v2629 = vpop.f32.mrb[0].mxu0
  %2630 = vmatprep.mubr.bf16.mxu0 0
  %2631 = vmatmul.mubr.bf16.gmra.mrb[0].mxu0 %v2537
  %v2632 = vpop.f32.mrb[0].mxu0
  %v2633 = vadd.f32 0.0, %v2632
  %v2634 = vpop.f32.mrb[0].mxu0
  %v2635 = vpop.f32.mrb[0].mxu0
  %v2636 = vadd.f32 0.0, %v2635
  %v2637 = vpop.f32.mrb[0].mxu0
  %2638 = vmatprep.mubr.bf16.mxu0 0
  %2639 = vmatmul.mubr.bf16.gmra.mrb[0].mxu0 %v2540
  %v2640 = vpop.f32.mrb[0].mxu0
  %v2641 = vadd.f32 0.0, %v2640
  %v2642 = vpop.f32.mrb[0].mxu0
  %v2643 = vpop.f32.mrb[0].mxu0
  %v2644 = vadd.f32 0.0, %v2643
  %v2645 = vpop.f32.mrb[0].mxu0
  %2646 = vdwg.mxu0
  %v2647 = vadd.f32 %v2481, %v2577
  %v2648 = vadd.f32 %v2482, %v2580
  %v2649 = vadd.f32 %v2483, %v2585
  %v2650 = vadd.f32 %v2484, %v2588
  %v2651 = vadd.f32 %v2485, %v2593
  %v2652 = vadd.f32 %v2486, %v2596
  %v2653 = vadd.f32 %v2487, %v2601
  %v2654 = vadd.f32 %v2488, %v2604
  %v2655 = vadd.f32 %v2489, %v2609
  %v2656 = vadd.f32 %v2490, %v2612
  %v2657 = vadd.f32 %v2491, %v2617
  %v2658 = vadd.f32 %v2492, %v2620
  %v2659 = vadd.f32 %v2493, %v2625
  %v2660 = vadd.f32 %v2494, %v2628
  %v2661 = vadd.f32 %v2495, %v2633
  %v2662 = vadd.f32 %v2496, %v2636
  %v2663 = vadd.f32 %v2497, %v2641
  %v2664 = vadd.f32 %v2498, %v2644
  %v2665 = vld [vmem:[%s5 + $0x40] sm:$0xf]
  %v2666 = vld [vmem:[%s5 + $0x44] sm:$0xf]
  %v2667 = vld [vmem:[%s5 + $0x48] sm:$0xf]
  %v2668 = vld [vmem:[%s5 + $0x4c] sm:$0xf]
  %v2673 = vunpack.c.l.b16 %v2665
  %v2674 = vunpack.c.l.b16 %v2666
  %v2675 = vunpack.c.l.b16 %v2667
  %v2676 = vunpack.c.l.b16 %v2668
  %v2677 = vpack.c.b16 %v2674, %v2673
  %v2678 = vpack.c.b16 %v2676, %v2675
  %v2682 = vsel %vm2056, %v1991, 0
  %v2685 = vsel %vm2056, %v1992, 0
  %v2688 = vsel %vm2056, %v1993, 0
  %v2691 = vsel %vm2056, %v1994, 0
  %v2694 = vsel %vm2056, %v1995, 0
  %v2697 = vsel %vm2056, %v1996, 0
  %v2700 = vsel %vm2056, %v1997, 0
  %v2703 = vsel %vm2056, %v1998, 0
  %v2706 = vsel %vm2056, %v1999, 0
  %2708 = vmatprep.subr.bf16.mxu0 0
  %2709 = vmatpush1.bf16.msra.mxu0 %v2677
  %2710 = vmatprep.subr.bf16.mxu0 0
  %2711 = vmatpush1.bf16.msra.mxu0 %v2678
  %2712 = vmatprep.subr.bf16.mxu0 0
  %2713 = vmatpush1.bf16.msra.mxu0 0
  %2714 = vmatprep.subr.bf16.mxu0 0
  %2715 = vmatpush1.bf16.msra.mxu0 0
  %2716 = vmatprep.subr.bf16.mxu0 0
  %2717 = vmatpush1.bf16.msra.mxu0 0
  %2718 = vmatprep.subr.bf16.mxu0 0
  %2719 = vmatpush1.bf16.msra.mxu0 0
  %2720 = vmatprep.subr.bf16.mxu0 0
  %2721 = vmatpush1.bf16.msra.mxu0 0
  %2722 = vmatprep.subr.bf16.mxu0 0
  %2723 = vmatpush1.bf16.msra.mxu0 0
  %2724 = vmatprep.subr.bf16.mxu0 0
  %2725 = vmatpush1.bf16.msra.mxu0 0
  %2726 = vmatprep.subr.bf16.mxu0 0
  %2727 = vmatpush1.bf16.msra.mxu0 0
  %2728 = vmatprep.subr.bf16.mxu0 0
  %2729 = vmatpush1.bf16.msra.mxu0 0
  %2730 = vmatprep.subr.bf16.mxu0 0
  %2731 = vmatpush1.bf16.msra.mxu0 0
  %2732 = vmatprep.subr.bf16.mxu0 0
  %2733 = vmatpush1.bf16.msra.mxu0 0
  %2734 = vmatprep.subr.bf16.mxu0 0
  %2735 = vmatpush1.bf16.msra.mxu0 0
  %2736 = vmatprep.subr.bf16.mxu0 0
  %2737 = vmatpush1.bf16.msra.mxu0 0
  %2738 = vmatprep.subr.bf16.mxu0 0
  %2739 = vmatpush1.bf16.msra.mxu0 0
  %2740 = vmatprep.mubr.bf16.mxu0 0
  %2741 = vmatmul.mubr.bf16.gmra.mrb[0].mxu0 %v2682
  %v2742 = vpop.f32.mrb[0].mxu0
  %v2743 = vadd.f32 0.0, %v2742
  %v2744 = vpop.f32.mrb[0].mxu0
  %v2745 = vpop.f32.mrb[0].mxu0
  %v2746 = vadd.f32 0.0, %v2745
  %v2747 = vpop.f32.mrb[0].mxu0
  %2748 = vmatprep.mubr.bf16.mxu0 0
  %2749 = vmatmul.mubr.bf16.gmra.mrb[0].mxu0 %v2685
  %v2750 = vpop.f32.mrb[0].mxu0
  %v2751 = vadd.f32 0.0, %v2750
  %v2752 = vpop.f32.mrb[0].mxu0
  %v2753 = vpop.f32.mrb[0].mxu0
  %v2754 = vadd.f32 0.0, %v2753
  %v2755 = vpop.f32.mrb[0].mxu0
  %2756 = vmatprep.mubr.bf16.mxu0 0
  %2757 = vmatmul.mubr.bf16.gmra.mrb[0].mxu0 %v2688
  %v2758 = vpop.f32.mrb[0].mxu0
  %v2759 = vadd.f32 0.0, %v2758
  %v2760 = vpop.f32.mrb[0].mxu0
  %v2761 = vpop.f32.mrb[0].mxu0
  %v2762 = vadd.f32 0.0, %v2761
  %v2763 = vpop.f32.mrb[0].mxu0
  %2764 = vmatprep.mubr.bf16.mxu0 0
  %2765 = vmatmul.mubr.bf16.gmra.mrb[0].mxu0 %v2691
  %v2766 = vpop.f32.mrb[0].mxu0
  %v2767 = vadd.f32 0.0, %v2766
  %v2768 = vpop.f32.mrb[0].mxu0
  %v2769 = vpop.f32.mrb[0].mxu0
  %v2770 = vadd.f32 0.0, %v2769
  %v2771 = vpop.f32.mrb[0].mxu0
  %2772 = vmatprep.mubr.bf16.mxu0 0
  %2773 = vmatmul.mubr.bf16.gmra.mrb[0].mxu0 %v2694
  %v2774 = vpop.f32.mrb[0].mxu0
  %v2775 = vadd.f32 0.0, %v2774
  %v2776 = vpop.f32.mrb[0].mxu0
  %v2777 = vpop.f32.mrb[0].mxu0
  %v2778 = vadd.f32 0.0, %v2777
  %v2779 = vpop.f32.mrb[0].mxu0
  %2780 = vmatprep.mubr.bf16.mxu0 0
  %2781 = vmatmul.mubr.bf16.gmra.mrb[0].mxu0 %v2697
  %v2782 = vpop.f32.mrb[0].mxu0
  %v2783 = vadd.f32 0.0, %v2782
  %v2784 = vpop.f32.mrb[0].mxu0
  %v2785 = vpop.f32.mrb[0].mxu0
  %v2786 = vadd.f32 0.0, %v2785
  %v2787 = vpop.f32.mrb[0].mxu0
  %2788 = vmatprep.mubr.bf16.mxu0 0
  %2789 = vmatmul.mubr.bf16.gmra.mrb[0].mxu0 %v2700
  %v2790 = vpop.f32.mrb[0].mxu0
  %v2791 = vadd.f32 0.0, %v2790
  %v2792 = vpop.f32.mrb[0].mxu0
  %v2793 = vpop.f32.mrb[0].mxu0
  %v2794 = vadd.f32 0.0, %v2793
  %v2795 = vpop.f32.mrb[0].mxu0
  %2796 = vmatprep.mubr.bf16.mxu0 0
  %2797 = vmatmul.mubr.bf16.gmra.mrb[0].mxu0 %v2703
  %v2798 = vpop.f32.mrb[0].mxu0
  %v2799 = vadd.f32 0.0, %v2798
  %v2800 = vpop.f32.mrb[0].mxu0
  %v2801 = vpop.f32.mrb[0].mxu0
  %v2802 = vadd.f32 0.0, %v2801
  %v2803 = vpop.f32.mrb[0].mxu0
  %2804 = vmatprep.mubr.bf16.mxu0 0
  %2805 = vmatmul.mubr.bf16.gmra.mrb[0].mxu0 %v2706
  %v2806 = vpop.f32.mrb[0].mxu0
  %v2807 = vadd.f32 0.0, %v2806
  %v2808 = vpop.f32.mrb[0].mxu0
  %v2809 = vpop.f32.mrb[0].mxu0
  %v2810 = vadd.f32 0.0, %v2809
  %v2811 = vpop.f32.mrb[0].mxu0
  %2812 = vdwg.mxu0
  %v2813 = vadd.f32 %v2647, %v2743
  %v2814 = vadd.f32 %v2648, %v2746
  %v2815 = vadd.f32 %v2649, %v2751
  %v2816 = vadd.f32 %v2650, %v2754
  %v2817 = vadd.f32 %v2651, %v2759
  %v2818 = vadd.f32 %v2652, %v2762
  %v2819 = vadd.f32 %v2653, %v2767
  %v2820 = vadd.f32 %v2654, %v2770
  %v2821 = vadd.f32 %v2655, %v2775
  %v2822 = vadd.f32 %v2656, %v2778
  %v2823 = vadd.f32 %v2657, %v2783
  %v2824 = vadd.f32 %v2658, %v2786
  %v2825 = vadd.f32 %v2659, %v2791
  %v2826 = vadd.f32 %v2660, %v2794
  %v2827 = vadd.f32 %v2661, %v2799
  %v2828 = vadd.f32 %v2662, %v2802
  %v2829 = vadd.f32 %v2663, %v2807
  %v2830 = vadd.f32 %v2664, %v2810
  %v2831 = vld [vmem:[%s5 + $0x50] sm:$0xf]
  %v2832 = vld [vmem:[%s5 + $0x54] sm:$0xf]
  %v2833 = vld [vmem:[%s5 + $0x58] sm:$0xf]
  %v2834 = vld [vmem:[%s5 + $0x5c] sm:$0xf]
  %v2839 = vunpack.c.l.b16 %v2831
  %v2840 = vunpack.c.l.b16 %v2832
  %v2841 = vunpack.c.l.b16 %v2833
  %v2842 = vunpack.c.l.b16 %v2834
  %v2843 = vpack.c.b16 %v2840, %v2839
  %v2844 = vpack.c.b16 %v2842, %v2841
  %v2848 = vsel %vm2056, %v2000, 0
  %v2851 = vsel %vm2056, %v2001, 0
  %v2854 = vsel %vm2056, %v2002, 0
  %v2857 = vsel %vm2056, %v2003, 0
  %v2860 = vsel %vm2056, %v2004, 0
  %v2863 = vsel %vm2056, %v2005, 0
  %v2866 = vsel %vm2056, %v2006, 0
  %v2869 = vsel %vm2056, %v2007, 0
  %v2872 = vsel %vm2056, %v2008, 0
  %2874 = vmatprep.subr.bf16.mxu0 0
  %2875 = vmatpush1.bf16.msra.mxu0 %v2843
  %2876 = vmatprep.subr.bf16.mxu0 0
  %2877 = vmatpush1.bf16.msra.mxu0 %v2844
  %2878 = vmatprep.subr.bf16.mxu0 0
  %2879 = vmatpush1.bf16.msra.mxu0 0
  %2880 = vmatprep.subr.bf16.mxu0 0
  %2881 = vmatpush1.bf16.msra.mxu0 0
  %2882 = vmatprep.subr.bf16.mxu0 0
  %2883 = vmatpush1.bf16.msra.mxu0 0
  %2884 = vmatprep.subr.bf16.mxu0 0
  %2885 = vmatpush1.bf16.msra.mxu0 0
  %2886 = vmatprep.subr.bf16.mxu0 0
  %2887 = vmatpush1.bf16.msra.mxu0 0
  %2888 = vmatprep.subr.bf16.mxu0 0
  %2889 = vmatpush1.bf16.msra.mxu0 0
  %2890 = vmatprep.subr.bf16.mxu0 0
  %2891 = vmatpush1.bf16.msra.mxu0 0
  %2892 = vmatprep.subr.bf16.mxu0 0
  %2893 = vmatpush1.bf16.msra.mxu0 0
  %2894 = vmatprep.subr.bf16.mxu0 0
  %2895 = vmatpush1.bf16.msra.mxu0 0
  %2896 = vmatprep.subr.bf16.mxu0 0
  %2897 = vmatpush1.bf16.msra.mxu0 0
  %2898 = vmatprep.subr.bf16.mxu0 0
  %2899 = vmatpush1.bf16.msra.mxu0 0
  %2900 = vmatprep.subr.bf16.mxu0 0
  %2901 = vmatpush1.bf16.msra.mxu0 0
  %2902 = vmatprep.subr.bf16.mxu0 0
  %2903 = vmatpush1.bf16.msra.mxu0 0
  %2904 = vmatprep.subr.bf16.mxu0 0
  %2905 = vmatpush1.bf16.msra.mxu0 0
  %2906 = vmatprep.mubr.bf16.mxu0 0
  %2907 = vmatmul.mubr.bf16.gmra.mrb[0].mxu0 %v2848
  %v2908 = vpop.f32.mrb[0].mxu0
  %v2909 = vadd.f32 0.0, %v2908
  %v2910 = vpop.f32.mrb[0].mxu0
  %v2911 = vpop.f32.mrb[0].mxu0
  %v2912 = vadd.f32 0.0, %v2911
  %v2913 = vpop.f32.mrb[0].mxu0
  %2914 = vmatprep.mubr.bf16.mxu0 0
  %2915 = vmatmul.mubr.bf16.gmra.mrb[0].mxu0 %v2851
  %v2916 = vpop.f32.mrb[0].mxu0
  %v2917 = vadd.f32 0.0, %v2916
  %v2918 = vpop.f32.mrb[0].mxu0
  %v2919 = vpop.f32.mrb[0].mxu0
  %v2920 = vadd.f32 0.0, %v2919
  %v2921 = vpop.f32.mrb[0].mxu0
  %2922 = vmatprep.mubr.bf16.mxu0 0
  %2923 = vmatmul.mubr.bf16.gmra.mrb[0].mxu0 %v2854
  %v2924 = vpop.f32.mrb[0].mxu0
  %v2925 = vadd.f32 0.0, %v2924
  %v2926 = vpop.f32.mrb[0].mxu0
  %v2927 = vpop.f32.mrb[0].mxu0
  %v2928 = vadd.f32 0.0, %v2927
  %v2929 = vpop.f32.mrb[0].mxu0
  %2930 = vmatprep.mubr.bf16.mxu0 0
  %2931 = vmatmul.mubr.bf16.gmra.mrb[0].mxu0 %v2857
  %v2932 = vpop.f32.mrb[0].mxu0
  %v2933 = vadd.f32 0.0, %v2932
  %v2934 = vpop.f32.mrb[0].mxu0
  %v2935 = vpop.f32.mrb[0].mxu0
  %v2936 = vadd.f32 0.0, %v2935
  %v2937 = vpop.f32.mrb[0].mxu0
  %2938 = vmatprep.mubr.bf16.mxu0 0
  %2939 = vmatmul.mubr.bf16.gmra.mrb[0].mxu0 %v2860
  %v2940 = vpop.f32.mrb[0].mxu0
  %v2941 = vadd.f32 0.0, %v2940
  %v2942 = vpop.f32.mrb[0].mxu0
  %v2943 = vpop.f32.mrb[0].mxu0
  %v2944 = vadd.f32 0.0, %v2943
  %v2945 = vpop.f32.mrb[0].mxu0
  %2946 = vmatprep.mubr.bf16.mxu0 0
  %2947 = vmatmul.mubr.bf16.gmra.mrb[0].mxu0 %v2863
  %v2948 = vpop.f32.mrb[0].mxu0
  %v2949 = vadd.f32 0.0, %v2948
  %v2950 = vpop.f32.mrb[0].mxu0
  %v2951 = vpop.f32.mrb[0].mxu0
  %v2952 = vadd.f32 0.0, %v2951
  %v2953 = vpop.f32.mrb[0].mxu0
  %2954 = vmatprep.mubr.bf16.mxu0 0
  %2955 = vmatmul.mubr.bf16.gmra.mrb[0].mxu0 %v2866
  %v2956 = vpop.f32.mrb[0].mxu0
  %v2957 = vadd.f32 0.0, %v2956
  %v2958 = vpop.f32.mrb[0].mxu0
  %v2959 = vpop.f32.mrb[0].mxu0
  %v2960 = vadd.f32 0.0, %v2959
  %v2961 = vpop.f32.mrb[0].mxu0
  %2962 = vmatprep.mubr.bf16.mxu0 0
  %2963 = vmatmul.mubr.bf16.gmra.mrb[0].mxu0 %v2869
  %v2964 = vpop.f32.mrb[0].mxu0
  %v2965 = vadd.f32 0.0, %v2964
  %v2966 = vpop.f32.mrb[0].mxu0
  %v2967 = vpop.f32.mrb[0].mxu0
  %v2968 = vadd.f32 0.0, %v2967
  %v2969 = vpop.f32.mrb[0].mxu0
  %2970 = vmatprep.mubr.bf16.mxu0 0
  %2971 = vmatmul.mubr.bf16.gmra.mrb[0].mxu0 %v2872
  %v2972 = vpop.f32.mrb[0].mxu0
  %v2973 = vadd.f32 0.0, %v2972
  %v2974 = vpop.f32.mrb[0].mxu0
  %v2975 = vpop.f32.mrb[0].mxu0
  %v2976 = vadd.f32 0.0, %v2975
  %v2977 = vpop.f32.mrb[0].mxu0
  %2978 = vdwg.mxu0
  %v2979 = vadd.f32 %v2813, %v2909
  %v2980 = vadd.f32 %v2814, %v2912
  %v2981 = vadd.f32 %v2815, %v2917
  %v2982 = vadd.f32 %v2816, %v2920
  %v2983 = vadd.f32 %v2817, %v2925
  %v2984 = vadd.f32 %v2818, %v2928
  %v2985 = vadd.f32 %v2819, %v2933
  %v2986 = vadd.f32 %v2820, %v2936
  %v2987 = vadd.f32 %v2821, %v2941
  %v2988 = vadd.f32 %v2822, %v2944
  %v2989 = vadd.f32 %v2823, %v2949
  %v2990 = vadd.f32 %v2824, %v2952
  %v2991 = vadd.f32 %v2825, %v2957
  %v2992 = vadd.f32 %v2826, %v2960
  %v2993 = vadd.f32 %v2827, %v2965
  %v2994 = vadd.f32 %v2828, %v2968
  %v2995 = vadd.f32 %v2829, %v2973
  %v2996 = vadd.f32 %v2830, %v2976
  %v2997 = vld [vmem:[%s5 + $0x60] sm:$0xf]
  %v2998 = vld [vmem:[%s5 + $0x64] sm:$0xf]
  %v2999 = vld [vmem:[%s5 + $0x68] sm:$0xf]
  %v3000 = vld [vmem:[%s5 + $0x6c] sm:$0xf]
  %v3005 = vunpack.c.l.b16 %v2997
  %v3006 = vunpack.c.l.b16 %v2998
  %v3007 = vunpack.c.l.b16 %v2999
  %v3008 = vunpack.c.l.b16 %v3000
  %v3009 = vpack.c.b16 %v3006, %v3005
  %v3010 = vpack.c.b16 %v3008, %v3007
  %v3014 = vsel %vm2056, %v2009, 0
  %v3017 = vsel %vm2056, %v2010, 0
  %v3020 = vsel %vm2056, %v2011, 0
  %v3023 = vsel %vm2056, %v2012, 0
  %v3026 = vsel %vm2056, %v2013, 0
  %v3029 = vsel %vm2056, %v2014, 0
  %v3032 = vsel %vm2056, %v2015, 0
  %v3035 = vsel %vm2056, %v2016, 0
  %v3038 = vsel %vm2056, %v2017, 0
  %3040 = vmatprep.subr.bf16.mxu0 0
  %3041 = vmatpush1.bf16.msra.mxu0 %v3009
  %3042 = vmatprep.subr.bf16.mxu0 0
  %3043 = vmatpush1.bf16.msra.mxu0 %v3010
  %3044 = vmatprep.subr.bf16.mxu0 0
  %3045 = vmatpush1.bf16.msra.mxu0 0
  %3046 = vmatprep.subr.bf16.mxu0 0
  %3047 = vmatpush1.bf16.msra.mxu0 0
  %3048 = vmatprep.subr.bf16.mxu0 0
  %3049 = vmatpush1.bf16.msra.mxu0 0
  %3050 = vmatprep.subr.bf16.mxu0 0
  %3051 = vmatpush1.bf16.msra.mxu0 0
  %3052 = vmatprep.subr.bf16.mxu0 0
  %3053 = vmatpush1.bf16.msra.mxu0 0
  %3054 = vmatprep.subr.bf16.mxu0 0
  %3055 = vmatpush1.bf16.msra.mxu0 0
  %3056 = vmatprep.subr.bf16.mxu0 0
  %3057 = vmatpush1.bf16.msra.mxu0 0
  %3058 = vmatprep.subr.bf16.mxu0 0
  %3059 = vmatpush1.bf16.msra.mxu0 0
  %3060 = vmatprep.subr.bf16.mxu0 0
  %3061 = vmatpush1.bf16.msra.mxu0 0
  %3062 = vmatprep.subr.bf16.mxu0 0
  %3063 = vmatpush1.bf16.msra.mxu0 0
  %3064 = vmatprep.subr.bf16.mxu0 0
  %3065 = vmatpush1.bf16.msra.mxu0 0
  %3066 = vmatprep.subr.bf16.mxu0 0
  %3067 = vmatpush1.bf16.msra.mxu0 0
  %3068 = vmatprep.subr.bf16.mxu0 0
  %3069 = vmatpush1.bf16.msra.mxu0 0
  %3070 = vmatprep.subr.bf16.mxu0 0
  %3071 = vmatpush1.bf16.msra.mxu0 0
  %3072 = vmatprep.mubr.bf16.mxu0 0
  %3073 = vmatmul.mubr.bf16.gmra.mrb[0].mxu0 %v3014
  %v3074 = vpop.f32.mrb[0].mxu0
  %v3075 = vadd.f32 0.0, %v3074
  %v3076 = vpop.f32.mrb[0].mxu0
  %v3077 = vpop.f32.mrb[0].mxu0
  %v3078 = vadd.f32 0.0, %v3077
  %v3079 = vpop.f32.mrb[0].mxu0
  %3080 = vmatprep.mubr.bf16.mxu0 0
  %3081 = vmatmul.mubr.bf16.gmra.mrb[0].mxu0 %v3017
  %v3082 = vpop.f32.mrb[0].mxu0
  %v3083 = vadd.f32 0.0, %v3082
  %v3084 = vpop.f32.mrb[0].mxu0
  %v3085 = vpop.f32.mrb[0].mxu0
  %v3086 = vadd.f32 0.0, %v3085
  %v3087 = vpop.f32.mrb[0].mxu0
  %3088 = vmatprep.mubr.bf16.mxu0 0
  %3089 = vmatmul.mubr.bf16.gmra.mrb[0].mxu0 %v3020
  %v3090 = vpop.f32.mrb[0].mxu0
  %v3091 = vadd.f32 0.0, %v3090
  %v3092 = vpop.f32.mrb[0].mxu0
  %v3093 = vpop.f32.mrb[0].mxu0
  %v3094 = vadd.f32 0.0, %v3093
  %v3095 = vpop.f32.mrb[0].mxu0
  %3096 = vmatprep.mubr.bf16.mxu0 0
  %3097 = vmatmul.mubr.bf16.gmra.mrb[0].mxu0 %v3023
  %v3098 = vpop.f32.mrb[0].mxu0
  %v3099 = vadd.f32 0.0, %v3098
  %v3100 = vpop.f32.mrb[0].mxu0
  %v3101 = vpop.f32.mrb[0].mxu0
  %v3102 = vadd.f32 0.0, %v3101
  %v3103 = vpop.f32.mrb[0].mxu0
  %3104 = vmatprep.mubr.bf16.mxu0 0
  %3105 = vmatmul.mubr.bf16.gmra.mrb[0].mxu0 %v3026
  %v3106 = vpop.f32.mrb[0].mxu0
  %v3107 = vadd.f32 0.0, %v3106
  %v3108 = vpop.f32.mrb[0].mxu0
  %v3109 = vpop.f32.mrb[0].mxu0
  %v3110 = vadd.f32 0.0, %v3109
  %v3111 = vpop.f32.mrb[0].mxu0
  %3112 = vmatprep.mubr.bf16.mxu0 0
  %3113 = vmatmul.mubr.bf16.gmra.mrb[0].mxu0 %v3029
  %v3114 = vpop.f32.mrb[0].mxu0
  %v3115 = vadd.f32 0.0, %v3114
  %v3116 = vpop.f32.mrb[0].mxu0
  %v3117 = vpop.f32.mrb[0].mxu0
  %v3118 = vadd.f32 0.0, %v3117
  %v3119 = vpop.f32.mrb[0].mxu0
  %3120 = vmatprep.mubr.bf16.mxu0 0
  %3121 = vmatmul.mubr.bf16.gmra.mrb[0].mxu0 %v3032
  %v3122 = vpop.f32.mrb[0].mxu0
  %v3123 = vadd.f32 0.0, %v3122
  %v3124 = vpop.f32.mrb[0].mxu0
  %v3125 = vpop.f32.mrb[0].mxu0
  %v3126 = vadd.f32 0.0, %v3125
  %v3127 = vpop.f32.mrb[0].mxu0
  %3128 = vmatprep.mubr.bf16.mxu0 0
  %3129 = vmatmul.mubr.bf16.gmra.mrb[0].mxu0 %v3035
  %v3130 = vpop.f32.mrb[0].mxu0
  %v3131 = vadd.f32 0.0, %v3130
  %v3132 = vpop.f32.mrb[0].mxu0
  %v3133 = vpop.f32.mrb[0].mxu0
  %v3134 = vadd.f32 0.0, %v3133
  %v3135 = vpop.f32.mrb[0].mxu0
  %3136 = vmatprep.mubr.bf16.mxu0 0
  %3137 = vmatmul.mubr.bf16.gmra.mrb[0].mxu0 %v3038
  %v3138 = vpop.f32.mrb[0].mxu0
  %v3139 = vadd.f32 0.0, %v3138
  %v3140 = vpop.f32.mrb[0].mxu0
  %v3141 = vpop.f32.mrb[0].mxu0
  %v3142 = vadd.f32 0.0, %v3141
  %v3143 = vpop.f32.mrb[0].mxu0
  %3144 = vdwg.mxu0
  %v3145 = vadd.f32 %v2979, %v3075
  %v3146 = vadd.f32 %v2980, %v3078
  %v3147 = vadd.f32 %v2981, %v3083
  %v3148 = vadd.f32 %v2982, %v3086
  %v3149 = vadd.f32 %v2983, %v3091
  %v3150 = vadd.f32 %v2984, %v3094
  %v3151 = vadd.f32 %v2985, %v3099
  %v3152 = vadd.f32 %v2986, %v3102
  %v3153 = vadd.f32 %v2987, %v3107
  %v3154 = vadd.f32 %v2988, %v3110
  %v3155 = vadd.f32 %v2989, %v3115
  %v3156 = vadd.f32 %v2990, %v3118
  %v3157 = vadd.f32 %v2991, %v3123
  %v3158 = vadd.f32 %v2992, %v3126
  %v3159 = vadd.f32 %v2993, %v3131
  %v3160 = vadd.f32 %v2994, %v3134
  %v3161 = vadd.f32 %v2995, %v3139
  %v3162 = vadd.f32 %v2996, %v3142
  %v3163 = vld [vmem:[%s5 + $0x70] sm:$0xf]
  %v3164 = vld [vmem:[%s5 + $0x74] sm:$0xf]
  %v3165 = vld [vmem:[%s5 + $0x78] sm:$0xf]
  %v3166 = vld [vmem:[%s5 + $0x7c] sm:$0xf]
  %v3171 = vunpack.c.l.b16 %v3163
  %v3172 = vunpack.c.l.b16 %v3164
  %v3173 = vunpack.c.l.b16 %v3165
  %v3174 = vunpack.c.l.b16 %v3166
  %v3175 = vpack.c.b16 %v3172, %v3171
  %v3176 = vpack.c.b16 %v3174, %v3173
  %v3180 = vsel %vm2056, %v2018, 0
  %v3183 = vsel %vm2056, %v2019, 0
  %v3186 = vsel %vm2056, %v2020, 0
  %v3189 = vsel %vm2056, %v2021, 0
  %v3192 = vsel %vm2056, %v2022, 0
  %v3195 = vsel %vm2056, %v2023, 0
  %v3198 = vsel %vm2056, %v2024, 0
  %v3201 = vsel %vm2056, %v2025, 0
  %v3204 = vsel %vm2056, %v2026, 0
  %3206 = vmatprep.subr.bf16.mxu0 0
  %3207 = vmatpush1.bf16.msra.mxu0 %v3175
  %3208 = vmatprep.subr.bf16.mxu0 0
  %3209 = vmatpush1.bf16.msra.mxu0 %v3176
  %3210 = vmatprep.subr.bf16.mxu0 0
  %3211 = vmatpush1.bf16.msra.mxu0 0
  %3212 = vmatprep.subr.bf16.mxu0 0
  %3213 = vmatpush1.bf16.msra.mxu0 0
  %3214 = vmatprep.subr.bf16.mxu0 0
  %3215 = vmatpush1.bf16.msra.mxu0 0
  %3216 = vmatprep.subr.bf16.mxu0 0
  %3217 = vmatpush1.bf16.msra.mxu0 0
  %3218 = vmatprep.subr.bf16.mxu0 0
  %3219 = vmatpush1.bf16.msra.mxu0 0
  %3220 = vmatprep.subr.bf16.mxu0 0
  %3221 = vmatpush1.bf16.msra.mxu0 0
  %3222 = vmatprep.subr.bf16.mxu0 0
  %3223 = vmatpush1.bf16.msra.mxu0 0
  %3224 = vmatprep.subr.bf16.mxu0 0
  %3225 = vmatpush1.bf16.msra.mxu0 0
  %3226 = vmatprep.subr.bf16.mxu0 0
  %3227 = vmatpush1.bf16.msra.mxu0 0
  %3228 = vmatprep.subr.bf16.mxu0 0
  %3229 = vmatpush1.bf16.msra.mxu0 0
  %3230 = vmatprep.subr.bf16.mxu0 0
  %3231 = vmatpush1.bf16.msra.mxu0 0
  %3232 = vmatprep.subr.bf16.mxu0 0
  %3233 = vmatpush1.bf16.msra.mxu0 0
  %3234 = vmatprep.subr.bf16.mxu0 0
  %3235 = vmatpush1.bf16.msra.mxu0 0
  %3236 = vmatprep.subr.bf16.mxu0 0
  %3237 = vmatpush1.bf16.msra.mxu0 0
  %3238 = vmatprep.mubr.bf16.mxu0 0
  %3239 = vmatmul.mubr.bf16.gmra.mrb[0].mxu0 %v3180
  %v3240 = vpop.f32.mrb[0].mxu0
  %v3241 = vadd.f32 0.0, %v3240
  %v3242 = vpop.f32.mrb[0].mxu0
  %v3243 = vpop.f32.mrb[0].mxu0
  %v3244 = vadd.f32 0.0, %v3243
  %v3245 = vpop.f32.mrb[0].mxu0
  %3246 = vmatprep.mubr.bf16.mxu0 0
  %3247 = vmatmul.mubr.bf16.gmra.mrb[0].mxu0 %v3183
  %v3248 = vpop.f32.mrb[0].mxu0
  %v3249 = vadd.f32 0.0, %v3248
  %v3250 = vpop.f32.mrb[0].mxu0
  %v3251 = vpop.f32.mrb[0].mxu0
  %v3252 = vadd.f32 0.0, %v3251
  %v3253 = vpop.f32.mrb[0].mxu0
  %3254 = vmatprep.mubr.bf16.mxu0 0
  %3255 = vmatmul.mubr.bf16.gmra.mrb[0].mxu0 %v3186
  %v3256 = vpop.f32.mrb[0].mxu0
  %v3257 = vadd.f32 0.0, %v3256
  %v3258 = vpop.f32.mrb[0].mxu0
  %v3259 = vpop.f32.mrb[0].mxu0
  %v3260 = vadd.f32 0.0, %v3259
  %v3261 = vpop.f32.mrb[0].mxu0
  %3262 = vmatprep.mubr.bf16.mxu0 0
  %3263 = vmatmul.mubr.bf16.gmra.mrb[0].mxu0 %v3189
  %v3264 = vpop.f32.mrb[0].mxu0
  %v3265 = vadd.f32 0.0, %v3264
  %v3266 = vpop.f32.mrb[0].mxu0
  %v3267 = vpop.f32.mrb[0].mxu0
  %v3268 = vadd.f32 0.0, %v3267
  %v3269 = vpop.f32.mrb[0].mxu0
  %3270 = vmatprep.mubr.bf16.mxu0 0
  %3271 = vmatmul.mubr.bf16.gmra.mrb[0].mxu0 %v3192
  %v3272 = vpop.f32.mrb[0].mxu0
  %v3273 = vadd.f32 0.0, %v3272
  %v3274 = vpop.f32.mrb[0].mxu0
  %v3275 = vpop.f32.mrb[0].mxu0
  %v3276 = vadd.f32 0.0, %v3275
  %v3277 = vpop.f32.mrb[0].mxu0
  %3278 = vmatprep.mubr.bf16.mxu0 0
  %3279 = vmatmul.mubr.bf16.gmra.mrb[0].mxu0 %v3195
  %v3280 = vpop.f32.mrb[0].mxu0
  %v3281 = vadd.f32 0.0, %v3280
  %v3282 = vpop.f32.mrb[0].mxu0
  %v3283 = vpop.f32.mrb[0].mxu0
  %v3284 = vadd.f32 0.0, %v3283
  %v3285 = vpop.f32.mrb[0].mxu0
  %3286 = vmatprep.mubr.bf16.mxu0 0
  %3287 = vmatmul.mubr.bf16.gmra.mrb[0].mxu0 %v3198
  %v3288 = vpop.f32.mrb[0].mxu0
  %v3289 = vadd.f32 0.0, %v3288
  %v3290 = vpop.f32.mrb[0].mxu0
  %v3291 = vpop.f32.mrb[0].mxu0
  %v3292 = vadd.f32 0.0, %v3291
  %v3293 = vpop.f32.mrb[0].mxu0
  %3294 = vmatprep.mubr.bf16.mxu0 0
  %3295 = vmatmul.mubr.bf16.gmra.mrb[0].mxu0 %v3201
  %v3296 = vpop.f32.mrb[0].mxu0
  %v3297 = vadd.f32 0.0, %v3296
  %v3298 = vpop.f32.mrb[0].mxu0
  %v3299 = vpop.f32.mrb[0].mxu0
  %v3300 = vadd.f32 0.0, %v3299
  %v3301 = vpop.f32.mrb[0].mxu0
  %3302 = vmatprep.mubr.bf16.mxu0 0
  %3303 = vmatmul.mubr.bf16.gmra.mrb[0].mxu0 %v3204
  %v3304 = vpop.f32.mrb[0].mxu0
  %v3305 = vadd.f32 0.0, %v3304
  %v3306 = vpop.f32.mrb[0].mxu0
  %v3307 = vpop.f32.mrb[0].mxu0
  %v3308 = vadd.f32 0.0, %v3307
  %v3309 = vpop.f32.mrb[0].mxu0
  %3310 = vdwg.mxu0
  %v3311 = vadd.f32 %v3145, %v3241
  %v3312 = vadd.f32 %v3146, %v3244
  %v3313 = vadd.f32 %v3147, %v3249
  %v3314 = vadd.f32 %v3148, %v3252
  %v3315 = vadd.f32 %v3149, %v3257
  %v3316 = vadd.f32 %v3150, %v3260
  %v3317 = vadd.f32 %v3151, %v3265
  %v3318 = vadd.f32 %v3152, %v3268
  %v3319 = vadd.f32 %v3153, %v3273
  %v3320 = vadd.f32 %v3154, %v3276
  %v3321 = vadd.f32 %v3155, %v3281
  %v3322 = vadd.f32 %v3156, %v3284
  %v3323 = vadd.f32 %v3157, %v3289
  %v3324 = vadd.f32 %v3158, %v3292
  %v3325 = vadd.f32 %v3159, %v3297
  %v3326 = vadd.f32 %v3160, %v3300
  %v3327 = vadd.f32 %v3161, %v3305
  %v3328 = vadd.f32 %v3162, %v3308
  %v3329 = vld [vmem:[%s5 + $0x80] sm:$0xf]
  %v3330 = vld [vmem:[%s5 + $0x84] sm:$0xf]
  %v3331 = vld [vmem:[%s5 + $0x88] sm:$0xf]
  %v3332 = vld [vmem:[%s5 + $0x8c] sm:$0xf]
  %v3337 = vunpack.c.l.b16 %v3329
  %v3338 = vunpack.c.l.b16 %v3330
  %v3339 = vunpack.c.l.b16 %v3331
  %v3340 = vunpack.c.l.b16 %v3332
  %v3341 = vpack.c.b16 %v3338, %v3337
  %v3342 = vpack.c.b16 %v3340, %v3339
  %v3346 = vsel %vm2056, %v2027, 0
  %v3349 = vsel %vm2056, %v2028, 0
  %v3352 = vsel %vm2056, %v2029, 0
  %v3355 = vsel %vm2056, %v2030, 0
  %v3358 = vsel %vm2056, %v2031, 0
  %v3361 = vsel %vm2056, %v2032, 0
  %v3364 = vsel %vm2056, %v2033, 0
  %v3367 = vsel %vm2056, %v2034, 0
  %v3370 = vsel %vm2056, %v2035, 0
  %3372 = vmatprep.subr.bf16.mxu0 0
  %3373 = vmatpush1.bf16.msra.mxu0 %v3341
  %3374 = vmatprep.subr.bf16.mxu0 0
  %3375 = vmatpush1.bf16.msra.mxu0 %v3342
  %3376 = vmatprep.subr.bf16.mxu0 0
  %3377 = vmatpush1.bf16.msra.mxu0 0
  %3378 = vmatprep.subr.bf16.mxu0 0
  %3379 = vmatpush1.bf16.msra.mxu0 0
  %3380 = vmatprep.subr.bf16.mxu0 0
  %3381 = vmatpush1.bf16.msra.mxu0 0
  %3382 = vmatprep.subr.bf16.mxu0 0
  %3383 = vmatpush1.bf16.msra.mxu0 0
  %3384 = vmatprep.subr.bf16.mxu0 0
  %3385 = vmatpush1.bf16.msra.mxu0 0
  %3386 = vmatprep.subr.bf16.mxu0 0
  %3387 = vmatpush1.bf16.msra.mxu0 0
  %3388 = vmatprep.subr.bf16.mxu0 0
  %3389 = vmatpush1.bf16.msra.mxu0 0
  %3390 = vmatprep.subr.bf16.mxu0 0
  %3391 = vmatpush1.bf16.msra.mxu0 0
  %3392 = vmatprep.subr.bf16.mxu0 0
  %3393 = vmatpush1.bf16.msra.mxu0 0
  %3394 = vmatprep.subr.bf16.mxu0 0
  %3395 = vmatpush1.bf16.msra.mxu0 0
  %3396 = vmatprep.subr.bf16.mxu0 0
  %3397 = vmatpush1.bf16.msra.mxu0 0
  %3398 = vmatprep.subr.bf16.mxu0 0
  %3399 = vmatpush1.bf16.msra.mxu0 0
  %3400 = vmatprep.subr.bf16.mxu0 0
  %3401 = vmatpush1.bf16.msra.mxu0 0
  %3402 = vmatprep.subr.bf16.mxu0 0
  %3403 = vmatpush1.bf16.msra.mxu0 0
  %3404 = vmatprep.mubr.bf16.mxu0 0
  %3405 = vmatmul.mubr.bf16.gmra.mrb[0].mxu0 %v3346
  %v3406 = vpop.f32.mrb[0].mxu0
  %v3407 = vadd.f32 0.0, %v3406
  %v3408 = vpop.f32.mrb[0].mxu0
  %v3409 = vpop.f32.mrb[0].mxu0
  %v3410 = vadd.f32 0.0, %v3409
  %v3411 = vpop.f32.mrb[0].mxu0
  %3412 = vmatprep.mubr.bf16.mxu0 0
  %3413 = vmatmul.mubr.bf16.gmra.mrb[0].mxu0 %v3349
  %v3414 = vpop.f32.mrb[0].mxu0
  %v3415 = vadd.f32 0.0, %v3414
  %v3416 = vpop.f32.mrb[0].mxu0
  %v3417 = vpop.f32.mrb[0].mxu0
  %v3418 = vadd.f32 0.0, %v3417
  %v3419 = vpop.f32.mrb[0].mxu0
  %3420 = vmatprep.mubr.bf16.mxu0 0
  %3421 = vmatmul.mubr.bf16.gmra.mrb[0].mxu0 %v3352
  %v3422 = vpop.f32.mrb[0].mxu0
  %v3423 = vadd.f32 0.0, %v3422
  %v3424 = vpop.f32.mrb[0].mxu0
  %v3425 = vpop.f32.mrb[0].mxu0
  %v3426 = vadd.f32 0.0, %v3425
  %v3427 = vpop.f32.mrb[0].mxu0
  %3428 = vmatprep.mubr.bf16.mxu0 0
  %3429 = vmatmul.mubr.bf16.gmra.mrb[0].mxu0 %v3355
  %v3430 = vpop.f32.mrb[0].mxu0
  %v3431 = vadd.f32 0.0, %v3430
  %v3432 = vpop.f32.mrb[0].mxu0
  %v3433 = vpop.f32.mrb[0].mxu0
  %v3434 = vadd.f32 0.0, %v3433
  %v3435 = vpop.f32.mrb[0].mxu0
  %3436 = vmatprep.mubr.bf16.mxu0 0
  %3437 = vmatmul.mubr.bf16.gmra.mrb[0].mxu0 %v3358
  %v3438 = vpop.f32.mrb[0].mxu0
  %v3439 = vadd.f32 0.0, %v3438
  %v3440 = vpop.f32.mrb[0].mxu0
  %v3441 = vpop.f32.mrb[0].mxu0
  %v3442 = vadd.f32 0.0, %v3441
  %v3443 = vpop.f32.mrb[0].mxu0
  %3444 = vmatprep.mubr.bf16.mxu0 0
  %3445 = vmatmul.mubr.bf16.gmra.mrb[0].mxu0 %v3361
  %v3446 = vpop.f32.mrb[0].mxu0
  %v3447 = vadd.f32 0.0, %v3446
  %v3448 = vpop.f32.mrb[0].mxu0
  %v3449 = vpop.f32.mrb[0].mxu0
  %v3450 = vadd.f32 0.0, %v3449
  %v3451 = vpop.f32.mrb[0].mxu0
  %3452 = vmatprep.mubr.bf16.mxu0 0
  %3453 = vmatmul.mubr.bf16.gmra.mrb[0].mxu0 %v3364
  %v3454 = vpop.f32.mrb[0].mxu0
  %v3455 = vadd.f32 0.0, %v3454
  %v3456 = vpop.f32.mrb[0].mxu0
  %v3457 = vpop.f32.mrb[0].mxu0
  %v3458 = vadd.f32 0.0, %v3457
  %v3459 = vpop.f32.mrb[0].mxu0
  %3460 = vmatprep.mubr.bf16.mxu0 0
  %3461 = vmatmul.mubr.bf16.gmra.mrb[0].mxu0 %v3367
  %v3462 = vpop.f32.mrb[0].mxu0
  %v3463 = vadd.f32 0.0, %v3462
  %v3464 = vpop.f32.mrb[0].mxu0
  %v3465 = vpop.f32.mrb[0].mxu0
  %v3466 = vadd.f32 0.0, %v3465
  %v3467 = vpop.f32.mrb[0].mxu0
  %3468 = vmatprep.mubr.bf16.mxu0 0
  %3469 = vmatmul.mubr.bf16.gmra.mrb[0].mxu0 %v3370
  %v3470 = vpop.f32.mrb[0].mxu0
  %v3471 = vadd.f32 0.0, %v3470
  %v3472 = vpop.f32.mrb[0].mxu0
  %v3473 = vpop.f32.mrb[0].mxu0
  %v3474 = vadd.f32 0.0, %v3473
  %v3475 = vpop.f32.mrb[0].mxu0
  %3476 = vdwg.mxu0
  %v3477 = vadd.f32 %v3311, %v3407
  %v3478 = vadd.f32 %v3312, %v3410
  %v3479 = vadd.f32 %v3313, %v3415
  %v3480 = vadd.f32 %v3314, %v3418
  %v3481 = vadd.f32 %v3315, %v3423
  %v3482 = vadd.f32 %v3316, %v3426
  %v3483 = vadd.f32 %v3317, %v3431
  %v3484 = vadd.f32 %v3318, %v3434
  %v3485 = vadd.f32 %v3319, %v3439
  %v3486 = vadd.f32 %v3320, %v3442
  %v3487 = vadd.f32 %v3321, %v3447
  %v3488 = vadd.f32 %v3322, %v3450
  %v3489 = vadd.f32 %v3323, %v3455
  %v3490 = vadd.f32 %v3324, %v3458
  %v3491 = vadd.f32 %v3325, %v3463
  %v3492 = vadd.f32 %v3326, %v3466
  %v3493 = vadd.f32 %v3327, %v3471
  %v3494 = vadd.f32 %v3328, %v3474
  %v3495 = vld [vmem:[%s6] sm:$0x1]
  %v3497 = vlaneseq
  %v3498 = vshrl.u32 %v3497, 7
  %v3499 = vsub.s32 0, %v3498
  %v3500 = vrot.slane %v3495, %v3499
  %v3502 = vmul.f32 %v3477, %v3500
  %v3503 = vmul.f32 %v3478, %v3500
  %v3504 = vmul.f32 %v3479, %v3500
  %v3505 = vmul.f32 %v3480, %v3500
  %v3506 = vmul.f32 %v3481, %v3500
  %v3507 = vmul.f32 %v3482, %v3500
  %v3508 = vmul.f32 %v3483, %v3500
  %v3509 = vmul.f32 %v3484, %v3500
  %v3510 = vmul.f32 %v3485, %v3500
  %v3511 = vmul.f32 %v3486, %v3500
  %v3512 = vmul.f32 %v3487, %v3500
  %v3513 = vmul.f32 %v3488, %v3500
  %v3514 = vmul.f32 %v3489, %v3500
  %v3515 = vmul.f32 %v3490, %v3500
  %v3516 = vmul.f32 %v3491, %v3500
  %v3517 = vmul.f32 %v3492, %v3500
  %v3518 = vmul.f32 %v3493, %v3500
  %v3519 = vmul.f32 %v3494, %v3500
  %v3520 = vld [vmem:[%s7] sm:$0x1]
  %v3522 = vlaneseq
  %v3523 = vshrl.u32 %v3522, 7
  %v3524 = vsub.s32 0, %v3523
  %v3525 = vrot.slane %v3520, %v3524
  %v3527 = vadd.f32 %v3502, %v3525
  %v3528 = vadd.f32 %v3503, %v3525
  %v3529 = vadd.f32 %v3504, %v3525
  %v3530 = vadd.f32 %v3505, %v3525
  %v3531 = vadd.f32 %v3506, %v3525
  %v3532 = vadd.f32 %v3507, %v3525
  %v3533 = vadd.f32 %v3508, %v3525
  %v3534 = vadd.f32 %v3509, %v3525
  %v3535 = vadd.f32 %v3510, %v3525
  %v3536 = vadd.f32 %v3511, %v3525
  %v3537 = vadd.f32 %v3512, %v3525
  %v3538 = vadd.f32 %v3513, %v3525
  %v3539 = vadd.f32 %v3514, %v3525
  %v3540 = vadd.f32 %v3515, %v3525
  %v3541 = vadd.f32 %v3516, %v3525
  %v3542 = vadd.f32 %v3517, %v3525
  %v3543 = vadd.f32 %v3518, %v3525
  %v3544 = vadd.f32 %v3519, %v3525
  %v3545 = vmax.f32 %v3527, 0.0
  %v3546 = vmax.f32 %v3528, 0.0
  %v3547 = vmax.f32 %v3529, 0.0
  %v3548 = vmax.f32 %v3530, 0.0
  %v3549 = vmax.f32 %v3531, 0.0
  %v3550 = vmax.f32 %v3532, 0.0
  %v3551 = vmax.f32 %v3533, 0.0
  %v3552 = vmax.f32 %v3534, 0.0
  %v3553 = vmax.f32 %v3535, 0.0
  %v3554 = vmax.f32 %v3536, 0.0
  %v3555 = vmax.f32 %v3537, 0.0
  %v3556 = vmax.f32 %v3538, 0.0
  %v3557 = vmax.f32 %v3539, 0.0
  %v3558 = vmax.f32 %v3540, 0.0
  %v3559 = vmax.f32 %v3541, 0.0
  %v3560 = vmax.f32 %v3542, 0.0
  %v3561 = vmax.f32 %v3543, 0.0
  %v3562 = vmax.f32 %v3544, 0.0
  %v3563 = vpack.c.bf16 %v3546, %v3545
  %v3564 = vld [vmem:[%s8] sm:$0xf]
  %v3565 = vld [vmem:[%s8 + $0x4] sm:$0xf]
  %v3566 = vld [vmem:[%s8 + $0x8] sm:$0xf]
  %v3567 = vld [vmem:[%s8 + $0xc] sm:$0xf]
  %v3568 = vld [vmem:[%s8 + $0x10] sm:$0xf]
  %v3569 = vld [vmem:[%s8 + $0x14] sm:$0xf]
  %v3570 = vld [vmem:[%s8 + $0x18] sm:$0xf]
  %v3571 = vld [vmem:[%s8 + $0x1c] sm:$0xf]
  %v3572 = vpack.c.bf16 %v3548, %v3547
  %v3573 = vld [vmem:[%s8 + $0x20] sm:$0xf]
  %v3574 = vld [vmem:[%s8 + $0x24] sm:$0xf]
  %v3575 = vld [vmem:[%s8 + $0x28] sm:$0xf]
  %v3576 = vld [vmem:[%s8 + $0x2c] sm:$0xf]
  %v3577 = vld [vmem:[%s8 + $0x30] sm:$0xf]
  %v3578 = vld [vmem:[%s8 + $0x34] sm:$0xf]
  %v3579 = vld [vmem:[%s8 + $0x38] sm:$0xf]
  %v3580 = vld [vmem:[%s8 + $0x3c] sm:$0xf]
  %v3589 = vunpack.c.l.b16 %v3573
  %v3590 = vunpack.c.l.b16 %v3574
  %v3591 = vunpack.c.l.b16 %v3575
  %v3592 = vunpack.c.l.b16 %v3576
  %v3593 = vunpack.c.l.b16 %v3577
  %v3594 = vunpack.c.l.b16 %v3578
  %v3595 = vunpack.c.l.b16 %v3579
  %v3596 = vunpack.c.l.b16 %v3580
  %v3597 = vpack.c.b16 %v3590, %v3589
  %v3598 = vpack.c.b16 %v3592, %v3591
  %v3599 = vpack.c.b16 %v3594, %v3593
  %v3600 = vpack.c.b16 %v3596, %v3595
  %vm3605 = vcmask 523264
  %v3607 = vsel %vm3605, %v3572, 0
  %3609 = vmatprep.subr.bf16.mxu0 0
  %3610 = vmatpush1.bf16.msra.mxu0 %v3597
  %3611 = vmatprep.subr.bf16.mxu0 0
  %3612 = vmatpush1.bf16.msra.mxu0 %v3598
  %3613 = vmatprep.subr.bf16.mxu0 0
  %3614 = vmatpush1.bf16.msra.mxu0 %v3599
  %3615 = vmatprep.subr.bf16.mxu0 0
  %3616 = vmatpush1.bf16.msra.mxu0 %v3600
  %3617 = vmatprep.subr.bf16.mxu0 0
  %3618 = vmatpush1.bf16.msra.mxu0 0
  %3619 = vmatprep.subr.bf16.mxu0 0
  %3620 = vmatpush1.bf16.msra.mxu0 0
  %3621 = vmatprep.subr.bf16.mxu0 0
  %3622 = vmatpush1.bf16.msra.mxu0 0
  %3623 = vmatprep.subr.bf16.mxu0 0
  %3624 = vmatpush1.bf16.msra.mxu0 0
  %3625 = vmatprep.subr.bf16.mxu0 0
  %3626 = vmatpush1.bf16.msra.mxu0 0
  %3627 = vmatprep.subr.bf16.mxu0 0
  %3628 = vmatpush1.bf16.msra.mxu0 0
  %3629 = vmatprep.subr.bf16.mxu0 0
  %3630 = vmatpush1.bf16.msra.mxu0 0
  %3631 = vmatprep.subr.bf16.mxu0 0
  %3632 = vmatpush1.bf16.msra.mxu0 0
  %3633 = vmatprep.subr.bf16.mxu0 0
  %3634 = vmatpush1.bf16.msra.mxu0 0
  %3635 = vmatprep.subr.bf16.mxu0 0
  %3636 = vmatpush1.bf16.msra.mxu0 0
  %3637 = vmatprep.subr.bf16.mxu0 0
  %3638 = vmatpush1.bf16.msra.mxu0 0
  %3639 = vmatprep.subr.bf16.mxu0 0
  %3640 = vmatpush1.bf16.msra.mxu0 0
  %3641 = vmatprep.mubr.bf16.mxu0 0
  %3642 = vmatmul.mubr.bf16.gmra.mrb[0].mxu0 %v3607
  %v3643 = vpop.f32.mrb[0].mxu0
  %v3644 = vadd.f32 0.0, %v3643
  %v3645 = vpop.f32.mrb[0].mxu0
  %v3646 = vpop.f32.mrb[0].mxu0
  %v3647 = vadd.f32 0.0, %v3646
  %v3648 = vpop.f32.mrb[0].mxu0
  %3649 = vdwg.mxu0
  %v3658 = vunpack.c.l.b16 %v3564
  %v3659 = vunpack.c.l.b16 %v3565
  %v3660 = vunpack.c.l.b16 %v3566
  %v3661 = vunpack.c.l.b16 %v3567
  %v3662 = vunpack.c.l.b16 %v3568
  %v3663 = vunpack.c.l.b16 %v3569
  %v3664 = vunpack.c.l.b16 %v3570
  %v3665 = vunpack.c.l.b16 %v3571
  %v3666 = vpack.c.b16 %v3659, %v3658
  %v3667 = vpack.c.b16 %v3661, %v3660
  %v3668 = vpack.c.b16 %v3663, %v3662
  %v3669 = vpack.c.b16 %v3665, %v3664
  %v3675 = vsel %vm3605, %v3563, 0
  %3677 = vmatprep.subr.bf16.mxu0 0
  %3678 = vmatpush1.bf16.msra.mxu0 %v3666
  %3679 = vmatprep.subr.bf16.mxu0 0
  %3680 = vmatpush1.bf16.msra.mxu0 %v3667
  %3681 = vmatprep.subr.bf16.mxu0 0
  %3682 = vmatpush1.bf16.msra.mxu0 %v3668
  %3683 = vmatprep.subr.bf16.mxu0 0
  %3684 = vmatpush1.bf16.msra.mxu0 %v3669
  %3685 = vmatprep.subr.bf16.mxu0 0
  %3686 = vmatpush1.bf16.msra.mxu0 0
  %3687 = vmatprep.subr.bf16.mxu0 0
  %3688 = vmatpush1.bf16.msra.mxu0 0
  %3689 = vmatprep.subr.bf16.mxu0 0
  %3690 = vmatpush1.bf16.msra.mxu0 0
  %3691 = vmatprep.subr.bf16.mxu0 0
  %3692 = vmatpush1.bf16.msra.mxu0 0
  %3693 = vmatprep.subr.bf16.mxu0 0
  %3694 = vmatpush1.bf16.msra.mxu0 0
  %3695 = vmatprep.subr.bf16.mxu0 0
  %3696 = vmatpush1.bf16.msra.mxu0 0
  %3697 = vmatprep.subr.bf16.mxu0 0
  %3698 = vmatpush1.bf16.msra.mxu0 0
  %3699 = vmatprep.subr.bf16.mxu0 0
  %3700 = vmatpush1.bf16.msra.mxu0 0
  %3701 = vmatprep.subr.bf16.mxu0 0
  %3702 = vmatpush1.bf16.msra.mxu0 0
  %3703 = vmatprep.subr.bf16.mxu0 0
  %3704 = vmatpush1.bf16.msra.mxu0 0
  %3705 = vmatprep.subr.bf16.mxu0 0
  %3706 = vmatpush1.bf16.msra.mxu0 0
  %3707 = vmatprep.subr.bf16.mxu0 0
  %3708 = vmatpush1.bf16.msra.mxu0 0
  %3709 = vmatprep.mubr.bf16.mxu0 0
  %3710 = vmatmul.mubr.bf16.gmra.mrb[0].mxu0 %v3675
  %v3711 = vpop.f32.mrb[0].mxu0
  %v3712 = vadd.f32 %v3644, %v3711
  %v3713 = vpop.f32.mrb[0].mxu0
  %v3714 = vpop.f32.mrb[0].mxu0
  %v3715 = vadd.f32 %v3647, %v3714
  %v3716 = vpop.f32.mrb[0].mxu0
  %3717 = vdwg.mxu0
  %v3718 = vpack.c.bf16 %v3550, %v3549
  %v3719 = vld [vmem:[%s8 + $0x40] sm:$0xf]
  %v3720 = vld [vmem:[%s8 + $0x44] sm:$0xf]
  %v3721 = vld [vmem:[%s8 + $0x48] sm:$0xf]
  %v3722 = vld [vmem:[%s8 + $0x4c] sm:$0xf]
  %v3723 = vld [vmem:[%s8 + $0x50] sm:$0xf]
  %v3724 = vld [vmem:[%s8 + $0x54] sm:$0xf]
  %v3725 = vld [vmem:[%s8 + $0x58] sm:$0xf]
  %v3726 = vld [vmem:[%s8 + $0x5c] sm:$0xf]
  %v3735 = vunpack.c.l.b16 %v3719
  %v3736 = vunpack.c.l.b16 %v3720
  %v3737 = vunpack.c.l.b16 %v3721
  %v3738 = vunpack.c.l.b16 %v3722
  %v3739 = vunpack.c.l.b16 %v3723
  %v3740 = vunpack.c.l.b16 %v3724
  %v3741 = vunpack.c.l.b16 %v3725
  %v3742 = vunpack.c.l.b16 %v3726
  %v3743 = vpack.c.b16 %v3736, %v3735
  %v3744 = vpack.c.b16 %v3738, %v3737
  %v3745 = vpack.c.b16 %v3740, %v3739
  %v3746 = vpack.c.b16 %v3742, %v3741
  %v3752 = vsel %vm3605, %v3718, 0
  %3754 = vmatprep.subr.bf16.mxu0 0
  %3755 = vmatpush1.bf16.msra.mxu0 %v3743
  %3756 = vmatprep.subr.bf16.mxu0 0
  %3757 = vmatpush1.bf16.msra.mxu0 %v3744
  %3758 = vmatprep.subr.bf16.mxu0 0
  %3759 = vmatpush1.bf16.msra.mxu0 %v3745
  %3760 = vmatprep.subr.bf16.mxu0 0
  %3761 = vmatpush1.bf16.msra.mxu0 %v3746
  %3762 = vmatprep.subr.bf16.mxu0 0
  %3763 = vmatpush1.bf16.msra.mxu0 0
  %3764 = vmatprep.subr.bf16.mxu0 0
  %3765 = vmatpush1.bf16.msra.mxu0 0
  %3766 = vmatprep.subr.bf16.mxu0 0
  %3767 = vmatpush1.bf16.msra.mxu0 0
  %3768 = vmatprep.subr.bf16.mxu0 0
  %3769 = vmatpush1.bf16.msra.mxu0 0
  %3770 = vmatprep.subr.bf16.mxu0 0
  %3771 = vmatpush1.bf16.msra.mxu0 0
  %3772 = vmatprep.subr.bf16.mxu0 0
  %3773 = vmatpush1.bf16.msra.mxu0 0
  %3774 = vmatprep.subr.bf16.mxu0 0
  %3775 = vmatpush1.bf16.msra.mxu0 0
  %3776 = vmatprep.subr.bf16.mxu0 0
  %3777 = vmatpush1.bf16.msra.mxu0 0
  %3778 = vmatprep.subr.bf16.mxu0 0
  %3779 = vmatpush1.bf16.msra.mxu0 0
  %3780 = vmatprep.subr.bf16.mxu0 0
  %3781 = vmatpush1.bf16.msra.mxu0 0
  %3782 = vmatprep.subr.bf16.mxu0 0
  %3783 = vmatpush1.bf16.msra.mxu0 0
  %3784 = vmatprep.subr.bf16.mxu0 0
  %3785 = vmatpush1.bf16.msra.mxu0 0
  %3786 = vmatprep.mubr.bf16.mxu0 0
  %3787 = vmatmul.mubr.bf16.gmra.mrb[0].mxu0 %v3752
  %v3788 = vpop.f32.mrb[0].mxu0
  %v3789 = vadd.f32 0.0, %v3788
  %v3790 = vpop.f32.mrb[0].mxu0
  %v3791 = vpop.f32.mrb[0].mxu0
  %v3792 = vadd.f32 0.0, %v3791
  %v3793 = vpop.f32.mrb[0].mxu0
  %3794 = vdwg.mxu0
  %v3795 = vadd.f32 %v3712, %v3789
  %v3796 = vadd.f32 %v3715, %v3792
  %v3797 = vpack.c.bf16 %v3552, %v3551
  %v3798 = vld [vmem:[%s8 + $0x60] sm:$0xf]
  %v3799 = vld [vmem:[%s8 + $0x64] sm:$0xf]
  %v3800 = vld [vmem:[%s8 + $0x68] sm:$0xf]
  %v3801 = vld [vmem:[%s8 + $0x6c] sm:$0xf]
  %v3802 = vld [vmem:[%s8 + $0x70] sm:$0xf]
  %v3803 = vld [vmem:[%s8 + $0x74] sm:$0xf]
  %v3804 = vld [vmem:[%s8 + $0x78] sm:$0xf]
  %v3805 = vld [vmem:[%s8 + $0x7c] sm:$0xf]
  %v3814 = vunpack.c.l.b16 %v3798
  %v3815 = vunpack.c.l.b16 %v3799
  %v3816 = vunpack.c.l.b16 %v3800
  %v3817 = vunpack.c.l.b16 %v3801
  %v3818 = vunpack.c.l.b16 %v3802
  %v3819 = vunpack.c.l.b16 %v3803
  %v3820 = vunpack.c.l.b16 %v3804
  %v3821 = vunpack.c.l.b16 %v3805
  %v3822 = vpack.c.b16 %v3815, %v3814
  %v3823 = vpack.c.b16 %v3817, %v3816
  %v3824 = vpack.c.b16 %v3819, %v3818
  %v3825 = vpack.c.b16 %v3821, %v3820
  %v3831 = vsel %vm3605, %v3797, 0
  %3833 = vmatprep.subr.bf16.mxu0 0
  %3834 = vmatpush1.bf16.msra.mxu0 %v3822
  %3835 = vmatprep.subr.bf16.mxu0 0
  %3836 = vmatpush1.bf16.msra.mxu0 %v3823
  %3837 = vmatprep.subr.bf16.mxu0 0
  %3838 = vmatpush1.bf16.msra.mxu0 %v3824
  %3839 = vmatprep.subr.bf16.mxu0 0
  %3840 = vmatpush1.bf16.msra.mxu0 %v3825
  %3841 = vmatprep.subr.bf16.mxu0 0
  %3842 = vmatpush1.bf16.msra.mxu0 0
  %3843 = vmatprep.subr.bf16.mxu0 0
  %3844 = vmatpush1.bf16.msra.mxu0 0
  %3845 = vmatprep.subr.bf16.mxu0 0
  %3846 = vmatpush1.bf16.msra.mxu0 0
  %3847 = vmatprep.subr.bf16.mxu0 0
  %3848 = vmatpush1.bf16.msra.mxu0 0
  %3849 = vmatprep.subr.bf16.mxu0 0
  %3850 = vmatpush1.bf16.msra.mxu0 0
  %3851 = vmatprep.subr.bf16.mxu0 0
  %3852 = vmatpush1.bf16.msra.mxu0 0
  %3853 = vmatprep.subr.bf16.mxu0 0
  %3854 = vmatpush1.bf16.msra.mxu0 0
  %3855 = vmatprep.subr.bf16.mxu0 0
  %3856 = vmatpush1.bf16.msra.mxu0 0
  %3857 = vmatprep.subr.bf16.mxu0 0
  %3858 = vmatpush1.bf16.msra.mxu0 0
  %3859 = vmatprep.subr.bf16.mxu0 0
  %3860 = vmatpush1.bf16.msra.mxu0 0
  %3861 = vmatprep.subr.bf16.mxu0 0
  %3862 = vmatpush1.bf16.msra.mxu0 0
  %3863 = vmatprep.subr.bf16.mxu0 0
  %3864 = vmatpush1.bf16.msra.mxu0 0
  %3865 = vmatprep.mubr.bf16.mxu0 0
  %3866 = vmatmul.mubr.bf16.gmra.mrb[0].mxu0 %v3831
  %v3867 = vpop.f32.mrb[0].mxu0
  %v3868 = vadd.f32 0.0, %v3867
  %v3869 = vpop.f32.mrb[0].mxu0
  %v3870 = vpop.f32.mrb[0].mxu0
  %v3871 = vadd.f32 0.0, %v3870
  %v3872 = vpop.f32.mrb[0].mxu0
  %3873 = vdwg.mxu0
  %v3874 = vadd.f32 %v3795, %v3868
  %v3875 = vadd.f32 %v3796, %v3871
  %v3876 = vpack.c.bf16 %v3554, %v3553
  %v3877 = vld [vmem:[%s8 + $0x80] sm:$0xf]
  %v3878 = vld [vmem:[%s8 + $0x84] sm:$0xf]
  %v3879 = vld [vmem:[%s8 + $0x88] sm:$0xf]
  %v3880 = vld [vmem:[%s8 + $0x8c] sm:$0xf]
  %v3881 = vld [vmem:[%s8 + $0x90] sm:$0xf]
  %v3882 = vld [vmem:[%s8 + $0x94] sm:$0xf]
  %v3883 = vld [vmem:[%s8 + $0x98] sm:$0xf]
  %v3884 = vld [vmem:[%s8 + $0x9c] sm:$0xf]
  %v3893 = vunpack.c.l.b16 %v3877
  %v3894 = vunpack.c.l.b16 %v3878
  %v3895 = vunpack.c.l.b16 %v3879
  %v3896 = vunpack.c.l.b16 %v3880
  %v3897 = vunpack.c.l.b16 %v3881
  %v3898 = vunpack.c.l.b16 %v3882
  %v3899 = vunpack.c.l.b16 %v3883
  %v3900 = vunpack.c.l.b16 %v3884
  %v3901 = vpack.c.b16 %v3894, %v3893
  %v3902 = vpack.c.b16 %v3896, %v3895
  %v3903 = vpack.c.b16 %v3898, %v3897
  %v3904 = vpack.c.b16 %v3900, %v3899
  %v3910 = vsel %vm3605, %v3876, 0
  %3912 = vmatprep.subr.bf16.mxu0 0
  %3913 = vmatpush1.bf16.msra.mxu0 %v3901
  %3914 = vmatprep.subr.bf16.mxu0 0
  %3915 = vmatpush1.bf16.msra.mxu0 %v3902
  %3916 = vmatprep.subr.bf16.mxu0 0
  %3917 = vmatpush1.bf16.msra.mxu0 %v3903
  %3918 = vmatprep.subr.bf16.mxu0 0
  %3919 = vmatpush1.bf16.msra.mxu0 %v3904
  %3920 = vmatprep.subr.bf16.mxu0 0
  %3921 = vmatpush1.bf16.msra.mxu0 0
  %3922 = vmatprep.subr.bf16.mxu0 0
  %3923 = vmatpush1.bf16.msra.mxu0 0
  %3924 = vmatprep.subr.bf16.mxu0 0
  %3925 = vmatpush1.bf16.msra.mxu0 0
  %3926 = vmatprep.subr.bf16.mxu0 0
  %3927 = vmatpush1.bf16.msra.mxu0 0
  %3928 = vmatprep.subr.bf16.mxu0 0
  %3929 = vmatpush1.bf16.msra.mxu0 0
  %3930 = vmatprep.subr.bf16.mxu0 0
  %3931 = vmatpush1.bf16.msra.mxu0 0
  %3932 = vmatprep.subr.bf16.mxu0 0
  %3933 = vmatpush1.bf16.msra.mxu0 0
  %3934 = vmatprep.subr.bf16.mxu0 0
  %3935 = vmatpush1.bf16.msra.mxu0 0
  %3936 = vmatprep.subr.bf16.mxu0 0
  %3937 = vmatpush1.bf16.msra.mxu0 0
  %3938 = vmatprep.subr.bf16.mxu0 0
  %3939 = vmatpush1.bf16.msra.mxu0 0
  %3940 = vmatprep.subr.bf16.mxu0 0
  %3941 = vmatpush1.bf16.msra.mxu0 0
  %3942 = vmatprep.subr.bf16.mxu0 0
  %3943 = vmatpush1.bf16.msra.mxu0 0
  %3944 = vmatprep.mubr.bf16.mxu0 0
  %3945 = vmatmul.mubr.bf16.gmra.mrb[0].mxu0 %v3910
  %v3946 = vpop.f32.mrb[0].mxu0
  %v3947 = vadd.f32 0.0, %v3946
  %v3948 = vpop.f32.mrb[0].mxu0
  %v3949 = vpop.f32.mrb[0].mxu0
  %v3950 = vadd.f32 0.0, %v3949
  %v3951 = vpop.f32.mrb[0].mxu0
  %3952 = vdwg.mxu0
  %v3953 = vadd.f32 %v3874, %v3947
  %v3954 = vadd.f32 %v3875, %v3950
  %v3955 = vpack.c.bf16 %v3556, %v3555
  %v3956 = vld [vmem:[%s8 + $0xa0] sm:$0xf]
  %v3957 = vld [vmem:[%s8 + $0xa4] sm:$0xf]
  %v3958 = vld [vmem:[%s8 + $0xa8] sm:$0xf]
  %v3959 = vld [vmem:[%s8 + $0xac] sm:$0xf]
  %v3960 = vld [vmem:[%s8 + $0xb0] sm:$0xf]
  %v3961 = vld [vmem:[%s8 + $0xb4] sm:$0xf]
  %v3962 = vld [vmem:[%s8 + $0xb8] sm:$0xf]
  %v3963 = vld [vmem:[%s8 + $0xbc] sm:$0xf]
  %v3972 = vunpack.c.l.b16 %v3956
  %v3973 = vunpack.c.l.b16 %v3957
  %v3974 = vunpack.c.l.b16 %v3958
  %v3975 = vunpack.c.l.b16 %v3959
  %v3976 = vunpack.c.l.b16 %v3960
  %v3977 = vunpack.c.l.b16 %v3961
  %v3978 = vunpack.c.l.b16 %v3962
  %v3979 = vunpack.c.l.b16 %v3963
  %v3980 = vpack.c.b16 %v3973, %v3972
  %v3981 = vpack.c.b16 %v3975, %v3974
  %v3982 = vpack.c.b16 %v3977, %v3976
  %v3983 = vpack.c.b16 %v3979, %v3978
  %v3989 = vsel %vm3605, %v3955, 0
  %3991 = vmatprep.subr.bf16.mxu0 0
  %3992 = vmatpush1.bf16.msra.mxu0 %v3980
  %3993 = vmatprep.subr.bf16.mxu0 0
  %3994 = vmatpush1.bf16.msra.mxu0 %v3981
  %3995 = vmatprep.subr.bf16.mxu0 0
  %3996 = vmatpush1.bf16.msra.mxu0 %v3982
  %3997 = vmatprep.subr.bf16.mxu0 0
  %3998 = vmatpush1.bf16.msra.mxu0 %v3983
  %3999 = vmatprep.subr.bf16.mxu0 0
  %4000 = vmatpush1.bf16.msra.mxu0 0
  %4001 = vmatprep.subr.bf16.mxu0 0
  %4002 = vmatpush1.bf16.msra.mxu0 0
  %4003 = vmatprep.subr.bf16.mxu0 0
  %4004 = vmatpush1.bf16.msra.mxu0 0
  %4005 = vmatprep.subr.bf16.mxu0 0
  %4006 = vmatpush1.bf16.msra.mxu0 0
  %4007 = vmatprep.subr.bf16.mxu0 0
  %4008 = vmatpush1.bf16.msra.mxu0 0
  %4009 = vmatprep.subr.bf16.mxu0 0
  %4010 = vmatpush1.bf16.msra.mxu0 0
  %4011 = vmatprep.subr.bf16.mxu0 0
  %4012 = vmatpush1.bf16.msra.mxu0 0
  %4013 = vmatprep.subr.bf16.mxu0 0
  %4014 = vmatpush1.bf16.msra.mxu0 0
  %4015 = vmatprep.subr.bf16.mxu0 0
  %4016 = vmatpush1.bf16.msra.mxu0 0
  %4017 = vmatprep.subr.bf16.mxu0 0
  %4018 = vmatpush1.bf16.msra.mxu0 0
  %4019 = vmatprep.subr.bf16.mxu0 0
  %4020 = vmatpush1.bf16.msra.mxu0 0
  %4021 = vmatprep.subr.bf16.mxu0 0
  %4022 = vmatpush1.bf16.msra.mxu0 0
  %4023 = vmatprep.mubr.bf16.mxu0 0
  %4024 = vmatmul.mubr.bf16.gmra.mrb[0].mxu0 %v3989
  %v4025 = vpop.f32.mrb[0].mxu0
  %v4026 = vadd.f32 0.0, %v4025
  %v4027 = vpop.f32.mrb[0].mxu0
  %v4028 = vpop.f32.mrb[0].mxu0
  %v4029 = vadd.f32 0.0, %v4028
  %v4030 = vpop.f32.mrb[0].mxu0
  %4031 = vdwg.mxu0
  %v4032 = vadd.f32 %v3953, %v4026
  %v4033 = vadd.f32 %v3954, %v4029
  %v4034 = vpack.c.bf16 %v3558, %v3557
  %v4035 = vld [vmem:[%s8 + $0xc0] sm:$0xf]
  %v4036 = vld [vmem:[%s8 + $0xc4] sm:$0xf]
  %v4037 = vld [vmem:[%s8 + $0xc8] sm:$0xf]
  %v4038 = vld [vmem:[%s8 + $0xcc] sm:$0xf]
  %v4039 = vld [vmem:[%s8 + $0xd0] sm:$0xf]
  %v4040 = vld [vmem:[%s8 + $0xd4] sm:$0xf]
  %v4041 = vld [vmem:[%s8 + $0xd8] sm:$0xf]
  %v4042 = vld [vmem:[%s8 + $0xdc] sm:$0xf]
  %v4051 = vunpack.c.l.b16 %v4035
  %v4052 = vunpack.c.l.b16 %v4036
  %v4053 = vunpack.c.l.b16 %v4037
  %v4054 = vunpack.c.l.b16 %v4038
  %v4055 = vunpack.c.l.b16 %v4039
  %v4056 = vunpack.c.l.b16 %v4040
  %v4057 = vunpack.c.l.b16 %v4041
  %v4058 = vunpack.c.l.b16 %v4042
  %v4059 = vpack.c.b16 %v4052, %v4051
  %v4060 = vpack.c.b16 %v4054, %v4053
  %v4061 = vpack.c.b16 %v4056, %v4055
  %v4062 = vpack.c.b16 %v4058, %v4057
  %v4068 = vsel %vm3605, %v4034, 0
  %4070 = vmatprep.subr.bf16.mxu0 0
  %4071 = vmatpush1.bf16.msra.mxu0 %v4059
  %4072 = vmatprep.subr.bf16.mxu0 0
  %4073 = vmatpush1.bf16.msra.mxu0 %v4060
  %4074 = vmatprep.subr.bf16.mxu0 0
  %4075 = vmatpush1.bf16.msra.mxu0 %v4061
  %4076 = vmatprep.subr.bf16.mxu0 0
  %4077 = vmatpush1.bf16.msra.mxu0 %v4062
  %4078 = vmatprep.subr.bf16.mxu0 0
  %4079 = vmatpush1.bf16.msra.mxu0 0
  %4080 = vmatprep.subr.bf16.mxu0 0
  %4081 = vmatpush1.bf16.msra.mxu0 0
  %4082 = vmatprep.subr.bf16.mxu0 0
  %4083 = vmatpush1.bf16.msra.mxu0 0
  %4084 = vmatprep.subr.bf16.mxu0 0
  %4085 = vmatpush1.bf16.msra.mxu0 0
  %4086 = vmatprep.subr.bf16.mxu0 0
  %4087 = vmatpush1.bf16.msra.mxu0 0
  %4088 = vmatprep.subr.bf16.mxu0 0
  %4089 = vmatpush1.bf16.msra.mxu0 0
  %4090 = vmatprep.subr.bf16.mxu0 0
  %4091 = vmatpush1.bf16.msra.mxu0 0
  %4092 = vmatprep.subr.bf16.mxu0 0
  %4093 = vmatpush1.bf16.msra.mxu0 0
  %4094 = vmatprep.subr.bf16.mxu0 0
  %4095 = vmatpush1.bf16.msra.mxu0 0
  %4096 = vmatprep.subr.bf16.mxu0 0
  %4097 = vmatpush1.bf16.msra.mxu0 0
  %4098 = vmatprep.subr.bf16.mxu0 0
  %4099 = vmatpush1.bf16.msra.mxu0 0
  %4100 = vmatprep.subr.bf16.mxu0 0
  %4101 = vmatpush1.bf16.msra.mxu0 0
  %4102 = vmatprep.mubr.bf16.mxu0 0
  %4103 = vmatmul.mubr.bf16.gmra.mrb[0].mxu0 %v4068
  %v4104 = vpop.f32.mrb[0].mxu0
  %v4105 = vadd.f32 0.0, %v4104
  %v4106 = vpop.f32.mrb[0].mxu0
  %v4107 = vpop.f32.mrb[0].mxu0
  %v4108 = vadd.f32 0.0, %v4107
  %v4109 = vpop.f32.mrb[0].mxu0
  %4110 = vdwg.mxu0
  %v4111 = vadd.f32 %v4032, %v4105
  %v4112 = vadd.f32 %v4033, %v4108
  %v4113 = vpack.c.bf16 %v3560, %v3559
  %v4114 = vld [vmem:[%s8 + $0xe0] sm:$0xf]
  %v4115 = vld [vmem:[%s8 + $0xe4] sm:$0xf]
  %v4116 = vld [vmem:[%s8 + $0xe8] sm:$0xf]
  %v4117 = vld [vmem:[%s8 + $0xec] sm:$0xf]
  %v4118 = vld [vmem:[%s8 + $0xf0] sm:$0xf]
  %v4119 = vld [vmem:[%s8 + $0xf4] sm:$0xf]
  %v4120 = vld [vmem:[%s8 + $0xf8] sm:$0xf]
  %v4121 = vld [vmem:[%s8 + $0xfc] sm:$0xf]
  %v4130 = vunpack.c.l.b16 %v4114
  %v4131 = vunpack.c.l.b16 %v4115
  %v4132 = vunpack.c.l.b16 %v4116
  %v4133 = vunpack.c.l.b16 %v4117
  %v4134 = vunpack.c.l.b16 %v4118
  %v4135 = vunpack.c.l.b16 %v4119
  %v4136 = vunpack.c.l.b16 %v4120
  %v4137 = vunpack.c.l.b16 %v4121
  %v4138 = vpack.c.b16 %v4131, %v4130
  %v4139 = vpack.c.b16 %v4133, %v4132
  %v4140 = vpack.c.b16 %v4135, %v4134
  %v4141 = vpack.c.b16 %v4137, %v4136
  %v4147 = vsel %vm3605, %v4113, 0
  %4149 = vmatprep.subr.bf16.mxu0 0
  %4150 = vmatpush1.bf16.msra.mxu0 %v4138
  %4151 = vmatprep.subr.bf16.mxu0 0
  %4152 = vmatpush1.bf16.msra.mxu0 %v4139
  %4153 = vmatprep.subr.bf16.mxu0 0
  %4154 = vmatpush1.bf16.msra.mxu0 %v4140
  %4155 = vmatprep.subr.bf16.mxu0 0
  %4156 = vmatpush1.bf16.msra.mxu0 %v4141
  %4157 = vmatprep.subr.bf16.mxu0 0
  %4158 = vmatpush1.bf16.msra.mxu0 0
  %4159 = vmatprep.subr.bf16.mxu0 0
  %4160 = vmatpush1.bf16.msra.mxu0 0
  %4161 = vmatprep.subr.bf16.mxu0 0
  %4162 = vmatpush1.bf16.msra.mxu0 0
  %4163 = vmatprep.subr.bf16.mxu0 0
  %4164 = vmatpush1.bf16.msra.mxu0 0
  %4165 = vmatprep.subr.bf16.mxu0 0
  %4166 = vmatpush1.bf16.msra.mxu0 0
  %4167 = vmatprep.subr.bf16.mxu0 0
  %4168 = vmatpush1.bf16.msra.mxu0 0
  %4169 = vmatprep.subr.bf16.mxu0 0
  %4170 = vmatpush1.bf16.msra.mxu0 0
  %4171 = vmatprep.subr.bf16.mxu0 0
  %4172 = vmatpush1.bf16.msra.mxu0 0
  %4173 = vmatprep.subr.bf16.mxu0 0
  %4174 = vmatpush1.bf16.msra.mxu0 0
  %4175 = vmatprep.subr.bf16.mxu0 0
  %4176 = vmatpush1.bf16.msra.mxu0 0
  %4177 = vmatprep.subr.bf16.mxu0 0
  %4178 = vmatpush1.bf16.msra.mxu0 0
  %4179 = vmatprep.subr.bf16.mxu0 0
  %4180 = vmatpush1.bf16.msra.mxu0 0
  %4181 = vmatprep.mubr.bf16.mxu0 0
  %4182 = vmatmul.mubr.bf16.gmra.mrb[0].mxu0 %v4147
  %v4183 = vpop.f32.mrb[0].mxu0
  %v4184 = vadd.f32 0.0, %v4183
  %v4185 = vpop.f32.mrb[0].mxu0
  %v4186 = vpop.f32.mrb[0].mxu0
  %v4187 = vadd.f32 0.0, %v4186
  %v4188 = vpop.f32.mrb[0].mxu0
  %4189 = vdwg.mxu0
  %v4190 = vadd.f32 %v4111, %v4184
  %v4191 = vadd.f32 %v4112, %v4187
  %v4192 = vpack.c.bf16 %v3562, %v3561
  %v4193 = vld [vmem:[%s8 + $0x100] sm:$0xf]
  %v4194 = vld [vmem:[%s8 + $0x104] sm:$0xf]
  %v4195 = vld [vmem:[%s8 + $0x108] sm:$0xf]
  %v4196 = vld [vmem:[%s8 + $0x10c] sm:$0xf]
  %v4197 = vld [vmem:[%s8 + $0x110] sm:$0xf]
  %v4198 = vld [vmem:[%s8 + $0x114] sm:$0xf]
  %v4199 = vld [vmem:[%s8 + $0x118] sm:$0xf]
  %v4200 = vld [vmem:[%s8 + $0x11c] sm:$0xf]
  %v4209 = vunpack.c.l.b16 %v4193
  %v4210 = vunpack.c.l.b16 %v4194
  %v4211 = vunpack.c.l.b16 %v4195
  %v4212 = vunpack.c.l.b16 %v4196
  %v4213 = vunpack.c.l.b16 %v4197
  %v4214 = vunpack.c.l.b16 %v4198
  %v4215 = vunpack.c.l.b16 %v4199
  %v4216 = vunpack.c.l.b16 %v4200
  %v4217 = vpack.c.b16 %v4210, %v4209
  %v4218 = vpack.c.b16 %v4212, %v4211
  %v4219 = vpack.c.b16 %v4214, %v4213
  %v4220 = vpack.c.b16 %v4216, %v4215
  %v4226 = vsel %vm3605, %v4192, 0
  %4228 = vmatprep.subr.bf16.mxu0 0
  %4229 = vmatpush1.bf16.msra.mxu0 %v4217
  %4230 = vmatprep.subr.bf16.mxu0 0
  %4231 = vmatpush1.bf16.msra.mxu0 %v4218
  %4232 = vmatprep.subr.bf16.mxu0 0
  %4233 = vmatpush1.bf16.msra.mxu0 %v4219
  %4234 = vmatprep.subr.bf16.mxu0 0
  %4235 = vmatpush1.bf16.msra.mxu0 %v4220
  %4236 = vmatprep.subr.bf16.mxu0 0
  %4237 = vmatpush1.bf16.msra.mxu0 0
  %4238 = vmatprep.subr.bf16.mxu0 0
  %4239 = vmatpush1.bf16.msra.mxu0 0
  %4240 = vmatprep.subr.bf16.mxu0 0
  %4241 = vmatpush1.bf16.msra.mxu0 0
  %4242 = vmatprep.subr.bf16.mxu0 0
  %4243 = vmatpush1.bf16.msra.mxu0 0
  %4244 = vmatprep.subr.bf16.mxu0 0
  %4245 = vmatpush1.bf16.msra.mxu0 0
  %4246 = vmatprep.subr.bf16.mxu0 0
  %4247 = vmatpush1.bf16.msra.mxu0 0
  %4248 = vmatprep.subr.bf16.mxu0 0
  %4249 = vmatpush1.bf16.msra.mxu0 0
  %4250 = vmatprep.subr.bf16.mxu0 0
  %4251 = vmatpush1.bf16.msra.mxu0 0
  %4252 = vmatprep.subr.bf16.mxu0 0
  %4253 = vmatpush1.bf16.msra.mxu0 0
  %4254 = vmatprep.subr.bf16.mxu0 0
  %4255 = vmatpush1.bf16.msra.mxu0 0
  %4256 = vmatprep.subr.bf16.mxu0 0
  %4257 = vmatpush1.bf16.msra.mxu0 0
  %4258 = vmatprep.subr.bf16.mxu0 0
  %4259 = vmatpush1.bf16.msra.mxu0 0
  %4260 = vmatprep.mubr.bf16.mxu0 0
  %4261 = vmatmul.mubr.bf16.gmra.mrb[0].mxu0 %v4226
  %v4262 = vpop.f32.mrb[0].mxu0
  %v4263 = vadd.f32 0.0, %v4262
  %v4264 = vpop.f32.mrb[0].mxu0
  %v4265 = vpop.f32.mrb[0].mxu0
  %v4266 = vadd.f32 0.0, %v4265
  %v4267 = vpop.f32.mrb[0].mxu0
  %4268 = vdwg.mxu0
  %v4269 = vadd.f32 %v4190, %v4263
  %v4270 = vadd.f32 %v4191, %v4266
  %v4271 = vld [vmem:[%s9] sm:$0x1]
  %v4273 = vlaneseq
  %v4274 = vshrl.u32 %v4273, 7
  %v4275 = vsub.s32 0, %v4274
  %v4276 = vrot.slane %v4271, %v4275
  %v4278 = vmul.f32 %v4269, %v4276
  %v4279 = vmul.f32 %v4270, %v4276
  %v4280 = vld [vmem:[%s10] sm:$0x1]
  %v4282 = vlaneseq
  %v4283 = vshrl.u32 %v4282, 7
  %v4284 = vsub.s32 0, %v4283
  %v4285 = vrot.slane %v4280, %v4284
  %v4287 = vadd.f32 %v4278, %v4285
  %v4288 = vadd.f32 %v4279, %v4285
  %v4289 = vmax.f32 %v4287, 0.0
  %v4290 = vmax.f32 %v4288, 0.0
  %v4291 = vld [vmem:[%s1] sm:$0x1]
  %v4292 = vld [vmem:[%s12] sm:$0xff]
  %v4293 = vld [vmem:[%s13] sm:$0xf]
  %v4295 = vlaneseq
  %v4296 = vshrl.u32 %v4295, 7
  %v4297 = vsub.s32 0, %v4296
  %v4298 = vrot.slane %v4293, %v4297
  %v4299 = vlaneseq
  %v4300 = vshrl.u32 %v4299, 7
  %v4301 = vsub.s32 1, %v4300
  %v4302 = vrot.slane %v4293, %v4301
  %v4303 = vlaneseq
  %v4304 = vshrl.u32 %v4303, 7
  %v4305 = vsub.s32 2, %v4304
  %v4306 = vrot.slane %v4293, %v4305
  %v4307 = vlaneseq
  %v4308 = vshrl.u32 %v4307, 7
  %v4309 = vsub.s32 3, %v4308
  %v4310 = vrot.slane %v4293, %v4309
  %v4316 = vcombine.high %v4292, %v4292
  %v4318 = vunpack.c.l.s4 1983009808
  %v4319 = vunpack.c.0.s8 %v4318
  %v4320 = vlaneseq
  %v4321 = vshrl.u32 %v4320, 7
  %v4322 = vsub.s32 %v4319, %v4321
  %v4323 = vrot.slane %v4292, %v4322
  %v4325 = vunpack.c.l.s4 1983009808
  %v4326 = vunpack.c.0.s8 %v4325
  %v4327 = vlaneseq
  %v4328 = vshrl.u32 %v4327, 7
  %v4329 = vsub.s32 %v4326, %v4328
  %v4330 = vrot.slane %v4316, %v4329
  %v4331 = vcombine.high %v4323, %v4323
  %v4332 = vcombine.high %v4330, %v4330
  %vm4333 = vcmask 31744
  %v4335 = vsel %vm4333, %v4291, 0
  %vm4337 = vcmask 1041408
  %v4339 = vsel %vm4337, %v4323, 0
  %v4342 = vsel %vm4337, %v4331, 0
  %v4345 = vsel %vm4337, %v4330, 0
  %v4348 = vsel %vm4337, %v4332, 0
  %4350 = vmatprep.subr.bf16.mxu0 %v4342
  %4351 = vmatpush1.bf16.msra.mxu0 %v4339
  %4352 = vmatprep.subr.bf16.mxu0 0
  %4353 = vmatpush1.bf16.msra.mxu0 0
  %4354 = vmatprep.subr.bf16.mxu0 0
  %4355 = vmatpush1.bf16.msra.mxu0 0
  %4356 = vmatprep.subr.bf16.mxu0 0
  %4357 = vmatpush1.bf16.msra.mxu0 0
  %4358 = vmatprep.subr.bf16.mxu0 0
  %4359 = vmatpush1.bf16.msra.mxu0 0
  %4360 = vmatprep.subr.bf16.mxu0 0
  %4361 = vmatpush1.bf16.msra.mxu0 0
  %4362 = vmatprep.subr.bf16.mxu0 0
  %4363 = vmatpush1.bf16.msra.mxu0 0
  %4364 = vmatprep.subr.bf16.mxu0 0
  %4365 = vmatpush1.bf16.msra.mxu0 0
  %4366 = vmatprep.subr.bf16.mxu0 0
  %4367 = vmatpush1.bf16.msra.mxu0 0
  %4368 = vmatprep.subr.bf16.mxu0 0
  %4369 = vmatpush1.bf16.msra.mxu0 0
  %4370 = vmatprep.subr.bf16.mxu0 0
  %4371 = vmatpush1.bf16.msra.mxu0 0
  %4372 = vmatprep.subr.bf16.mxu0 0
  %4373 = vmatpush1.bf16.msra.mxu0 0
  %4374 = vmatprep.subr.bf16.mxu0 0
  %4375 = vmatpush1.bf16.msra.mxu0 0
  %4376 = vmatprep.subr.bf16.mxu0 0
  %4377 = vmatpush1.bf16.msra.mxu0 0
  %4378 = vmatprep.subr.bf16.mxu0 0
  %4379 = vmatpush1.bf16.msra.mxu0 0
  %4380 = vmatprep.subr.bf16.mxu0 0
  %4381 = vmatpush1.bf16.msra.mxu0 0
  %4382 = vmatprep.mubr.bf16.mxu0 0
  %4383 = vmatmul.mubr.bf16.gmra.mrb[0].mxu0 %v4335
  %v4384 = vpop.f32.mrb[0].mxu0
  %v4385 = vadd.f32 %v4298, %v4384
  %v4386 = vpop.f32.mrb[0].mxu0
  %v4387 = vadd.f32 %v4302, %v4386
  %v4388 = vpop.f32.mrb[0].mxu0
  %v4389 = vpop.f32.mrb[0].mxu0
  %4390 = vdwg.mxu0
  %4391 = vmatprep.subr.bf16.mxu0 %v4348
  %4392 = vmatpush1.bf16.msra.mxu0 %v4345
  %4393 = vmatprep.subr.bf16.mxu0 0
  %4394 = vmatpush1.bf16.msra.mxu0 0
  %4395 = vmatprep.subr.bf16.mxu0 0
  %4396 = vmatpush1.bf16.msra.mxu0 0
  %4397 = vmatprep.subr.bf16.mxu0 0
  %4398 = vmatpush1.bf16.msra.mxu0 0
  %4399 = vmatprep.subr.bf16.mxu0 0
  %4400 = vmatpush1.bf16.msra.mxu0 0
  %4401 = vmatprep.subr.bf16.mxu0 0
  %4402 = vmatpush1.bf16.msra.mxu0 0
  %4403 = vmatprep.subr.bf16.mxu0 0
  %4404 = vmatpush1.bf16.msra.mxu0 0
  %4405 = vmatprep.subr.bf16.mxu0 0
  %4406 = vmatpush1.bf16.msra.mxu0 0
  %4407 = vmatprep.subr.bf16.mxu0 0
  %4408 = vmatpush1.bf16.msra.mxu0 0
  %4409 = vmatprep.subr.bf16.mxu0 0
  %4410 = vmatpush1.bf16.msra.mxu0 0
  %4411 = vmatprep.subr.bf16.mxu0 0
  %4412 = vmatpush1.bf16.msra.mxu0 0
  %4413 = vmatprep.subr.bf16.mxu0 0
  %4414 = vmatpush1.bf16.msra.mxu0 0
  %4415 = vmatprep.subr.bf16.mxu0 0
  %4416 = vmatpush1.bf16.msra.mxu0 0
  %4417 = vmatprep.subr.bf16.mxu0 0
  %4418 = vmatpush1.bf16.msra.mxu0 0
  %4419 = vmatprep.subr.bf16.mxu0 0
  %4420 = vmatpush1.bf16.msra.mxu0 0
  %4421 = vmatprep.subr.bf16.mxu0 0
  %4422 = vmatpush1.bf16.msra.mxu0 0
  %4423 = vmatprep.mubr.bf16.mxu0 0
  %4424 = vmatmul.mubr.bf16.gmra.mrb[0].mxu0 %v4335
  %v4425 = vpop.f32.mrb[0].mxu0
  %v4426 = vadd.f32 %v4306, %v4425
  %v4427 = vpop.f32.mrb[0].mxu0
  %v4428 = vadd.f32 %v4310, %v4427
  %v4429 = vpop.f32.mrb[0].mxu0
  %v4430 = vpop.f32.mrb[0].mxu0
  %4431 = vdwg.mxu0
  %v4432 = vpack.c.bf16 %v4289, %v4289
  %v4433 = vld [vmem:[%s11] sm:$0xff]
  %v4434 = vld [vmem:[%s11 + $0x8] sm:$0xff]
  %v4435 = vld [vmem:[%s11 + $0x10] sm:$0xff]
  %v4436 = vld [vmem:[%s11 + $0x18] sm:$0xff]
  %v4437 = vld [vmem:[%s11 + $0x20] sm:$0xff]
  %v4438 = vld [vmem:[%s11 + $0x28] sm:$0xff]
  %v4439 = vld [vmem:[%s11 + $0x30] sm:$0xff]
  %v4440 = vld [vmem:[%s11 + $0x38] sm:$0xff]
  %v4441 = vld [vmem:[%s11 + $0x40] sm:$0xff]
  %v4442 = vld [vmem:[%s11 + $0x48] sm:$0xff]
  %v4443 = vld [vmem:[%s11 + $0x50] sm:$0xff]
  %v4444 = vld [vmem:[%s11 + $0x58] sm:$0xff]
  %v4445 = vld [vmem:[%s11 + $0x60] sm:$0xff]
  %v4446 = vld [vmem:[%s11 + $0x68] sm:$0xff]
  %v4447 = vld [vmem:[%s11 + $0x70] sm:$0xff]
  %v4448 = vld [vmem:[%s11 + $0x78] sm:$0xff]
  %v4449 = vld [vmem:[%s11 + $0x80] sm:$0xff]
  %v4450 = vld [vmem:[%s11 + $0x88] sm:$0xff]
  %v4451 = vld [vmem:[%s11 + $0x90] sm:$0xff]
  %v4452 = vld [vmem:[%s11 + $0x98] sm:$0xff]
  %v4453 = vld [vmem:[%s11 + $0xa0] sm:$0xff]
  %v4454 = vld [vmem:[%s11 + $0xa8] sm:$0xff]
  %v4455 = vld [vmem:[%s11 + $0xb0] sm:$0xff]
  %v4456 = vld [vmem:[%s11 + $0xb8] sm:$0xff]
  %v4457 = vld [vmem:[%s11 + $0xc0] sm:$0xff]
  %v4458 = vld [vmem:[%s11 + $0xc8] sm:$0xff]
  %v4459 = vld [vmem:[%s11 + $0xd0] sm:$0xff]
  %v4460 = vld [vmem:[%s11 + $0xd8] sm:$0xff]
  %v4461 = vld [vmem:[%s11 + $0xe0] sm:$0xff]
  %v4462 = vld [vmem:[%s11 + $0xe8] sm:$0xff]
  %v4463 = vld [vmem:[%s11 + $0xf0] sm:$0xff]
  %v4464 = vld [vmem:[%s11 + $0xf8] sm:$0xff]
  %v4497 = vunpack.c.l.b16 %v4433
  %v4498 = vunpack.c.h.b16 %v4433
  %v4499 = vunpack.c.l.b16 %v4434
  %v4500 = vunpack.c.h.b16 %v4434
  %v4501 = vunpack.c.l.b16 %v4435
  %v4502 = vunpack.c.h.b16 %v4435
  %v4503 = vunpack.c.l.b16 %v4436
  %v4504 = vunpack.c.h.b16 %v4436
  %v4505 = vunpack.c.l.b16 %v4437
  %v4506 = vunpack.c.h.b16 %v4437
  %v4507 = vunpack.c.l.b16 %v4438
  %v4508 = vunpack.c.h.b16 %v4438
  %v4509 = vunpack.c.l.b16 %v4439
  %v4510 = vunpack.c.h.b16 %v4439
  %v4511 = vunpack.c.l.b16 %v4440
  %v4512 = vunpack.c.h.b16 %v4440
  %v4513 = vunpack.c.l.b16 %v4441
  %v4514 = vunpack.c.h.b16 %v4441
  %v4515 = vunpack.c.l.b16 %v4442
  %v4516 = vunpack.c.h.b16 %v4442
  %v4517 = vunpack.c.l.b16 %v4443
  %v4518 = vunpack.c.h.b16 %v4443
  %v4519 = vunpack.c.l.b16 %v4444
  %v4520 = vunpack.c.h.b16 %v4444
  %v4521 = vunpack.c.l.b16 %v4445
  %v4522 = vunpack.c.h.b16 %v4445
  %v4523 = vunpack.c.l.b16 %v4446
  %v4524 = vunpack.c.h.b16 %v4446
  %v4525 = vunpack.c.l.b16 %v4447
  %v4526 = vunpack.c.h.b16 %v4447
  %v4527 = vunpack.c.l.b16 %v4448
  %v4528 = vunpack.c.h.b16 %v4448
  %v4529 = vunpack.c.l.b16 %v4449
  %v4530 = vunpack.c.h.b16 %v4449
  %v4531 = vunpack.c.l.b16 %v4450
  %v4532 = vunpack.c.h.b16 %v4450
  %v4533 = vunpack.c.l.b16 %v4451
  %v4534 = vunpack.c.h.b16 %v4451
  %v4535 = vunpack.c.l.b16 %v4452
  %v4536 = vunpack.c.h.b16 %v4452
  %v4537 = vunpack.c.l.b16 %v4453
  %v4538 = vunpack.c.h.b16 %v4453
  %v4539 = vunpack.c.l.b16 %v4454
  %v4540 = vunpack.c.h.b16 %v4454
  %v4541 = vunpack.c.l.b16 %v4455
  %v4542 = vunpack.c.h.b16 %v4455
  %v4543 = vunpack.c.l.b16 %v4456
  %v4544 = vunpack.c.h.b16 %v4456
  %v4545 = vunpack.c.l.b16 %v4457
  %v4546 = vunpack.c.h.b16 %v4457
  %v4547 = vunpack.c.l.b16 %v4458
  %v4548 = vunpack.c.h.b16 %v4458
  %v4549 = vunpack.c.l.b16 %v4459
  %v4550 = vunpack.c.h.b16 %v4459
  %v4551 = vunpack.c.l.b16 %v4460
  %v4552 = vunpack.c.h.b16 %v4460
  %v4553 = vunpack.c.l.b16 %v4461
  %v4554 = vunpack.c.h.b16 %v4461
  %v4555 = vunpack.c.l.b16 %v4462
  %v4556 = vunpack.c.h.b16 %v4462
  %v4557 = vunpack.c.l.b16 %v4463
  %v4558 = vunpack.c.h.b16 %v4463
  %v4559 = vunpack.c.l.b16 %v4464
  %v4560 = vunpack.c.h.b16 %v4464
  %v4561 = vpack.c.b16 %v4501, %v4497
  %v4562 = vpack.c.b16 %v4502, %v4498
  %v4563 = vpack.c.b16 %v4503, %v4499
  %v4564 = vpack.c.b16 %v4504, %v4500
  %v4565 = vpack.c.b16 %v4509, %v4505
  %v4566 = vpack.c.b16 %v4510, %v4506
  %v4567 = vpack.c.b16 %v4511, %v4507
  %v4568 = vpack.c.b16 %v4512, %v4508
  %v4569 = vpack.c.b16 %v4517, %v4513
  %v4570 = vpack.c.b16 %v4518, %v4514
  %v4571 = vpack.c.b16 %v4519, %v4515
  %v4572 = vpack.c.b16 %v4520, %v4516
  %v4573 = vpack.c.b16 %v4525, %v4521
  %v4574 = vpack.c.b16 %v4526, %v4522
  %v4575 = vpack.c.b16 %v4527, %v4523
  %v4576 = vpack.c.b16 %v4528, %v4524
  %v4577 = vpack.c.b16 %v4533, %v4529
  %v4578 = vpack.c.b16 %v4534, %v4530
  %v4579 = vpack.c.b16 %v4535, %v4531
  %v4580 = vpack.c.b16 %v4536, %v4532
  %v4581 = vpack.c.b16 %v4541, %v4537
  %v4582 = vpack.c.b16 %v4542, %v4538
  %v4583 = vpack.c.b16 %v4543, %v4539
  %v4584 = vpack.c.b16 %v4544, %v4540
  %v4585 = vpack.c.b16 %v4549, %v4545
  %v4586 = vpack.c.b16 %v4550, %v4546
  %v4587 = vpack.c.b16 %v4551, %v4547
  %v4588 = vpack.c.b16 %v4552, %v4548
  %v4589 = vpack.c.b16 %v4557, %v4553
  %v4590 = vpack.c.b16 %v4558, %v4554
  %v4591 = vpack.c.b16 %v4559, %v4555
  %v4592 = vpack.c.b16 %v4560, %v4556
  %4625 = vmatprep.subr.bf16.mxu0 %v4562
  %4626 = vmatpush1.bf16.msra.mxu0 %v4561
  %4627 = vmatprep.subr.bf16.mxu0 %v4566
  %4628 = vmatpush1.bf16.msra.mxu0 %v4565
  %4629 = vmatprep.subr.bf16.mxu0 %v4570
  %4630 = vmatpush1.bf16.msra.mxu0 %v4569
  %4631 = vmatprep.subr.bf16.mxu0 %v4574
  %4632 = vmatpush1.bf16.msra.mxu0 %v4573
  %4633 = vmatprep.subr.bf16.mxu0 %v4578
  %4634 = vmatpush1.bf16.msra.mxu0 %v4577
  %4635 = vmatprep.subr.bf16.mxu0 %v4582
  %4636 = vmatpush1.bf16.msra.mxu0 %v4581
  %4637 = vmatprep.subr.bf16.mxu0 %v4586
  %4638 = vmatpush1.bf16.msra.mxu0 %v4585
  %4639 = vmatprep.subr.bf16.mxu0 %v4590
  %4640 = vmatpush1.bf16.msra.mxu0 %v4589
  %4641 = vmatprep.subr.bf16.mxu0 0
  %4642 = vmatpush1.bf16.msra.mxu0 0
  %4643 = vmatprep.subr.bf16.mxu0 0
  %4644 = vmatpush1.bf16.msra.mxu0 0
  %4645 = vmatprep.subr.bf16.mxu0 0
  %4646 = vmatpush1.bf16.msra.mxu0 0
  %4647 = vmatprep.subr.bf16.mxu0 0
  %4648 = vmatpush1.bf16.msra.mxu0 0
  %4649 = vmatprep.subr.bf16.mxu0 0
  %4650 = vmatpush1.bf16.msra.mxu0 0
  %4651 = vmatprep.subr.bf16.mxu0 0
  %4652 = vmatpush1.bf16.msra.mxu0 0
  %4653 = vmatprep.subr.bf16.mxu0 0
  %4654 = vmatpush1.bf16.msra.mxu0 0
  %4655 = vmatprep.subr.bf16.mxu0 0
  %4656 = vmatpush1.bf16.msra.mxu0 0
  %4657 = vmatprep.mubr.bf16.mxu0 0
  %4658 = vmatmul.mubr.bf16.gmra.mrb[0].mxu0 %v4432
  %v4659 = vpop.f32.mrb[0].mxu0
  %v4660 = vadd.f32 0.0, %v4659
  %v4661 = vpop.f32.mrb[0].mxu0
  %v4662 = vadd.f32 0.0, %v4661
  %v4663 = vpop.f32.mrb[0].mxu0
  %v4664 = vpop.f32.mrb[0].mxu0
  %4665 = vdwg.mxu0
  %4666 = vmatprep.subr.bf16.mxu0 %v4564
  %4667 = vmatpush1.bf16.msra.mxu0 %v4563
  %4668 = vmatprep.subr.bf16.mxu0 %v4568
  %4669 = vmatpush1.bf16.msra.mxu0 %v4567
  %4670 = vmatprep.subr.bf16.mxu0 %v4572
  %4671 = vmatpush1.bf16.msra.mxu0 %v4571
  %4672 = vmatprep.subr.bf16.mxu0 %v4576
  %4673 = vmatpush1.bf16.msra.mxu0 %v4575
  %4674 = vmatprep.subr.bf16.mxu0 %v4580
  %4675 = vmatpush1.bf16.msra.mxu0 %v4579
  %4676 = vmatprep.subr.bf16.mxu0 %v4584
  %4677 = vmatpush1.bf16.msra.mxu0 %v4583
  %4678 = vmatprep.subr.bf16.mxu0 %v4588
  %4679 = vmatpush1.bf16.msra.mxu0 %v4587
  %4680 = vmatprep.subr.bf16.mxu0 %v4592
  %4681 = vmatpush1.bf16.msra.mxu0 %v4591
  %4682 = vmatprep.subr.bf16.mxu0 0
  %4683 = vmatpush1.bf16.msra.mxu0 0
  %4684 = vmatprep.subr.bf16.mxu0 0
  %4685 = vmatpush1.bf16.msra.mxu0 0
  %4686 = vmatprep.subr.bf16.mxu0 0
  %4687 = vmatpush1.bf16.msra.mxu0 0
  %4688 = vmatprep.subr.bf16.mxu0 0
  %4689 = vmatpush1.bf16.msra.mxu0 0
  %4690 = vmatprep.subr.bf16.mxu0 0
  %4691 = vmatpush1.bf16.msra.mxu0 0
  %4692 = vmatprep.subr.bf16.mxu0 0
  %4693 = vmatpush1.bf16.msra.mxu0 0
  %4694 = vmatprep.subr.bf16.mxu0 0
  %4695 = vmatpush1.bf16.msra.mxu0 0
  %4696 = vmatprep.subr.bf16.mxu0 0
  %4697 = vmatpush1.bf16.msra.mxu0 0
  %4698 = vmatprep.mubr.bf16.mxu0 0
  %4699 = vmatmul.mubr.bf16.gmra.mrb[0].mxu0 %v4432
  %v4700 = vpop.f32.mrb[0].mxu0
  %v4701 = vadd.f32 0.0, %v4700
  %v4702 = vpop.f32.mrb[0].mxu0
  %v4703 = vadd.f32 0.0, %v4702
  %v4704 = vpop.f32.mrb[0].mxu0
  %v4705 = vpop.f32.mrb[0].mxu0
  %4706 = vdwg.mxu0
  %v4707 = vadd.f32 %v4385, %v4660
  %v4708 = vadd.f32 %v4387, %v4662
  %v4709 = vadd.f32 %v4426, %v4701
  %v4710 = vadd.f32 %v4428, %v4703
  %v4711 = vld [vmem:[%s11 + $0x100] sm:$0xff]
  %v4712 = vld [vmem:[%s11 + $0x108] sm:$0xff]
  %v4713 = vld [vmem:[%s11 + $0x110] sm:$0xff]
  %v4714 = vld [vmem:[%s11 + $0x118] sm:$0xff]
  %v4715 = vld [vmem:[%s11 + $0x120] sm:$0xff]
  %v4716 = vld [vmem:[%s11 + $0x128] sm:$0xff]
  %v4717 = vld [vmem:[%s11 + $0x130] sm:$0xff]
  %v4718 = vld [vmem:[%s11 + $0x138] sm:$0xff]
  %v4719 = vld [vmem:[%s11 + $0x140] sm:$0xff]
  %v4720 = vld [vmem:[%s11 + $0x148] sm:$0xff]
  %v4721 = vld [vmem:[%s11 + $0x150] sm:$0xff]
  %v4722 = vld [vmem:[%s11 + $0x158] sm:$0xff]
  %v4723 = vld [vmem:[%s11 + $0x160] sm:$0xff]
  %v4724 = vld [vmem:[%s11 + $0x168] sm:$0xff]
  %v4725 = vld [vmem:[%s11 + $0x170] sm:$0xff]
  %v4726 = vld [vmem:[%s11 + $0x178] sm:$0xff]
  %v4727 = vld [vmem:[%s11 + $0x180] sm:$0xff]
  %v4728 = vld [vmem:[%s11 + $0x188] sm:$0xff]
  %v4729 = vld [vmem:[%s11 + $0x190] sm:$0xff]
  %v4730 = vld [vmem:[%s11 + $0x198] sm:$0xff]
  %v4731 = vld [vmem:[%s11 + $0x1a0] sm:$0xff]
  %v4732 = vld [vmem:[%s11 + $0x1a8] sm:$0xff]
  %v4733 = vld [vmem:[%s11 + $0x1b0] sm:$0xff]
  %v4734 = vld [vmem:[%s11 + $0x1b8] sm:$0xff]
  %v4735 = vld [vmem:[%s11 + $0x1c0] sm:$0xff]
  %v4736 = vld [vmem:[%s11 + $0x1c8] sm:$0xff]
  %v4737 = vld [vmem:[%s11 + $0x1d0] sm:$0xff]
  %v4738 = vld [vmem:[%s11 + $0x1d8] sm:$0xff]
  %v4739 = vld [vmem:[%s11 + $0x1e0] sm:$0xff]
  %v4740 = vld [vmem:[%s11 + $0x1e8] sm:$0xff]
  %v4741 = vld [vmem:[%s11 + $0x1f0] sm:$0xff]
  %v4742 = vld [vmem:[%s11 + $0x1f8] sm:$0xff]
  %v4744 = vrot.slane %v4432, 1
  %v4778 = vunpack.c.l.b16 %v4711
  %v4779 = vunpack.c.h.b16 %v4711
  %v4780 = vunpack.c.l.b16 %v4712
  %v4781 = vunpack.c.h.b16 %v4712
  %v4782 = vunpack.c.l.b16 %v4713
  %v4783 = vunpack.c.h.b16 %v4713
  %v4784 = vunpack.c.l.b16 %v4714
  %v4785 = vunpack.c.h.b16 %v4714
  %v4786 = vunpack.c.l.b16 %v4715
  %v4787 = vunpack.c.h.b16 %v4715
  %v4788 = vunpack.c.l.b16 %v4716
  %v4789 = vunpack.c.h.b16 %v4716
  %v4790 = vunpack.c.l.b16 %v4717
  %v4791 = vunpack.c.h.b16 %v4717
  %v4792 = vunpack.c.l.b16 %v4718
  %v4793 = vunpack.c.h.b16 %v4718
  %v4794 = vunpack.c.l.b16 %v4719
  %v4795 = vunpack.c.h.b16 %v4719
  %v4796 = vunpack.c.l.b16 %v4720
  %v4797 = vunpack.c.h.b16 %v4720
  %v4798 = vunpack.c.l.b16 %v4721
  %v4799 = vunpack.c.h.b16 %v4721
  %v4800 = vunpack.c.l.b16 %v4722
  %v4801 = vunpack.c.h.b16 %v4722
  %v4802 = vunpack.c.l.b16 %v4723
  %v4803 = vunpack.c.h.b16 %v4723
  %v4804 = vunpack.c.l.b16 %v4724
  %v4805 = vunpack.c.h.b16 %v4724
  %v4806 = vunpack.c.l.b16 %v4725
  %v4807 = vunpack.c.h.b16 %v4725
  %v4808 = vunpack.c.l.b16 %v4726
  %v4809 = vunpack.c.h.b16 %v4726
  %v4810 = vunpack.c.l.b16 %v4727
  %v4811 = vunpack.c.h.b16 %v4727
  %v4812 = vunpack.c.l.b16 %v4728
  %v4813 = vunpack.c.h.b16 %v4728
  %v4814 = vunpack.c.l.b16 %v4729
  %v4815 = vunpack.c.h.b16 %v4729
  %v4816 = vunpack.c.l.b16 %v4730
  %v4817 = vunpack.c.h.b16 %v4730
  %v4818 = vunpack.c.l.b16 %v4731
  %v4819 = vunpack.c.h.b16 %v4731
  %v4820 = vunpack.c.l.b16 %v4732
  %v4821 = vunpack.c.h.b16 %v4732
  %v4822 = vunpack.c.l.b16 %v4733
  %v4823 = vunpack.c.h.b16 %v4733
  %v4824 = vunpack.c.l.b16 %v4734
  %v4825 = vunpack.c.h.b16 %v4734
  %v4826 = vunpack.c.l.b16 %v4735
  %v4827 = vunpack.c.h.b16 %v4735
  %v4828 = vunpack.c.l.b16 %v4736
  %v4829 = vunpack.c.h.b16 %v4736
  %v4830 = vunpack.c.l.b16 %v4737
  %v4831 = vunpack.c.h.b16 %v4737
  %v4832 = vunpack.c.l.b16 %v4738
  %v4833 = vunpack.c.h.b16 %v4738
  %v4834 = vunpack.c.l.b16 %v4739
  %v4835 = vunpack.c.h.b16 %v4739
  %v4836 = vunpack.c.l.b16 %v4740
  %v4837 = vunpack.c.h.b16 %v4740
  %v4838 = vunpack.c.l.b16 %v4741
  %v4839 = vunpack.c.h.b16 %v4741
  %v4840 = vunpack.c.l.b16 %v4742
  %v4841 = vunpack.c.h.b16 %v4742
  %v4842 = vpack.c.b16 %v4782, %v4778
  %v4843 = vpack.c.b16 %v4783, %v4779
  %v4844 = vpack.c.b16 %v4784, %v4780
  %v4845 = vpack.c.b16 %v4785, %v4781
  %v4846 = vpack.c.b16 %v4790, %v4786
  %v4847 = vpack.c.b16 %v4791, %v4787
  %v4848 = vpack.c.b16 %v4792, %v4788
  %v4849 = vpack.c.b16 %v4793, %v4789
  %v4850 = vpack.c.b16 %v4798, %v4794
  %v4851 = vpack.c.b16 %v4799, %v4795
  %v4852 = vpack.c.b16 %v4800, %v4796
  %v4853 = vpack.c.b16 %v4801, %v4797
  %v4854 = vpack.c.b16 %v4806, %v4802
  %v4855 = vpack.c.b16 %v4807, %v4803
  %v4856 = vpack.c.b16 %v4808, %v4804
  %v4857 = vpack.c.b16 %v4809, %v4805
  %v4858 = vpack.c.b16 %v4814, %v4810
  %v4859 = vpack.c.b16 %v4815, %v4811
  %v4860 = vpack.c.b16 %v4816, %v4812
  %v4861 = vpack.c.b16 %v4817, %v4813
  %v4862 = vpack.c.b16 %v4822, %v4818
  %v4863 = vpack.c.b16 %v4823, %v4819
  %v4864 = vpack.c.b16 %v4824, %v4820
  %v4865 = vpack.c.b16 %v4825, %v4821
  %v4866 = vpack.c.b16 %v4830, %v4826
  %v4867 = vpack.c.b16 %v4831, %v4827
  %v4868 = vpack.c.b16 %v4832, %v4828
  %v4869 = vpack.c.b16 %v4833, %v4829
  %v4870 = vpack.c.b16 %v4838, %v4834
  %v4871 = vpack.c.b16 %v4839, %v4835
  %v4872 = vpack.c.b16 %v4840, %v4836
  %v4873 = vpack.c.b16 %v4841, %v4837
  %4906 = vmatprep.subr.bf16.mxu0 %v4843
  %4907 = vmatpush1.bf16.msra.mxu0 %v4842
  %4908 = vmatprep.subr.bf16.mxu0 %v4847
  %4909 = vmatpush1.bf16.msra.mxu0 %v4846
  %4910 = vmatprep.subr.bf16.mxu0 %v4851
  %4911 = vmatpush1.bf16.msra.mxu0 %v4850
  %4912 = vmatprep.subr.bf16.mxu0 %v4855
  %4913 = vmatpush1.bf16.msra.mxu0 %v4854
  %4914 = vmatprep.subr.bf16.mxu0 %v4859
  %4915 = vmatpush1.bf16.msra.mxu0 %v4858
  %4916 = vmatprep.subr.bf16.mxu0 %v4863
  %4917 = vmatpush1.bf16.msra.mxu0 %v4862
  %4918 = vmatprep.subr.bf16.mxu0 %v4867
  %4919 = vmatpush1.bf16.msra.mxu0 %v4866
  %4920 = vmatprep.subr.bf16.mxu0 %v4871
  %4921 = vmatpush1.bf16.msra.mxu0 %v4870
  %4922 = vmatprep.subr.bf16.mxu0 0
  %4923 = vmatpush1.bf16.msra.mxu0 0
  %4924 = vmatprep.subr.bf16.mxu0 0
  %4925 = vmatpush1.bf16.msra.mxu0 0
  %4926 = vmatprep.subr.bf16.mxu0 0
  %4927 = vmatpush1.bf16.msra.mxu0 0
  %4928 = vmatprep.subr.bf16.mxu0 0
  %4929 = vmatpush1.bf16.msra.mxu0 0
  %4930 = vmatprep.subr.bf16.mxu0 0
  %4931 = vmatpush1.bf16.msra.mxu0 0
  %4932 = vmatprep.subr.bf16.mxu0 0
  %4933 = vmatpush1.bf16.msra.mxu0 0
  %4934 = vmatprep.subr.bf16.mxu0 0
  %4935 = vmatpush1.bf16.msra.mxu0 0
  %4936 = vmatprep.subr.bf16.mxu0 0
  %4937 = vmatpush1.bf16.msra.mxu0 0
  %4938 = vmatprep.mubr.bf16.mxu0 0
  %4939 = vmatmul.mubr.bf16.gmra.mrb[0].mxu0 %v4744
  %v4940 = vpop.f32.mrb[0].mxu0
  %v4941 = vadd.f32 0.0, %v4940
  %v4942 = vpop.f32.mrb[0].mxu0
  %v4943 = vadd.f32 0.0, %v4942
  %v4944 = vpop.f32.mrb[0].mxu0
  %v4945 = vpop.f32.mrb[0].mxu0
  %4946 = vdwg.mxu0
  %4947 = vmatprep.subr.bf16.mxu0 %v4845
  %4948 = vmatpush1.bf16.msra.mxu0 %v4844
  %4949 = vmatprep.subr.bf16.mxu0 %v4849
  %4950 = vmatpush1.bf16.msra.mxu0 %v4848
  %4951 = vmatprep.subr.bf16.mxu0 %v4853
  %4952 = vmatpush1.bf16.msra.mxu0 %v4852
  %4953 = vmatprep.subr.bf16.mxu0 %v4857
  %4954 = vmatpush1.bf16.msra.mxu0 %v4856
  %4955 = vmatprep.subr.bf16.mxu0 %v4861
  %4956 = vmatpush1.bf16.msra.mxu0 %v4860
  %4957 = vmatprep.subr.bf16.mxu0 %v4865
  %4958 = vmatpush1.bf16.msra.mxu0 %v4864
  %4959 = vmatprep.subr.bf16.mxu0 %v4869
  %4960 = vmatpush1.bf16.msra.mxu0 %v4868
  %4961 = vmatprep.subr.bf16.mxu0 %v4873
  %4962 = vmatpush1.bf16.msra.mxu0 %v4872
  %4963 = vmatprep.subr.bf16.mxu0 0
  %4964 = vmatpush1.bf16.msra.mxu0 0
  %4965 = vmatprep.subr.bf16.mxu0 0
  %4966 = vmatpush1.bf16.msra.mxu0 0
  %4967 = vmatprep.subr.bf16.mxu0 0
  %4968 = vmatpush1.bf16.msra.mxu0 0
  %4969 = vmatprep.subr.bf16.mxu0 0
  %4970 = vmatpush1.bf16.msra.mxu0 0
  %4971 = vmatprep.subr.bf16.mxu0 0
  %4972 = vmatpush1.bf16.msra.mxu0 0
  %4973 = vmatprep.subr.bf16.mxu0 0
  %4974 = vmatpush1.bf16.msra.mxu0 0
  %4975 = vmatprep.subr.bf16.mxu0 0
  %4976 = vmatpush1.bf16.msra.mxu0 0
  %4977 = vmatprep.subr.bf16.mxu0 0
  %4978 = vmatpush1.bf16.msra.mxu0 0
  %4979 = vmatprep.mubr.bf16.mxu0 0
  %4980 = vmatmul.mubr.bf16.gmra.mrb[0].mxu0 %v4744
  %v4981 = vpop.f32.mrb[0].mxu0
  %v4982 = vadd.f32 0.0, %v4981
  %v4983 = vpop.f32.mrb[0].mxu0
  %v4984 = vadd.f32 0.0, %v4983
  %v4985 = vpop.f32.mrb[0].mxu0
  %v4986 = vpop.f32.mrb[0].mxu0
  %4987 = vdwg.mxu0
  %v4988 = vadd.f32 %v4707, %v4941
  %v4989 = vadd.f32 %v4708, %v4943
  %v4990 = vadd.f32 %v4709, %v4982
  %v4991 = vadd.f32 %v4710, %v4984
  %v4992 = vld [vmem:[%s11 + $0x200] sm:$0xff]
  %v4993 = vld [vmem:[%s11 + $0x208] sm:$0xff]
  %v4994 = vld [vmem:[%s11 + $0x210] sm:$0xff]
  %v4995 = vld [vmem:[%s11 + $0x218] sm:$0xff]
  %v4996 = vld [vmem:[%s11 + $0x220] sm:$0xff]
  %v4997 = vld [vmem:[%s11 + $0x228] sm:$0xff]
  %v4998 = vld [vmem:[%s11 + $0x230] sm:$0xff]
  %v4999 = vld [vmem:[%s11 + $0x238] sm:$0xff]
  %v5000 = vld [vmem:[%s11 + $0x240] sm:$0xff]
  %v5001 = vld [vmem:[%s11 + $0x248] sm:$0xff]
  %v5002 = vld [vmem:[%s11 + $0x250] sm:$0xff]
  %v5003 = vld [vmem:[%s11 + $0x258] sm:$0xff]
  %v5004 = vld [vmem:[%s11 + $0x260] sm:$0xff]
  %v5005 = vld [vmem:[%s11 + $0x268] sm:$0xff]
  %v5006 = vld [vmem:[%s11 + $0x270] sm:$0xff]
  %v5007 = vld [vmem:[%s11 + $0x278] sm:$0xff]
  %v5008 = vld [vmem:[%s11 + $0x280] sm:$0xff]
  %v5009 = vld [vmem:[%s11 + $0x288] sm:$0xff]
  %v5010 = vld [vmem:[%s11 + $0x290] sm:$0xff]
  %v5011 = vld [vmem:[%s11 + $0x298] sm:$0xff]
  %v5012 = vld [vmem:[%s11 + $0x2a0] sm:$0xff]
  %v5013 = vld [vmem:[%s11 + $0x2a8] sm:$0xff]
  %v5014 = vld [vmem:[%s11 + $0x2b0] sm:$0xff]
  %v5015 = vld [vmem:[%s11 + $0x2b8] sm:$0xff]
  %v5016 = vld [vmem:[%s11 + $0x2c0] sm:$0xff]
  %v5017 = vld [vmem:[%s11 + $0x2c8] sm:$0xff]
  %v5018 = vld [vmem:[%s11 + $0x2d0] sm:$0xff]
  %v5019 = vld [vmem:[%s11 + $0x2d8] sm:$0xff]
  %v5020 = vld [vmem:[%s11 + $0x2e0] sm:$0xff]
  %v5021 = vld [vmem:[%s11 + $0x2e8] sm:$0xff]
  %v5022 = vld [vmem:[%s11 + $0x2f0] sm:$0xff]
  %v5023 = vld [vmem:[%s11 + $0x2f8] sm:$0xff]
  %v5024 = vrot.slane %v4432, 2
  %v5058 = vunpack.c.l.b16 %v4992
  %v5059 = vunpack.c.h.b16 %v4992
  %v5060 = vunpack.c.l.b16 %v4993
  %v5061 = vunpack.c.h.b16 %v4993
  %v5062 = vunpack.c.l.b16 %v4994
  %v5063 = vunpack.c.h.b16 %v4994
  %v5064 = vunpack.c.l.b16 %v4995
  %v5065 = vunpack.c.h.b16 %v4995
  %v5066 = vunpack.c.l.b16 %v4996
  %v5067 = vunpack.c.h.b16 %v4996
  %v5068 = vunpack.c.l.b16 %v4997
  %v5069 = vunpack.c.h.b16 %v4997
  %v5070 = vunpack.c.l.b16 %v4998
  %v5071 = vunpack.c.h.b16 %v4998
  %v5072 = vunpack.c.l.b16 %v4999
  %v5073 = vunpack.c.h.b16 %v4999
  %v5074 = vunpack.c.l.b16 %v5000
  %v5075 = vunpack.c.h.b16 %v5000
  %v5076 = vunpack.c.l.b16 %v5001
  %v5077 = vunpack.c.h.b16 %v5001
  %v5078 = vunpack.c.l.b16 %v5002
  %v5079 = vunpack.c.h.b16 %v5002
  %v5080 = vunpack.c.l.b16 %v5003
  %v5081 = vunpack.c.h.b16 %v5003
  %v5082 = vunpack.c.l.b16 %v5004
  %v5083 = vunpack.c.h.b16 %v5004
  %v5084 = vunpack.c.l.b16 %v5005
  %v5085 = vunpack.c.h.b16 %v5005
  %v5086 = vunpack.c.l.b16 %v5006
  %v5087 = vunpack.c.h.b16 %v5006
  %v5088 = vunpack.c.l.b16 %v5007
  %v5089 = vunpack.c.h.b16 %v5007
  %v5090 = vunpack.c.l.b16 %v5008
  %v5091 = vunpack.c.h.b16 %v5008
  %v5092 = vunpack.c.l.b16 %v5009
  %v5093 = vunpack.c.h.b16 %v5009
  %v5094 = vunpack.c.l.b16 %v5010
  %v5095 = vunpack.c.h.b16 %v5010
  %v5096 = vunpack.c.l.b16 %v5011
  %v5097 = vunpack.c.h.b16 %v5011
  %v5098 = vunpack.c.l.b16 %v5012
  %v5099 = vunpack.c.h.b16 %v5012
  %v5100 = vunpack.c.l.b16 %v5013
  %v5101 = vunpack.c.h.b16 %v5013
  %v5102 = vunpack.c.l.b16 %v5014
  %v5103 = vunpack.c.h.b16 %v5014
  %v5104 = vunpack.c.l.b16 %v5015
  %v5105 = vunpack.c.h.b16 %v5015
  %v5106 = vunpack.c.l.b16 %v5016
  %v5107 = vunpack.c.h.b16 %v5016
  %v5108 = vunpack.c.l.b16 %v5017
  %v5109 = vunpack.c.h.b16 %v5017
  %v5110 = vunpack.c.l.b16 %v5018
  %v5111 = vunpack.c.h.b16 %v5018
  %v5112 = vunpack.c.l.b16 %v5019
  %v5113 = vunpack.c.h.b16 %v5019
  %v5114 = vunpack.c.l.b16 %v5020
  %v5115 = vunpack.c.h.b16 %v5020
  %v5116 = vunpack.c.l.b16 %v5021
  %v5117 = vunpack.c.h.b16 %v5021
  %v5118 = vunpack.c.l.b16 %v5022
  %v5119 = vunpack.c.h.b16 %v5022
  %v5120 = vunpack.c.l.b16 %v5023
  %v5121 = vunpack.c.h.b16 %v5023
  %v5122 = vpack.c.b16 %v5062, %v5058
  %v5123 = vpack.c.b16 %v5063, %v5059
  %v5124 = vpack.c.b16 %v5064, %v5060
  %v5125 = vpack.c.b16 %v5065, %v5061
  %v5126 = vpack.c.b16 %v5070, %v5066
  %v5127 = vpack.c.b16 %v5071, %v5067
  %v5128 = vpack.c.b16 %v5072, %v5068
  %v5129 = vpack.c.b16 %v5073, %v5069
  %v5130 = vpack.c.b16 %v5078, %v5074
  %v5131 = vpack.c.b16 %v5079, %v5075
  %v5132 = vpack.c.b16 %v5080, %v5076
  %v5133 = vpack.c.b16 %v5081, %v5077
  %v5134 = vpack.c.b16 %v5086, %v5082
  %v5135 = vpack.c.b16 %v5087, %v5083
  %v5136 = vpack.c.b16 %v5088, %v5084
  %v5137 = vpack.c.b16 %v5089, %v5085
  %v5138 = vpack.c.b16 %v5094, %v5090
  %v5139 = vpack.c.b16 %v5095, %v5091
  %v5140 = vpack.c.b16 %v5096, %v5092
  %v5141 = vpack.c.b16 %v5097, %v5093
  %v5142 = vpack.c.b16 %v5102, %v5098
  %v5143 = vpack.c.b16 %v5103, %v5099
  %v5144 = vpack.c.b16 %v5104, %v5100
  %v5145 = vpack.c.b16 %v5105, %v5101
  %v5146 = vpack.c.b16 %v5110, %v5106
  %v5147 = vpack.c.b16 %v5111, %v5107
  %v5148 = vpack.c.b16 %v5112, %v5108
  %v5149 = vpack.c.b16 %v5113, %v5109
  %v5150 = vpack.c.b16 %v5118, %v5114
  %v5151 = vpack.c.b16 %v5119, %v5115
  %v5152 = vpack.c.b16 %v5120, %v5116
  %v5153 = vpack.c.b16 %v5121, %v5117
  %5186 = vmatprep.subr.bf16.mxu0 %v5123
  %5187 = vmatpush1.bf16.msra.mxu0 %v5122
  %5188 = vmatprep.subr.bf16.mxu0 %v5127
  %5189 = vmatpush1.bf16.msra.mxu0 %v5126
  %5190 = vmatprep.subr.bf16.mxu0 %v5131
  %5191 = vmatpush1.bf16.msra.mxu0 %v5130
  %5192 = vmatprep.subr.bf16.mxu0 %v5135
  %5193 = vmatpush1.bf16.msra.mxu0 %v5134
  %5194 = vmatprep.subr.bf16.mxu0 %v5139
  %5195 = vmatpush1.bf16.msra.mxu0 %v5138
  %5196 = vmatprep.subr.bf16.mxu0 %v5143
  %5197 = vmatpush1.bf16.msra.mxu0 %v5142
  %5198 = vmatprep.subr.bf16.mxu0 %v5147
  %5199 = vmatpush1.bf16.msra.mxu0 %v5146
  %5200 = vmatprep.subr.bf16.mxu0 %v5151
  %5201 = vmatpush1.bf16.msra.mxu0 %v5150
  %5202 = vmatprep.subr.bf16.mxu0 0
  %5203 = vmatpush1.bf16.msra.mxu0 0
  %5204 = vmatprep.subr.bf16.mxu0 0
  %5205 = vmatpush1.bf16.msra.mxu0 0
  %5206 = vmatprep.subr.bf16.mxu0 0
  %5207 = vmatpush1.bf16.msra.mxu0 0
  %5208 = vmatprep.subr.bf16.mxu0 0
  %5209 = vmatpush1.bf16.msra.mxu0 0
  %5210 = vmatprep.subr.bf16.mxu0 0
  %5211 = vmatpush1.bf16.msra.mxu0 0
  %5212 = vmatprep.subr.bf16.mxu0 0
  %5213 = vmatpush1.bf16.msra.mxu0 0
  %5214 = vmatprep.subr.bf16.mxu0 0
  %5215 = vmatpush1.bf16.msra.mxu0 0
  %5216 = vmatprep.subr.bf16.mxu0 0
  %5217 = vmatpush1.bf16.msra.mxu0 0
  %5218 = vmatprep.mubr.bf16.mxu0 0
  %5219 = vmatmul.mubr.bf16.gmra.mrb[0].mxu0 %v5024
  %v5220 = vpop.f32.mrb[0].mxu0
  %v5221 = vadd.f32 0.0, %v5220
  %v5222 = vpop.f32.mrb[0].mxu0
  %v5223 = vadd.f32 0.0, %v5222
  %v5224 = vpop.f32.mrb[0].mxu0
  %v5225 = vpop.f32.mrb[0].mxu0
  %5226 = vdwg.mxu0
  %5227 = vmatprep.subr.bf16.mxu0 %v5125
  %5228 = vmatpush1.bf16.msra.mxu0 %v5124
  %5229 = vmatprep.subr.bf16.mxu0 %v5129
  %5230 = vmatpush1.bf16.msra.mxu0 %v5128
  %5231 = vmatprep.subr.bf16.mxu0 %v5133
  %5232 = vmatpush1.bf16.msra.mxu0 %v5132
  %5233 = vmatprep.subr.bf16.mxu0 %v5137
  %5234 = vmatpush1.bf16.msra.mxu0 %v5136
  %5235 = vmatprep.subr.bf16.mxu0 %v5141
  %5236 = vmatpush1.bf16.msra.mxu0 %v5140
  %5237 = vmatprep.subr.bf16.mxu0 %v5145
  %5238 = vmatpush1.bf16.msra.mxu0 %v5144
  %5239 = vmatprep.subr.bf16.mxu0 %v5149
  %5240 = vmatpush1.bf16.msra.mxu0 %v5148
  %5241 = vmatprep.subr.bf16.mxu0 %v5153
  %5242 = vmatpush1.bf16.msra.mxu0 %v5152
  %5243 = vmatprep.subr.bf16.mxu0 0
  %5244 = vmatpush1.bf16.msra.mxu0 0
  %5245 = vmatprep.subr.bf16.mxu0 0
  %5246 = vmatpush1.bf16.msra.mxu0 0
  %5247 = vmatprep.subr.bf16.mxu0 0
  %5248 = vmatpush1.bf16.msra.mxu0 0
  %5249 = vmatprep.subr.bf16.mxu0 0
  %5250 = vmatpush1.bf16.msra.mxu0 0
  %5251 = vmatprep.subr.bf16.mxu0 0
  %5252 = vmatpush1.bf16.msra.mxu0 0
  %5253 = vmatprep.subr.bf16.mxu0 0
  %5254 = vmatpush1.bf16.msra.mxu0 0
  %5255 = vmatprep.subr.bf16.mxu0 0
  %5256 = vmatpush1.bf16.msra.mxu0 0
  %5257 = vmatprep.subr.bf16.mxu0 0
  %5258 = vmatpush1.bf16.msra.mxu0 0
  %5259 = vmatprep.mubr.bf16.mxu0 0
  %5260 = vmatmul.mubr.bf16.gmra.mrb[0].mxu0 %v5024
  %v5261 = vpop.f32.mrb[0].mxu0
  %v5262 = vadd.f32 0.0, %v5261
  %v5263 = vpop.f32.mrb[0].mxu0
  %v5264 = vadd.f32 0.0, %v5263
  %v5265 = vpop.f32.mrb[0].mxu0
  %v5266 = vpop.f32.mrb[0].mxu0
  %5267 = vdwg.mxu0
  %v5268 = vadd.f32 %v4988, %v5221
  %v5269 = vadd.f32 %v4989, %v5223
  %v5270 = vadd.f32 %v4990, %v5262
  %v5271 = vadd.f32 %v4991, %v5264
  %v5272 = vld [vmem:[%s11 + $0x300] sm:$0xff]
  %v5273 = vld [vmem:[%s11 + $0x308] sm:$0xff]
  %v5274 = vld [vmem:[%s11 + $0x310] sm:$0xff]
  %v5275 = vld [vmem:[%s11 + $0x318] sm:$0xff]
  %v5276 = vld [vmem:[%s11 + $0x320] sm:$0xff]
  %v5277 = vld [vmem:[%s11 + $0x328] sm:$0xff]
  %v5278 = vld [vmem:[%s11 + $0x330] sm:$0xff]
  %v5279 = vld [vmem:[%s11 + $0x338] sm:$0xff]
  %v5280 = vld [vmem:[%s11 + $0x340] sm:$0xff]
  %v5281 = vld [vmem:[%s11 + $0x348] sm:$0xff]
  %v5282 = vld [vmem:[%s11 + $0x350] sm:$0xff]
  %v5283 = vld [vmem:[%s11 + $0x358] sm:$0xff]
  %v5284 = vld [vmem:[%s11 + $0x360] sm:$0xff]
  %v5285 = vld [vmem:[%s11 + $0x368] sm:$0xff]
  %v5286 = vld [vmem:[%s11 + $0x370] sm:$0xff]
  %v5287 = vld [vmem:[%s11 + $0x378] sm:$0xff]
  %v5288 = vld [vmem:[%s11 + $0x380] sm:$0xff]
  %v5289 = vld [vmem:[%s11 + $0x388] sm:$0xff]
  %v5290 = vld [vmem:[%s11 + $0x390] sm:$0xff]
  %v5291 = vld [vmem:[%s11 + $0x398] sm:$0xff]
  %v5292 = vld [vmem:[%s11 + $0x3a0] sm:$0xff]
  %v5293 = vld [vmem:[%s11 + $0x3a8] sm:$0xff]
  %v5294 = vld [vmem:[%s11 + $0x3b0] sm:$0xff]
  %v5295 = vld [vmem:[%s11 + $0x3b8] sm:$0xff]
  %v5296 = vld [vmem:[%s11 + $0x3c0] sm:$0xff]
  %v5297 = vld [vmem:[%s11 + $0x3c8] sm:$0xff]
  %v5298 = vld [vmem:[%s11 + $0x3d0] sm:$0xff]
  %v5299 = vld [vmem:[%s11 + $0x3d8] sm:$0xff]
  %v5300 = vld [vmem:[%s11 + $0x3e0] sm:$0xff]
  %v5301 = vld [vmem:[%s11 + $0x3e8] sm:$0xff]
  %v5302 = vld [vmem:[%s11 + $0x3f0] sm:$0xff]
  %v5303 = vld [vmem:[%s11 + $0x3f8] sm:$0xff]
  %v5304 = vrot.slane %v4432, 3
  %v5338 = vunpack.c.l.b16 %v5272
  %v5339 = vunpack.c.h.b16 %v5272
  %v5340 = vunpack.c.l.b16 %v5273
  %v5341 = vunpack.c.h.b16 %v5273
  %v5342 = vunpack.c.l.b16 %v5274
  %v5343 = vunpack.c.h.b16 %v5274
  %v5344 = vunpack.c.l.b16 %v5275
  %v5345 = vunpack.c.h.b16 %v5275
  %v5346 = vunpack.c.l.b16 %v5276
  %v5347 = vunpack.c.h.b16 %v5276
  %v5348 = vunpack.c.l.b16 %v5277
  %v5349 = vunpack.c.h.b16 %v5277
  %v5350 = vunpack.c.l.b16 %v5278
  %v5351 = vunpack.c.h.b16 %v5278
  %v5352 = vunpack.c.l.b16 %v5279
  %v5353 = vunpack.c.h.b16 %v5279
  %v5354 = vunpack.c.l.b16 %v5280
  %v5355 = vunpack.c.h.b16 %v5280
  %v5356 = vunpack.c.l.b16 %v5281
  %v5357 = vunpack.c.h.b16 %v5281
  %v5358 = vunpack.c.l.b16 %v5282
  %v5359 = vunpack.c.h.b16 %v5282
  %v5360 = vunpack.c.l.b16 %v5283
  %v5361 = vunpack.c.h.b16 %v5283
  %v5362 = vunpack.c.l.b16 %v5284
  %v5363 = vunpack.c.h.b16 %v5284
  %v5364 = vunpack.c.l.b16 %v5285
  %v5365 = vunpack.c.h.b16 %v5285
  %v5366 = vunpack.c.l.b16 %v5286
  %v5367 = vunpack.c.h.b16 %v5286
  %v5368 = vunpack.c.l.b16 %v5287
  %v5369 = vunpack.c.h.b16 %v5287
  %v5370 = vunpack.c.l.b16 %v5288
  %v5371 = vunpack.c.h.b16 %v5288
  %v5372 = vunpack.c.l.b16 %v5289
  %v5373 = vunpack.c.h.b16 %v5289
  %v5374 = vunpack.c.l.b16 %v5290
  %v5375 = vunpack.c.h.b16 %v5290
  %v5376 = vunpack.c.l.b16 %v5291
  %v5377 = vunpack.c.h.b16 %v5291
  %v5378 = vunpack.c.l.b16 %v5292
  %v5379 = vunpack.c.h.b16 %v5292
  %v5380 = vunpack.c.l.b16 %v5293
  %v5381 = vunpack.c.h.b16 %v5293
  %v5382 = vunpack.c.l.b16 %v5294
  %v5383 = vunpack.c.h.b16 %v5294
  %v5384 = vunpack.c.l.b16 %v5295
  %v5385 = vunpack.c.h.b16 %v5295
  %v5386 = vunpack.c.l.b16 %v5296
  %v5387 = vunpack.c.h.b16 %v5296
  %v5388 = vunpack.c.l.b16 %v5297
  %v5389 = vunpack.c.h.b16 %v5297
  %v5390 = vunpack.c.l.b16 %v5298
  %v5391 = vunpack.c.h.b16 %v5298
  %v5392 = vunpack.c.l.b16 %v5299
  %v5393 = vunpack.c.h.b16 %v5299
  %v5394 = vunpack.c.l.b16 %v5300
  %v5395 = vunpack.c.h.b16 %v5300
  %v5396 = vunpack.c.l.b16 %v5301
  %v5397 = vunpack.c.h.b16 %v5301
  %v5398 = vunpack.c.l.b16 %v5302
  %v5399 = vunpack.c.h.b16 %v5302
  %v5400 = vunpack.c.l.b16 %v5303
  %v5401 = vunpack.c.h.b16 %v5303
  %v5402 = vpack.c.b16 %v5342, %v5338
  %v5403 = vpack.c.b16 %v5343, %v5339
  %v5404 = vpack.c.b16 %v5344, %v5340
  %v5405 = vpack.c.b16 %v5345, %v5341
  %v5406 = vpack.c.b16 %v5350, %v5346
  %v5407 = vpack.c.b16 %v5351, %v5347
  %v5408 = vpack.c.b16 %v5352, %v5348
  %v5409 = vpack.c.b16 %v5353, %v5349
  %v5410 = vpack.c.b16 %v5358, %v5354
  %v5411 = vpack.c.b16 %v5359, %v5355
  %v5412 = vpack.c.b16 %v5360, %v5356
  %v5413 = vpack.c.b16 %v5361, %v5357
  %v5414 = vpack.c.b16 %v5366, %v5362
  %v5415 = vpack.c.b16 %v5367, %v5363
  %v5416 = vpack.c.b16 %v5368, %v5364
  %v5417 = vpack.c.b16 %v5369, %v5365
  %v5418 = vpack.c.b16 %v5374, %v5370
  %v5419 = vpack.c.b16 %v5375, %v5371
  %v5420 = vpack.c.b16 %v5376, %v5372
  %v5421 = vpack.c.b16 %v5377, %v5373
  %v5422 = vpack.c.b16 %v5382, %v5378
  %v5423 = vpack.c.b16 %v5383, %v5379
  %v5424 = vpack.c.b16 %v5384, %v5380
  %v5425 = vpack.c.b16 %v5385, %v5381
  %v5426 = vpack.c.b16 %v5390, %v5386
  %v5427 = vpack.c.b16 %v5391, %v5387
  %v5428 = vpack.c.b16 %v5392, %v5388
  %v5429 = vpack.c.b16 %v5393, %v5389
  %v5430 = vpack.c.b16 %v5398, %v5394
  %v5431 = vpack.c.b16 %v5399, %v5395
  %v5432 = vpack.c.b16 %v5400, %v5396
  %v5433 = vpack.c.b16 %v5401, %v5397
  %5466 = vmatprep.subr.bf16.mxu0 %v5403
  %5467 = vmatpush1.bf16.msra.mxu0 %v5402
  %5468 = vmatprep.subr.bf16.mxu0 %v5407
  %5469 = vmatpush1.bf16.msra.mxu0 %v5406
  %5470 = vmatprep.subr.bf16.mxu0 %v5411
  %5471 = vmatpush1.bf16.msra.mxu0 %v5410
  %5472 = vmatprep.subr.bf16.mxu0 %v5415
  %5473 = vmatpush1.bf16.msra.mxu0 %v5414
  %5474 = vmatprep.subr.bf16.mxu0 %v5419
  %5475 = vmatpush1.bf16.msra.mxu0 %v5418
  %5476 = vmatprep.subr.bf16.mxu0 %v5423
  %5477 = vmatpush1.bf16.msra.mxu0 %v5422
  %5478 = vmatprep.subr.bf16.mxu0 %v5427
  %5479 = vmatpush1.bf16.msra.mxu0 %v5426
  %5480 = vmatprep.subr.bf16.mxu0 %v5431
  %5481 = vmatpush1.bf16.msra.mxu0 %v5430
  %5482 = vmatprep.subr.bf16.mxu0 0
  %5483 = vmatpush1.bf16.msra.mxu0 0
  %5484 = vmatprep.subr.bf16.mxu0 0
  %5485 = vmatpush1.bf16.msra.mxu0 0
  %5486 = vmatprep.subr.bf16.mxu0 0
  %5487 = vmatpush1.bf16.msra.mxu0 0
  %5488 = vmatprep.subr.bf16.mxu0 0
  %5489 = vmatpush1.bf16.msra.mxu0 0
  %5490 = vmatprep.subr.bf16.mxu0 0
  %5491 = vmatpush1.bf16.msra.mxu0 0
  %5492 = vmatprep.subr.bf16.mxu0 0
  %5493 = vmatpush1.bf16.msra.mxu0 0
  %5494 = vmatprep.subr.bf16.mxu0 0
  %5495 = vmatpush1.bf16.msra.mxu0 0
  %5496 = vmatprep.subr.bf16.mxu0 0
  %5497 = vmatpush1.bf16.msra.mxu0 0
  %5498 = vmatprep.mubr.bf16.mxu0 0
  %5499 = vmatmul.mubr.bf16.gmra.mrb[0].mxu0 %v5304
  %v5500 = vpop.f32.mrb[0].mxu0
  %v5501 = vadd.f32 0.0, %v5500
  %v5502 = vpop.f32.mrb[0].mxu0
  %v5503 = vadd.f32 0.0, %v5502
  %v5504 = vpop.f32.mrb[0].mxu0
  %v5505 = vpop.f32.mrb[0].mxu0
  %5506 = vdwg.mxu0
  %5507 = vmatprep.subr.bf16.mxu0 %v5405
  %5508 = vmatpush1.bf16.msra.mxu0 %v5404
  %5509 = vmatprep.subr.bf16.mxu0 %v5409
  %5510 = vmatpush1.bf16.msra.mxu0 %v5408
  %5511 = vmatprep.subr.bf16.mxu0 %v5413
  %5512 = vmatpush1.bf16.msra.mxu0 %v5412
  %5513 = vmatprep.subr.bf16.mxu0 %v5417
  %5514 = vmatpush1.bf16.msra.mxu0 %v5416
  %5515 = vmatprep.subr.bf16.mxu0 %v5421
  %5516 = vmatpush1.bf16.msra.mxu0 %v5420
  %5517 = vmatprep.subr.bf16.mxu0 %v5425
  %5518 = vmatpush1.bf16.msra.mxu0 %v5424
  %5519 = vmatprep.subr.bf16.mxu0 %v5429
  %5520 = vmatpush1.bf16.msra.mxu0 %v5428
  %5521 = vmatprep.subr.bf16.mxu0 %v5433
  %5522 = vmatpush1.bf16.msra.mxu0 %v5432
  %5523 = vmatprep.subr.bf16.mxu0 0
  %5524 = vmatpush1.bf16.msra.mxu0 0
  %5525 = vmatprep.subr.bf16.mxu0 0
  %5526 = vmatpush1.bf16.msra.mxu0 0
  %5527 = vmatprep.subr.bf16.mxu0 0
  %5528 = vmatpush1.bf16.msra.mxu0 0
  %5529 = vmatprep.subr.bf16.mxu0 0
  %5530 = vmatpush1.bf16.msra.mxu0 0
  %5531 = vmatprep.subr.bf16.mxu0 0
  %5532 = vmatpush1.bf16.msra.mxu0 0
  %5533 = vmatprep.subr.bf16.mxu0 0
  %5534 = vmatpush1.bf16.msra.mxu0 0
  %5535 = vmatprep.subr.bf16.mxu0 0
  %5536 = vmatpush1.bf16.msra.mxu0 0
  %5537 = vmatprep.subr.bf16.mxu0 0
  %5538 = vmatpush1.bf16.msra.mxu0 0
  %5539 = vmatprep.mubr.bf16.mxu0 0
  %5540 = vmatmul.mubr.bf16.gmra.mrb[0].mxu0 %v5304
  %v5541 = vpop.f32.mrb[0].mxu0
  %v5542 = vadd.f32 0.0, %v5541
  %v5543 = vpop.f32.mrb[0].mxu0
  %v5544 = vadd.f32 0.0, %v5543
  %v5545 = vpop.f32.mrb[0].mxu0
  %v5546 = vpop.f32.mrb[0].mxu0
  %5547 = vdwg.mxu0
  %v5548 = vadd.f32 %v5268, %v5501
  %v5549 = vadd.f32 %v5269, %v5503
  %v5550 = vadd.f32 %v5270, %v5542
  %v5551 = vadd.f32 %v5271, %v5544
  %v5552 = vpack.c.bf16 %v4290, %v4290
  %v5553 = vld [vmem:[%s11 + $0x400] sm:$0xff]
  %v5554 = vld [vmem:[%s11 + $0x408] sm:$0xff]
  %v5555 = vld [vmem:[%s11 + $0x410] sm:$0xff]
  %v5556 = vld [vmem:[%s11 + $0x418] sm:$0xff]
  %v5557 = vld [vmem:[%s11 + $0x420] sm:$0xff]
  %v5558 = vld [vmem:[%s11 + $0x428] sm:$0xff]
  %v5559 = vld [vmem:[%s11 + $0x430] sm:$0xff]
  %v5560 = vld [vmem:[%s11 + $0x438] sm:$0xff]
  %v5561 = vld [vmem:[%s11 + $0x440] sm:$0xff]
  %v5562 = vld [vmem:[%s11 + $0x448] sm:$0xff]
  %v5563 = vld [vmem:[%s11 + $0x450] sm:$0xff]
  %v5564 = vld [vmem:[%s11 + $0x458] sm:$0xff]
  %v5565 = vld [vmem:[%s11 + $0x460] sm:$0xff]
  %v5566 = vld [vmem:[%s11 + $0x468] sm:$0xff]
  %v5567 = vld [vmem:[%s11 + $0x470] sm:$0xff]
  %v5568 = vld [vmem:[%s11 + $0x478] sm:$0xff]
  %v5569 = vld [vmem:[%s11 + $0x480] sm:$0xff]
  %v5570 = vld [vmem:[%s11 + $0x488] sm:$0xff]
  %v5571 = vld [vmem:[%s11 + $0x490] sm:$0xff]
  %v5572 = vld [vmem:[%s11 + $0x498] sm:$0xff]
  %v5573 = vld [vmem:[%s11 + $0x4a0] sm:$0xff]
  %v5574 = vld [vmem:[%s11 + $0x4a8] sm:$0xff]
  %v5575 = vld [vmem:[%s11 + $0x4b0] sm:$0xff]
  %v5576 = vld [vmem:[%s11 + $0x4b8] sm:$0xff]
  %v5577 = vld [vmem:[%s11 + $0x4c0] sm:$0xff]
  %v5578 = vld [vmem:[%s11 + $0x4c8] sm:$0xff]
  %v5579 = vld [vmem:[%s11 + $0x4d0] sm:$0xff]
  %v5580 = vld [vmem:[%s11 + $0x4d8] sm:$0xff]
  %v5581 = vld [vmem:[%s11 + $0x4e0] sm:$0xff]
  %v5582 = vld [vmem:[%s11 + $0x4e8] sm:$0xff]
  %v5583 = vld [vmem:[%s11 + $0x4f0] sm:$0xff]
  %v5584 = vld [vmem:[%s11 + $0x4f8] sm:$0xff]
  %v5617 = vunpack.c.l.b16 %v5553
  %v5618 = vunpack.c.h.b16 %v5553
  %v5619 = vunpack.c.l.b16 %v5554
  %v5620 = vunpack.c.h.b16 %v5554
  %v5621 = vunpack.c.l.b16 %v5555
  %v5622 = vunpack.c.h.b16 %v5555
  %v5623 = vunpack.c.l.b16 %v5556
  %v5624 = vunpack.c.h.b16 %v5556
  %v5625 = vunpack.c.l.b16 %v5557
  %v5626 = vunpack.c.h.b16 %v5557
  %v5627 = vunpack.c.l.b16 %v5558
  %v5628 = vunpack.c.h.b16 %v5558
  %v5629 = vunpack.c.l.b16 %v5559
  %v5630 = vunpack.c.h.b16 %v5559
  %v5631 = vunpack.c.l.b16 %v5560
  %v5632 = vunpack.c.h.b16 %v5560
  %v5633 = vunpack.c.l.b16 %v5561
  %v5634 = vunpack.c.h.b16 %v5561
  %v5635 = vunpack.c.l.b16 %v5562
  %v5636 = vunpack.c.h.b16 %v5562
  %v5637 = vunpack.c.l.b16 %v5563
  %v5638 = vunpack.c.h.b16 %v5563
  %v5639 = vunpack.c.l.b16 %v5564
  %v5640 = vunpack.c.h.b16 %v5564
  %v5641 = vunpack.c.l.b16 %v5565
  %v5642 = vunpack.c.h.b16 %v5565
  %v5643 = vunpack.c.l.b16 %v5566
  %v5644 = vunpack.c.h.b16 %v5566
  %v5645 = vunpack.c.l.b16 %v5567
  %v5646 = vunpack.c.h.b16 %v5567
  %v5647 = vunpack.c.l.b16 %v5568
  %v5648 = vunpack.c.h.b16 %v5568
  %v5649 = vunpack.c.l.b16 %v5569
  %v5650 = vunpack.c.h.b16 %v5569
  %v5651 = vunpack.c.l.b16 %v5570
  %v5652 = vunpack.c.h.b16 %v5570
  %v5653 = vunpack.c.l.b16 %v5571
  %v5654 = vunpack.c.h.b16 %v5571
  %v5655 = vunpack.c.l.b16 %v5572
  %v5656 = vunpack.c.h.b16 %v5572
  %v5657 = vunpack.c.l.b16 %v5573
  %v5658 = vunpack.c.h.b16 %v5573
  %v5659 = vunpack.c.l.b16 %v5574
  %v5660 = vunpack.c.h.b16 %v5574
  %v5661 = vunpack.c.l.b16 %v5575
  %v5662 = vunpack.c.h.b16 %v5575
  %v5663 = vunpack.c.l.b16 %v5576
  %v5664 = vunpack.c.h.b16 %v5576
  %v5665 = vunpack.c.l.b16 %v5577
  %v5666 = vunpack.c.h.b16 %v5577
  %v5667 = vunpack.c.l.b16 %v5578
  %v5668 = vunpack.c.h.b16 %v5578
  %v5669 = vunpack.c.l.b16 %v5579
  %v5670 = vunpack.c.h.b16 %v5579
  %v5671 = vunpack.c.l.b16 %v5580
  %v5672 = vunpack.c.h.b16 %v5580
  %v5673 = vunpack.c.l.b16 %v5581
  %v5674 = vunpack.c.h.b16 %v5581
  %v5675 = vunpack.c.l.b16 %v5582
  %v5676 = vunpack.c.h.b16 %v5582
  %v5677 = vunpack.c.l.b16 %v5583
  %v5678 = vunpack.c.h.b16 %v5583
  %v5679 = vunpack.c.l.b16 %v5584
  %v5680 = vunpack.c.h.b16 %v5584
  %v5681 = vpack.c.b16 %v5621, %v5617
  %v5682 = vpack.c.b16 %v5622, %v5618
  %v5683 = vpack.c.b16 %v5623, %v5619
  %v5684 = vpack.c.b16 %v5624, %v5620
  %v5685 = vpack.c.b16 %v5629, %v5625
  %v5686 = vpack.c.b16 %v5630, %v5626
  %v5687 = vpack.c.b16 %v5631, %v5627
  %v5688 = vpack.c.b16 %v5632, %v5628
  %v5689 = vpack.c.b16 %v5637, %v5633
  %v5690 = vpack.c.b16 %v5638, %v5634
  %v5691 = vpack.c.b16 %v5639, %v5635
  %v5692 = vpack.c.b16 %v5640, %v5636
  %v5693 = vpack.c.b16 %v5645, %v5641
  %v5694 = vpack.c.b16 %v5646, %v5642
  %v5695 = vpack.c.b16 %v5647, %v5643
  %v5696 = vpack.c.b16 %v5648, %v5644
  %v5697 = vpack.c.b16 %v5653, %v5649
  %v5698 = vpack.c.b16 %v5654, %v5650
  %v5699 = vpack.c.b16 %v5655, %v5651
  %v5700 = vpack.c.b16 %v5656, %v5652
  %v5701 = vpack.c.b16 %v5661, %v5657
  %v5702 = vpack.c.b16 %v5662, %v5658
  %v5703 = vpack.c.b16 %v5663, %v5659
  %v5704 = vpack.c.b16 %v5664, %v5660
  %v5705 = vpack.c.b16 %v5669, %v5665
  %v5706 = vpack.c.b16 %v5670, %v5666
  %v5707 = vpack.c.b16 %v5671, %v5667
  %v5708 = vpack.c.b16 %v5672, %v5668
  %v5709 = vpack.c.b16 %v5677, %v5673
  %v5710 = vpack.c.b16 %v5678, %v5674
  %v5711 = vpack.c.b16 %v5679, %v5675
  %v5712 = vpack.c.b16 %v5680, %v5676
  %5745 = vmatprep.subr.bf16.mxu0 %v5682
  %5746 = vmatpush1.bf16.msra.mxu0 %v5681
  %5747 = vmatprep.subr.bf16.mxu0 %v5686
  %5748 = vmatpush1.bf16.msra.mxu0 %v5685
  %5749 = vmatprep.subr.bf16.mxu0 %v5690
  %5750 = vmatpush1.bf16.msra.mxu0 %v5689
  %5751 = vmatprep.subr.bf16.mxu0 %v5694
  %5752 = vmatpush1.bf16.msra.mxu0 %v5693
  %5753 = vmatprep.subr.bf16.mxu0 %v5698
  %5754 = vmatpush1.bf16.msra.mxu0 %v5697
  %5755 = vmatprep.subr.bf16.mxu0 %v5702
  %5756 = vmatpush1.bf16.msra.mxu0 %v5701
  %5757 = vmatprep.subr.bf16.mxu0 %v5706
  %5758 = vmatpush1.bf16.msra.mxu0 %v5705
  %5759 = vmatprep.subr.bf16.mxu0 %v5710
  %5760 = vmatpush1.bf16.msra.mxu0 %v5709
  %5761 = vmatprep.subr.bf16.mxu0 0
  %5762 = vmatpush1.bf16.msra.mxu0 0
  %5763 = vmatprep.subr.bf16.mxu0 0
  %5764 = vmatpush1.bf16.msra.mxu0 0
  %5765 = vmatprep.subr.bf16.mxu0 0
  %5766 = vmatpush1.bf16.msra.mxu0 0
  %5767 = vmatprep.subr.bf16.mxu0 0
  %5768 = vmatpush1.bf16.msra.mxu0 0
  %5769 = vmatprep.subr.bf16.mxu0 0
  %5770 = vmatpush1.bf16.msra.mxu0 0
  %5771 = vmatprep.subr.bf16.mxu0 0
  %5772 = vmatpush1.bf16.msra.mxu0 0
  %5773 = vmatprep.subr.bf16.mxu0 0
  %5774 = vmatpush1.bf16.msra.mxu0 0
  %5775 = vmatprep.subr.bf16.mxu0 0
  %5776 = vmatpush1.bf16.msra.mxu0 0
  %5777 = vmatprep.mubr.bf16.mxu0 0
  %5778 = vmatmul.mubr.bf16.gmra.mrb[0].mxu0 %v5552
  %v5779 = vpop.f32.mrb[0].mxu0
  %v5780 = vadd.f32 0.0, %v5779
  %v5781 = vpop.f32.mrb[0].mxu0
  %v5782 = vadd.f32 0.0, %v5781
  %v5783 = vpop.f32.mrb[0].mxu0
  %v5784 = vpop.f32.mrb[0].mxu0
  %5785 = vdwg.mxu0
  %5786 = vmatprep.subr.bf16.mxu0 %v5684
  %5787 = vmatpush1.bf16.msra.mxu0 %v5683
  %5788 = vmatprep.subr.bf16.mxu0 %v5688
  %5789 = vmatpush1.bf16.msra.mxu0 %v5687
  %5790 = vmatprep.subr.bf16.mxu0 %v5692
  %5791 = vmatpush1.bf16.msra.mxu0 %v5691
  %5792 = vmatprep.subr.bf16.mxu0 %v5696
  %5793 = vmatpush1.bf16.msra.mxu0 %v5695
  %5794 = vmatprep.subr.bf16.mxu0 %v5700
  %5795 = vmatpush1.bf16.msra.mxu0 %v5699
  %5796 = vmatprep.subr.bf16.mxu0 %v5704
  %5797 = vmatpush1.bf16.msra.mxu0 %v5703
  %5798 = vmatprep.subr.bf16.mxu0 %v5708
  %5799 = vmatpush1.bf16.msra.mxu0 %v5707
  %5800 = vmatprep.subr.bf16.mxu0 %v5712
  %5801 = vmatpush1.bf16.msra.mxu0 %v5711
  %5802 = vmatprep.subr.bf16.mxu0 0
  %5803 = vmatpush1.bf16.msra.mxu0 0
  %5804 = vmatprep.subr.bf16.mxu0 0
  %5805 = vmatpush1.bf16.msra.mxu0 0
  %5806 = vmatprep.subr.bf16.mxu0 0
  %5807 = vmatpush1.bf16.msra.mxu0 0
  %5808 = vmatprep.subr.bf16.mxu0 0
  %5809 = vmatpush1.bf16.msra.mxu0 0
  %5810 = vmatprep.subr.bf16.mxu0 0
  %5811 = vmatpush1.bf16.msra.mxu0 0
  %5812 = vmatprep.subr.bf16.mxu0 0
  %5813 = vmatpush1.bf16.msra.mxu0 0
  %5814 = vmatprep.subr.bf16.mxu0 0
  %5815 = vmatpush1.bf16.msra.mxu0 0
  %5816 = vmatprep.subr.bf16.mxu0 0
  %5817 = vmatpush1.bf16.msra.mxu0 0
  %5818 = vmatprep.mubr.bf16.mxu0 0
  %5819 = vmatmul.mubr.bf16.gmra.mrb[0].mxu0 %v5552
  %v5820 = vpop.f32.mrb[0].mxu0
  %v5821 = vadd.f32 0.0, %v5820
  %v5822 = vpop.f32.mrb[0].mxu0
  %v5823 = vadd.f32 0.0, %v5822
  %v5824 = vpop.f32.mrb[0].mxu0
  %v5825 = vpop.f32.mrb[0].mxu0
  %5826 = vdwg.mxu0
  %v5827 = vadd.f32 %v5548, %v5780
  %v5828 = vadd.f32 %v5549, %v5782
  %v5829 = vadd.f32 %v5550, %v5821
  %v5830 = vadd.f32 %v5551, %v5823
  %v5831 = vld [vmem:[%s11 + $0x500] sm:$0xff]
  %v5832 = vld [vmem:[%s11 + $0x508] sm:$0xff]
  %v5833 = vld [vmem:[%s11 + $0x510] sm:$0xff]
  %v5834 = vld [vmem:[%s11 + $0x518] sm:$0xff]
  %v5835 = vld [vmem:[%s11 + $0x520] sm:$0xff]
  %v5836 = vld [vmem:[%s11 + $0x528] sm:$0xff]
  %v5837 = vld [vmem:[%s11 + $0x530] sm:$0xff]
  %v5838 = vld [vmem:[%s11 + $0x538] sm:$0xff]
  %v5839 = vld [vmem:[%s11 + $0x540] sm:$0xff]
  %v5840 = vld [vmem:[%s11 + $0x548] sm:$0xff]
  %v5841 = vld [vmem:[%s11 + $0x550] sm:$0xff]
  %v5842 = vld [vmem:[%s11 + $0x558] sm:$0xff]
  %v5843 = vld [vmem:[%s11 + $0x560] sm:$0xff]
  %v5844 = vld [vmem:[%s11 + $0x568] sm:$0xff]
  %v5845 = vld [vmem:[%s11 + $0x570] sm:$0xff]
  %v5846 = vld [vmem:[%s11 + $0x578] sm:$0xff]
  %v5847 = vld [vmem:[%s11 + $0x580] sm:$0xff]
  %v5848 = vld [vmem:[%s11 + $0x588] sm:$0xff]
  %v5849 = vld [vmem:[%s11 + $0x590] sm:$0xff]
  %v5850 = vld [vmem:[%s11 + $0x598] sm:$0xff]
  %v5851 = vld [vmem:[%s11 + $0x5a0] sm:$0xff]
  %v5852 = vld [vmem:[%s11 + $0x5a8] sm:$0xff]
  %v5853 = vld [vmem:[%s11 + $0x5b0] sm:$0xff]
  %v5854 = vld [vmem:[%s11 + $0x5b8] sm:$0xff]
  %v5855 = vld [vmem:[%s11 + $0x5c0] sm:$0xff]
  %v5856 = vld [vmem:[%s11 + $0x5c8] sm:$0xff]
  %v5857 = vld [vmem:[%s11 + $0x5d0] sm:$0xff]
  %v5858 = vld [vmem:[%s11 + $0x5d8] sm:$0xff]
  %v5859 = vld [vmem:[%s11 + $0x5e0] sm:$0xff]
  %v5860 = vld [vmem:[%s11 + $0x5e8] sm:$0xff]
  %v5861 = vld [vmem:[%s11 + $0x5f0] sm:$0xff]
  %v5862 = vld [vmem:[%s11 + $0x5f8] sm:$0xff]
  %v5864 = vrot.slane %v5552, 1
  %v5898 = vunpack.c.l.b16 %v5831
  %v5899 = vunpack.c.h.b16 %v5831
  %v5900 = vunpack.c.l.b16 %v5832
  %v5901 = vunpack.c.h.b16 %v5832
  %v5902 = vunpack.c.l.b16 %v5833
  %v5903 = vunpack.c.h.b16 %v5833
  %v5904 = vunpack.c.l.b16 %v5834
  %v5905 = vunpack.c.h.b16 %v5834
  %v5906 = vunpack.c.l.b16 %v5835
  %v5907 = vunpack.c.h.b16 %v5835
  %v5908 = vunpack.c.l.b16 %v5836
  %v5909 = vunpack.c.h.b16 %v5836
  %v5910 = vunpack.c.l.b16 %v5837
  %v5911 = vunpack.c.h.b16 %v5837
  %v5912 = vunpack.c.l.b16 %v5838
  %v5913 = vunpack.c.h.b16 %v5838
  %v5914 = vunpack.c.l.b16 %v5839
  %v5915 = vunpack.c.h.b16 %v5839
  %v5916 = vunpack.c.l.b16 %v5840
  %v5917 = vunpack.c.h.b16 %v5840
  %v5918 = vunpack.c.l.b16 %v5841
  %v5919 = vunpack.c.h.b16 %v5841
  %v5920 = vunpack.c.l.b16 %v5842
  %v5921 = vunpack.c.h.b16 %v5842
  %v5922 = vunpack.c.l.b16 %v5843
  %v5923 = vunpack.c.h.b16 %v5843
  %v5924 = vunpack.c.l.b16 %v5844
  %v5925 = vunpack.c.h.b16 %v5844
  %v5926 = vunpack.c.l.b16 %v5845
  %v5927 = vunpack.c.h.b16 %v5845
  %v5928 = vunpack.c.l.b16 %v5846
  %v5929 = vunpack.c.h.b16 %v5846
  %v5930 = vunpack.c.l.b16 %v5847
  %v5931 = vunpack.c.h.b16 %v5847
  %v5932 = vunpack.c.l.b16 %v5848
  %v5933 = vunpack.c.h.b16 %v5848
  %v5934 = vunpack.c.l.b16 %v5849
  %v5935 = vunpack.c.h.b16 %v5849
  %v5936 = vunpack.c.l.b16 %v5850
  %v5937 = vunpack.c.h.b16 %v5850
  %v5938 = vunpack.c.l.b16 %v5851
  %v5939 = vunpack.c.h.b16 %v5851
  %v5940 = vunpack.c.l.b16 %v5852
  %v5941 = vunpack.c.h.b16 %v5852
  %v5942 = vunpack.c.l.b16 %v5853
  %v5943 = vunpack.c.h.b16 %v5853
  %v5944 = vunpack.c.l.b16 %v5854
  %v5945 = vunpack.c.h.b16 %v5854
  %v5946 = vunpack.c.l.b16 %v5855
  %v5947 = vunpack.c.h.b16 %v5855
  %v5948 = vunpack.c.l.b16 %v5856
  %v5949 = vunpack.c.h.b16 %v5856
  %v5950 = vunpack.c.l.b16 %v5857
  %v5951 = vunpack.c.h.b16 %v5857
  %v5952 = vunpack.c.l.b16 %v5858
  %v5953 = vunpack.c.h.b16 %v5858
  %v5954 = vunpack.c.l.b16 %v5859
  %v5955 = vunpack.c.h.b16 %v5859
  %v5956 = vunpack.c.l.b16 %v5860
  %v5957 = vunpack.c.h.b16 %v5860
  %v5958 = vunpack.c.l.b16 %v5861
  %v5959 = vunpack.c.h.b16 %v5861
  %v5960 = vunpack.c.l.b16 %v5862
  %v5961 = vunpack.c.h.b16 %v5862
  %v5962 = vpack.c.b16 %v5902, %v5898
  %v5963 = vpack.c.b16 %v5903, %v5899
  %v5964 = vpack.c.b16 %v5904, %v5900
  %v5965 = vpack.c.b16 %v5905, %v5901
  %v5966 = vpack.c.b16 %v5910, %v5906
  %v5967 = vpack.c.b16 %v5911, %v5907
  %v5968 = vpack.c.b16 %v5912, %v5908
  %v5969 = vpack.c.b16 %v5913, %v5909
  %v5970 = vpack.c.b16 %v5918, %v5914
  %v5971 = vpack.c.b16 %v5919, %v5915
  %v5972 = vpack.c.b16 %v5920, %v5916
  %v5973 = vpack.c.b16 %v5921, %v5917
  %v5974 = vpack.c.b16 %v5926, %v5922
  %v5975 = vpack.c.b16 %v5927, %v5923
  %v5976 = vpack.c.b16 %v5928, %v5924
  %v5977 = vpack.c.b16 %v5929, %v5925
  %v5978 = vpack.c.b16 %v5934, %v5930
  %v5979 = vpack.c.b16 %v5935, %v5931
  %v5980 = vpack.c.b16 %v5936, %v5932
  %v5981 = vpack.c.b16 %v5937, %v5933
  %v5982 = vpack.c.b16 %v5942, %v5938
  %v5983 = vpack.c.b16 %v5943, %v5939
  %v5984 = vpack.c.b16 %v5944, %v5940
  %v5985 = vpack.c.b16 %v5945, %v5941
  %v5986 = vpack.c.b16 %v5950, %v5946
  %v5987 = vpack.c.b16 %v5951, %v5947
  %v5988 = vpack.c.b16 %v5952, %v5948
  %v5989 = vpack.c.b16 %v5953, %v5949
  %v5990 = vpack.c.b16 %v5958, %v5954
  %v5991 = vpack.c.b16 %v5959, %v5955
  %v5992 = vpack.c.b16 %v5960, %v5956
  %v5993 = vpack.c.b16 %v5961, %v5957
  %6026 = vmatprep.subr.bf16.mxu0 %v5963
  %6027 = vmatpush1.bf16.msra.mxu0 %v5962
  %6028 = vmatprep.subr.bf16.mxu0 %v5967
  %6029 = vmatpush1.bf16.msra.mxu0 %v5966
  %6030 = vmatprep.subr.bf16.mxu0 %v5971
  %6031 = vmatpush1.bf16.msra.mxu0 %v5970
  %6032 = vmatprep.subr.bf16.mxu0 %v5975
  %6033 = vmatpush1.bf16.msra.mxu0 %v5974
  %6034 = vmatprep.subr.bf16.mxu0 %v5979
  %6035 = vmatpush1.bf16.msra.mxu0 %v5978
  %6036 = vmatprep.subr.bf16.mxu0 %v5983
  %6037 = vmatpush1.bf16.msra.mxu0 %v5982
  %6038 = vmatprep.subr.bf16.mxu0 %v5987
  %6039 = vmatpush1.bf16.msra.mxu0 %v5986
  %6040 = vmatprep.subr.bf16.mxu0 %v5991
  %6041 = vmatpush1.bf16.msra.mxu0 %v5990
  %6042 = vmatprep.subr.bf16.mxu0 0
  %6043 = vmatpush1.bf16.msra.mxu0 0
  %6044 = vmatprep.subr.bf16.mxu0 0
  %6045 = vmatpush1.bf16.msra.mxu0 0
  %6046 = vmatprep.subr.bf16.mxu0 0
  %6047 = vmatpush1.bf16.msra.mxu0 0
  %6048 = vmatprep.subr.bf16.mxu0 0
  %6049 = vmatpush1.bf16.msra.mxu0 0
  %6050 = vmatprep.subr.bf16.mxu0 0
  %6051 = vmatpush1.bf16.msra.mxu0 0
  %6052 = vmatprep.subr.bf16.mxu0 0
  %6053 = vmatpush1.bf16.msra.mxu0 0
  %6054 = vmatprep.subr.bf16.mxu0 0
  %6055 = vmatpush1.bf16.msra.mxu0 0
  %6056 = vmatprep.subr.bf16.mxu0 0
  %6057 = vmatpush1.bf16.msra.mxu0 0
  %6058 = vmatprep.mubr.bf16.mxu0 0
  %6059 = vmatmul.mubr.bf16.gmra.mrb[0].mxu0 %v5864
  %v6060 = vpop.f32.mrb[0].mxu0
  %v6061 = vadd.f32 0.0, %v6060
  %v6062 = vpop.f32.mrb[0].mxu0
  %v6063 = vadd.f32 0.0, %v6062
  %v6064 = vpop.f32.mrb[0].mxu0
  %v6065 = vpop.f32.mrb[0].mxu0
  %6066 = vdwg.mxu0
  %6067 = vmatprep.subr.bf16.mxu0 %v5965
  %6068 = vmatpush1.bf16.msra.mxu0 %v5964
  %6069 = vmatprep.subr.bf16.mxu0 %v5969
  %6070 = vmatpush1.bf16.msra.mxu0 %v5968
  %6071 = vmatprep.subr.bf16.mxu0 %v5973
  %6072 = vmatpush1.bf16.msra.mxu0 %v5972
  %6073 = vmatprep.subr.bf16.mxu0 %v5977
  %6074 = vmatpush1.bf16.msra.mxu0 %v5976
  %6075 = vmatprep.subr.bf16.mxu0 %v5981
  %6076 = vmatpush1.bf16.msra.mxu0 %v5980
  %6077 = vmatprep.subr.bf16.mxu0 %v5985
  %6078 = vmatpush1.bf16.msra.mxu0 %v5984
  %6079 = vmatprep.subr.bf16.mxu0 %v5989
  %6080 = vmatpush1.bf16.msra.mxu0 %v5988
  %6081 = vmatprep.subr.bf16.mxu0 %v5993
  %6082 = vmatpush1.bf16.msra.mxu0 %v5992
  %6083 = vmatprep.subr.bf16.mxu0 0
  %6084 = vmatpush1.bf16.msra.mxu0 0
  %6085 = vmatprep.subr.bf16.mxu0 0
  %6086 = vmatpush1.bf16.msra.mxu0 0
  %6087 = vmatprep.subr.bf16.mxu0 0
  %6088 = vmatpush1.bf16.msra.mxu0 0
  %6089 = vmatprep.subr.bf16.mxu0 0
  %6090 = vmatpush1.bf16.msra.mxu0 0
  %6091 = vmatprep.subr.bf16.mxu0 0
  %6092 = vmatpush1.bf16.msra.mxu0 0
  %6093 = vmatprep.subr.bf16.mxu0 0
  %6094 = vmatpush1.bf16.msra.mxu0 0
  %6095 = vmatprep.subr.bf16.mxu0 0
  %6096 = vmatpush1.bf16.msra.mxu0 0
  %6097 = vmatprep.subr.bf16.mxu0 0
  %6098 = vmatpush1.bf16.msra.mxu0 0
  %6099 = vmatprep.mubr.bf16.mxu0 0
  %6100 = vmatmul.mubr.bf16.gmra.mrb[0].mxu0 %v5864
  %v6101 = vpop.f32.mrb[0].mxu0
  %v6102 = vadd.f32 0.0, %v6101
  %v6103 = vpop.f32.mrb[0].mxu0
  %v6104 = vadd.f32 0.0, %v6103
  %v6105 = vpop.f32.mrb[0].mxu0
  %v6106 = vpop.f32.mrb[0].mxu0
  %6107 = vdwg.mxu0
  %v6108 = vadd.f32 %v5827, %v6061
  %v6109 = vadd.f32 %v5828, %v6063
  %v6110 = vadd.f32 %v5829, %v6102
  %v6111 = vadd.f32 %v5830, %v6104
  %v6112 = vmax.f32 %v6108, 0.0
  %v6113 = vmax.f32 %v6109, 0.0
  %v6114 = vmax.f32 %v6110, 0.0
  %v6115 = vmax.f32 %v6111, 0.0
  %v6116 = vpack.c.bf16 %v6112, %v6112
  %v6117 = vpack.c.bf16 %v6113, %v6113
  %v6118 = vpack.c.bf16 %v6114, %v6114
  %v6119 = vpack.c.bf16 %v6115, %v6115
  %v6120 = vld [vmem:[%s14] sm:$0xff]
  %v6121 = vld [vmem:[%s14 + $0x8] sm:$0xf]
  %v6122 = vld [vmem:[%s14 + $0xc] sm:$0xff]
  %v6123 = vld [vmem:[%s14 + $0x14] sm:$0xf]
  %v6124 = vld [vmem:[%s14 + $0x18] sm:$0xff]
  %v6125 = vld [vmem:[%s14 + $0x20] sm:$0xf]
  %v6126 = vld [vmem:[%s14 + $0x24] sm:$0xff]
  %v6127 = vld [vmem:[%s14 + $0x2c] sm:$0xf]
  %v6128 = vld [vmem:[%s14 + $0x30] sm:$0xff]
  %v6129 = vld [vmem:[%s14 + $0x38] sm:$0xf]
  %v6130 = vld [vmem:[%s14 + $0x3c] sm:$0xff]
  %v6131 = vld [vmem:[%s14 + $0x44] sm:$0xf]
  %v6132 = vld [vmem:[%s14 + $0x48] sm:$0xff]
  %v6133 = vld [vmem:[%s14 + $0x50] sm:$0xf]
  %v6134 = vld [vmem:[%s14 + $0x54] sm:$0xff]
  %v6135 = vld [vmem:[%s14 + $0x5c] sm:$0xf]
  %v6136 = vld [vmem:[%s14 + $0x60] sm:$0xff]
  %v6137 = vld [vmem:[%s14 + $0x68] sm:$0xf]
  %v6138 = vld [vmem:[%s14 + $0x6c] sm:$0xff]
  %v6139 = vld [vmem:[%s14 + $0x74] sm:$0xf]
  %v6140 = vld [vmem:[%s14 + $0x78] sm:$0xff]
  %v6141 = vld [vmem:[%s14 + $0x80] sm:$0xf]
  %v6142 = vld [vmem:[%s14 + $0x84] sm:$0xff]
  %v6143 = vld [vmem:[%s14 + $0x8c] sm:$0xf]
  %v6144 = vld [vmem:[%s14 + $0x90] sm:$0xff]
  %v6145 = vld [vmem:[%s14 + $0x98] sm:$0xf]
  %v6146 = vld [vmem:[%s14 + $0x9c] sm:$0xff]
  %v6147 = vld [vmem:[%s14 + $0xa4] sm:$0xf]
  %v6148 = vld [vmem:[%s14 + $0xa8] sm:$0xff]
  %v6149 = vld [vmem:[%s14 + $0xb0] sm:$0xf]
  %v6150 = vld [vmem:[%s14 + $0xb4] sm:$0xff]
  %v6151 = vld [vmem:[%s14 + $0xbc] sm:$0xf]
  %v6152 = vld [vmem:[%s14 + $0xc0] sm:$0xff]
  %v6153 = vld [vmem:[%s14 + $0xc8] sm:$0xf]
  %v6154 = vld [vmem:[%s14 + $0xcc] sm:$0xff]
  %v6155 = vld [vmem:[%s14 + $0xd4] sm:$0xf]
  %v6156 = vld [vmem:[%s14 + $0xd8] sm:$0xff]
  %v6157 = vld [vmem:[%s14 + $0xe0] sm:$0xf]
  %v6158 = vld [vmem:[%s14 + $0xe4] sm:$0xff]
  %v6159 = vld [vmem:[%s14 + $0xec] sm:$0xf]
  %v6160 = vld [vmem:[%s14 + $0xf0] sm:$0xff]
  %v6161 = vld [vmem:[%s14 + $0xf8] sm:$0xf]
  %v6162 = vld [vmem:[%s14 + $0xfc] sm:$0xff]
  %v6163 = vld [vmem:[%s14 + $0x104] sm:$0xf]
  %v6164 = vld [vmem:[%s14 + $0x108] sm:$0xff]
  %v6165 = vld [vmem:[%s14 + $0x110] sm:$0xf]
  %v6166 = vld [vmem:[%s14 + $0x114] sm:$0xff]
  %v6167 = vld [vmem:[%s14 + $0x11c] sm:$0xf]
  %v6168 = vld [vmem:[%s14 + $0x120] sm:$0xff]
  %v6169 = vld [vmem:[%s14 + $0x128] sm:$0xf]
  %v6170 = vld [vmem:[%s14 + $0x12c] sm:$0xff]
  %v6171 = vld [vmem:[%s14 + $0x134] sm:$0xf]
  %v6172 = vld [vmem:[%s14 + $0x138] sm:$0xff]
  %v6173 = vld [vmem:[%s14 + $0x140] sm:$0xf]
  %v6174 = vld [vmem:[%s14 + $0x144] sm:$0xff]
  %v6175 = vld [vmem:[%s14 + $0x14c] sm:$0xf]
  %v6176 = vld [vmem:[%s14 + $0x150] sm:$0xff]
  %v6177 = vld [vmem:[%s14 + $0x158] sm:$0xf]
  %v6178 = vld [vmem:[%s14 + $0x15c] sm:$0xff]
  %v6179 = vld [vmem:[%s14 + $0x164] sm:$0xf]
  %v6180 = vld [vmem:[%s14 + $0x168] sm:$0xff]
  %v6181 = vld [vmem:[%s14 + $0x170] sm:$0xf]
  %v6182 = vld [vmem:[%s14 + $0x174] sm:$0xff]
  %v6183 = vld [vmem:[%s14 + $0x17c] sm:$0xf]
  %v6184 = vld [vmem:[%s14 + $0x180] sm:$0xff]
  %v6185 = vld [vmem:[%s14 + $0x188] sm:$0xf]
  %v6186 = vld [vmem:[%s14 + $0x18c] sm:$0xff]
  %v6187 = vld [vmem:[%s14 + $0x194] sm:$0xf]
  %v6188 = vld [vmem:[%s14 + $0x198] sm:$0xff]
  %v6189 = vld [vmem:[%s14 + $0x1a0] sm:$0xf]
  %v6190 = vld [vmem:[%s14 + $0x1a4] sm:$0xff]
  %v6191 = vld [vmem:[%s14 + $0x1ac] sm:$0xf]
  %v6192 = vld [vmem:[%s14 + $0x1b0] sm:$0xff]
  %v6193 = vld [vmem:[%s14 + $0x1b8] sm:$0xf]
  %v6194 = vld [vmem:[%s14 + $0x1bc] sm:$0xff]
  %v6195 = vld [vmem:[%s14 + $0x1c4] sm:$0xf]
  %v6196 = vld [vmem:[%s14 + $0x1c8] sm:$0xff]
  %v6197 = vld [vmem:[%s14 + $0x1d0] sm:$0xf]
  %v6198 = vld [vmem:[%s14 + $0x1d4] sm:$0xff]
  %v6199 = vld [vmem:[%s14 + $0x1dc] sm:$0xf]
  %v6200 = vld [vmem:[%s14 + $0x1e0] sm:$0xff]
  %v6201 = vld [vmem:[%s14 + $0x1e8] sm:$0xf]
  %v6202 = vld [vmem:[%s14 + $0x1ec] sm:$0xff]
  %v6203 = vld [vmem:[%s14 + $0x1f4] sm:$0xf]
  %v6204 = vld [vmem:[%s14 + $0x1f8] sm:$0xff]
  %v6205 = vld [vmem:[%s14 + $0x200] sm:$0xf]
  %v6206 = vld [vmem:[%s14 + $0x204] sm:$0xff]
  %v6207 = vld [vmem:[%s14 + $0x20c] sm:$0xf]
  %v6208 = vld [vmem:[%s14 + $0x210] sm:$0xff]
  %v6209 = vld [vmem:[%s14 + $0x218] sm:$0xf]
  %v6210 = vld [vmem:[%s14 + $0x21c] sm:$0xff]
  %v6211 = vld [vmem:[%s14 + $0x224] sm:$0xf]
  %v6212 = vld [vmem:[%s14 + $0x228] sm:$0xff]
  %v6213 = vld [vmem:[%s14 + $0x230] sm:$0xf]
  %v6214 = vld [vmem:[%s14 + $0x234] sm:$0xff]
  %v6215 = vld [vmem:[%s14 + $0x23c] sm:$0xf]
  %v6216 = vld [vmem:[%s14 + $0x240] sm:$0xff]
  %v6217 = vld [vmem:[%s14 + $0x248] sm:$0xf]
  %v6218 = vld [vmem:[%s14 + $0x24c] sm:$0xff]
  %v6219 = vld [vmem:[%s14 + $0x254] sm:$0xf]
  %v6220 = vld [vmem:[%s15] sm:$0x7]
  %v6222 = vlaneseq
  %v6223 = vshrl.u32 %v6222, 7
  %v6224 = vsub.s32 0, %v6223
  %v6225 = vrot.slane %v6220, %v6224
  %v6226 = vlaneseq
  %v6227 = vshrl.u32 %v6226, 7
  %v6228 = vsub.s32 1, %v6227
  %v6229 = vrot.slane %v6220, %v6228
  %v6230 = vlaneseq
  %v6231 = vshrl.u32 %v6230, 7
  %v6232 = vsub.s32 2, %v6231
  %v6233 = vrot.slane %v6220, %v6232
  %v6337 = vunpack.c.l.b16 %v6120
  %v6338 = vunpack.c.h.b16 %v6120
  %v6339 = vunpack.c.l.b16 %v6121
  %v6340 = vunpack.c.l.b16 %v6122
  %v6341 = vunpack.c.h.b16 %v6122
  %v6342 = vunpack.c.l.b16 %v6123
  %v6343 = vunpack.c.l.b16 %v6124
  %v6344 = vunpack.c.h.b16 %v6124
  %v6345 = vunpack.c.l.b16 %v6125
  %v6346 = vunpack.c.l.b16 %v6126
  %v6347 = vunpack.c.h.b16 %v6126
  %v6348 = vunpack.c.l.b16 %v6127
  %v6349 = vunpack.c.l.b16 %v6128
  %v6350 = vunpack.c.h.b16 %v6128
  %v6351 = vunpack.c.l.b16 %v6129
  %v6352 = vunpack.c.l.b16 %v6130
  %v6353 = vunpack.c.h.b16 %v6130
  %v6354 = vunpack.c.l.b16 %v6131
  %v6355 = vunpack.c.l.b16 %v6132
  %v6356 = vunpack.c.h.b16 %v6132
  %v6357 = vunpack.c.l.b16 %v6133
  %v6358 = vunpack.c.l.b16 %v6134
  %v6359 = vunpack.c.h.b16 %v6134
  %v6360 = vunpack.c.l.b16 %v6135
  %v6361 = vunpack.c.l.b16 %v6136
  %v6362 = vunpack.c.h.b16 %v6136
  %v6363 = vunpack.c.l.b16 %v6137
  %v6364 = vunpack.c.l.b16 %v6138
  %v6365 = vunpack.c.h.b16 %v6138
  %v6366 = vunpack.c.l.b16 %v6139
  %v6367 = vunpack.c.l.b16 %v6140
  %v6368 = vunpack.c.h.b16 %v6140
  %v6369 = vunpack.c.l.b16 %v6141
  %v6370 = vunpack.c.l.b16 %v6142
  %v6371 = vunpack.c.h.b16 %v6142
  %v6372 = vunpack.c.l.b16 %v6143
  %v6373 = vunpack.c.l.b16 %v6144
  %v6374 = vunpack.c.h.b16 %v6144
  %v6375 = vunpack.c.l.b16 %v6145
  %v6376 = vunpack.c.l.b16 %v6146
  %v6377 = vunpack.c.h.b16 %v6146
  %v6378 = vunpack.c.l.b16 %v6147
  %v6379 = vunpack.c.l.b16 %v6148
  %v6380 = vunpack.c.h.b16 %v6148
  %v6381 = vunpack.c.l.b16 %v6149
  %v6382 = vunpack.c.l.b16 %v6150
  %v6383 = vunpack.c.h.b16 %v6150
  %v6384 = vunpack.c.l.b16 %v6151
  %v6385 = vunpack.c.l.b16 %v6152
  %v6386 = vunpack.c.h.b16 %v6152
  %v6387 = vunpack.c.l.b16 %v6153
  %v6388 = vunpack.c.l.b16 %v6154
  %v6389 = vunpack.c.h.b16 %v6154
  %v6390 = vunpack.c.l.b16 %v6155
  %v6391 = vunpack.c.l.b16 %v6156
  %v6392 = vunpack.c.h.b16 %v6156
  %v6393 = vunpack.c.l.b16 %v6157
  %v6394 = vunpack.c.l.b16 %v6158
  %v6395 = vunpack.c.h.b16 %v6158
  %v6396 = vunpack.c.l.b16 %v6159
  %v6397 = vunpack.c.l.b16 %v6160
  %v6398 = vunpack.c.h.b16 %v6160
  %v6399 = vunpack.c.l.b16 %v6161
  %v6400 = vunpack.c.l.b16 %v6162
  %v6401 = vunpack.c.h.b16 %v6162
  %v6402 = vunpack.c.l.b16 %v6163
  %v6403 = vunpack.c.l.b16 %v6164
  %v6404 = vunpack.c.h.b16 %v6164
  %v6405 = vunpack.c.l.b16 %v6165
  %v6406 = vunpack.c.l.b16 %v6166
  %v6407 = vunpack.c.h.b16 %v6166
  %v6408 = vunpack.c.l.b16 %v6167
  %v6409 = vunpack.c.l.b16 %v6168
  %v6410 = vunpack.c.h.b16 %v6168
  %v6411 = vunpack.c.l.b16 %v6169
  %v6412 = vunpack.c.l.b16 %v6170
  %v6413 = vunpack.c.h.b16 %v6170
  %v6414 = vunpack.c.l.b16 %v6171
  %v6415 = vunpack.c.l.b16 %v6172
  %v6416 = vunpack.c.h.b16 %v6172
  %v6417 = vunpack.c.l.b16 %v6173
  %v6418 = vunpack.c.l.b16 %v6174
  %v6419 = vunpack.c.h.b16 %v6174
  %v6420 = vunpack.c.l.b16 %v6175
  %v6421 = vunpack.c.l.b16 %v6176
  %v6422 = vunpack.c.h.b16 %v6176
  %v6423 = vunpack.c.l.b16 %v6177
  %v6424 = vunpack.c.l.b16 %v6178
  %v6425 = vunpack.c.h.b16 %v6178
  %v6426 = vunpack.c.l.b16 %v6179
  %v6427 = vunpack.c.l.b16 %v6180
  %v6428 = vunpack.c.h.b16 %v6180
  %v6429 = vunpack.c.l.b16 %v6181
  %v6430 = vunpack.c.l.b16 %v6182
  %v6431 = vunpack.c.h.b16 %v6182
  %v6432 = vunpack.c.l.b16 %v6183
  %v6433 = vunpack.c.l.b16 %v6184
  %v6434 = vunpack.c.h.b16 %v6184
  %v6435 = vunpack.c.l.b16 %v6185
  %v6436 = vunpack.c.l.b16 %v6186
  %v6437 = vunpack.c.h.b16 %v6186
  %v6438 = vunpack.c.l.b16 %v6187
  %v6439 = vunpack.c.l.b16 %v6188
  %v6440 = vunpack.c.h.b16 %v6188
  %v6441 = vunpack.c.l.b16 %v6189
  %v6442 = vunpack.c.l.b16 %v6190
  %v6443 = vunpack.c.h.b16 %v6190
  %v6444 = vunpack.c.l.b16 %v6191
  %v6445 = vunpack.c.l.b16 %v6192
  %v6446 = vunpack.c.h.b16 %v6192
  %v6447 = vunpack.c.l.b16 %v6193
  %v6448 = vunpack.c.l.b16 %v6194
  %v6449 = vunpack.c.h.b16 %v6194
  %v6450 = vunpack.c.l.b16 %v6195
  %v6451 = vunpack.c.l.b16 %v6196
  %v6452 = vunpack.c.h.b16 %v6196
  %v6453 = vunpack.c.l.b16 %v6197
  %v6454 = vunpack.c.l.b16 %v6198
  %v6455 = vunpack.c.h.b16 %v6198
  %v6456 = vunpack.c.l.b16 %v6199
  %v6457 = vunpack.c.l.b16 %v6200
  %v6458 = vunpack.c.h.b16 %v6200
  %v6459 = vunpack.c.l.b16 %v6201
  %v6460 = vunpack.c.l.b16 %v6202
  %v6461 = vunpack.c.h.b16 %v6202
  %v6462 = vunpack.c.l.b16 %v6203
  %v6463 = vunpack.c.l.b16 %v6204
  %v6464 = vunpack.c.h.b16 %v6204
  %v6465 = vunpack.c.l.b16 %v6205
  %v6466 = vunpack.c.l.b16 %v6206
  %v6467 = vunpack.c.h.b16 %v6206
  %v6468 = vunpack.c.l.b16 %v6207
  %v6469 = vunpack.c.l.b16 %v6208
  %v6470 = vunpack.c.h.b16 %v6208
  %v6471 = vunpack.c.l.b16 %v6209
  %v6472 = vunpack.c.l.b16 %v6210
  %v6473 = vunpack.c.h.b16 %v6210
  %v6474 = vunpack.c.l.b16 %v6211
  %v6475 = vunpack.c.l.b16 %v6212
  %v6476 = vunpack.c.h.b16 %v6212
  %v6477 = vunpack.c.l.b16 %v6213
  %v6478 = vunpack.c.l.b16 %v6214
  %v6479 = vunpack.c.h.b16 %v6214
  %v6480 = vunpack.c.l.b16 %v6215
  %v6481 = vunpack.c.l.b16 %v6216
  %v6482 = vunpack.c.h.b16 %v6216
  %v6483 = vunpack.c.l.b16 %v6217
  %v6484 = vunpack.c.l.b16 %v6218
  %v6485 = vunpack.c.h.b16 %v6218
  %v6486 = vunpack.c.l.b16 %v6219
  %v6487 = vpack.c.b16 %v6340, %v6337
  %v6488 = vpack.c.b16 %v6341, %v6338
  %v6489 = vpack.c.b16 %v6342, %v6339
  %v6490 = vpack.c.b16 %v6346, %v6343
  %v6491 = vpack.c.b16 %v6347, %v6344
  %v6492 = vpack.c.b16 %v6348, %v6345
  %v6493 = vpack.c.b16 %v6352, %v6349
  %v6494 = vpack.c.b16 %v6353, %v6350
  %v6495 = vpack.c.b16 %v6354, %v6351
  %v6496 = vpack.c.b16 %v6358, %v6355
  %v6497 = vpack.c.b16 %v6359, %v6356
  %v6498 = vpack.c.b16 %v6360, %v6357
  %v6499 = vpack.c.b16 %v6364, %v6361
  %v6500 = vpack.c.b16 %v6365, %v6362
  %v6501 = vpack.c.b16 %v6366, %v6363
  %v6502 = vpack.c.b16 %v6370, %v6367
  %v6503 = vpack.c.b16 %v6371, %v6368
  %v6504 = vpack.c.b16 %v6372, %v6369
  %v6505 = vpack.c.b16 %v6376, %v6373
  %v6506 = vpack.c.b16 %v6377, %v6374
  %v6507 = vpack.c.b16 %v6378, %v6375
  %v6508 = vpack.c.b16 %v6382, %v6379
  %v6509 = vpack.c.b16 %v6383, %v6380
  %v6510 = vpack.c.b16 %v6384, %v6381
  %v6511 = vpack.c.b16 %v6388, %v6385
  %v6512 = vpack.c.b16 %v6389, %v6386
  %v6513 = vpack.c.b16 %v6390, %v6387
  %v6514 = vpack.c.b16 %v6394, %v6391
  %v6515 = vpack.c.b16 %v6395, %v6392
  %v6516 = vpack.c.b16 %v6396, %v6393
  %v6517 = vpack.c.b16 %v6400, %v6397
  %v6518 = vpack.c.b16 %v6401, %v6398
  %v6519 = vpack.c.b16 %v6402, %v6399
  %v6520 = vpack.c.b16 %v6406, %v6403
  %v6521 = vpack.c.b16 %v6407, %v6404
  %v6522 = vpack.c.b16 %v6408, %v6405
  %v6523 = vpack.c.b16 %v6412, %v6409
  %v6524 = vpack.c.b16 %v6413, %v6410
  %v6525 = vpack.c.b16 %v6414, %v6411
  %v6526 = vpack.c.b16 %v6418, %v6415
  %v6527 = vpack.c.b16 %v6419, %v6416
  %v6528 = vpack.c.b16 %v6420, %v6417
  %v6529 = vpack.c.b16 %v6424, %v6421
  %v6530 = vpack.c.b16 %v6425, %v6422
  %v6531 = vpack.c.b16 %v6426, %v6423
  %v6532 = vpack.c.b16 %v6430, %v6427
  %v6533 = vpack.c.b16 %v6431, %v6428
  %v6534 = vpack.c.b16 %v6432, %v6429
  %v6535 = vpack.c.b16 %v6436, %v6433
  %v6536 = vpack.c.b16 %v6437, %v6434
  %v6537 = vpack.c.b16 %v6438, %v6435
  %v6538 = vpack.c.b16 %v6442, %v6439
  %v6539 = vpack.c.b16 %v6443, %v6440
  %v6540 = vpack.c.b16 %v6444, %v6441
  %v6541 = vpack.c.b16 %v6448, %v6445
  %v6542 = vpack.c.b16 %v6449, %v6446
  %v6543 = vpack.c.b16 %v6450, %v6447
  %v6544 = vpack.c.b16 %v6454, %v6451
  %v6545 = vpack.c.b16 %v6455, %v6452
  %v6546 = vpack.c.b16 %v6456, %v6453
  %v6547 = vpack.c.b16 %v6460, %v6457
  %v6548 = vpack.c.b16 %v6461, %v6458
  %v6549 = vpack.c.b16 %v6462, %v6459
  %v6550 = vpack.c.b16 %v6466, %v6463
  %v6551 = vpack.c.b16 %v6467, %v6464
  %v6552 = vpack.c.b16 %v6468, %v6465
  %v6553 = vpack.c.b16 %v6472, %v6469
  %v6554 = vpack.c.b16 %v6473, %v6470
  %v6555 = vpack.c.b16 %v6474, %v6471
  %v6556 = vpack.c.b16 %v6478, %v6475
  %v6557 = vpack.c.b16 %v6479, %v6476
  %v6558 = vpack.c.b16 %v6480, %v6477
  %v6559 = vpack.c.b16 %v6484, %v6481
  %v6560 = vpack.c.b16 %v6485, %v6482
  %v6561 = vpack.c.b16 %v6486, %v6483
  %vm6637 = vcmask 130048
  %v6639 = vsel %vm6637, %v6119, 0
  %6641 = vmatprep.subr.bf16.mxu0 %v6488
  %6642 = vmatpush1.bf16.msra.mxu0 %v6487
  %6643 = vmatprep.subr.bf16.mxu0 %v6491
  %6644 = vmatpush1.bf16.msra.mxu0 %v6490
  %6645 = vmatprep.subr.bf16.mxu0 %v6494
  %6646 = vmatpush1.bf16.msra.mxu0 %v6493
  %6647 = vmatprep.subr.bf16.mxu0 %v6497
  %6648 = vmatpush1.bf16.msra.mxu0 %v6496
  %6649 = vmatprep.subr.bf16.mxu0 %v6500
  %6650 = vmatpush1.bf16.msra.mxu0 %v6499
  %6651 = vmatprep.subr.bf16.mxu0 %v6503
  %6652 = vmatpush1.bf16.msra.mxu0 %v6502
  %6653 = vmatprep.subr.bf16.mxu0 %v6506
  %6654 = vmatpush1.bf16.msra.mxu0 %v6505
  %6655 = vmatprep.subr.bf16.mxu0 %v6509
  %6656 = vmatpush1.bf16.msra.mxu0 %v6508
  %6657 = vmatprep.subr.bf16.mxu0 %v6512
  %6658 = vmatpush1.bf16.msra.mxu0 %v6511
  %6659 = vmatprep.subr.bf16.mxu0 %v6515
  %6660 = vmatpush1.bf16.msra.mxu0 %v6514
  %6661 = vmatprep.subr.bf16.mxu0 %v6518
  %6662 = vmatpush1.bf16.msra.mxu0 %v6517
  %6663 = vmatprep.subr.bf16.mxu0 %v6521
  %6664 = vmatpush1.bf16.msra.mxu0 %v6520
  %6665 = vmatprep.subr.bf16.mxu0 %v6524
  %6666 = vmatpush1.bf16.msra.mxu0 %v6523
  %6667 = vmatprep.subr.bf16.mxu0 %v6527
  %6668 = vmatpush1.bf16.msra.mxu0 %v6526
  %6669 = vmatprep.subr.bf16.mxu0 %v6530
  %6670 = vmatpush1.bf16.msra.mxu0 %v6529
  %6671 = vmatprep.subr.bf16.mxu0 %v6533
  %6672 = vmatpush1.bf16.msra.mxu0 %v6532
  %6673 = vmatprep.mubr.bf16.mxu0 %v6117
  %6674 = vmatmul.mubr.bf16.gmra.mrb[0].mxu0 %v6116
  %v6675 = vpop.f32.mrb[0].mxu0
  %v6676 = vadd.f32 %v6225, %v6675
  %v6677 = vpop.f32.mrb[0].mxu0
  %v6678 = vadd.f32 %v6229, %v6677
  %v6679 = vpop.f32.mrb[0].mxu0
  %v6680 = vpop.f32.mrb[0].mxu0
  %6681 = vdwg.mxu0
  %6682 = vmatprep.subr.bf16.mxu0 %v6536
  %6683 = vmatpush1.bf16.msra.mxu0 %v6535
  %6684 = vmatprep.subr.bf16.mxu0 %v6539
  %6685 = vmatpush1.bf16.msra.mxu0 %v6538
  %6686 = vmatprep.subr.bf16.mxu0 %v6542
  %6687 = vmatpush1.bf16.msra.mxu0 %v6541
  %6688 = vmatprep.subr.bf16.mxu0 %v6545
  %6689 = vmatpush1.bf16.msra.mxu0 %v6544
  %6690 = vmatprep.subr.bf16.mxu0 %v6548
  %6691 = vmatpush1.bf16.msra.mxu0 %v6547
  %6692 = vmatprep.subr.bf16.mxu0 %v6551
  %6693 = vmatpush1.bf16.msra.mxu0 %v6550
  %6694 = vmatprep.subr.bf16.mxu0 %v6554
  %6695 = vmatpush1.bf16.msra.mxu0 %v6553
  %6696 = vmatprep.subr.bf16.mxu0 %v6557
  %6697 = vmatpush1.bf16.msra.mxu0 %v6556
  %6698 = vmatprep.subr.bf16.mxu0 %v6560
  %6699 = vmatpush1.bf16.msra.mxu0 %v6559
  %6700 = vmatprep.subr.bf16.mxu0 0
  %6701 = vmatpush1.bf16.msra.mxu0 0
  %6702 = vmatprep.subr.bf16.mxu0 0
  %6703 = vmatpush1.bf16.msra.mxu0 0
  %6704 = vmatprep.subr.bf16.mxu0 0
  %6705 = vmatpush1.bf16.msra.mxu0 0
  %6706 = vmatprep.subr.bf16.mxu0 0
  %6707 = vmatpush1.bf16.msra.mxu0 0
  %6708 = vmatprep.subr.bf16.mxu0 0
  %6709 = vmatpush1.bf16.msra.mxu0 0
  %6710 = vmatprep.subr.bf16.mxu0 0
  %6711 = vmatpush1.bf16.msra.mxu0 0
  %6712 = vmatprep.subr.bf16.mxu0 0
  %6713 = vmatpush1.bf16.msra.mxu0 0
  %6714 = vmatprep.mubr.bf16.mxu0 %v6639
  %6715 = vmatmul.mubr.bf16.gmra.mrb[0].mxu0 %v6118
  %v6716 = vpop.f32.mrb[0].mxu0
  %v6717 = vadd.f32 %v6676, %v6716
  %v6718 = vpop.f32.mrb[0].mxu0
  %v6719 = vadd.f32 %v6678, %v6718
  %v6720 = vpop.f32.mrb[0].mxu0
  %v6721 = vpop.f32.mrb[0].mxu0
  %6722 = vdwg.mxu0
  %6723 = vmatprep.subr.bf16.mxu0 0
  %6724 = vmatpush1.bf16.msra.mxu0 %v6489
  %6725 = vmatprep.subr.bf16.mxu0 0
  %6726 = vmatpush1.bf16.msra.mxu0 %v6492
  %6727 = vmatprep.subr.bf16.mxu0 0
  %6728 = vmatpush1.bf16.msra.mxu0 %v6495
  %6729 = vmatprep.subr.bf16.mxu0 0
  %6730 = vmatpush1.bf16.msra.mxu0 %v6498
  %6731 = vmatprep.subr.bf16.mxu0 0
  %6732 = vmatpush1.bf16.msra.mxu0 %v6501
  %6733 = vmatprep.subr.bf16.mxu0 0
  %6734 = vmatpush1.bf16.msra.mxu0 %v6504
  %6735 = vmatprep.subr.bf16.mxu0 0
  %6736 = vmatpush1.bf16.msra.mxu0 %v6507
  %6737 = vmatprep.subr.bf16.mxu0 0
  %6738 = vmatpush1.bf16.msra.mxu0 %v6510
  %6739 = vmatprep.subr.bf16.mxu0 0
  %6740 = vmatpush1.bf16.msra.mxu0 %v6513
  %6741 = vmatprep.subr.bf16.mxu0 0
  %6742 = vmatpush1.bf16.msra.mxu0 %v6516
  %6743 = vmatprep.subr.bf16.mxu0 0
  %6744 = vmatpush1.bf16.msra.mxu0 %v6519
  %6745 = vmatprep.subr.bf16.mxu0 0
  %6746 = vmatpush1.bf16.msra.mxu0 %v6522
  %6747 = vmatprep.subr.bf16.mxu0 0
  %6748 = vmatpush1.bf16.msra.mxu0 %v6525
  %6749 = vmatprep.subr.bf16.mxu0 0
  %6750 = vmatpush1.bf16.msra.mxu0 %v6528
  %6751 = vmatprep.subr.bf16.mxu0 0
  %6752 = vmatpush1.bf16.msra.mxu0 %v6531
  %6753 = vmatprep.subr.bf16.mxu0 0
  %6754 = vmatpush1.bf16.msra.mxu0 %v6534
  %6755 = vmatprep.mubr.bf16.mxu0 %v6117
  %6756 = vmatmul.mubr.bf16.gmra.mrb[0].mxu0 %v6116
  %v6757 = vpop.f32.mrb[0].mxu0
  %v6758 = vadd.f32 %v6233, %v6757
  %v6759 = vpop.f32.mrb[0].mxu0
  %v6760 = vpop.f32.mrb[0].mxu0
  %v6761 = vpop.f32.mrb[0].mxu0
  %6762 = vdwg.mxu0
  %6763 = vmatprep.subr.bf16.mxu0 0
  %6764 = vmatpush1.bf16.msra.mxu0 %v6537
  %6765 = vmatprep.subr.bf16.mxu0 0
  %6766 = vmatpush1.bf16.msra.mxu0 %v6540
  %6767 = vmatprep.subr.bf16.mxu0 0
  %6768 = vmatpush1.bf16.msra.mxu0 %v6543
  %6769 = vmatprep.subr.bf16.mxu0 0
  %6770 = vmatpush1.bf16.msra.mxu0 %v6546
  %6771 = vmatprep.subr.bf16.mxu0 0
  %6772 = vmatpush1.bf16.msra.mxu0 %v6549
  %6773 = vmatprep.subr.bf16.mxu0 0
  %6774 = vmatpush1.bf16.msra.mxu0 %v6552
  %6775 = vmatprep.subr.bf16.mxu0 0
  %6776 = vmatpush1.bf16.msra.mxu0 %v6555
  %6777 = vmatprep.subr.bf16.mxu0 0
  %6778 = vmatpush1.bf16.msra.mxu0 %v6558
  %6779 = vmatprep.subr.bf16.mxu0 0
  %6780 = vmatpush1.bf16.msra.mxu0 %v6561
  %6781 = vmatprep.subr.bf16.mxu0 0
  %6782 = vmatpush1.bf16.msra.mxu0 0
  %6783 = vmatprep.subr.bf16.mxu0 0
  %6784 = vmatpush1.bf16.msra.mxu0 0
  %6785 = vmatprep.subr.bf16.mxu0 0
  %6786 = vmatpush1.bf16.msra.mxu0 0
  %6787 = vmatprep.subr.bf16.mxu0 0
  %6788 = vmatpush1.bf16.msra.mxu0 0
  %6789 = vmatprep.subr.bf16.mxu0 0
  %6790 = vmatpush1.bf16.msra.mxu0 0
  %6791 = vmatprep.subr.bf16.mxu0 0
  %6792 = vmatpush1.bf16.msra.mxu0 0
  %6793 = vmatprep.subr.bf16.mxu0 0
  %6794 = vmatpush1.bf16.msra.mxu0 0
  %6795 = vmatprep.mubr.bf16.mxu0 %v6639
  %6796 = vmatmul.mubr.bf16.gmra.mrb[0].mxu0 %v6118
  %v6797 = vpop.f32.mrb[0].mxu0
  %v6798 = vadd.f32 %v6758, %v6797
  %v6799 = vpop.f32.mrb[0].mxu0
  %v6800 = vpop.f32.mrb[0].mxu0
  %v6801 = vpop.f32.mrb[0].mxu0
  %6802 = vdwg.mxu0
  %v6803 = vmax.f32 %v6717, 0.0
  %v6804 = vmax.f32 %v6719, 0.0
  %v6805 = vmax.f32 %v6798, 0.0
  %v6806 = vpack.c.bf16 %v6803, %v6803
  %v6807 = vpack.c.bf16 %v6804, %v6804
  %v6808 = vpack.c.bf16 %v6805, %v6805
  %v6809 = vld [vmem:[%s16] sm:$0xf]
  %v6810 = vld [vmem:[%s16 + $0x4] sm:$0xf]
  %v6811 = vld [vmem:[%s16 + $0x8] sm:$0xf]
  %v6812 = vld [vmem:[%s16 + $0xc] sm:$0xf]
  %v6813 = vld [vmem:[%s16 + $0x10] sm:$0xf]
  %v6814 = vld [vmem:[%s16 + $0x14] sm:$0xf]
  %v6815 = vld [vmem:[%s16 + $0x18] sm:$0xf]
  %v6816 = vld [vmem:[%s16 + $0x1c] sm:$0xf]
  %v6817 = vld [vmem:[%s16 + $0x20] sm:$0xf]
  %v6818 = vld [vmem:[%s16 + $0x24] sm:$0xf]
  %v6819 = vld [vmem:[%s16 + $0x28] sm:$0xf]
  %v6820 = vld [vmem:[%s16 + $0x2c] sm:$0xf]
  %v6821 = vld [vmem:[%s16 + $0x30] sm:$0xf]
  %v6822 = vld [vmem:[%s16 + $0x34] sm:$0xf]
  %v6823 = vld [vmem:[%s16 + $0x38] sm:$0xf]
  %v6824 = vld [vmem:[%s16 + $0x3c] sm:$0xf]
  %v6825 = vld [vmem:[%s16 + $0x40] sm:$0xf]
  %v6826 = vld [vmem:[%s16 + $0x44] sm:$0xf]
  %v6827 = vld [vmem:[%s16 + $0x48] sm:$0xf]
  %v6828 = vld [vmem:[%s16 + $0x4c] sm:$0xf]
  %v6829 = vld [vmem:[%s16 + $0x50] sm:$0xf]
  %v6830 = vld [vmem:[%s16 + $0x54] sm:$0xf]
  %v6831 = vld [vmem:[%s16 + $0x58] sm:$0xf]
  %v6832 = vld [vmem:[%s16 + $0x5c] sm:$0xf]
  %v6833 = vld [vmem:[%s16 + $0x60] sm:$0xf]
  %v6834 = vld [vmem:[%s16 + $0x64] sm:$0xf]
  %v6835 = vld [vmem:[%s16 + $0x68] sm:$0xf]
  %v6836 = vld [vmem:[%s16 + $0x6c] sm:$0xf]
  %v6837 = vld [vmem:[%s16 + $0x70] sm:$0xf]
  %v6838 = vld [vmem:[%s16 + $0x74] sm:$0xf]
  %v6839 = vld [vmem:[%s16 + $0x78] sm:$0xf]
  %v6840 = vld [vmem:[%s16 + $0x7c] sm:$0xf]
  %v6841 = vld [vmem:[%s16 + $0x80] sm:$0xf]
  %v6842 = vld [vmem:[%s16 + $0x84] sm:$0xf]
  %v6843 = vld [vmem:[%s16 + $0x88] sm:$0xf]
  %v6844 = vld [vmem:[%s16 + $0x8c] sm:$0xf]
  %v6845 = vld [vmem:[%s16 + $0x90] sm:$0xf]
  %v6846 = vld [vmem:[%s16 + $0x94] sm:$0x3]
  %v6847 = vld [vmem:[#allocation2] sm:$0x1]
  %v6849 = vlaneseq
  %v6850 = vshrl.u32 %v6849, 7
  %v6851 = vsub.s32 0, %v6850
  %v6852 = vrot.slane %v6847, %v6851
  %v6892 = vunpack.c.l.b16 %v6809
  %v6893 = vunpack.c.l.b16 %v6810
  %v6894 = vunpack.c.l.b16 %v6811
  %v6895 = vunpack.c.l.b16 %v6812
  %v6896 = vunpack.c.l.b16 %v6813
  %v6897 = vunpack.c.l.b16 %v6814
  %v6898 = vunpack.c.l.b16 %v6815
  %v6899 = vunpack.c.l.b16 %v6816
  %v6900 = vunpack.c.l.b16 %v6817
  %v6901 = vunpack.c.l.b16 %v6818
  %v6902 = vunpack.c.l.b16 %v6819
  %v6903 = vunpack.c.l.b16 %v6820
  %v6904 = vunpack.c.l.b16 %v6821
  %v6905 = vunpack.c.l.b16 %v6822
  %v6906 = vunpack.c.l.b16 %v6823
  %v6907 = vunpack.c.l.b16 %v6824
  %v6908 = vunpack.c.l.b16 %v6825
  %v6909 = vunpack.c.l.b16 %v6826
  %v6910 = vunpack.c.l.b16 %v6827
  %v6911 = vunpack.c.l.b16 %v6828
  %v6912 = vunpack.c.l.b16 %v6829
  %v6913 = vunpack.c.l.b16 %v6830
  %v6914 = vunpack.c.l.b16 %v6831
  %v6915 = vunpack.c.l.b16 %v6832
  %v6916 = vunpack.c.l.b16 %v6833
  %v6917 = vunpack.c.l.b16 %v6834
  %v6918 = vunpack.c.l.b16 %v6835
  %v6919 = vunpack.c.l.b16 %v6836
  %v6920 = vunpack.c.l.b16 %v6837
  %v6921 = vunpack.c.l.b16 %v6838
  %v6922 = vunpack.c.l.b16 %v6839
  %v6923 = vunpack.c.l.b16 %v6840
  %v6924 = vunpack.c.l.b16 %v6841
  %v6925 = vunpack.c.l.b16 %v6842
  %v6926 = vunpack.c.l.b16 %v6843
  %v6927 = vunpack.c.l.b16 %v6844
  %v6928 = vunpack.c.l.b16 %v6845
  %v6929 = vunpack.c.l.b16 %v6846
  %v6930 = vpack.c.b16 %v6893, %v6892
  %v6931 = vpack.c.b16 %v6895, %v6894
  %v6932 = vpack.c.b16 %v6897, %v6896
  %v6933 = vpack.c.b16 %v6899, %v6898
  %v6934 = vpack.c.b16 %v6901, %v6900
  %v6935 = vpack.c.b16 %v6903, %v6902
  %v6936 = vpack.c.b16 %v6905, %v6904
  %v6937 = vpack.c.b16 %v6907, %v6906
  %v6938 = vpack.c.b16 %v6909, %v6908
  %v6939 = vpack.c.b16 %v6911, %v6910
  %v6940 = vpack.c.b16 %v6913, %v6912
  %v6941 = vpack.c.b16 %v6915, %v6914
  %v6942 = vpack.c.b16 %v6917, %v6916
  %v6943 = vpack.c.b16 %v6919, %v6918
  %v6944 = vpack.c.b16 %v6921, %v6920
  %v6945 = vpack.c.b16 %v6923, %v6922
  %v6946 = vpack.c.b16 %v6925, %v6924
  %v6947 = vpack.c.b16 %v6927, %v6926
  %v6948 = vpack.c.b16 %v6929, %v6928
  %vm6967 = vcmask 359424
  %v6969 = vsel %vm6967, %v6808, 0
  %vm6971 = vcmask 1045504
  %v6973 = vsel %vm6971, %v6948, 0
  %6975 = vmatprep.subr.bf16.mxu0 0
  %6976 = vmatpush1.bf16.msra.mxu0 %v6930
  %6977 = vmatprep.subr.bf16.mxu0 0
  %6978 = vmatpush1.bf16.msra.mxu0 %v6931
  %6979 = vmatprep.subr.bf16.mxu0 0
  %6980 = vmatpush1.bf16.msra.mxu0 %v6932
  %6981 = vmatprep.subr.bf16.mxu0 0
  %6982 = vmatpush1.bf16.msra.mxu0 %v6933
  %6983 = vmatprep.subr.bf16.mxu0 0
  %6984 = vmatpush1.bf16.msra.mxu0 %v6934
  %6985 = vmatprep.subr.bf16.mxu0 0
  %6986 = vmatpush1.bf16.msra.mxu0 %v6935
  %6987 = vmatprep.subr.bf16.mxu0 0
  %6988 = vmatpush1.bf16.msra.mxu0 %v6936
  %6989 = vmatprep.subr.bf16.mxu0 0
  %6990 = vmatpush1.bf16.msra.mxu0 %v6937
  %6991 = vmatprep.subr.bf16.mxu0 0
  %6992 = vmatpush1.bf16.msra.mxu0 %v6938
  %6993 = vmatprep.subr.bf16.mxu0 0
  %6994 = vmatpush1.bf16.msra.mxu0 %v6939
  %6995 = vmatprep.subr.bf16.mxu0 0
  %6996 = vmatpush1.bf16.msra.mxu0 %v6940
  %6997 = vmatprep.subr.bf16.mxu0 0
  %6998 = vmatpush1.bf16.msra.mxu0 %v6941
  %6999 = vmatprep.subr.bf16.mxu0 0
  %7000 = vmatpush1.bf16.msra.mxu0 %v6942
  %7001 = vmatprep.subr.bf16.mxu0 0
  %7002 = vmatpush1.bf16.msra.mxu0 %v6943
  %7003 = vmatprep.subr.bf16.mxu0 0
  %7004 = vmatpush1.bf16.msra.mxu0 %v6944
  %7005 = vmatprep.subr.bf16.mxu0 0
  %7006 = vmatpush1.bf16.msra.mxu0 %v6945
  %7007 = vmatprep.mubr.bf16.mxu0 %v6807
  %7008 = vmatmul.mubr.bf16.gmra.mrb[0].mxu0 %v6806
  %v7009 = vpop.f32.mrb[0].mxu0
  %v7010 = vadd.f32 %v6852, %v7009
  %v7011 = vpop.f32.mrb[0].mxu0
  %v7012 = vpop.f32.mrb[0].mxu0
  %v7013 = vpop.f32.mrb[0].mxu0
  %7014 = vdwg.mxu0
  %7015 = vmatprep.subr.bf16.mxu0 0
  %7016 = vmatpush1.bf16.msra.mxu0 %v6946
  %7017 = vmatprep.subr.bf16.mxu0 0
  %7018 = vmatpush1.bf16.msra.mxu0 %v6947
  %7019 = vmatprep.subr.bf16.mxu0 0
  %7020 = vmatpush1.bf16.msra.mxu0 %v6973
  %7021 = vmatprep.subr.bf16.mxu0 0
  %7022 = vmatpush1.bf16.msra.mxu0 0
  %7023 = vmatprep.subr.bf16.mxu0 0
  %7024 = vmatpush1.bf16.msra.mxu0 0
  %7025 = vmatprep.subr.bf16.mxu0 0
  %7026 = vmatpush1.bf16.msra.mxu0 0
  %7027 = vmatprep.subr.bf16.mxu0 0
  %7028 = vmatpush1.bf16.msra.mxu0 0
  %7029 = vmatprep.subr.bf16.mxu0 0
  %7030 = vmatpush1.bf16.msra.mxu0 0
  %7031 = vmatprep.subr.bf16.mxu0 0
  %7032 = vmatpush1.bf16.msra.mxu0 0
  %7033 = vmatprep.subr.bf16.mxu0 0
  %7034 = vmatpush1.bf16.msra.mxu0 0
  %7035 = vmatprep.subr.bf16.mxu0 0
  %7036 = vmatpush1.bf16.msra.mxu0 0
  %7037 = vmatprep.subr.bf16.mxu0 0
  %7038 = vmatpush1.bf16.msra.mxu0 0
  %7039 = vmatprep.subr.bf16.mxu0 0
  %7040 = vmatpush1.bf16.msra.mxu0 0
  %7041 = vmatprep.subr.bf16.mxu0 0
  %7042 = vmatpush1.bf16.msra.mxu0 0
  %7043 = vmatprep.subr.bf16.mxu0 0
  %7044 = vmatpush1.bf16.msra.mxu0 0
  %7045 = vmatprep.subr.bf16.mxu0 0
  %7046 = vmatpush1.bf16.msra.mxu0 0
  %7047 = vmatprep.mubr.bf16.mxu0 0
  %7048 = vmatmul.mubr.bf16.gmra.mrb[0].mxu0 %v6969
  %v7049 = vpop.f32.mrb[0].mxu0
  %v7050 = vadd.f32 %v7010, %v7049
  %v7051 = vpop.f32.mrb[0].mxu0
  %v7052 = vpop.f32.mrb[0].mxu0
  %v7053 = vpop.f32.mrb[0].mxu0
  %7054 = vdwg.mxu0
  %vm7055 = vcmask 1024
  %7056 = vst.msk [vmem:[%s18] sm:$0x3] %vm7055, %v7050
  // Predicated region
  $region74: #{critic_forward.1} parent=0 // pred_check
    _
  $region75: #{critic_forward.1} parent=0 // pred_check_branch
    %7058 = sbr.rel (0) target = $region77
  $region76: #{critic_forward.1} parent=0 // pred_region
    _
  $region77: #{critic_forward.1} parent=0 // pred_fallthru
    _
  // Predicated region
  $region78: #{critic_forward.1} parent=0 // pred_check
    _
  $region79: #{critic_forward.1} parent=0 // pred_check_branch
    %7060 = sbr.rel (0) target = $region81
  $region80: #{critic_forward.1} parent=0 // pred_region
    _
  $region81: #{critic_forward.1} parent=0 // pred_fallthru
    _

</llo_original>
